<compile_context>
chip_gen: v5e
topology: v5e:2x2
jax: 0.10.0
libtpu: 0.0.40
codegen_flags: <defaults>
</compile_context>

<pallas_src>
import functools

import jax
import jax.numpy as jnp
from jax.experimental import pallas as pl
from jax.experimental.pallas import tpu as pltpu

KERNEL_SIZES = (5, 9, 13)
N_GROUPS = len(KERNEL_SIZES) + 1


def spp_kernel(x_ref, w1_ref, b1_ref, w2_ref, b2_ref, col_ref, o_ref, *, img_w):
    # x_ref  : (1, HW, Cin) f32       w1_ref: (Cin, C1)      bf16    b1_ref: (1, C1)  f32
    # w2_ref : (4, C1, C2p) bf16      b2_ref: (1, C2p)       f32     col_ref: (HW, 1) int32
    # o_ref  : (1, HW, C2p) f32
    hw = x_ref.shape[1]
    neg = jnp.float32(-jnp.inf)

    # ---- conv1 (1x1 conv + folded BN) + SiLU: bf16 MXU inputs, f32 accumulate/elementwise
    x = x_ref[0].astype(jnp.bfloat16)                               # (HW, Cin)
    y = jnp.dot(x, w1_ref[...], preferred_element_type=jnp.float32) + b1_ref[0]
    y = y * jax.nn.sigmoid(y)                                       # (HW, C1) f32

    # ---- one 5x5 / stride-1 / pad-2 max pool as masked sublane rolls on (HW, C) data ----
    # Shifts act on the flattened row axis (axis 0):
    #   distance 1, 2   -> W-direction neighbours (must stay inside the same image row)
    #   distance W, 2W  -> H-direction neighbours (column preserved automatically)
    rows = jax.lax.broadcasted_iota(jnp.int32, (hw, 1), 0)
    cols = col_ref[...]                                             # row position % W

    def neighbour_taps(dist, same_row):
        taps = []
        for shift in (dist % hw, (hw - dist) % hw):   # both directions; direction-agnostic
            r_rows = pltpu.roll(rows, shift, 0)
            delta = r_rows - rows
            ok = (delta == dist) | (delta == -dist)   # excludes whole-array wrap-around
            if same_row:
                r_cols = pltpu.roll(cols, shift, 0)
                ok = jnp.logical_and(ok, (r_cols - cols) == delta)  # excludes row crossings
            bias = jnp.where(ok, jnp.float32(0.0), neg)             # (HW, 1) additive mask
            taps.append((shift, bias))
        return taps

    w_taps = neighbour_taps(1, True) + neighbour_taps(2, True)
    h_taps = neighbour_taps(img_w, False) + neighbour_taps(2 * img_w, False)

    def pool5(v):
        # Separable 5x5 max: W pass, then H pass on the row-pooled result.
        t = v
        for shift, bias in w_taps:
            t = jnp.maximum(t, pltpu.roll(v, shift, 0) + bias)
        out = t
        for shift, bias in h_taps:
            out = jnp.maximum(out, pltpu.roll(t, shift, 0) + bias)
        return out

    # ---- conv2 (1x1 conv + folded BN) streamed over the four concat groups -------------
    # z = [y, pool5, pool9, pool13] @ W2, accumulated one group at a time so the concat is
    # never materialised and MXU work overlaps the pooling of the next stage.
    z = jnp.dot(y.astype(jnp.bfloat16), w2_ref[0],
                preferred_element_type=jnp.float32)                 # (HW, C2p) f32
    p = y
    for g in range(1, N_GROUPS):
        p = pool5(p)                     # chained 5x5 pools == MaxPool 5 / 9 / 13 (SPPF)
        z = z + jnp.dot(p.astype(jnp.bfloat16), w2_ref[g],
                        preferred_element_type=jnp.float32)

    z = z + b2_ref[0]
    z = z * jax.nn.sigmoid(z)
    o_ref[0] = z.astype(o_ref.dtype)


def spp_bottleneck(x_nchw, w1t, b1, w2t, b2):
    """x_nchw: (N, Cin, H, W) f32; w1t: (Cin, C1); w2t: (4*C1, C2). Returns (N, C2, H, W)."""
    N, Cin, H, W = x_nchw.shape
    assert H > 4 and W > 4, "SPP pooling kernel assumes spatial dims > 4"
    C1 = w1t.shape[1]
    Ccat = N_GROUPS * C1
    C2 = w2t.shape[1]
    assert w2t.shape[0] == Ccat
    HW = H * W
    C2p = ((C2 + 127) // 128) * 128      # lane-dense output stores (no-op if C2 % 128 == 0)

    # NCHW -> flattened NHWC.  In an NHWC end-to-end model these transposes (and the
    # inverse below) disappear; they are kept here only to match the PyTorch interface.
    x_flat = jnp.transpose(x_nchw, (0, 2, 3, 1)).reshape(N, HW, Cin)

    w1_bf = w1t.astype(jnp.bfloat16)
    w2_bf = (jnp.pad(w2t, ((0, 0), (0, C2p - C2)))
             .astype(jnp.bfloat16)
             .reshape(N_GROUPS, C1, C2p))                 # group-split for streamed conv2
    b1_2d = b1.reshape(1, C1).astype(jnp.float32)
    b2_2d = jnp.pad(b2.astype(jnp.float32), (0, C2p - C2)).reshape(1, C2p)
    col_ids = (jnp.arange(HW, dtype=jnp.int32) % W).reshape(HW, 1)

    # VMEM budget: double-buffered x / out blocks + weights + live feature-map temporaries
    # (y, current pool, z accumulator, bf16 staging) + small iota / edge-mask vectors.
    work_bytes = (4 * HW * (2 * Cin + 3 * C2p + 6 * C1)
                  + 2 * (Cin * C1 + Ccat * C2p)
                  + 4 * HW * 12)
    vmem_limit = int(min(64 * 1024 * 1024, max(32 * 1024 * 1024, 4 * work_bytes)))

    cost = pl.CostEstimate(
        flops=2 * N * HW * (Cin * C1 + Ccat * C2p) + 48 * N * HW * C1,
        transcendentals=N * HW * (C1 + C2p),
        bytes_accessed=4 * N * HW * (Cin + C2p) + 2 * (Cin * C1 + Ccat * C2p) + 4 * HW,
    )

    out = pl.pallas_call(
        functools.partial(spp_kernel, img_w=W),
        out_shape=jax.ShapeDtypeStruct((N, HW, C2p), jnp.float32),
        grid_spec=pltpu.PrefetchScalarGridSpec(
            num_scalar_prefetch=0,
            grid=(N,),
            in_specs=[
                pl.BlockSpec((1, HW, Cin), lambda n: (n, 0, 0)),        # x (per image)
                pl.BlockSpec((Cin, C1), lambda n: (0, 0)),              # conv1 weight (bf16)
                pl.BlockSpec((1, C1), lambda n: (0, 0)),                # conv1 bias (f32)
                pl.BlockSpec((N_GROUPS, C1, C2p), lambda n: (0, 0, 0)),  # conv2 weight (bf16)
                pl.BlockSpec((1, C2p), lambda n: (0, 0)),               # conv2 bias (f32)
                pl.BlockSpec((HW, 1), lambda n: (0, 0)),                # column ids (int32)
            ],
            out_specs=pl.BlockSpec((1, HW, C2p), lambda n: (n, 0, 0)),
        ),
        compiler_params=pltpu.CompilerParams(
            dimension_semantics=("parallel",),
            vmem_limit_bytes=vmem_limit),
        cost_estimate=cost,
    )(x_flat, w1_bf, b1_2d, w2_bf, b2_2d, col_ids)

    out = out[:, :, :C2].reshape(N, H, W, C2)
    return jnp.transpose(out, (0, 3, 1, 2))


def _fold_bn(w_oi, gamma, beta, mean, var, eps=1e-3):
    """Fold BatchNorm into a 1x1 conv (YOLOX BaseConv uses BN eps=1e-3).
    w_oi: (Cout, Cin). Returns (Cin, Cout) weight + (Cout,) bias."""
    scale = gamma / jnp.sqrt(var + eps)
    w_eff = (w_oi * scale[:, None]).T          # (Cin, Cout)
    b_eff = beta - mean * scale
    return w_eff, b_eff


def _ref_forward(x_nchw, w1t, b1, w2t, b2):
    """Pure-JAX reference (independent max-pool impl, original 5/9/13 kernels)."""
    x = jnp.transpose(x_nchw, (0, 2, 3, 1))
    y = jnp.einsum('nhwc,cd->nhwd', x.astype(jnp.bfloat16), w1t.astype(jnp.bfloat16),
                   preferred_element_type=jnp.float32) + b1
    y = y * jax.nn.sigmoid(y)
    feats = [y]
    for k in KERNEL_SIZES:
        feats.append(jax.lax.reduce_window(
            y, -jnp.inf, jax.lax.max, (1, k, k, 1), (1, 1, 1, 1), 'SAME'))
    cat = jnp.concatenate(feats, axis=-1)
    z = jnp.einsum('nhwc,cd->nhwd', cat.astype(jnp.bfloat16), w2t.astype(jnp.bfloat16),
                   preferred_element_type=jnp.float32) + b2
    z = z * jax.nn.sigmoid(z)
    return jnp.transpose(z, (0, 3, 1, 2))


if __name__ == "__main__":
    # Small shapes consistent with the module's forward.
    N, Cin, H, W = 2, 4, 16, 16
    C1, C2 = 8, 8
    Ccat = C1 * N_GROUPS

    key = jax.random.PRNGKey(0)
    ks = jax.random.split(key, 11)

    x = jax.random.normal(ks[0], (N, Cin, H, W), dtype=jnp.float32)

    # conv1: Conv2d(Cin, C1, 1, bias=False) + BatchNorm2d(C1)
    w1 = jax.random.normal(ks[1], (C1, Cin), dtype=jnp.float32) * 0.3
    g1 = jax.random.uniform(ks[2], (C1,), minval=0.5, maxval=1.5)
    be1 = jax.random.normal(ks[3], (C1,)) * 0.1
    mu1 = jax.random.normal(ks[4], (C1,)) * 0.1
    var1 = jax.random.uniform(ks[5], (C1,), minval=0.5, maxval=1.5)
    w1t, b1 = _fold_bn(w1, g1, be1, mu1, var1)

    # conv2: Conv2d(4*C1, C2, 1, bias=False) + BatchNorm2d(C2)
    w2 = jax.random.normal(ks[6], (C2, Ccat), dtype=jnp.float32) * 0.2
    g2 = jax.random.uniform(ks[7], (C2,), minval=0.5, maxval=1.5)
    be2 = jax.random.normal(ks[8], (C2,)) * 0.1
    mu2 = jax.random.normal(ks[9], (C2,)) * 0.1
    var2 = jax.random.uniform(ks[10], (C2,), minval=0.5, maxval=1.5)
    w2t, b2 = _fold_bn(w2, g2, be2, mu2, var2)

    out = jax.block_until_ready(spp_bottleneck(x, w1t, b1, w2t, b2))
    ref = jax.block_until_ready(_ref_forward(x, w1t, b1, w2t, b2))

    assert out.shape == (N, C2, H, W)
    assert jnp.allclose(out, ref, atol=2e-3, rtol=2e-3), "mismatch vs reference"

    print("KERNEL_OK")
</pallas_src>

<mosaic_0001>
module attributes {stable_mosaic.version = 11 : i64} {
  func.func @spp_kernel(%arg0: i32, %arg1: memref<1x256x4xf32, #tpu.memory_space<vmem>>, %arg2: memref<4x8xbf16, #tpu.memory_space<vmem>>, %arg3: memref<1x8xf32, #tpu.memory_space<vmem>>, %arg4: memref<4x8x128xbf16, #tpu.memory_space<vmem>>, %arg5: memref<1x128xf32, #tpu.memory_space<vmem>>, %arg6: memref<256x1xi32, #tpu.memory_space<vmem>>, %arg7: memref<1x256x128xf32, #tpu.memory_space<vmem>>) attributes {dimension_semantics = [#tpu.dimension_semantics<parallel>], iteration_bounds = array<i64: 2>, scalar_prefetch = 0 : i64, scratch_operands = 0 : i64, tpu.core_type = #tpu.core_type<tc>, window_params = [{transform_indices = @transform_0, window_bounds = array<i64: 1, 256, 4>}, {pipeline_mode = #tpu.pipeline_mode<synchronous>, transform_indices = @transform_1, window_bounds = array<i64: 4, 8>}, {pipeline_mode = #tpu.pipeline_mode<synchronous>, transform_indices = @transform_2, window_bounds = array<i64: 1, 8>}, {pipeline_mode = #tpu.pipeline_mode<synchronous>, transform_indices = @transform_3, window_bounds = array<i64: 4, 8, 128>}, {pipeline_mode = #tpu.pipeline_mode<synchronous>, transform_indices = @transform_4, window_bounds = array<i64: 1, 128>}, {pipeline_mode = #tpu.pipeline_mode<synchronous>, transform_indices = @transform_5, window_bounds = array<i64: 256, 1>}, {transform_indices = @transform_6, window_bounds = array<i64: 1, 256, 128>}]} {
    %c0 = arith.constant 0 : index
    %c0_0 = arith.constant 0 : index
    %c0_1 = arith.constant 0 : index
    %0 = vector.load %arg1[%c0, %c0_0, %c0_1] : memref<1x256x4xf32, #tpu.memory_space<vmem>>, vector<1x256x4xf32>
    %1 = vector.shape_cast %0 : vector<1x256x4xf32> to vector<256x4xf32>
    %2 = arith.truncf %1 : vector<256x4xf32> to vector<256x4xbf16>
    %c0_2 = arith.constant 0 : index
    %c0_3 = arith.constant 0 : index
    %3 = vector.load %arg2[%c0_2, %c0_3] : memref<4x8xbf16, #tpu.memory_space<vmem>>, vector<4x8xbf16>
    %cst = arith.constant dense<0.000000e+00> : vector<256x8xf32>
    %4 = tpu.matmul %2, %3, %cst {dimension_numbers = #tpu.dot_dimension_numbers<[1], [0], [0], [1], [0, 0, 1, 1], [], []>} : vector<256x4xbf16>, vector<4x8xbf16>, vector<256x8xf32> -> vector<256x8xf32>
    %c0_4 = arith.constant 0 : index
    %c0_5 = arith.constant 0 : index
    %5 = vector.load %arg3[%c0_4, %c0_5] : memref<1x8xf32, #tpu.memory_space<vmem>>, vector<1x8xf32>
    %6 = vector.shape_cast %5 : vector<1x8xf32> to vector<8xf32>
    %7 = vector.shape_cast %6 : vector<8xf32> to vector<1x8xf32>
    %8 = vector.broadcast %7 : vector<1x8xf32> to vector<256x8xf32>
    %9 = arith.addf %4, %8 : vector<256x8xf32>
    %10 = arith.negf %9 : vector<256x8xf32>
    %11 = math.exp %10 : vector<256x8xf32>
    %cst_6 = arith.constant 1.000000e+00 : f32
    %12 = vector.broadcast %cst_6 : f32 to vector<256x8xf32>
    %13 = arith.addf %12, %11 : vector<256x8xf32>
    %14 = arith.divf %12, %13 : vector<256x8xf32>
    %15 = arith.mulf %9, %14 : vector<256x8xf32>
    %16 = tpu.iota {dimensions = array<i32: 0>} : vector<256x1xi32>
    %c0_7 = arith.constant 0 : index
    %c0_8 = arith.constant 0 : index
    %17 = vector.load %arg6[%c0_7, %c0_8] : memref<256x1xi32, #tpu.memory_space<vmem>>, vector<256x1xi32>
    %c1_i32 = arith.constant 1 : i32
    %18 = tpu.dynamic_rotate %16 by %c1_i32 dim 0 : vector<256x1xi32>, i32 -> vector<256x1xi32>
    %19 = arith.subi %18, %16 : vector<256x1xi32>
    %c1_i32_9 = arith.constant 1 : i32
    %20 = vector.broadcast %c1_i32_9 : i32 to vector<256x1xi32>
    %21 = arith.cmpi eq, %19, %20 : vector<256x1xi32>
    %c-1_i32 = arith.constant -1 : i32
    %22 = vector.broadcast %c-1_i32 : i32 to vector<256x1xi32>
    %23 = arith.cmpi eq, %19, %22 : vector<256x1xi32>
    %24 = arith.ori %21, %23 : vector<256x1xi1>
    %c1_i32_10 = arith.constant 1 : i32
    %25 = tpu.dynamic_rotate %17 by %c1_i32_10 dim 0 : vector<256x1xi32>, i32 -> vector<256x1xi32>
    %26 = arith.subi %25, %17 : vector<256x1xi32>
    %27 = arith.cmpi eq, %26, %19 : vector<256x1xi32>
    %28 = arith.andi %24, %27 : vector<256x1xi1>
    %cst_11 = arith.constant 0.000000e+00 : f32
    %cst_12 = arith.constant 0xFF800000 : f32
    %29 = vector.broadcast %cst_11 : f32 to vector<256x1xf32>
    %30 = vector.broadcast %cst_12 : f32 to vector<256x1xf32>
    %31 = arith.select %28, %29, %30 : vector<256x1xi1>, vector<256x1xf32>
    %c255_i32 = arith.constant 255 : i32
    %32 = tpu.dynamic_rotate %16 by %c255_i32 dim 0 : vector<256x1xi32>, i32 -> vector<256x1xi32>
    %33 = arith.subi %32, %16 : vector<256x1xi32>
    %c1_i32_13 = arith.constant 1 : i32
    %34 = vector.broadcast %c1_i32_13 : i32 to vector<256x1xi32>
    %35 = arith.cmpi eq, %33, %34 : vector<256x1xi32>
    %c-1_i32_14 = arith.constant -1 : i32
    %36 = vector.broadcast %c-1_i32_14 : i32 to vector<256x1xi32>
    %37 = arith.cmpi eq, %33, %36 : vector<256x1xi32>
    %38 = arith.ori %35, %37 : vector<256x1xi1>
    %c255_i32_15 = arith.constant 255 : i32
    %39 = tpu.dynamic_rotate %17 by %c255_i32_15 dim 0 : vector<256x1xi32>, i32 -> vector<256x1xi32>
    %40 = arith.subi %39, %17 : vector<256x1xi32>
    %41 = arith.cmpi eq, %40, %33 : vector<256x1xi32>
    %42 = arith.andi %38, %41 : vector<256x1xi1>
    %cst_16 = arith.constant 0.000000e+00 : f32
    %cst_17 = arith.constant 0xFF800000 : f32
    %43 = vector.broadcast %cst_16 : f32 to vector<256x1xf32>
    %44 = vector.broadcast %cst_17 : f32 to vector<256x1xf32>
    %45 = arith.select %42, %43, %44 : vector<256x1xi1>, vector<256x1xf32>
    %c2_i32 = arith.constant 2 : i32
    %46 = tpu.dynamic_rotate %16 by %c2_i32 dim 0 : vector<256x1xi32>, i32 -> vector<256x1xi32>
    %47 = arith.subi %46, %16 : vector<256x1xi32>
    %c2_i32_18 = arith.constant 2 : i32
    %48 = vector.broadcast %c2_i32_18 : i32 to vector<256x1xi32>
    %49 = arith.cmpi eq, %47, %48 : vector<256x1xi32>
    %c-2_i32 = arith.constant -2 : i32
    %50 = vector.broadcast %c-2_i32 : i32 to vector<256x1xi32>
    %51 = arith.cmpi eq, %47, %50 : vector<256x1xi32>
    %52 = arith.ori %49, %51 : vector<256x1xi1>
    %c2_i32_19 = arith.constant 2 : i32
    %53 = tpu.dynamic_rotate %17 by %c2_i32_19 dim 0 : vector<256x1xi32>, i32 -> vector<256x1xi32>
    %54 = arith.subi %53, %17 : vector<256x1xi32>
    %55 = arith.cmpi eq, %54, %47 : vector<256x1xi32>
    %56 = arith.andi %52, %55 : vector<256x1xi1>
    %cst_20 = arith.constant 0.000000e+00 : f32
    %cst_21 = arith.constant 0xFF800000 : f32
    %57 = vector.broadcast %cst_20 : f32 to vector<256x1xf32>
    %58 = vector.broadcast %cst_21 : f32 to vector<256x1xf32>
    %59 = arith.select %56, %57, %58 : vector<256x1xi1>, vector<256x1xf32>
    %c254_i32 = arith.constant 254 : i32
    %60 = tpu.dynamic_rotate %16 by %c254_i32 dim 0 : vector<256x1xi32>, i32 -> vector<256x1xi32>
    %61 = arith.subi %60, %16 : vector<256x1xi32>
    %c2_i32_22 = arith.constant 2 : i32
    %62 = vector.broadcast %c2_i32_22 : i32 to vector<256x1xi32>
    %63 = arith.cmpi eq, %61, %62 : vector<256x1xi32>
    %c-2_i32_23 = arith.constant -2 : i32
    %64 = vector.broadcast %c-2_i32_23 : i32 to vector<256x1xi32>
    %65 = arith.cmpi eq, %61, %64 : vector<256x1xi32>
    %66 = arith.ori %63, %65 : vector<256x1xi1>
    %c254_i32_24 = arith.constant 254 : i32
    %67 = tpu.dynamic_rotate %17 by %c254_i32_24 dim 0 : vector<256x1xi32>, i32 -> vector<256x1xi32>
    %68 = arith.subi %67, %17 : vector<256x1xi32>
    %69 = arith.cmpi eq, %68, %61 : vector<256x1xi32>
    %70 = arith.andi %66, %69 : vector<256x1xi1>
    %cst_25 = arith.constant 0.000000e+00 : f32
    %cst_26 = arith.constant 0xFF800000 : f32
    %71 = vector.broadcast %cst_25 : f32 to vector<256x1xf32>
    %72 = vector.broadcast %cst_26 : f32 to vector<256x1xf32>
    %73 = arith.select %70, %71, %72 : vector<256x1xi1>, vector<256x1xf32>
    %c16_i32 = arith.constant 16 : i32
    %74 = tpu.dynamic_rotate %16 by %c16_i32 dim 0 : vector<256x1xi32>, i32 -> vector<256x1xi32>
    %75 = arith.subi %74, %16 : vector<256x1xi32>
    %c16_i32_27 = arith.constant 16 : i32
    %76 = vector.broadcast %c16_i32_27 : i32 to vector<256x1xi32>
    %77 = arith.cmpi eq, %75, %76 : vector<256x1xi32>
    %c-16_i32 = arith.constant -16 : i32
    %78 = vector.broadcast %c-16_i32 : i32 to vector<256x1xi32>
    %79 = arith.cmpi eq, %75, %78 : vector<256x1xi32>
    %80 = arith.ori %77, %79 : vector<256x1xi1>
    %cst_28 = arith.constant 0.000000e+00 : f32
    %cst_29 = arith.constant 0xFF800000 : f32
    %81 = vector.broadcast %cst_28 : f32 to vector<256x1xf32>
    %82 = vector.broadcast %cst_29 : f32 to vector<256x1xf32>
    %83 = arith.select %80, %81, %82 : vector<256x1xi1>, vector<256x1xf32>
    %c240_i32 = arith.constant 240 : i32
    %84 = tpu.dynamic_rotate %16 by %c240_i32 dim 0 : vector<256x1xi32>, i32 -> vector<256x1xi32>
    %85 = arith.subi %84, %16 : vector<256x1xi32>
    %c16_i32_30 = arith.constant 16 : i32
    %86 = vector.broadcast %c16_i32_30 : i32 to vector<256x1xi32>
    %87 = arith.cmpi eq, %85, %86 : vector<256x1xi32>
    %c-16_i32_31 = arith.constant -16 : i32
    %88 = vector.broadcast %c-16_i32_31 : i32 to vector<256x1xi32>
    %89 = arith.cmpi eq, %85, %88 : vector<256x1xi32>
    %90 = arith.ori %87, %89 : vector<256x1xi1>
    %cst_32 = arith.constant 0.000000e+00 : f32
    %cst_33 = arith.constant 0xFF800000 : f32
    %91 = vector.broadcast %cst_32 : f32 to vector<256x1xf32>
    %92 = vector.broadcast %cst_33 : f32 to vector<256x1xf32>
    %93 = arith.select %90, %91, %92 : vector<256x1xi1>, vector<256x1xf32>
    %c32_i32 = arith.constant 32 : i32
    %94 = tpu.dynamic_rotate %16 by %c32_i32 dim 0 : vector<256x1xi32>, i32 -> vector<256x1xi32>
    %95 = arith.subi %94, %16 : vector<256x1xi32>
    %c32_i32_34 = arith.constant 32 : i32
    %96 = vector.broadcast %c32_i32_34 : i32 to vector<256x1xi32>
    %97 = arith.cmpi eq, %95, %96 : vector<256x1xi32>
    %c-32_i32 = arith.constant -32 : i32
    %98 = vector.broadcast %c-32_i32 : i32 to vector<256x1xi32>
    %99 = arith.cmpi eq, %95, %98 : vector<256x1xi32>
    %100 = arith.ori %97, %99 : vector<256x1xi1>
    %cst_35 = arith.constant 0.000000e+00 : f32
    %cst_36 = arith.constant 0xFF800000 : f32
    %101 = vector.broadcast %cst_35 : f32 to vector<256x1xf32>
    %102 = vector.broadcast %cst_36 : f32 to vector<256x1xf32>
    %103 = arith.select %100, %101, %102 : vector<256x1xi1>, vector<256x1xf32>
    %c224_i32 = arith.constant 224 : i32
    %104 = tpu.dynamic_rotate %16 by %c224_i32 dim 0 : vector<256x1xi32>, i32 -> vector<256x1xi32>
    %105 = arith.subi %104, %16 : vector<256x1xi32>
    %c32_i32_37 = arith.constant 32 : i32
    %106 = vector.broadcast %c32_i32_37 : i32 to vector<256x1xi32>
    %107 = arith.cmpi eq, %105, %106 : vector<256x1xi32>
    %c-32_i32_38 = arith.constant -32 : i32
    %108 = vector.broadcast %c-32_i32_38 : i32 to vector<256x1xi32>
    %109 = arith.cmpi eq, %105, %108 : vector<256x1xi32>
    %110 = arith.ori %107, %109 : vector<256x1xi1>
    %cst_39 = arith.constant 0.000000e+00 : f32
    %cst_40 = arith.constant 0xFF800000 : f32
    %111 = vector.broadcast %cst_39 : f32 to vector<256x1xf32>
    %112 = vector.broadcast %cst_40 : f32 to vector<256x1xf32>
    %113 = arith.select %110, %111, %112 : vector<256x1xi1>, vector<256x1xf32>
    %114 = arith.truncf %15 : vector<256x8xf32> to vector<256x8xbf16>
    %c0_41 = arith.constant 0 : index
    %c0_42 = arith.constant 0 : index
    %c0_43 = arith.constant 0 : index
    %115 = vector.load %arg4[%c0_41, %c0_42, %c0_43] : memref<4x8x128xbf16, #tpu.memory_space<vmem>>, vector<1x8x128xbf16>
    %116 = vector.shape_cast %115 : vector<1x8x128xbf16> to vector<8x128xbf16>
    %cst_44 = arith.constant dense<0.000000e+00> : vector<256x128xf32>
    %117 = tpu.matmul %114, %116, %cst_44 {dimension_numbers = #tpu.dot_dimension_numbers<[1], [0], [0], [1], [0, 0, 1, 1], [], []>} : vector<256x8xbf16>, vector<8x128xbf16>, vector<256x128xf32> -> vector<256x128xf32>
    %c1_i32_45 = arith.constant 1 : i32
    %118 = tpu.dynamic_rotate %15 by %c1_i32_45 dim 0 : vector<256x8xf32>, i32 -> vector<256x8xf32>
    %119 = vector.broadcast %31 : vector<256x1xf32> to vector<256x8xf32>
    %120 = arith.addf %118, %119 : vector<256x8xf32>
    %121 = arith.maximumf %15, %120 : vector<256x8xf32>
    %c255_i32_46 = arith.constant 255 : i32
    %122 = tpu.dynamic_rotate %15 by %c255_i32_46 dim 0 : vector<256x8xf32>, i32 -> vector<256x8xf32>
    %123 = vector.broadcast %45 : vector<256x1xf32> to vector<256x8xf32>
    %124 = arith.addf %122, %123 : vector<256x8xf32>
    %125 = arith.maximumf %121, %124 : vector<256x8xf32>
    %c2_i32_47 = arith.constant 2 : i32
    %126 = tpu.dynamic_rotate %15 by %c2_i32_47 dim 0 : vector<256x8xf32>, i32 -> vector<256x8xf32>
    %127 = vector.broadcast %59 : vector<256x1xf32> to vector<256x8xf32>
    %128 = arith.addf %126, %127 : vector<256x8xf32>
    %129 = arith.maximumf %125, %128 : vector<256x8xf32>
    %c254_i32_48 = arith.constant 254 : i32
    %130 = tpu.dynamic_rotate %15 by %c254_i32_48 dim 0 : vector<256x8xf32>, i32 -> vector<256x8xf32>
    %131 = vector.broadcast %73 : vector<256x1xf32> to vector<256x8xf32>
    %132 = arith.addf %130, %131 : vector<256x8xf32>
    %133 = arith.maximumf %129, %132 : vector<256x8xf32>
    %c16_i32_49 = arith.constant 16 : i32
    %134 = tpu.dynamic_rotate %133 by %c16_i32_49 dim 0 : vector<256x8xf32>, i32 -> vector<256x8xf32>
    %135 = vector.broadcast %83 : vector<256x1xf32> to vector<256x8xf32>
    %136 = arith.addf %134, %135 : vector<256x8xf32>
    %137 = arith.maximumf %133, %136 : vector<256x8xf32>
    %c240_i32_50 = arith.constant 240 : i32
    %138 = tpu.dynamic_rotate %133 by %c240_i32_50 dim 0 : vector<256x8xf32>, i32 -> vector<256x8xf32>
    %139 = vector.broadcast %93 : vector<256x1xf32> to vector<256x8xf32>
    %140 = arith.addf %138, %139 : vector<256x8xf32>
    %141 = arith.maximumf %137, %140 : vector<256x8xf32>
    %c32_i32_51 = arith.constant 32 : i32
    %142 = tpu.dynamic_rotate %133 by %c32_i32_51 dim 0 : vector<256x8xf32>, i32 -> vector<256x8xf32>
    %143 = vector.broadcast %103 : vector<256x1xf32> to vector<256x8xf32>
    %144 = arith.addf %142, %143 : vector<256x8xf32>
    %145 = arith.maximumf %141, %144 : vector<256x8xf32>
    %c224_i32_52 = arith.constant 224 : i32
    %146 = tpu.dynamic_rotate %133 by %c224_i32_52 dim 0 : vector<256x8xf32>, i32 -> vector<256x8xf32>
    %147 = vector.broadcast %113 : vector<256x1xf32> to vector<256x8xf32>
    %148 = arith.addf %146, %147 : vector<256x8xf32>
    %149 = arith.maximumf %145, %148 : vector<256x8xf32>
    %150 = arith.truncf %149 : vector<256x8xf32> to vector<256x8xbf16>
    %c1 = arith.constant 1 : index
    %c0_53 = arith.constant 0 : index
    %c0_54 = arith.constant 0 : index
    %151 = vector.load %arg4[%c1, %c0_53, %c0_54] : memref<4x8x128xbf16, #tpu.memory_space<vmem>>, vector<1x8x128xbf16>
    %152 = vector.shape_cast %151 : vector<1x8x128xbf16> to vector<8x128xbf16>
    %cst_55 = arith.constant dense<0.000000e+00> : vector<256x128xf32>
    %153 = tpu.matmul %150, %152, %cst_55 {dimension_numbers = #tpu.dot_dimension_numbers<[1], [0], [0], [1], [0, 0, 1, 1], [], []>} : vector<256x8xbf16>, vector<8x128xbf16>, vector<256x128xf32> -> vector<256x128xf32>
    %154 = arith.addf %117, %153 : vector<256x128xf32>
    %c1_i32_56 = arith.constant 1 : i32
    %155 = tpu.dynamic_rotate %149 by %c1_i32_56 dim 0 : vector<256x8xf32>, i32 -> vector<256x8xf32>
    %156 = vector.broadcast %31 : vector<256x1xf32> to vector<256x8xf32>
    %157 = arith.addf %155, %156 : vector<256x8xf32>
    %158 = arith.maximumf %149, %157 : vector<256x8xf32>
    %c255_i32_57 = arith.constant 255 : i32
    %159 = tpu.dynamic_rotate %149 by %c255_i32_57 dim 0 : vector<256x8xf32>, i32 -> vector<256x8xf32>
    %160 = vector.broadcast %45 : vector<256x1xf32> to vector<256x8xf32>
    %161 = arith.addf %159, %160 : vector<256x8xf32>
    %162 = arith.maximumf %158, %161 : vector<256x8xf32>
    %c2_i32_58 = arith.constant 2 : i32
    %163 = tpu.dynamic_rotate %149 by %c2_i32_58 dim 0 : vector<256x8xf32>, i32 -> vector<256x8xf32>
    %164 = vector.broadcast %59 : vector<256x1xf32> to vector<256x8xf32>
    %165 = arith.addf %163, %164 : vector<256x8xf32>
    %166 = arith.maximumf %162, %165 : vector<256x8xf32>
    %c254_i32_59 = arith.constant 254 : i32
    %167 = tpu.dynamic_rotate %149 by %c254_i32_59 dim 0 : vector<256x8xf32>, i32 -> vector<256x8xf32>
    %168 = vector.broadcast %73 : vector<256x1xf32> to vector<256x8xf32>
    %169 = arith.addf %167, %168 : vector<256x8xf32>
    %170 = arith.maximumf %166, %169 : vector<256x8xf32>
    %c16_i32_60 = arith.constant 16 : i32
    %171 = tpu.dynamic_rotate %170 by %c16_i32_60 dim 0 : vector<256x8xf32>, i32 -> vector<256x8xf32>
    %172 = vector.broadcast %83 : vector<256x1xf32> to vector<256x8xf32>
    %173 = arith.addf %171, %172 : vector<256x8xf32>
    %174 = arith.maximumf %170, %173 : vector<256x8xf32>
    %c240_i32_61 = arith.constant 240 : i32
    %175 = tpu.dynamic_rotate %170 by %c240_i32_61 dim 0 : vector<256x8xf32>, i32 -> vector<256x8xf32>
    %176 = vector.broadcast %93 : vector<256x1xf32> to vector<256x8xf32>
    %177 = arith.addf %175, %176 : vector<256x8xf32>
    %178 = arith.maximumf %174, %177 : vector<256x8xf32>
    %c32_i32_62 = arith.constant 32 : i32
    %179 = tpu.dynamic_rotate %170 by %c32_i32_62 dim 0 : vector<256x8xf32>, i32 -> vector<256x8xf32>
    %180 = vector.broadcast %103 : vector<256x1xf32> to vector<256x8xf32>
    %181 = arith.addf %179, %180 : vector<256x8xf32>
    %182 = arith.maximumf %178, %181 : vector<256x8xf32>
    %c224_i32_63 = arith.constant 224 : i32
    %183 = tpu.dynamic_rotate %170 by %c224_i32_63 dim 0 : vector<256x8xf32>, i32 -> vector<256x8xf32>
    %184 = vector.broadcast %113 : vector<256x1xf32> to vector<256x8xf32>
    %185 = arith.addf %183, %184 : vector<256x8xf32>
    %186 = arith.maximumf %182, %185 : vector<256x8xf32>
    %187 = arith.truncf %186 : vector<256x8xf32> to vector<256x8xbf16>
    %c2 = arith.constant 2 : index
    %c0_64 = arith.constant 0 : index
    %c0_65 = arith.constant 0 : index
    %188 = vector.load %arg4[%c2, %c0_64, %c0_65] : memref<4x8x128xbf16, #tpu.memory_space<vmem>>, vector<1x8x128xbf16>
    %189 = vector.shape_cast %188 : vector<1x8x128xbf16> to vector<8x128xbf16>
    %cst_66 = arith.constant dense<0.000000e+00> : vector<256x128xf32>
    %190 = tpu.matmul %187, %189, %cst_66 {dimension_numbers = #tpu.dot_dimension_numbers<[1], [0], [0], [1], [0, 0, 1, 1], [], []>} : vector<256x8xbf16>, vector<8x128xbf16>, vector<256x128xf32> -> vector<256x128xf32>
    %191 = arith.addf %154, %190 : vector<256x128xf32>
    %c1_i32_67 = arith.constant 1 : i32
    %192 = tpu.dynamic_rotate %186 by %c1_i32_67 dim 0 : vector<256x8xf32>, i32 -> vector<256x8xf32>
    %193 = vector.broadcast %31 : vector<256x1xf32> to vector<256x8xf32>
    %194 = arith.addf %192, %193 : vector<256x8xf32>
    %195 = arith.maximumf %186, %194 : vector<256x8xf32>
    %c255_i32_68 = arith.constant 255 : i32
    %196 = tpu.dynamic_rotate %186 by %c255_i32_68 dim 0 : vector<256x8xf32>, i32 -> vector<256x8xf32>
    %197 = vector.broadcast %45 : vector<256x1xf32> to vector<256x8xf32>
    %198 = arith.addf %196, %197 : vector<256x8xf32>
    %199 = arith.maximumf %195, %198 : vector<256x8xf32>
    %c2_i32_69 = arith.constant 2 : i32
    %200 = tpu.dynamic_rotate %186 by %c2_i32_69 dim 0 : vector<256x8xf32>, i32 -> vector<256x8xf32>
    %201 = vector.broadcast %59 : vector<256x1xf32> to vector<256x8xf32>
    %202 = arith.addf %200, %201 : vector<256x8xf32>
    %203 = arith.maximumf %199, %202 : vector<256x8xf32>
    %c254_i32_70 = arith.constant 254 : i32
    %204 = tpu.dynamic_rotate %186 by %c254_i32_70 dim 0 : vector<256x8xf32>, i32 -> vector<256x8xf32>
    %205 = vector.broadcast %73 : vector<256x1xf32> to vector<256x8xf32>
    %206 = arith.addf %204, %205 : vector<256x8xf32>
    %207 = arith.maximumf %203, %206 : vector<256x8xf32>
    %c16_i32_71 = arith.constant 16 : i32
    %208 = tpu.dynamic_rotate %207 by %c16_i32_71 dim 0 : vector<256x8xf32>, i32 -> vector<256x8xf32>
    %209 = vector.broadcast %83 : vector<256x1xf32> to vector<256x8xf32>
    %210 = arith.addf %208, %209 : vector<256x8xf32>
    %211 = arith.maximumf %207, %210 : vector<256x8xf32>
    %c240_i32_72 = arith.constant 240 : i32
    %212 = tpu.dynamic_rotate %207 by %c240_i32_72 dim 0 : vector<256x8xf32>, i32 -> vector<256x8xf32>
    %213 = vector.broadcast %93 : vector<256x1xf32> to vector<256x8xf32>
    %214 = arith.addf %212, %213 : vector<256x8xf32>
    %215 = arith.maximumf %211, %214 : vector<256x8xf32>
    %c32_i32_73 = arith.constant 32 : i32
    %216 = tpu.dynamic_rotate %207 by %c32_i32_73 dim 0 : vector<256x8xf32>, i32 -> vector<256x8xf32>
    %217 = vector.broadcast %103 : vector<256x1xf32> to vector<256x8xf32>
    %218 = arith.addf %216, %217 : vector<256x8xf32>
    %219 = arith.maximumf %215, %218 : vector<256x8xf32>
    %c224_i32_74 = arith.constant 224 : i32
    %220 = tpu.dynamic_rotate %207 by %c224_i32_74 dim 0 : vector<256x8xf32>, i32 -> vector<256x8xf32>
    %221 = vector.broadcast %113 : vector<256x1xf32> to vector<256x8xf32>
    %222 = arith.addf %220, %221 : vector<256x8xf32>
    %223 = arith.maximumf %219, %222 : vector<256x8xf32>
    %224 = arith.truncf %223 : vector<256x8xf32> to vector<256x8xbf16>
    %c3 = arith.constant 3 : index
    %c0_75 = arith.constant 0 : index
    %c0_76 = arith.constant 0 : index
    %225 = vector.load %arg4[%c3, %c0_75, %c0_76] : memref<4x8x128xbf16, #tpu.memory_space<vmem>>, vector<1x8x128xbf16>
    %226 = vector.shape_cast %225 : vector<1x8x128xbf16> to vector<8x128xbf16>
    %cst_77 = arith.constant dense<0.000000e+00> : vector<256x128xf32>
    %227 = tpu.matmul %224, %226, %cst_77 {dimension_numbers = #tpu.dot_dimension_numbers<[1], [0], [0], [1], [0, 0, 1, 1], [], []>} : vector<256x8xbf16>, vector<8x128xbf16>, vector<256x128xf32> -> vector<256x128xf32>
    %228 = arith.addf %191, %227 : vector<256x128xf32>
    %c0_78 = arith.constant 0 : index
    %c0_79 = arith.constant 0 : index
    %229 = vector.load %arg5[%c0_78, %c0_79] : memref<1x128xf32, #tpu.memory_space<vmem>>, vector<1x128xf32>
    %230 = vector.shape_cast %229 : vector<1x128xf32> to vector<128xf32>
    %231 = vector.shape_cast %230 : vector<128xf32> to vector<1x128xf32>
    %232 = vector.broadcast %231 : vector<1x128xf32> to vector<256x128xf32>
    %233 = arith.addf %228, %232 : vector<256x128xf32>
    %234 = arith.negf %233 : vector<256x128xf32>
    %235 = math.exp %234 : vector<256x128xf32>
    %cst_80 = arith.constant 1.000000e+00 : f32
    %236 = vector.broadcast %cst_80 : f32 to vector<256x128xf32>
    %237 = arith.addf %236, %235 : vector<256x128xf32>
    %238 = arith.divf %236, %237 : vector<256x128xf32>
    %239 = arith.mulf %233, %238 : vector<256x128xf32>
    %c0_81 = arith.constant 0 : index
    %c0_82 = arith.constant 0 : index
    %c0_83 = arith.constant 0 : index
    %240 = vector.load %arg7[%c0_81, %c0_82, %c0_83] : memref<1x256x128xf32, #tpu.memory_space<vmem>>, vector<1x256x128xf32>
    %241 = vector.shape_cast %240 : vector<1x256x128xf32> to vector<256x128xf32>
    %242 = vector.shape_cast %239 : vector<256x128xf32> to vector<1x256x128xf32>
    tpu.vector_store %arg7[%c0_81, %c0_82, %c0_83], %242 {strides = array<i32>} : memref<1x256x128xf32, #tpu.memory_space<vmem>>, vector<1x256x128xf32>,
    return
  }
  func.func @transform_0(%arg0: i32) -> (i32, i32, i32) {
    %c0_i32 = arith.constant 0 : i32
    %c0_i32_0 = arith.constant 0 : i32
    %c0_i32_1 = arith.constant 0 : i32
    return %arg0, %c0_i32, %c0_i32_0 : i32, i32, i32
  }
  func.func @transform_1(%arg0: i32) -> (i32, i32) {
    %c0_i32 = arith.constant 0 : i32
    %c0_i32_0 = arith.constant 0 : i32
    %c0_i32_1 = arith.constant 0 : i32
    return %c0_i32, %c0_i32_0 : i32, i32
  }
  func.func @transform_2(%arg0: i32) -> (i32, i32) {
    %c0_i32 = arith.constant 0 : i32
    %c0_i32_0 = arith.constant 0 : i32
    %c0_i32_1 = arith.constant 0 : i32
    return %c0_i32, %c0_i32_0 : i32, i32
  }
  func.func @transform_3(%arg0: i32) -> (i32, i32, i32) {
    %c0_i32 = arith.constant 0 : i32
    %c0_i32_0 = arith.constant 0 : i32
    %c0_i32_1 = arith.constant 0 : i32
    %c0_i32_2 = arith.constant 0 : i32
    return %c0_i32, %c0_i32_0, %c0_i32_1 : i32, i32, i32
  }
  func.func @transform_4(%arg0: i32) -> (i32, i32) {
    %c0_i32 = arith.constant 0 : i32
    %c0_i32_0 = arith.constant 0 : i32
    %c0_i32_1 = arith.constant 0 : i32
    return %c0_i32, %c0_i32_0 : i32, i32
  }
  func.func @transform_5(%arg0: i32) -> (i32, i32) {
    %c0_i32 = arith.constant 0 : i32
    %c0_i32_0 = arith.constant 0 : i32
    %c0_i32_1 = arith.constant 0 : i32
    return %c0_i32, %c0_i32_0 : i32, i32
  }
  func.func @transform_6(%arg0: i32) -> (i32, i32, i32) {
    %c0_i32 = arith.constant 0 : i32
    %c0_i32_0 = arith.constant 0 : i32
    %c0_i32_1 = arith.constant 0 : i32
    return %arg0, %c0_i32, %c0_i32_0 : i32, i32, i32
  }
}

</mosaic_0001>

<llo_original>
// kernel: tpu_custom_call.1
$region0: #{tpu_custom_call.1}
  #allocation0 [shape = 'u32[]', space=smem, size = 0x4, offset = 0x4, fixed_abs, tag = 'smem constant byte address 0x4 - core index']
  #allocation1 [shape = 'u32[72,128]{1,0:T(1,128)}', space=vmem, size = 0x9000, scoped, tag = 'internal scratch']
  %s0 = inlined_call_operand.vmem [shape: f32[2,256,4], index: 0, kind: input, shape index: {}]
  %s1 = inlined_call_operand.vmem [shape: bf16[4,8], index: 1, kind: input, shape index: {}]
  %s2 = inlined_call_operand.vmem [shape: f32[1,8], index: 2, kind: input, shape index: {}]
  %s3 = inlined_call_operand.vmem [shape: bf16[4,8,128], index: 3, kind: input, shape index: {}]
  %s4 = inlined_call_operand.vmem [shape: f32[1,128], index: 4, kind: input, shape index: {}]
  %s5 = inlined_call_operand.vmem [shape: s32[256,1], index: 5, kind: input, shape index: {}]
  %s6 = inlined_call_operand.hbm [shape: f32[2,256,128], index: 6, kind: output, shape index: {}]
  %s7 = sld [smem:[#allocation0]]
  $region57: #{tpu_custom_call.1} parent=0
    _
  %s9 = ssub.s32 1, %s7
  %s10 = scalar_select 0, %s9, %s7
  $region1: #{tpu_custom_call.1} parent=0
    #allocation2 [shape = 'u8[262144]{0}', space=vmem, size = 0x40000, scoped, tag = 'output window, operand 0']
    #allocation3 [shape = 's32[2]{0}', space=sflag, size = 0x8, scoped, tag = 'scoped memory for tpu_custom_call.1']
    %11 = vsyncpa [#allocation3], 0
    %s12 = scalar_lea.sflag [#allocation3], 1
    %13 = vsyncpa %s12, 0
    loop: start=0, step=1, limit=4
    $region2: #{tpu_custom_call.1} parent=1 // loop_pre_header
      _
    $region3: #{tpu_custom_call.1} parent=1 // loop_header
      %s15 = sphi 0, %s19
      %p16 = scmp.ge.s32.totalorder %s15, 4
      %s25 = sphi 0, %s27
      %s28 = sphi 0, %s25
      %s29 = sphi 0, %s28
      %s45 = sphi 0, %s29
      %s49 = sphi 0, %s49
      %s51 = sphi 0, %s49
      %s52 = sphi 0, %s51
      %s66 = sphi 0, %s52
      %s70 = sphi 0, %s70
      %s72 = sphi 0, %s70
      %s73 = sphi 0, %s72
      %s87 = sphi 0, %s73
      %s91 = sphi 0, %s91
      %s93 = sphi 0, %s91
      %s94 = sphi 0, %s93
      %s108 = sphi 0, %s94
      %s112 = sphi 0, %s112
      %s114 = sphi 0, %s112
      %s115 = sphi 0, %s114
      %s129 = sphi 0, %s115
      %s133 = sphi 0, %s133
      %s135 = sphi 0, %s133
      %s136 = sphi 0, %s135
      %s150 = sphi 0, %s136
      %s156 = sphi 0, %s158
      %s159 = sphi 0, %s156
      %s160 = sphi 0, %s159
      %s176 = sphi 0, %s160
    $region4: #{tpu_custom_call.1} parent=1 // loop_header_branch
      %18 = sbr.rel (%p16) target = $region8
    $region5: #{tpu_custom_call.1} parent=1 // loop_body
      %s20 = ssub.s32 %s15, 1
      %s21 = ssub.s32 %s15, 2
      %s22 = sadd.s32 %s15, 1
      %s23 = ssub.s32 %s15, %s22
      %p24 = scmp.eq.s32.totalorder %s23, 0
      %s26 = sadd.s32 %s25, 1
      %s27 = scalar_select %p24, %s25, %s26
      %p30 = pneg %p24
      %p31 = scmp.eq.s32.totalorder %s15, 1
      %p32 = por %p30, %p31
      %p33 = scmp.ne.s32.totalorder %s25, %s28
      %p34 = scmp.eq.s32.totalorder %s15, 0
      %p35 = por %p33, %p34
      %p36 = scmp.ne.s32.totalorder %s25, %s28
      %p37 = scmp.eq.s32.totalorder %s20, 1
      %p38 = por %p36, %p37
      %p39 = scmp.ne.s32.totalorder %s28, %s29
      %p40 = scmp.eq.s32.totalorder %s20, 0
      %p41 = por %p39, %p40
      %p42 = scmp.ne.s32.totalorder %s28, %s29
      %p43 = scmp.eq.s32.totalorder %s21, 1
      %p44 = por %p42, %p43
      %p46 = scmp.ne.s32.totalorder %s29, %s45
      %p47 = scmp.eq.s32.totalorder %s21, 0
      %p48 = por %p46, %p47
      %s50 = sadd.s32 %s49, 1
      %p53 = scmp.eq.s32.totalorder %s15, 1
      %p54 = scmp.ne.s32.totalorder %s49, %s51
      %p55 = scmp.eq.s32.totalorder %s15, 0
      %p56 = por %p54, %p55
      %p57 = scmp.ne.s32.totalorder %s49, %s51
      %p58 = scmp.eq.s32.totalorder %s20, 1
      %p59 = por %p57, %p58
      %p60 = scmp.ne.s32.totalorder %s51, %s52
      %p61 = scmp.eq.s32.totalorder %s20, 0
      %p62 = por %p60, %p61
      %p63 = scmp.ne.s32.totalorder %s51, %s52
      %p64 = scmp.eq.s32.totalorder %s21, 1
      %p65 = por %p63, %p64
      %p67 = scmp.ne.s32.totalorder %s52, %s66
      %p68 = scmp.eq.s32.totalorder %s21, 0
      %p69 = por %p67, %p68
      %s71 = sadd.s32 %s70, 1
      %p74 = scmp.eq.s32.totalorder %s15, 1
      %p75 = scmp.ne.s32.totalorder %s70, %s72
      %p76 = scmp.eq.s32.totalorder %s15, 0
      %p77 = por %p75, %p76
      %p78 = scmp.ne.s32.totalorder %s70, %s72
      %p79 = scmp.eq.s32.totalorder %s20, 1
      %p80 = por %p78, %p79
      %p81 = scmp.ne.s32.totalorder %s72, %s73
      %p82 = scmp.eq.s32.totalorder %s20, 0
      %p83 = por %p81, %p82
      %p84 = scmp.ne.s32.totalorder %s72, %s73
      %p85 = scmp.eq.s32.totalorder %s21, 1
      %p86 = por %p84, %p85
      %p88 = scmp.ne.s32.totalorder %s73, %s87
      %p89 = scmp.eq.s32.totalorder %s21, 0
      %p90 = por %p88, %p89
      %s92 = sadd.s32 %s91, 1
      %p95 = scmp.eq.s32.totalorder %s15, 1
      %p96 = scmp.ne.s32.totalorder %s91, %s93
      %p97 = scmp.eq.s32.totalorder %s15, 0
      %p98 = por %p96, %p97
      %p99 = scmp.ne.s32.totalorder %s91, %s93
      %p100 = scmp.eq.s32.totalorder %s20, 1
      %p101 = por %p99, %p100
      %p102 = scmp.ne.s32.totalorder %s93, %s94
      %p103 = scmp.eq.s32.totalorder %s20, 0
      %p104 = por %p102, %p103
      %p105 = scmp.ne.s32.totalorder %s93, %s94
      %p106 = scmp.eq.s32.totalorder %s21, 1
      %p107 = por %p105, %p106
      %p109 = scmp.ne.s32.totalorder %s94, %s108
      %p110 = scmp.eq.s32.totalorder %s21, 0
      %p111 = por %p109, %p110
      %s113 = sadd.s32 %s112, 1
      %p116 = scmp.eq.s32.totalorder %s15, 1
      %p117 = scmp.ne.s32.totalorder %s112, %s114
      %p118 = scmp.eq.s32.totalorder %s15, 0
      %p119 = por %p117, %p118
      %p120 = scmp.ne.s32.totalorder %s112, %s114
      %p121 = scmp.eq.s32.totalorder %s20, 1
      %p122 = por %p120, %p121
      %p123 = scmp.ne.s32.totalorder %s114, %s115
      %p124 = scmp.eq.s32.totalorder %s20, 0
      %p125 = por %p123, %p124
      %p126 = scmp.ne.s32.totalorder %s114, %s115
      %p127 = scmp.eq.s32.totalorder %s21, 1
      %p128 = por %p126, %p127
      %p130 = scmp.ne.s32.totalorder %s115, %s129
      %p131 = scmp.eq.s32.totalorder %s21, 0
      %p132 = por %p130, %p131
      %s134 = sadd.s32 %s133, 1
      %p137 = scmp.eq.s32.totalorder %s15, 1
      %p138 = scmp.ne.s32.totalorder %s133, %s135
      %p139 = scmp.eq.s32.totalorder %s15, 0
      %p140 = por %p138, %p139
      %p141 = scmp.ne.s32.totalorder %s133, %s135
      %p142 = scmp.eq.s32.totalorder %s20, 1
      %p143 = por %p141, %p142
      %p144 = scmp.ne.s32.totalorder %s135, %s136
      %p145 = scmp.eq.s32.totalorder %s20, 0
      %p146 = por %p144, %p145
      %p147 = scmp.ne.s32.totalorder %s135, %s136
      %p148 = scmp.eq.s32.totalorder %s21, 1
      %p149 = por %p147, %p148
      %p151 = scmp.ne.s32.totalorder %s136, %s150
      %p152 = scmp.eq.s32.totalorder %s21, 0
      %p153 = por %p151, %p152
      %s154 = ssub.s32 %s15, %s22
      %p155 = scmp.eq.s32.totalorder %s154, 0
      %s157 = sadd.s32 %s156, 1
      %s158 = scalar_select %p155, %s156, %s157
      %p161 = pneg %p155
      %p162 = scmp.eq.s32.totalorder %s15, 1
      %p163 = por %p161, %p162
      %p164 = scmp.ne.s32.totalorder %s156, %s159
      %p165 = scmp.eq.s32.totalorder %s15, 0
      %p166 = por %p164, %p165
      %p167 = scmp.ne.s32.totalorder %s156, %s159
      %p168 = scmp.eq.s32.totalorder %s20, 1
      %p169 = por %p167, %p168
      %p170 = scmp.ne.s32.totalorder %s159, %s160
      %p171 = scmp.eq.s32.totalorder %s20, 0
      %p172 = por %p170, %p171
      %p173 = scmp.ne.s32.totalorder %s159, %s160
      %p174 = scmp.eq.s32.totalorder %s21, 1
      %p175 = por %p173, %p174
      %p177 = scmp.ne.s32.totalorder %s160, %s176
      %p178 = scmp.eq.s32.totalorder %s21, 0
      %p179 = por %p177, %p178
      %p180 = scmp.le.s32.totalorder 1, %s15
      %p181 = scmp.lt.s32.totalorder %s15, 3
      %p182 = pnand %p180, %p181
      %p183 = pneg %p182
      // Predicated region
      $region9: #{tpu_custom_call.1} parent=5 // pred_check
        _
      $region10: #{tpu_custom_call.1} parent=5 // pred_check_branch
        %185 = sbr.rel (%p182) target = $region12
      $region11: #{tpu_custom_call.1} parent=5 // pred_region
        %s186 = ssub.s32 %s15, 1
        // Predicated region
        $region13: #{tpu_custom_call.1} parent=11 // pred_check
          %p187 = pneg %p62
        $region14: #{tpu_custom_call.1} parent=11 // pred_check_branch
          %189 = sbr.rel (%p187) target = $region16
        $region15: #{tpu_custom_call.1} parent=11 // pred_region
          _
        $region16: #{tpu_custom_call.1} parent=11 // pred_fallthru
          _
        // Predicated region
        $region17: #{tpu_custom_call.1} parent=11 // pred_check
          %p190 = pneg %p83
        $region18: #{tpu_custom_call.1} parent=11 // pred_check_branch
          %192 = sbr.rel (%p190) target = $region20
        $region19: #{tpu_custom_call.1} parent=11 // pred_region
          _
        $region20: #{tpu_custom_call.1} parent=11 // pred_fallthru
          _
        // Predicated region
        $region21: #{tpu_custom_call.1} parent=11 // pred_check
          %p193 = pneg %p104
        $region22: #{tpu_custom_call.1} parent=11 // pred_check_branch
          %195 = sbr.rel (%p193) target = $region24
        $region23: #{tpu_custom_call.1} parent=11 // pred_region
          _
        $region24: #{tpu_custom_call.1} parent=11 // pred_fallthru
          _
        // Predicated region
        $region25: #{tpu_custom_call.1} parent=11 // pred_check
          %p196 = pneg %p125
        $region26: #{tpu_custom_call.1} parent=11 // pred_check_branch
          %198 = sbr.rel (%p196) target = $region28
        $region27: #{tpu_custom_call.1} parent=11 // pred_region
          _
        $region28: #{tpu_custom_call.1} parent=11 // pred_fallthru
          _
        // Predicated region
        $region29: #{tpu_custom_call.1} parent=11 // pred_check
          %p199 = pneg %p146
        $region30: #{tpu_custom_call.1} parent=11 // pred_check_branch
          %201 = sbr.rel (%p199) target = $region32
        $region31: #{tpu_custom_call.1} parent=11 // pred_region
          _
        $region32: #{tpu_custom_call.1} parent=11 // pred_fallthru
          _
      $region12: #{tpu_custom_call.1} parent=5 // pred_fallthru
        _
      %p202 = scmp.lt.s32.totalorder %s15, 2
      // Predicated region
      $region33: #{tpu_custom_call.1} parent=5 // pred_check
        %p203 = pneg %p202
      $region34: #{tpu_custom_call.1} parent=5 // pred_check_branch
        %205 = sbr.rel (%p203) target = $region36
      $region35: #{tpu_custom_call.1} parent=5 // pred_region
        // Predicated region
        $region37: #{tpu_custom_call.1} parent=35 // pred_check
          %p206 = pneg %p35
        $region38: #{tpu_custom_call.1} parent=35 // pred_check_branch
          %208 = sbr.rel (%p206) target = $region40
        $region39: #{tpu_custom_call.1} parent=35 // pred_region
          %p209 = scmp.lt.s32.totalorder %s15, 1
          %s210 = scalar_select %p209, %s15, 1
          %s211 = smul.addr %s210, 32
          %s212 = smul.addr %s211, 8
          %s213 = scalar_lea.vmem %s0, %s212
        $region40: #{tpu_custom_call.1} parent=35 // pred_fallthru
          _
      $region36: #{tpu_custom_call.1} parent=5 // pred_fallthru
        _
      %p214 = scmp.le.s32.totalorder 1, %s15
      %p215 = scmp.lt.s32.totalorder %s15, 3
      %p216 = pnand %p214, %p215
      %p217 = pneg %p216
      // Predicated region
      $region41: #{tpu_custom_call.1} parent=5 // pred_check
        _
      $region42: #{tpu_custom_call.1} parent=5 // pred_check_branch
        %219 = sbr.rel (%p216) target = $region44
      $region43: #{tpu_custom_call.1} parent=5 // pred_region
        %s220 = ssub.s32 %s15, 1
        %p221 = scmp.lt.s32.totalorder %s20, 1
        %s222 = scalar_select %p221, %s20, 1
        %s223 = smul.addr %s222, 32
        %s224 = smul.addr %s223, 8
        %s225 = scalar_lea.vmem %s0, %s224
        %p226 = pneg %p41
        %p227 = pneg %p38
        %p228 = pneg %p62
        %p229 = pneg %p59
        %p230 = pneg %p83
        %p231 = pneg %p80
        %p232 = pneg %p104
        %p233 = pneg %p101
        %p234 = pneg %p125
        %p235 = pneg %p122
        %p236 = pneg %p146
        %p237 = pneg %p143
        %p238 = pneg %p172
        %p239 = pneg %p169
        %s240 = sand.u32 %s159, 1
        %s241 = scalar_lea.sflag [#allocation3], %s240
        %s242 = sand.u32 %s159, 1
        %s243 = smul.addr %s242, 256
        %s244 = scalar_lea.vmem [#allocation2], %s243
        %p245 = scmp.lt.s32.totalorder %s20, 1
        %s246 = scalar_select %p245, %s20, 1
        %s247 = smul.addr %s246, 32
        %s248 = smul.addr %s247, 8
        %s249 = scalar_lea.vmem %s0, %s248
        %v251 = vld [vmem:[%s249] sm:$0xff]
        %v252 = vld [vmem:[%s249 + $0x8] sm:$0xff]
        %v253 = vld [vmem:[%s249 + $0x10] sm:$0xff]
        %v254 = vld [vmem:[%s249 + $0x18] sm:$0xff]
        %v255 = vld [vmem:[%s249 + $0x20] sm:$0xff]
        %v256 = vld [vmem:[%s249 + $0x28] sm:$0xff]
        %v257 = vld [vmem:[%s249 + $0x30] sm:$0xff]
        %v258 = vld [vmem:[%s249 + $0x38] sm:$0xff]
        %v259 = vld [vmem:[%s249 + $0x40] sm:$0xff]
        %v260 = vld [vmem:[%s249 + $0x48] sm:$0xff]
        %v261 = vld [vmem:[%s249 + $0x50] sm:$0xff]
        %v262 = vld [vmem:[%s249 + $0x58] sm:$0xff]
        %v263 = vld [vmem:[%s249 + $0x60] sm:$0xff]
        %v264 = vld [vmem:[%s249 + $0x68] sm:$0xff]
        %v265 = vld [vmem:[%s249 + $0x70] sm:$0xff]
        %v266 = vld [vmem:[%s249 + $0x78] sm:$0xff]
        %v267 = vld [vmem:[%s249 + $0x80] sm:$0xff]
        %v268 = vld [vmem:[%s249 + $0x88] sm:$0xff]
        %v269 = vld [vmem:[%s249 + $0x90] sm:$0xff]
        %v270 = vld [vmem:[%s249 + $0x98] sm:$0xff]
        %v271 = vld [vmem:[%s249 + $0xa0] sm:$0xff]
        %v272 = vld [vmem:[%s249 + $0xa8] sm:$0xff]
        %v273 = vld [vmem:[%s249 + $0xb0] sm:$0xff]
        %v274 = vld [vmem:[%s249 + $0xb8] sm:$0xff]
        %v275 = vld [vmem:[%s249 + $0xc0] sm:$0xff]
        %v276 = vld [vmem:[%s249 + $0xc8] sm:$0xff]
        %v277 = vld [vmem:[%s249 + $0xd0] sm:$0xff]
        %v278 = vld [vmem:[%s249 + $0xd8] sm:$0xff]
        %v279 = vld [vmem:[%s249 + $0xe0] sm:$0xff]
        %v280 = vld [vmem:[%s249 + $0xe8] sm:$0xff]
        %v281 = vld [vmem:[%s249 + $0xf0] sm:$0xff]
        %v282 = vld [vmem:[%s249 + $0xf8] sm:$0xff]
        %v283 = vpack.c.bf16 %v252, %v251
        %v284 = vpack.c.bf16 %v254, %v253
        %v285 = vpack.c.bf16 %v256, %v255
        %v286 = vpack.c.bf16 %v258, %v257
        %v287 = vpack.c.bf16 %v260, %v259
        %v288 = vpack.c.bf16 %v262, %v261
        %v289 = vpack.c.bf16 %v264, %v263
        %v290 = vpack.c.bf16 %v266, %v265
        %v291 = vpack.c.bf16 %v268, %v267
        %v292 = vpack.c.bf16 %v270, %v269
        %v293 = vpack.c.bf16 %v272, %v271
        %v294 = vpack.c.bf16 %v274, %v273
        %v295 = vpack.c.bf16 %v276, %v275
        %v296 = vpack.c.bf16 %v278, %v277
        %v297 = vpack.c.bf16 %v280, %v279
        %v298 = vpack.c.bf16 %v282, %v281
        %v299 = vld [vmem:[%s1] sm:$0x3]
        %v300 = vld [vmem:[%s2] sm:$0x1]
        %v302 = vperm.slane %v300, 0
        %vm304 = vcmask 31744
        %v306 = vsel %vm304, %v283, 0
        %v309 = vsel %vm304, %v284, 0
        %v312 = vsel %vm304, %v285, 0
        %v315 = vsel %vm304, %v286, 0
        %v318 = vsel %vm304, %v287, 0
        %v321 = vsel %vm304, %v288, 0
        %v324 = vsel %vm304, %v289, 0
        %v327 = vsel %vm304, %v290, 0
        %v330 = vsel %vm304, %v291, 0
        %v333 = vsel %vm304, %v292, 0
        %v336 = vsel %vm304, %v293, 0
        %v339 = vsel %vm304, %v294, 0
        %v342 = vsel %vm304, %v295, 0
        %v345 = vsel %vm304, %v296, 0
        %v348 = vsel %vm304, %v297, 0
        %v351 = vsel %vm304, %v298, 0
        %vm353 = vcmask 1041408
        %v355 = vsel %vm353, %v299, 0
        %357 = vmatpush.bf16.msra.mxu0 0
        %358 = vmatpush.bf16.msra.mxu0 0
        %359 = vmatpush.bf16.msra.mxu0 0
        %360 = vmatpush.bf16.msra.mxu0 0
        %361 = vmatpush.bf16.msra.mxu0 0
        %362 = vmatpush.bf16.msra.mxu0 0
        %363 = vmatpush.bf16.msra.mxu0 0
        %364 = vmatpush.bf16.msra.mxu0 %v355
        %365 = vmatmul.bf16.gmra.mxu0 %v306
        %v366 = vpop.f32.mrf.mxu0
        %v367 = vadd.f32 %v302, %v366
        %v368 = vpop.f32.mrf.mxu0
        %v369 = vadd.f32 %v302, %v368
        %370 = vmatmul.bf16.gmra.mxu0 %v309
        %v371 = vpop.f32.mrf.mxu0
        %v372 = vadd.f32 %v302, %v371
        %v373 = vpop.f32.mrf.mxu0
        %v374 = vadd.f32 %v302, %v373
        %375 = vmatmul.bf16.gmra.mxu0 %v312
        %v376 = vpop.f32.mrf.mxu0
        %v377 = vadd.f32 %v302, %v376
        %v378 = vpop.f32.mrf.mxu0
        %v379 = vadd.f32 %v302, %v378
        %380 = vmatmul.bf16.gmra.mxu0 %v315
        %v381 = vpop.f32.mrf.mxu0
        %v382 = vadd.f32 %v302, %v381
        %v383 = vpop.f32.mrf.mxu0
        %v384 = vadd.f32 %v302, %v383
        %385 = vmatmul.bf16.gmra.mxu0 %v318
        %v386 = vpop.f32.mrf.mxu0
        %v387 = vadd.f32 %v302, %v386
        %v388 = vpop.f32.mrf.mxu0
        %v389 = vadd.f32 %v302, %v388
        %390 = vmatmul.bf16.gmra.mxu0 %v321
        %v391 = vpop.f32.mrf.mxu0
        %v392 = vadd.f32 %v302, %v391
        %v393 = vpop.f32.mrf.mxu0
        %v394 = vadd.f32 %v302, %v393
        %395 = vmatmul.bf16.gmra.mxu0 %v324
        %v396 = vpop.f32.mrf.mxu0
        %v397 = vadd.f32 %v302, %v396
        %v398 = vpop.f32.mrf.mxu0
        %v399 = vadd.f32 %v302, %v398
        %400 = vmatmul.bf16.gmra.mxu0 %v327
        %v401 = vpop.f32.mrf.mxu0
        %v402 = vadd.f32 %v302, %v401
        %v403 = vpop.f32.mrf.mxu0
        %v404 = vadd.f32 %v302, %v403
        %405 = vmatmul.bf16.gmra.mxu0 %v330
        %v406 = vpop.f32.mrf.mxu0
        %v407 = vadd.f32 %v302, %v406
        %v408 = vpop.f32.mrf.mxu0
        %v409 = vadd.f32 %v302, %v408
        %410 = vmatmul.bf16.gmra.mxu0 %v333
        %v411 = vpop.f32.mrf.mxu0
        %v412 = vadd.f32 %v302, %v411
        %v413 = vpop.f32.mrf.mxu0
        %v414 = vadd.f32 %v302, %v413
        %415 = vmatmul.bf16.gmra.mxu0 %v336
        %v416 = vpop.f32.mrf.mxu0
        %v417 = vadd.f32 %v302, %v416
        %v418 = vpop.f32.mrf.mxu0
        %v419 = vadd.f32 %v302, %v418
        %420 = vmatmul.bf16.gmra.mxu0 %v339
        %v421 = vpop.f32.mrf.mxu0
        %v422 = vadd.f32 %v302, %v421
        %v423 = vpop.f32.mrf.mxu0
        %v424 = vadd.f32 %v302, %v423
        %425 = vmatmul.bf16.gmra.mxu0 %v342
        %v426 = vpop.f32.mrf.mxu0
        %v427 = vadd.f32 %v302, %v426
        %v428 = vpop.f32.mrf.mxu0
        %v429 = vadd.f32 %v302, %v428
        %430 = vmatmul.bf16.gmra.mxu0 %v345
        %v431 = vpop.f32.mrf.mxu0
        %v432 = vadd.f32 %v302, %v431
        %v433 = vpop.f32.mrf.mxu0
        %v434 = vadd.f32 %v302, %v433
        %435 = vmatmul.bf16.gmra.mxu0 %v348
        %v436 = vpop.f32.mrf.mxu0
        %v437 = vadd.f32 %v302, %v436
        %v438 = vpop.f32.mrf.mxu0
        %v439 = vadd.f32 %v302, %v438
        %440 = vmatmul.bf16.gmra.mxu0 %v351
        %v441 = vpop.f32.mrf.mxu0
        %v442 = vadd.f32 %v302, %v441
        %v443 = vpop.f32.mrf.mxu0
        %v444 = vadd.f32 %v302, %v443
        %445 = vdwg.mxu0
        %v446 = vxor.u32 %v367, 2147483648
        %v447 = vxor.u32 %v369, 2147483648
        %v448 = vxor.u32 %v372, 2147483648
        %v449 = vxor.u32 %v374, 2147483648
        %v450 = vxor.u32 %v377, 2147483648
        %v451 = vxor.u32 %v379, 2147483648
        %v452 = vxor.u32 %v382, 2147483648
        %v453 = vxor.u32 %v384, 2147483648
        %v454 = vxor.u32 %v387, 2147483648
        %v455 = vxor.u32 %v389, 2147483648
        %v456 = vxor.u32 %v392, 2147483648
        %v457 = vxor.u32 %v394, 2147483648
        %v458 = vxor.u32 %v397, 2147483648
        %v459 = vxor.u32 %v399, 2147483648
        %v460 = vxor.u32 %v402, 2147483648
        %v461 = vxor.u32 %v404, 2147483648
        %v462 = vxor.u32 %v407, 2147483648
        %v463 = vxor.u32 %v409, 2147483648
        %v464 = vxor.u32 %v412, 2147483648
        %v465 = vxor.u32 %v414, 2147483648
        %v466 = vxor.u32 %v417, 2147483648
        %v467 = vxor.u32 %v419, 2147483648
        %v468 = vxor.u32 %v422, 2147483648
        %v469 = vxor.u32 %v424, 2147483648
        %v470 = vxor.u32 %v427, 2147483648
        %v471 = vxor.u32 %v429, 2147483648
        %v472 = vxor.u32 %v432, 2147483648
        %v473 = vxor.u32 %v434, 2147483648
        %v474 = vxor.u32 %v437, 2147483648
        %v475 = vxor.u32 %v439, 2147483648
        %v476 = vxor.u32 %v442, 2147483648
        %v477 = vxor.u32 %v444, 2147483648
        %v478 = vmul.f32 %v446, 1.442695
        %v479 = vpow.pop %v478
        %v480 = vmul.f32 %v447, 1.442695
        %v481 = vpow.pop %v480
        %v482 = vmul.f32 %v448, 1.442695
        %v483 = vpow.pop %v482
        %v484 = vmul.f32 %v449, 1.442695
        %v485 = vpow.pop %v484
        %v486 = vmul.f32 %v450, 1.442695
        %v487 = vpow.pop %v486
        %v488 = vmul.f32 %v451, 1.442695
        %v489 = vpow.pop %v488
        %v490 = vmul.f32 %v452, 1.442695
        %v491 = vpow.pop %v490
        %v492 = vmul.f32 %v453, 1.442695
        %v493 = vpow.pop %v492
        %v494 = vmul.f32 %v454, 1.442695
        %v495 = vpow.pop %v494
        %v496 = vmul.f32 %v455, 1.442695
        %v497 = vpow.pop %v496
        %v498 = vmul.f32 %v456, 1.442695
        %v499 = vpow.pop %v498
        %v500 = vmul.f32 %v457, 1.442695
        %v501 = vpow.pop %v500
        %v502 = vmul.f32 %v458, 1.442695
        %v503 = vpow.pop %v502
        %v504 = vmul.f32 %v459, 1.442695
        %v505 = vpow.pop %v504
        %v506 = vmul.f32 %v460, 1.442695
        %v507 = vpow.pop %v506
        %v508 = vmul.f32 %v461, 1.442695
        %v509 = vpow.pop %v508
        %v510 = vmul.f32 %v462, 1.442695
        %v511 = vpow.pop %v510
        %v512 = vmul.f32 %v463, 1.442695
        %v513 = vpow.pop %v512
        %v514 = vmul.f32 %v464, 1.442695
        %v515 = vpow.pop %v514
        %v516 = vmul.f32 %v465, 1.442695
        %v517 = vpow.pop %v516
        %v518 = vmul.f32 %v466, 1.442695
        %v519 = vpow.pop %v518
        %v520 = vmul.f32 %v467, 1.442695
        %v521 = vpow.pop %v520
        %v522 = vmul.f32 %v468, 1.442695
        %v523 = vpow.pop %v522
        %v524 = vmul.f32 %v469, 1.442695
        %v525 = vpow.pop %v524
        %v526 = vmul.f32 %v470, 1.442695
        %v527 = vpow.pop %v526
        %v528 = vmul.f32 %v471, 1.442695
        %v529 = vpow.pop %v528
        %v530 = vmul.f32 %v472, 1.442695
        %v531 = vpow.pop %v530
        %v532 = vmul.f32 %v473, 1.442695
        %v533 = vpow.pop %v532
        %v534 = vmul.f32 %v474, 1.442695
        %v535 = vpow.pop %v534
        %v536 = vmul.f32 %v475, 1.442695
        %v537 = vpow.pop %v536
        %v538 = vmul.f32 %v476, 1.442695
        %v539 = vpow.pop %v538
        %v540 = vmul.f32 %v477, 1.442695
        %v541 = vpow.pop %v540
        %v542 = vadd.f32 %v479, 1.0
        %v543 = vadd.f32 %v481, 1.0
        %v544 = vadd.f32 %v483, 1.0
        %v545 = vadd.f32 %v485, 1.0
        %v546 = vadd.f32 %v487, 1.0
        %v547 = vadd.f32 %v489, 1.0
        %v548 = vadd.f32 %v491, 1.0
        %v549 = vadd.f32 %v493, 1.0
        %v550 = vadd.f32 %v495, 1.0
        %v551 = vadd.f32 %v497, 1.0
        %v552 = vadd.f32 %v499, 1.0
        %v553 = vadd.f32 %v501, 1.0
        %v554 = vadd.f32 %v503, 1.0
        %v555 = vadd.f32 %v505, 1.0
        %v556 = vadd.f32 %v507, 1.0
        %v557 = vadd.f32 %v509, 1.0
        %v558 = vadd.f32 %v511, 1.0
        %v559 = vadd.f32 %v513, 1.0
        %v560 = vadd.f32 %v515, 1.0
        %v561 = vadd.f32 %v517, 1.0
        %v562 = vadd.f32 %v519, 1.0
        %v563 = vadd.f32 %v521, 1.0
        %v564 = vadd.f32 %v523, 1.0
        %v565 = vadd.f32 %v525, 1.0
        %v566 = vadd.f32 %v527, 1.0
        %v567 = vadd.f32 %v529, 1.0
        %v568 = vadd.f32 %v531, 1.0
        %v569 = vadd.f32 %v533, 1.0
        %v570 = vadd.f32 %v535, 1.0
        %v571 = vadd.f32 %v537, 1.0
        %v572 = vadd.f32 %v539, 1.0
        %v573 = vadd.f32 %v541, 1.0
        %v574 = vrcp.pop %v542
        %v575 = vmul.f32 %v542, %v574
        %v576 = vsub.f32 1.0, %v575
        %v577 = vmul.f32 %v574, %v576
        %v578 = vadd.f32 %v574, %v577
        %vm579 = vweird.f32 %v542
        %vm580 = vweird.f32 %v574
        %vm581 = vmor %vm579, %vm580
        %v582 = vsel %vm581, %v574, %v578
        %v583 = vand.u32 2147483647, %v542
        %vm584 = vcmp.eq.f32.partialorder %v583, 8.507059e+37
        %v585 = vand.u32 %v542, 2147483648
        %v586 = vor.u32 1.1754944e-38, %v585
        %v587 = vsel %vm584, %v586, %v582
        %v588 = vmul.f32 1.0, %v587
        %v589 = vrcp.pop %v543
        %v590 = vmul.f32 %v543, %v589
        %v591 = vsub.f32 1.0, %v590
        %v592 = vmul.f32 %v589, %v591
        %v593 = vadd.f32 %v589, %v592
        %vm594 = vweird.f32 %v543
        %vm595 = vweird.f32 %v589
        %vm596 = vmor %vm594, %vm595
        %v597 = vsel %vm596, %v589, %v593
        %v598 = vand.u32 2147483647, %v543
        %vm599 = vcmp.eq.f32.partialorder %v598, 8.507059e+37
        %v600 = vand.u32 %v543, 2147483648
        %v601 = vor.u32 1.1754944e-38, %v600
        %v602 = vsel %vm599, %v601, %v597
        %v603 = vmul.f32 1.0, %v602
        %v604 = vrcp.pop %v544
        %v605 = vmul.f32 %v544, %v604
        %v606 = vsub.f32 1.0, %v605
        %v607 = vmul.f32 %v604, %v606
        %v608 = vadd.f32 %v604, %v607
        %vm609 = vweird.f32 %v544
        %vm610 = vweird.f32 %v604
        %vm611 = vmor %vm609, %vm610
        %v612 = vsel %vm611, %v604, %v608
        %v613 = vand.u32 2147483647, %v544
        %vm614 = vcmp.eq.f32.partialorder %v613, 8.507059e+37
        %v615 = vand.u32 %v544, 2147483648
        %v616 = vor.u32 1.1754944e-38, %v615
        %v617 = vsel %vm614, %v616, %v612
        %v618 = vmul.f32 1.0, %v617
        %v619 = vrcp.pop %v545
        %v620 = vmul.f32 %v545, %v619
        %v621 = vsub.f32 1.0, %v620
        %v622 = vmul.f32 %v619, %v621
        %v623 = vadd.f32 %v619, %v622
        %vm624 = vweird.f32 %v545
        %vm625 = vweird.f32 %v619
        %vm626 = vmor %vm624, %vm625
        %v627 = vsel %vm626, %v619, %v623
        %v628 = vand.u32 2147483647, %v545
        %vm629 = vcmp.eq.f32.partialorder %v628, 8.507059e+37
        %v630 = vand.u32 %v545, 2147483648
        %v631 = vor.u32 1.1754944e-38, %v630
        %v632 = vsel %vm629, %v631, %v627
        %v633 = vmul.f32 1.0, %v632
        %v634 = vrcp.pop %v546
        %v635 = vmul.f32 %v546, %v634
        %v636 = vsub.f32 1.0, %v635
        %v637 = vmul.f32 %v634, %v636
        %v638 = vadd.f32 %v634, %v637
        %vm639 = vweird.f32 %v546
        %vm640 = vweird.f32 %v634
        %vm641 = vmor %vm639, %vm640
        %v642 = vsel %vm641, %v634, %v638
        %v643 = vand.u32 2147483647, %v546
        %vm644 = vcmp.eq.f32.partialorder %v643, 8.507059e+37
        %v645 = vand.u32 %v546, 2147483648
        %v646 = vor.u32 1.1754944e-38, %v645
        %v647 = vsel %vm644, %v646, %v642
        %v648 = vmul.f32 1.0, %v647
        %v649 = vrcp.pop %v547
        %v650 = vmul.f32 %v547, %v649
        %v651 = vsub.f32 1.0, %v650
        %v652 = vmul.f32 %v649, %v651
        %v653 = vadd.f32 %v649, %v652
        %vm654 = vweird.f32 %v547
        %vm655 = vweird.f32 %v649
        %vm656 = vmor %vm654, %vm655
        %v657 = vsel %vm656, %v649, %v653
        %v658 = vand.u32 2147483647, %v547
        %vm659 = vcmp.eq.f32.partialorder %v658, 8.507059e+37
        %v660 = vand.u32 %v547, 2147483648
        %v661 = vor.u32 1.1754944e-38, %v660
        %v662 = vsel %vm659, %v661, %v657
        %v663 = vmul.f32 1.0, %v662
        %v664 = vrcp.pop %v548
        %v665 = vmul.f32 %v548, %v664
        %v666 = vsub.f32 1.0, %v665
        %v667 = vmul.f32 %v664, %v666
        %v668 = vadd.f32 %v664, %v667
        %vm669 = vweird.f32 %v548
        %vm670 = vweird.f32 %v664
        %vm671 = vmor %vm669, %vm670
        %v672 = vsel %vm671, %v664, %v668
        %v673 = vand.u32 2147483647, %v548
        %vm674 = vcmp.eq.f32.partialorder %v673, 8.507059e+37
        %v675 = vand.u32 %v548, 2147483648
        %v676 = vor.u32 1.1754944e-38, %v675
        %v677 = vsel %vm674, %v676, %v672
        %v678 = vmul.f32 1.0, %v677
        %v679 = vrcp.pop %v549
        %v680 = vmul.f32 %v549, %v679
        %v681 = vsub.f32 1.0, %v680
        %v682 = vmul.f32 %v679, %v681
        %v683 = vadd.f32 %v679, %v682
        %vm684 = vweird.f32 %v549
        %vm685 = vweird.f32 %v679
        %vm686 = vmor %vm684, %vm685
        %v687 = vsel %vm686, %v679, %v683
        %v688 = vand.u32 2147483647, %v549
        %vm689 = vcmp.eq.f32.partialorder %v688, 8.507059e+37
        %v690 = vand.u32 %v549, 2147483648
        %v691 = vor.u32 1.1754944e-38, %v690
        %v692 = vsel %vm689, %v691, %v687
        %v693 = vmul.f32 1.0, %v692
        %v694 = vrcp.pop %v550
        %v695 = vmul.f32 %v550, %v694
        %v696 = vsub.f32 1.0, %v695
        %v697 = vmul.f32 %v694, %v696
        %v698 = vadd.f32 %v694, %v697
        %vm699 = vweird.f32 %v550
        %vm700 = vweird.f32 %v694
        %vm701 = vmor %vm699, %vm700
        %v702 = vsel %vm701, %v694, %v698
        %v703 = vand.u32 2147483647, %v550
        %vm704 = vcmp.eq.f32.partialorder %v703, 8.507059e+37
        %v705 = vand.u32 %v550, 2147483648
        %v706 = vor.u32 1.1754944e-38, %v705
        %v707 = vsel %vm704, %v706, %v702
        %v708 = vmul.f32 1.0, %v707
        %v709 = vrcp.pop %v551
        %v710 = vmul.f32 %v551, %v709
        %v711 = vsub.f32 1.0, %v710
        %v712 = vmul.f32 %v709, %v711
        %v713 = vadd.f32 %v709, %v712
        %vm714 = vweird.f32 %v551
        %vm715 = vweird.f32 %v709
        %vm716 = vmor %vm714, %vm715
        %v717 = vsel %vm716, %v709, %v713
        %v718 = vand.u32 2147483647, %v551
        %vm719 = vcmp.eq.f32.partialorder %v718, 8.507059e+37
        %v720 = vand.u32 %v551, 2147483648
        %v721 = vor.u32 1.1754944e-38, %v720
        %v722 = vsel %vm719, %v721, %v717
        %v723 = vmul.f32 1.0, %v722
        %v724 = vrcp.pop %v552
        %v725 = vmul.f32 %v552, %v724
        %v726 = vsub.f32 1.0, %v725
        %v727 = vmul.f32 %v724, %v726
        %v728 = vadd.f32 %v724, %v727
        %vm729 = vweird.f32 %v552
        %vm730 = vweird.f32 %v724
        %vm731 = vmor %vm729, %vm730
        %v732 = vsel %vm731, %v724, %v728
        %v733 = vand.u32 2147483647, %v552
        %vm734 = vcmp.eq.f32.partialorder %v733, 8.507059e+37
        %v735 = vand.u32 %v552, 2147483648
        %v736 = vor.u32 1.1754944e-38, %v735
        %v737 = vsel %vm734, %v736, %v732
        %v738 = vmul.f32 1.0, %v737
        %v739 = vrcp.pop %v553
        %v740 = vmul.f32 %v553, %v739
        %v741 = vsub.f32 1.0, %v740
        %v742 = vmul.f32 %v739, %v741
        %v743 = vadd.f32 %v739, %v742
        %vm744 = vweird.f32 %v553
        %vm745 = vweird.f32 %v739
        %vm746 = vmor %vm744, %vm745
        %v747 = vsel %vm746, %v739, %v743
        %v748 = vand.u32 2147483647, %v553
        %vm749 = vcmp.eq.f32.partialorder %v748, 8.507059e+37
        %v750 = vand.u32 %v553, 2147483648
        %v751 = vor.u32 1.1754944e-38, %v750
        %v752 = vsel %vm749, %v751, %v747
        %v753 = vmul.f32 1.0, %v752
        %v754 = vrcp.pop %v554
        %v755 = vmul.f32 %v554, %v754
        %v756 = vsub.f32 1.0, %v755
        %v757 = vmul.f32 %v754, %v756
        %v758 = vadd.f32 %v754, %v757
        %vm759 = vweird.f32 %v554
        %vm760 = vweird.f32 %v754
        %vm761 = vmor %vm759, %vm760
        %v762 = vsel %vm761, %v754, %v758
        %v763 = vand.u32 2147483647, %v554
        %vm764 = vcmp.eq.f32.partialorder %v763, 8.507059e+37
        %v765 = vand.u32 %v554, 2147483648
        %v766 = vor.u32 1.1754944e-38, %v765
        %v767 = vsel %vm764, %v766, %v762
        %v768 = vmul.f32 1.0, %v767
        %v769 = vrcp.pop %v555
        %v770 = vmul.f32 %v555, %v769
        %v771 = vsub.f32 1.0, %v770
        %v772 = vmul.f32 %v769, %v771
        %v773 = vadd.f32 %v769, %v772
        %vm774 = vweird.f32 %v555
        %vm775 = vweird.f32 %v769
        %vm776 = vmor %vm774, %vm775
        %v777 = vsel %vm776, %v769, %v773
        %v778 = vand.u32 2147483647, %v555
        %vm779 = vcmp.eq.f32.partialorder %v778, 8.507059e+37
        %v780 = vand.u32 %v555, 2147483648
        %v781 = vor.u32 1.1754944e-38, %v780
        %v782 = vsel %vm779, %v781, %v777
        %v783 = vmul.f32 1.0, %v782
        %v784 = vrcp.pop %v556
        %v785 = vmul.f32 %v556, %v784
        %v786 = vsub.f32 1.0, %v785
        %v787 = vmul.f32 %v784, %v786
        %v788 = vadd.f32 %v784, %v787
        %vm789 = vweird.f32 %v556
        %vm790 = vweird.f32 %v784
        %vm791 = vmor %vm789, %vm790
        %v792 = vsel %vm791, %v784, %v788
        %v793 = vand.u32 2147483647, %v556
        %vm794 = vcmp.eq.f32.partialorder %v793, 8.507059e+37
        %v795 = vand.u32 %v556, 2147483648
        %v796 = vor.u32 1.1754944e-38, %v795
        %v797 = vsel %vm794, %v796, %v792
        %v798 = vmul.f32 1.0, %v797
        %v799 = vrcp.pop %v557
        %v800 = vmul.f32 %v557, %v799
        %v801 = vsub.f32 1.0, %v800
        %v802 = vmul.f32 %v799, %v801
        %v803 = vadd.f32 %v799, %v802
        %vm804 = vweird.f32 %v557
        %vm805 = vweird.f32 %v799
        %vm806 = vmor %vm804, %vm805
        %v807 = vsel %vm806, %v799, %v803
        %v808 = vand.u32 2147483647, %v557
        %vm809 = vcmp.eq.f32.partialorder %v808, 8.507059e+37
        %v810 = vand.u32 %v557, 2147483648
        %v811 = vor.u32 1.1754944e-38, %v810
        %v812 = vsel %vm809, %v811, %v807
        %v813 = vmul.f32 1.0, %v812
        %v814 = vrcp.pop %v558
        %v815 = vmul.f32 %v558, %v814
        %v816 = vsub.f32 1.0, %v815
        %v817 = vmul.f32 %v814, %v816
        %v818 = vadd.f32 %v814, %v817
        %vm819 = vweird.f32 %v558
        %vm820 = vweird.f32 %v814
        %vm821 = vmor %vm819, %vm820
        %v822 = vsel %vm821, %v814, %v818
        %v823 = vand.u32 2147483647, %v558
        %vm824 = vcmp.eq.f32.partialorder %v823, 8.507059e+37
        %v825 = vand.u32 %v558, 2147483648
        %v826 = vor.u32 1.1754944e-38, %v825
        %v827 = vsel %vm824, %v826, %v822
        %v828 = vmul.f32 1.0, %v827
        %v829 = vrcp.pop %v559
        %v830 = vmul.f32 %v559, %v829
        %v831 = vsub.f32 1.0, %v830
        %v832 = vmul.f32 %v829, %v831
        %v833 = vadd.f32 %v829, %v832
        %vm834 = vweird.f32 %v559
        %vm835 = vweird.f32 %v829
        %vm836 = vmor %vm834, %vm835
        %v837 = vsel %vm836, %v829, %v833
        %v838 = vand.u32 2147483647, %v559
        %vm839 = vcmp.eq.f32.partialorder %v838, 8.507059e+37
        %v840 = vand.u32 %v559, 2147483648
        %v841 = vor.u32 1.1754944e-38, %v840
        %v842 = vsel %vm839, %v841, %v837
        %v843 = vmul.f32 1.0, %v842
        %v844 = vrcp.pop %v560
        %v845 = vmul.f32 %v560, %v844
        %v846 = vsub.f32 1.0, %v845
        %v847 = vmul.f32 %v844, %v846
        %v848 = vadd.f32 %v844, %v847
        %vm849 = vweird.f32 %v560
        %vm850 = vweird.f32 %v844
        %vm851 = vmor %vm849, %vm850
        %v852 = vsel %vm851, %v844, %v848
        %v853 = vand.u32 2147483647, %v560
        %vm854 = vcmp.eq.f32.partialorder %v853, 8.507059e+37
        %v855 = vand.u32 %v560, 2147483648
        %v856 = vor.u32 1.1754944e-38, %v855
        %v857 = vsel %vm854, %v856, %v852
        %v858 = vmul.f32 1.0, %v857
        %v859 = vrcp.pop %v561
        %v860 = vmul.f32 %v561, %v859
        %v861 = vsub.f32 1.0, %v860
        %v862 = vmul.f32 %v859, %v861
        %v863 = vadd.f32 %v859, %v862
        %vm864 = vweird.f32 %v561
        %vm865 = vweird.f32 %v859
        %vm866 = vmor %vm864, %vm865
        %v867 = vsel %vm866, %v859, %v863
        %v868 = vand.u32 2147483647, %v561
        %vm869 = vcmp.eq.f32.partialorder %v868, 8.507059e+37
        %v870 = vand.u32 %v561, 2147483648
        %v871 = vor.u32 1.1754944e-38, %v870
        %v872 = vsel %vm869, %v871, %v867
        %v873 = vmul.f32 1.0, %v872
        %v874 = vrcp.pop %v562
        %v875 = vmul.f32 %v562, %v874
        %v876 = vsub.f32 1.0, %v875
        %v877 = vmul.f32 %v874, %v876
        %v878 = vadd.f32 %v874, %v877
        %vm879 = vweird.f32 %v562
        %vm880 = vweird.f32 %v874
        %vm881 = vmor %vm879, %vm880
        %v882 = vsel %vm881, %v874, %v878
        %v883 = vand.u32 2147483647, %v562
        %vm884 = vcmp.eq.f32.partialorder %v883, 8.507059e+37
        %v885 = vand.u32 %v562, 2147483648
        %v886 = vor.u32 1.1754944e-38, %v885
        %v887 = vsel %vm884, %v886, %v882
        %v888 = vmul.f32 1.0, %v887
        %v889 = vrcp.pop %v563
        %v890 = vmul.f32 %v563, %v889
        %v891 = vsub.f32 1.0, %v890
        %v892 = vmul.f32 %v889, %v891
        %v893 = vadd.f32 %v889, %v892
        %vm894 = vweird.f32 %v563
        %vm895 = vweird.f32 %v889
        %vm896 = vmor %vm894, %vm895
        %v897 = vsel %vm896, %v889, %v893
        %v898 = vand.u32 2147483647, %v563
        %vm899 = vcmp.eq.f32.partialorder %v898, 8.507059e+37
        %v900 = vand.u32 %v563, 2147483648
        %v901 = vor.u32 1.1754944e-38, %v900
        %v902 = vsel %vm899, %v901, %v897
        %v903 = vmul.f32 1.0, %v902
        %v904 = vrcp.pop %v564
        %v905 = vmul.f32 %v564, %v904
        %v906 = vsub.f32 1.0, %v905
        %v907 = vmul.f32 %v904, %v906
        %v908 = vadd.f32 %v904, %v907
        %vm909 = vweird.f32 %v564
        %vm910 = vweird.f32 %v904
        %vm911 = vmor %vm909, %vm910
        %v912 = vsel %vm911, %v904, %v908
        %v913 = vand.u32 2147483647, %v564
        %vm914 = vcmp.eq.f32.partialorder %v913, 8.507059e+37
        %v915 = vand.u32 %v564, 2147483648
        %v916 = vor.u32 1.1754944e-38, %v915
        %v917 = vsel %vm914, %v916, %v912
        %v918 = vmul.f32 1.0, %v917
        %v919 = vrcp.pop %v565
        %v920 = vmul.f32 %v565, %v919
        %v921 = vsub.f32 1.0, %v920
        %v922 = vmul.f32 %v919, %v921
        %v923 = vadd.f32 %v919, %v922
        %vm924 = vweird.f32 %v565
        %vm925 = vweird.f32 %v919
        %vm926 = vmor %vm924, %vm925
        %v927 = vsel %vm926, %v919, %v923
        %v928 = vand.u32 2147483647, %v565
        %vm929 = vcmp.eq.f32.partialorder %v928, 8.507059e+37
        %v930 = vand.u32 %v565, 2147483648
        %v931 = vor.u32 1.1754944e-38, %v930
        %v932 = vsel %vm929, %v931, %v927
        %v933 = vmul.f32 1.0, %v932
        %v934 = vrcp.pop %v566
        %v935 = vmul.f32 %v566, %v934
        %v936 = vsub.f32 1.0, %v935
        %v937 = vmul.f32 %v934, %v936
        %v938 = vadd.f32 %v934, %v937
        %vm939 = vweird.f32 %v566
        %vm940 = vweird.f32 %v934
        %vm941 = vmor %vm939, %vm940
        %v942 = vsel %vm941, %v934, %v938
        %v943 = vand.u32 2147483647, %v566
        %vm944 = vcmp.eq.f32.partialorder %v943, 8.507059e+37
        %v945 = vand.u32 %v566, 2147483648
        %v946 = vor.u32 1.1754944e-38, %v945
        %v947 = vsel %vm944, %v946, %v942
        %v948 = vmul.f32 1.0, %v947
        %v949 = vrcp.pop %v567
        %v950 = vmul.f32 %v567, %v949
        %v951 = vsub.f32 1.0, %v950
        %v952 = vmul.f32 %v949, %v951
        %v953 = vadd.f32 %v949, %v952
        %vm954 = vweird.f32 %v567
        %vm955 = vweird.f32 %v949
        %vm956 = vmor %vm954, %vm955
        %v957 = vsel %vm956, %v949, %v953
        %v958 = vand.u32 2147483647, %v567
        %vm959 = vcmp.eq.f32.partialorder %v958, 8.507059e+37
        %v960 = vand.u32 %v567, 2147483648
        %v961 = vor.u32 1.1754944e-38, %v960
        %v962 = vsel %vm959, %v961, %v957
        %v963 = vmul.f32 1.0, %v962
        %v964 = vrcp.pop %v568
        %v965 = vmul.f32 %v568, %v964
        %v966 = vsub.f32 1.0, %v965
        %v967 = vmul.f32 %v964, %v966
        %v968 = vadd.f32 %v964, %v967
        %vm969 = vweird.f32 %v568
        %vm970 = vweird.f32 %v964
        %vm971 = vmor %vm969, %vm970
        %v972 = vsel %vm971, %v964, %v968
        %v973 = vand.u32 2147483647, %v568
        %vm974 = vcmp.eq.f32.partialorder %v973, 8.507059e+37
        %v975 = vand.u32 %v568, 2147483648
        %v976 = vor.u32 1.1754944e-38, %v975
        %v977 = vsel %vm974, %v976, %v972
        %v978 = vmul.f32 1.0, %v977
        %v979 = vrcp.pop %v569
        %v980 = vmul.f32 %v569, %v979
        %v981 = vsub.f32 1.0, %v980
        %v982 = vmul.f32 %v979, %v981
        %v983 = vadd.f32 %v979, %v982
        %vm984 = vweird.f32 %v569
        %vm985 = vweird.f32 %v979
        %vm986 = vmor %vm984, %vm985
        %v987 = vsel %vm986, %v979, %v983
        %v988 = vand.u32 2147483647, %v569
        %vm989 = vcmp.eq.f32.partialorder %v988, 8.507059e+37
        %v990 = vand.u32 %v569, 2147483648
        %v991 = vor.u32 1.1754944e-38, %v990
        %v992 = vsel %vm989, %v991, %v987
        %v993 = vmul.f32 1.0, %v992
        %v994 = vrcp.pop %v570
        %v995 = vmul.f32 %v570, %v994
        %v996 = vsub.f32 1.0, %v995
        %v997 = vmul.f32 %v994, %v996
        %v998 = vadd.f32 %v994, %v997
        %vm999 = vweird.f32 %v570
        %vm1000 = vweird.f32 %v994
        %vm1001 = vmor %vm999, %vm1000
        %v1002 = vsel %vm1001, %v994, %v998
        %v1003 = vand.u32 2147483647, %v570
        %vm1004 = vcmp.eq.f32.partialorder %v1003, 8.507059e+37
        %v1005 = vand.u32 %v570, 2147483648
        %v1006 = vor.u32 1.1754944e-38, %v1005
        %v1007 = vsel %vm1004, %v1006, %v1002
        %v1008 = vmul.f32 1.0, %v1007
        %v1009 = vrcp.pop %v571
        %v1010 = vmul.f32 %v571, %v1009
        %v1011 = vsub.f32 1.0, %v1010
        %v1012 = vmul.f32 %v1009, %v1011
        %v1013 = vadd.f32 %v1009, %v1012
        %vm1014 = vweird.f32 %v571
        %vm1015 = vweird.f32 %v1009
        %vm1016 = vmor %vm1014, %vm1015
        %v1017 = vsel %vm1016, %v1009, %v1013
        %v1018 = vand.u32 2147483647, %v571
        %vm1019 = vcmp.eq.f32.partialorder %v1018, 8.507059e+37
        %v1020 = vand.u32 %v571, 2147483648
        %v1021 = vor.u32 1.1754944e-38, %v1020
        %v1022 = vsel %vm1019, %v1021, %v1017
        %v1023 = vmul.f32 1.0, %v1022
        %v1024 = vrcp.pop %v572
        %v1025 = vmul.f32 %v572, %v1024
        %v1026 = vsub.f32 1.0, %v1025
        %v1027 = vmul.f32 %v1024, %v1026
        %v1028 = vadd.f32 %v1024, %v1027
        %vm1029 = vweird.f32 %v572
        %vm1030 = vweird.f32 %v1024
        %vm1031 = vmor %vm1029, %vm1030
        %v1032 = vsel %vm1031, %v1024, %v1028
        %v1033 = vand.u32 2147483647, %v572
        %vm1034 = vcmp.eq.f32.partialorder %v1033, 8.507059e+37
        %v1035 = vand.u32 %v572, 2147483648
        %v1036 = vor.u32 1.1754944e-38, %v1035
        %v1037 = vsel %vm1034, %v1036, %v1032
        %v1038 = vmul.f32 1.0, %v1037
        %v1039 = vrcp.pop %v573
        %v1040 = vmul.f32 %v573, %v1039
        %v1041 = vsub.f32 1.0, %v1040
        %v1042 = vmul.f32 %v1039, %v1041
        %v1043 = vadd.f32 %v1039, %v1042
        %vm1044 = vweird.f32 %v573
        %vm1045 = vweird.f32 %v1039
        %vm1046 = vmor %vm1044, %vm1045
        %v1047 = vsel %vm1046, %v1039, %v1043
        %v1048 = vand.u32 2147483647, %v573
        %vm1049 = vcmp.eq.f32.partialorder %v1048, 8.507059e+37
        %v1050 = vand.u32 %v573, 2147483648
        %v1051 = vor.u32 1.1754944e-38, %v1050
        %v1052 = vsel %vm1049, %v1051, %v1047
        %v1053 = vmul.f32 1.0, %v1052
        %v1054 = vmul.f32 %v367, %v588
        %v1055 = vmul.f32 %v369, %v603
        %v1056 = vmul.f32 %v372, %v618
        %v1057 = vmul.f32 %v374, %v633
        %v1058 = vmul.f32 %v377, %v648
        %v1059 = vmul.f32 %v379, %v663
        %v1060 = vmul.f32 %v382, %v678
        %v1061 = vmul.f32 %v384, %v693
        %v1062 = vmul.f32 %v387, %v708
        %v1063 = vmul.f32 %v389, %v723
        %v1064 = vmul.f32 %v392, %v738
        %v1065 = vmul.f32 %v394, %v753
        %v1066 = vmul.f32 %v397, %v768
        %v1067 = vmul.f32 %v399, %v783
        %v1068 = vmul.f32 %v402, %v798
        %v1069 = vmul.f32 %v404, %v813
        %v1070 = vmul.f32 %v407, %v828
        %v1071 = vmul.f32 %v409, %v843
        %v1072 = vmul.f32 %v412, %v858
        %v1073 = vmul.f32 %v414, %v873
        %v1074 = vmul.f32 %v417, %v888
        %v1075 = vmul.f32 %v419, %v903
        %v1076 = vmul.f32 %v422, %v918
        %v1077 = vmul.f32 %v424, %v933
        %v1078 = vmul.f32 %v427, %v948
        %v1079 = vmul.f32 %v429, %v963
        %v1080 = vmul.f32 %v432, %v978
        %v1081 = vmul.f32 %v434, %v993
        %v1082 = vmul.f32 %v437, %v1008
        %v1083 = vmul.f32 %v439, %v1023
        %v1084 = vmul.f32 %v442, %v1038
        %v1085 = vmul.f32 %v444, %v1053
        %v1086 = vlaneseq
        %v1087 = vshrl.u32 %v1086, 7
        %v1088 = vadd.s32 %v1087, 8
        %v1089 = vadd.s32 %v1087, 16
        %v1090 = vadd.s32 %v1087, 24
        %v1091 = vadd.s32 %v1087, 32
        %v1092 = vadd.s32 %v1087, 40
        %v1093 = vadd.s32 %v1087, 48
        %v1094 = vadd.s32 %v1087, 56
        %v1095 = vadd.s32 %v1087, 64
        %v1096 = vadd.s32 %v1087, 72
        %v1097 = vadd.s32 %v1087, 80
        %v1098 = vadd.s32 %v1087, 88
        %v1099 = vadd.s32 %v1087, 96
        %v1100 = vadd.s32 %v1087, 104
        %v1101 = vadd.s32 %v1087, 112
        %v1102 = vadd.s32 %v1087, 120
        %v1103 = vadd.s32 %v1087, 128
        %v1104 = vadd.s32 %v1087, 136
        %v1105 = vadd.s32 %v1087, 144
        %v1106 = vadd.s32 %v1087, 152
        %v1107 = vadd.s32 %v1087, 160
        %v1108 = vadd.s32 %v1087, 168
        %v1109 = vadd.s32 %v1087, 176
        %v1110 = vadd.s32 %v1087, 184
        %v1111 = vadd.s32 %v1087, 192
        %v1112 = vadd.s32 %v1087, 200
        %v1113 = vadd.s32 %v1087, 208
        %v1114 = vadd.s32 %v1087, 216
        %v1115 = vadd.s32 %v1087, 224
        %v1116 = vadd.s32 %v1087, 232
        %v1117 = vadd.s32 %v1087, 240
        %v1118 = vadd.s32 %v1087, 248
        %v1119 = vld [vmem:[%s5] sm:$0xff]
        %v1120 = vld [vmem:[%s5 + $0x8] sm:$0xff]
        %v1121 = vld [vmem:[%s5 + $0x10] sm:$0xff]
        %v1122 = vld [vmem:[%s5 + $0x18] sm:$0xff]
        %v1123 = vld [vmem:[%s5 + $0x20] sm:$0xff]
        %v1124 = vld [vmem:[%s5 + $0x28] sm:$0xff]
        %v1125 = vld [vmem:[%s5 + $0x30] sm:$0xff]
        %v1126 = vld [vmem:[%s5 + $0x38] sm:$0xff]
        %v1127 = vld [vmem:[%s5 + $0x40] sm:$0xff]
        %v1128 = vld [vmem:[%s5 + $0x48] sm:$0xff]
        %v1129 = vld [vmem:[%s5 + $0x50] sm:$0xff]
        %v1130 = vld [vmem:[%s5 + $0x58] sm:$0xff]
        %v1131 = vld [vmem:[%s5 + $0x60] sm:$0xff]
        %v1132 = vld [vmem:[%s5 + $0x68] sm:$0xff]
        %v1133 = vld [vmem:[%s5 + $0x70] sm:$0xff]
        %v1134 = vld [vmem:[%s5 + $0x78] sm:$0xff]
        %v1135 = vld [vmem:[%s5 + $0x80] sm:$0xff]
        %v1136 = vld [vmem:[%s5 + $0x88] sm:$0xff]
        %v1137 = vld [vmem:[%s5 + $0x90] sm:$0xff]
        %v1138 = vld [vmem:[%s5 + $0x98] sm:$0xff]
        %v1139 = vld [vmem:[%s5 + $0xa0] sm:$0xff]
        %v1140 = vld [vmem:[%s5 + $0xa8] sm:$0xff]
        %v1141 = vld [vmem:[%s5 + $0xb0] sm:$0xff]
        %v1142 = vld [vmem:[%s5 + $0xb8] sm:$0xff]
        %v1143 = vld [vmem:[%s5 + $0xc0] sm:$0xff]
        %v1144 = vld [vmem:[%s5 + $0xc8] sm:$0xff]
        %v1145 = vld [vmem:[%s5 + $0xd0] sm:$0xff]
        %v1146 = vld [vmem:[%s5 + $0xd8] sm:$0xff]
        %v1147 = vld [vmem:[%s5 + $0xe0] sm:$0xff]
        %v1148 = vld [vmem:[%s5 + $0xe8] sm:$0xff]
        %v1149 = vld [vmem:[%s5 + $0xf0] sm:$0xff]
        %v1150 = vld [vmem:[%s5 + $0xf8] sm:$0xff]
        %v1151 = vrot.slane %v1087, 7
        %v1152 = vrot.slane %v1088, 7
        %v1153 = vrot.slane %v1089, 7
        %v1154 = vrot.slane %v1090, 7
        %v1155 = vrot.slane %v1091, 7
        %v1156 = vrot.slane %v1092, 7
        %v1157 = vrot.slane %v1093, 7
        %v1158 = vrot.slane %v1094, 7
        %v1159 = vrot.slane %v1095, 7
        %v1160 = vrot.slane %v1096, 7
        %v1161 = vrot.slane %v1097, 7
        %v1162 = vrot.slane %v1098, 7
        %v1163 = vrot.slane %v1099, 7
        %v1164 = vrot.slane %v1100, 7
        %v1165 = vrot.slane %v1101, 7
        %v1166 = vrot.slane %v1102, 7
        %v1167 = vrot.slane %v1103, 7
        %v1168 = vrot.slane %v1104, 7
        %v1169 = vrot.slane %v1105, 7
        %v1170 = vrot.slane %v1106, 7
        %v1171 = vrot.slane %v1107, 7
        %v1172 = vrot.slane %v1108, 7
        %v1173 = vrot.slane %v1109, 7
        %v1174 = vrot.slane %v1110, 7
        %v1175 = vrot.slane %v1111, 7
        %v1176 = vrot.slane %v1112, 7
        %v1177 = vrot.slane %v1113, 7
        %v1178 = vrot.slane %v1114, 7
        %v1179 = vrot.slane %v1115, 7
        %v1180 = vrot.slane %v1116, 7
        %v1181 = vrot.slane %v1117, 7
        %v1182 = vrot.slane %v1118, 7
        %vm1183 = vcmp.lt.s32.totalorder %v1087, 1
        %v1184 = vsel %vm1183, %v1181, %v1182
        %v1185 = vsel %vm1183, %v1180, %v1181
        %v1186 = vsel %vm1183, %v1179, %v1180
        %v1187 = vsel %vm1183, %v1178, %v1179
        %v1188 = vsel %vm1183, %v1177, %v1178
        %v1189 = vsel %vm1183, %v1176, %v1177
        %v1190 = vsel %vm1183, %v1175, %v1176
        %v1191 = vsel %vm1183, %v1174, %v1175
        %v1192 = vsel %vm1183, %v1173, %v1174
        %v1193 = vsel %vm1183, %v1172, %v1173
        %v1194 = vsel %vm1183, %v1171, %v1172
        %v1195 = vsel %vm1183, %v1170, %v1171
        %v1196 = vsel %vm1183, %v1169, %v1170
        %v1197 = vsel %vm1183, %v1168, %v1169
        %v1198 = vsel %vm1183, %v1167, %v1168
        %v1199 = vsel %vm1183, %v1166, %v1167
        %v1200 = vsel %vm1183, %v1165, %v1166
        %v1201 = vsel %vm1183, %v1164, %v1165
        %v1202 = vsel %vm1183, %v1163, %v1164
        %v1203 = vsel %vm1183, %v1162, %v1163
        %v1204 = vsel %vm1183, %v1161, %v1162
        %v1205 = vsel %vm1183, %v1160, %v1161
        %v1206 = vsel %vm1183, %v1159, %v1160
        %v1207 = vsel %vm1183, %v1158, %v1159
        %v1208 = vsel %vm1183, %v1157, %v1158
        %v1209 = vsel %vm1183, %v1156, %v1157
        %v1210 = vsel %vm1183, %v1155, %v1156
        %v1211 = vsel %vm1183, %v1154, %v1155
        %v1212 = vsel %vm1183, %v1153, %v1154
        %v1213 = vsel %vm1183, %v1152, %v1153
        %v1214 = vsel %vm1183, %v1151, %v1152
        %v1215 = vsel %vm1183, %v1182, %v1151
        %v1216 = vsub.s32 %v1215, %v1087
        %v1217 = vsub.s32 %v1214, %v1088
        %v1218 = vsub.s32 %v1213, %v1089
        %v1219 = vsub.s32 %v1212, %v1090
        %v1220 = vsub.s32 %v1211, %v1091
        %v1221 = vsub.s32 %v1210, %v1092
        %v1222 = vsub.s32 %v1209, %v1093
        %v1223 = vsub.s32 %v1208, %v1094
        %v1224 = vsub.s32 %v1207, %v1095
        %v1225 = vsub.s32 %v1206, %v1096
        %v1226 = vsub.s32 %v1205, %v1097
        %v1227 = vsub.s32 %v1204, %v1098
        %v1228 = vsub.s32 %v1203, %v1099
        %v1229 = vsub.s32 %v1202, %v1100
        %v1230 = vsub.s32 %v1201, %v1101
        %v1231 = vsub.s32 %v1200, %v1102
        %v1232 = vsub.s32 %v1199, %v1103
        %v1233 = vsub.s32 %v1198, %v1104
        %v1234 = vsub.s32 %v1197, %v1105
        %v1235 = vsub.s32 %v1196, %v1106
        %v1236 = vsub.s32 %v1195, %v1107
        %v1237 = vsub.s32 %v1194, %v1108
        %v1238 = vsub.s32 %v1193, %v1109
        %v1239 = vsub.s32 %v1192, %v1110
        %v1240 = vsub.s32 %v1191, %v1111
        %v1241 = vsub.s32 %v1190, %v1112
        %v1242 = vsub.s32 %v1189, %v1113
        %v1243 = vsub.s32 %v1188, %v1114
        %v1244 = vsub.s32 %v1187, %v1115
        %v1245 = vsub.s32 %v1186, %v1116
        %v1246 = vsub.s32 %v1185, %v1117
        %v1247 = vsub.s32 %v1184, %v1118
        %vm1248 = vcmp.eq.s32.totalorder %v1216, 1
        %vm1249 = vcmp.eq.s32.totalorder %v1217, 1
        %vm1250 = vcmp.eq.s32.totalorder %v1218, 1
        %vm1251 = vcmp.eq.s32.totalorder %v1219, 1
        %vm1252 = vcmp.eq.s32.totalorder %v1220, 1
        %vm1253 = vcmp.eq.s32.totalorder %v1221, 1
        %vm1254 = vcmp.eq.s32.totalorder %v1222, 1
        %vm1255 = vcmp.eq.s32.totalorder %v1223, 1
        %vm1256 = vcmp.eq.s32.totalorder %v1224, 1
        %vm1257 = vcmp.eq.s32.totalorder %v1225, 1
        %vm1258 = vcmp.eq.s32.totalorder %v1226, 1
        %vm1259 = vcmp.eq.s32.totalorder %v1227, 1
        %vm1260 = vcmp.eq.s32.totalorder %v1228, 1
        %vm1261 = vcmp.eq.s32.totalorder %v1229, 1
        %vm1262 = vcmp.eq.s32.totalorder %v1230, 1
        %vm1263 = vcmp.eq.s32.totalorder %v1231, 1
        %vm1264 = vcmp.eq.s32.totalorder %v1232, 1
        %vm1265 = vcmp.eq.s32.totalorder %v1233, 1
        %vm1266 = vcmp.eq.s32.totalorder %v1234, 1
        %vm1267 = vcmp.eq.s32.totalorder %v1235, 1
        %vm1268 = vcmp.eq.s32.totalorder %v1236, 1
        %vm1269 = vcmp.eq.s32.totalorder %v1237, 1
        %vm1270 = vcmp.eq.s32.totalorder %v1238, 1
        %vm1271 = vcmp.eq.s32.totalorder %v1239, 1
        %vm1272 = vcmp.eq.s32.totalorder %v1240, 1
        %vm1273 = vcmp.eq.s32.totalorder %v1241, 1
        %vm1274 = vcmp.eq.s32.totalorder %v1242, 1
        %vm1275 = vcmp.eq.s32.totalorder %v1243, 1
        %vm1276 = vcmp.eq.s32.totalorder %v1244, 1
        %vm1277 = vcmp.eq.s32.totalorder %v1245, 1
        %vm1278 = vcmp.eq.s32.totalorder %v1246, 1
        %vm1279 = vcmp.eq.s32.totalorder %v1247, 1
        %vm1280 = vcmp.eq.s32.totalorder %v1216, 4294967295
        %vm1281 = vcmp.eq.s32.totalorder %v1217, 4294967295
        %vm1282 = vcmp.eq.s32.totalorder %v1218, 4294967295
        %vm1283 = vcmp.eq.s32.totalorder %v1219, 4294967295
        %vm1284 = vcmp.eq.s32.totalorder %v1220, 4294967295
        %vm1285 = vcmp.eq.s32.totalorder %v1221, 4294967295
        %vm1286 = vcmp.eq.s32.totalorder %v1222, 4294967295
        %vm1287 = vcmp.eq.s32.totalorder %v1223, 4294967295
        %vm1288 = vcmp.eq.s32.totalorder %v1224, 4294967295
        %vm1289 = vcmp.eq.s32.totalorder %v1225, 4294967295
        %vm1290 = vcmp.eq.s32.totalorder %v1226, 4294967295
        %vm1291 = vcmp.eq.s32.totalorder %v1227, 4294967295
        %vm1292 = vcmp.eq.s32.totalorder %v1228, 4294967295
        %vm1293 = vcmp.eq.s32.totalorder %v1229, 4294967295
        %vm1294 = vcmp.eq.s32.totalorder %v1230, 4294967295
        %vm1295 = vcmp.eq.s32.totalorder %v1231, 4294967295
        %vm1296 = vcmp.eq.s32.totalorder %v1232, 4294967295
        %vm1297 = vcmp.eq.s32.totalorder %v1233, 4294967295
        %vm1298 = vcmp.eq.s32.totalorder %v1234, 4294967295
        %vm1299 = vcmp.eq.s32.totalorder %v1235, 4294967295
        %vm1300 = vcmp.eq.s32.totalorder %v1236, 4294967295
        %vm1301 = vcmp.eq.s32.totalorder %v1237, 4294967295
        %vm1302 = vcmp.eq.s32.totalorder %v1238, 4294967295
        %vm1303 = vcmp.eq.s32.totalorder %v1239, 4294967295
        %vm1304 = vcmp.eq.s32.totalorder %v1240, 4294967295
        %vm1305 = vcmp.eq.s32.totalorder %v1241, 4294967295
        %vm1306 = vcmp.eq.s32.totalorder %v1242, 4294967295
        %vm1307 = vcmp.eq.s32.totalorder %v1243, 4294967295
        %vm1308 = vcmp.eq.s32.totalorder %v1244, 4294967295
        %vm1309 = vcmp.eq.s32.totalorder %v1245, 4294967295
        %vm1310 = vcmp.eq.s32.totalorder %v1246, 4294967295
        %vm1311 = vcmp.eq.s32.totalorder %v1247, 4294967295
        %vm1312 = vmor %vm1248, %vm1280
        %vm1313 = vmor %vm1249, %vm1281
        %vm1314 = vmor %vm1250, %vm1282
        %vm1315 = vmor %vm1251, %vm1283
        %vm1316 = vmor %vm1252, %vm1284
        %vm1317 = vmor %vm1253, %vm1285
        %vm1318 = vmor %vm1254, %vm1286
        %vm1319 = vmor %vm1255, %vm1287
        %vm1320 = vmor %vm1256, %vm1288
        %vm1321 = vmor %vm1257, %vm1289
        %vm1322 = vmor %vm1258, %vm1290
        %vm1323 = vmor %vm1259, %vm1291
        %vm1324 = vmor %vm1260, %vm1292
        %vm1325 = vmor %vm1261, %vm1293
        %vm1326 = vmor %vm1262, %vm1294
        %vm1327 = vmor %vm1263, %vm1295
        %vm1328 = vmor %vm1264, %vm1296
        %vm1329 = vmor %vm1265, %vm1297
        %vm1330 = vmor %vm1266, %vm1298
        %vm1331 = vmor %vm1267, %vm1299
        %vm1332 = vmor %vm1268, %vm1300
        %vm1333 = vmor %vm1269, %vm1301
        %vm1334 = vmor %vm1270, %vm1302
        %vm1335 = vmor %vm1271, %vm1303
        %vm1336 = vmor %vm1272, %vm1304
        %vm1337 = vmor %vm1273, %vm1305
        %vm1338 = vmor %vm1274, %vm1306
        %vm1339 = vmor %vm1275, %vm1307
        %vm1340 = vmor %vm1276, %vm1308
        %vm1341 = vmor %vm1277, %vm1309
        %vm1342 = vmor %vm1278, %vm1310
        %vm1343 = vmor %vm1279, %vm1311
        %v1344 = vrot.slane %v1119, 7
        %v1345 = vrot.slane %v1120, 7
        %v1346 = vrot.slane %v1121, 7
        %v1347 = vrot.slane %v1122, 7
        %v1348 = vrot.slane %v1123, 7
        %v1349 = vrot.slane %v1124, 7
        %v1350 = vrot.slane %v1125, 7
        %v1351 = vrot.slane %v1126, 7
        %v1352 = vrot.slane %v1127, 7
        %v1353 = vrot.slane %v1128, 7
        %v1354 = vrot.slane %v1129, 7
        %v1355 = vrot.slane %v1130, 7
        %v1356 = vrot.slane %v1131, 7
        %v1357 = vrot.slane %v1132, 7
        %v1358 = vrot.slane %v1133, 7
        %v1359 = vrot.slane %v1134, 7
        %v1360 = vrot.slane %v1135, 7
        %v1361 = vrot.slane %v1136, 7
        %v1362 = vrot.slane %v1137, 7
        %v1363 = vrot.slane %v1138, 7
        %v1364 = vrot.slane %v1139, 7
        %v1365 = vrot.slane %v1140, 7
        %v1366 = vrot.slane %v1141, 7
        %v1367 = vrot.slane %v1142, 7
        %v1368 = vrot.slane %v1143, 7
        %v1369 = vrot.slane %v1144, 7
        %v1370 = vrot.slane %v1145, 7
        %v1371 = vrot.slane %v1146, 7
        %v1372 = vrot.slane %v1147, 7
        %v1373 = vrot.slane %v1148, 7
        %v1374 = vrot.slane %v1149, 7
        %v1375 = vrot.slane %v1150, 7
        %v1376 = vsel %vm1183, %v1374, %v1375
        %v1377 = vsel %vm1183, %v1373, %v1374
        %v1378 = vsel %vm1183, %v1372, %v1373
        %v1379 = vsel %vm1183, %v1371, %v1372
        %v1380 = vsel %vm1183, %v1370, %v1371
        %v1381 = vsel %vm1183, %v1369, %v1370
        %v1382 = vsel %vm1183, %v1368, %v1369
        %v1383 = vsel %vm1183, %v1367, %v1368
        %v1384 = vsel %vm1183, %v1366, %v1367
        %v1385 = vsel %vm1183, %v1365, %v1366
        %v1386 = vsel %vm1183, %v1364, %v1365
        %v1387 = vsel %vm1183, %v1363, %v1364
        %v1388 = vsel %vm1183, %v1362, %v1363
        %v1389 = vsel %vm1183, %v1361, %v1362
        %v1390 = vsel %vm1183, %v1360, %v1361
        %v1391 = vsel %vm1183, %v1359, %v1360
        %v1392 = vsel %vm1183, %v1358, %v1359
        %v1393 = vsel %vm1183, %v1357, %v1358
        %v1394 = vsel %vm1183, %v1356, %v1357
        %v1395 = vsel %vm1183, %v1355, %v1356
        %v1396 = vsel %vm1183, %v1354, %v1355
        %v1397 = vsel %vm1183, %v1353, %v1354
        %v1398 = vsel %vm1183, %v1352, %v1353
        %v1399 = vsel %vm1183, %v1351, %v1352
        %v1400 = vsel %vm1183, %v1350, %v1351
        %v1401 = vsel %vm1183, %v1349, %v1350
        %v1402 = vsel %vm1183, %v1348, %v1349
        %v1403 = vsel %vm1183, %v1347, %v1348
        %v1404 = vsel %vm1183, %v1346, %v1347
        %v1405 = vsel %vm1183, %v1345, %v1346
        %v1406 = vsel %vm1183, %v1344, %v1345
        %v1407 = vsel %vm1183, %v1375, %v1344
        %v1408 = vsub.s32 %v1407, %v1119
        %v1409 = vsub.s32 %v1406, %v1120
        %v1410 = vsub.s32 %v1405, %v1121
        %v1411 = vsub.s32 %v1404, %v1122
        %v1412 = vsub.s32 %v1403, %v1123
        %v1413 = vsub.s32 %v1402, %v1124
        %v1414 = vsub.s32 %v1401, %v1125
        %v1415 = vsub.s32 %v1400, %v1126
        %v1416 = vsub.s32 %v1399, %v1127
        %v1417 = vsub.s32 %v1398, %v1128
        %v1418 = vsub.s32 %v1397, %v1129
        %v1419 = vsub.s32 %v1396, %v1130
        %v1420 = vsub.s32 %v1395, %v1131
        %v1421 = vsub.s32 %v1394, %v1132
        %v1422 = vsub.s32 %v1393, %v1133
        %v1423 = vsub.s32 %v1392, %v1134
        %v1424 = vsub.s32 %v1391, %v1135
        %v1425 = vsub.s32 %v1390, %v1136
        %v1426 = vsub.s32 %v1389, %v1137
        %v1427 = vsub.s32 %v1388, %v1138
        %v1428 = vsub.s32 %v1387, %v1139
        %v1429 = vsub.s32 %v1386, %v1140
        %v1430 = vsub.s32 %v1385, %v1141
        %v1431 = vsub.s32 %v1384, %v1142
        %v1432 = vsub.s32 %v1383, %v1143
        %v1433 = vsub.s32 %v1382, %v1144
        %v1434 = vsub.s32 %v1381, %v1145
        %v1435 = vsub.s32 %v1380, %v1146
        %v1436 = vsub.s32 %v1379, %v1147
        %v1437 = vsub.s32 %v1378, %v1148
        %v1438 = vsub.s32 %v1377, %v1149
        %v1439 = vsub.s32 %v1376, %v1150
        %vm1440 = vcmp.eq.s32.totalorder %v1408, %v1216
        %vm1441 = vcmp.eq.s32.totalorder %v1409, %v1217
        %vm1442 = vcmp.eq.s32.totalorder %v1410, %v1218
        %vm1443 = vcmp.eq.s32.totalorder %v1411, %v1219
        %vm1444 = vcmp.eq.s32.totalorder %v1412, %v1220
        %vm1445 = vcmp.eq.s32.totalorder %v1413, %v1221
        %vm1446 = vcmp.eq.s32.totalorder %v1414, %v1222
        %vm1447 = vcmp.eq.s32.totalorder %v1415, %v1223
        %vm1448 = vcmp.eq.s32.totalorder %v1416, %v1224
        %vm1449 = vcmp.eq.s32.totalorder %v1417, %v1225
        %vm1450 = vcmp.eq.s32.totalorder %v1418, %v1226
        %vm1451 = vcmp.eq.s32.totalorder %v1419, %v1227
        %vm1452 = vcmp.eq.s32.totalorder %v1420, %v1228
        %vm1453 = vcmp.eq.s32.totalorder %v1421, %v1229
        %vm1454 = vcmp.eq.s32.totalorder %v1422, %v1230
        %vm1455 = vcmp.eq.s32.totalorder %v1423, %v1231
        %vm1456 = vcmp.eq.s32.totalorder %v1424, %v1232
        %vm1457 = vcmp.eq.s32.totalorder %v1425, %v1233
        %vm1458 = vcmp.eq.s32.totalorder %v1426, %v1234
        %vm1459 = vcmp.eq.s32.totalorder %v1427, %v1235
        %vm1460 = vcmp.eq.s32.totalorder %v1428, %v1236
        %vm1461 = vcmp.eq.s32.totalorder %v1429, %v1237
        %vm1462 = vcmp.eq.s32.totalorder %v1430, %v1238
        %vm1463 = vcmp.eq.s32.totalorder %v1431, %v1239
        %vm1464 = vcmp.eq.s32.totalorder %v1432, %v1240
        %vm1465 = vcmp.eq.s32.totalorder %v1433, %v1241
        %vm1466 = vcmp.eq.s32.totalorder %v1434, %v1242
        %vm1467 = vcmp.eq.s32.totalorder %v1435, %v1243
        %vm1468 = vcmp.eq.s32.totalorder %v1436, %v1244
        %vm1469 = vcmp.eq.s32.totalorder %v1437, %v1245
        %vm1470 = vcmp.eq.s32.totalorder %v1438, %v1246
        %vm1471 = vcmp.eq.s32.totalorder %v1439, %v1247
        %vm1472 = vmand %vm1312, %vm1440
        %vm1473 = vmand %vm1313, %vm1441
        %vm1474 = vmand %vm1314, %vm1442
        %vm1475 = vmand %vm1315, %vm1443
        %vm1476 = vmand %vm1316, %vm1444
        %vm1477 = vmand %vm1317, %vm1445
        %vm1478 = vmand %vm1318, %vm1446
        %vm1479 = vmand %vm1319, %vm1447
        %vm1480 = vmand %vm1320, %vm1448
        %vm1481 = vmand %vm1321, %vm1449
        %vm1482 = vmand %vm1322, %vm1450
        %vm1483 = vmand %vm1323, %vm1451
        %vm1484 = vmand %vm1324, %vm1452
        %vm1485 = vmand %vm1325, %vm1453
        %vm1486 = vmand %vm1326, %vm1454
        %vm1487 = vmand %vm1327, %vm1455
        %vm1488 = vmand %vm1328, %vm1456
        %vm1489 = vmand %vm1329, %vm1457
        %vm1490 = vmand %vm1330, %vm1458
        %vm1491 = vmand %vm1331, %vm1459
        %vm1492 = vmand %vm1332, %vm1460
        %vm1493 = vmand %vm1333, %vm1461
        %vm1494 = vmand %vm1334, %vm1462
        %vm1495 = vmand %vm1335, %vm1463
        %vm1496 = vmand %vm1336, %vm1464
        %vm1497 = vmand %vm1337, %vm1465
        %vm1498 = vmand %vm1338, %vm1466
        %vm1499 = vmand %vm1339, %vm1467
        %vm1500 = vmand %vm1340, %vm1468
        %vm1501 = vmand %vm1341, %vm1469
        %vm1502 = vmand %vm1342, %vm1470
        %vm1503 = vmand %vm1343, %vm1471
        %v1504 = vsel %vm1472, 0.0, -inf
        %v1505 = vsel %vm1473, 0.0, -inf
        %v1506 = vsel %vm1474, 0.0, -inf
        %v1507 = vsel %vm1475, 0.0, -inf
        %v1508 = vsel %vm1476, 0.0, -inf
        %v1509 = vsel %vm1477, 0.0, -inf
        %v1510 = vsel %vm1478, 0.0, -inf
        %v1511 = vsel %vm1479, 0.0, -inf
        %v1512 = vsel %vm1480, 0.0, -inf
        %v1513 = vsel %vm1481, 0.0, -inf
        %v1514 = vsel %vm1482, 0.0, -inf
        %v1515 = vsel %vm1483, 0.0, -inf
        %v1516 = vsel %vm1484, 0.0, -inf
        %v1517 = vsel %vm1485, 0.0, -inf
        %v1518 = vsel %vm1486, 0.0, -inf
        %v1519 = vsel %vm1487, 0.0, -inf
        %v1520 = vsel %vm1488, 0.0, -inf
        %v1521 = vsel %vm1489, 0.0, -inf
        %v1522 = vsel %vm1490, 0.0, -inf
        %v1523 = vsel %vm1491, 0.0, -inf
        %v1524 = vsel %vm1492, 0.0, -inf
        %v1525 = vsel %vm1493, 0.0, -inf
        %v1526 = vsel %vm1494, 0.0, -inf
        %v1527 = vsel %vm1495, 0.0, -inf
        %v1528 = vsel %vm1496, 0.0, -inf
        %v1529 = vsel %vm1497, 0.0, -inf
        %v1530 = vsel %vm1498, 0.0, -inf
        %v1531 = vsel %vm1499, 0.0, -inf
        %v1532 = vsel %vm1500, 0.0, -inf
        %v1533 = vsel %vm1501, 0.0, -inf
        %v1534 = vsel %vm1502, 0.0, -inf
        %v1535 = vsel %vm1503, 0.0, -inf
        %v1536 = vrot.slane %v1087, 1
        %v1537 = vrot.slane %v1088, 1
        %v1538 = vrot.slane %v1089, 1
        %v1539 = vrot.slane %v1090, 1
        %v1540 = vrot.slane %v1091, 1
        %v1541 = vrot.slane %v1092, 1
        %v1542 = vrot.slane %v1093, 1
        %v1543 = vrot.slane %v1094, 1
        %v1544 = vrot.slane %v1095, 1
        %v1545 = vrot.slane %v1096, 1
        %v1546 = vrot.slane %v1097, 1
        %v1547 = vrot.slane %v1098, 1
        %v1548 = vrot.slane %v1099, 1
        %v1549 = vrot.slane %v1100, 1
        %v1550 = vrot.slane %v1101, 1
        %v1551 = vrot.slane %v1102, 1
        %v1552 = vrot.slane %v1103, 1
        %v1553 = vrot.slane %v1104, 1
        %v1554 = vrot.slane %v1105, 1
        %v1555 = vrot.slane %v1106, 1
        %v1556 = vrot.slane %v1107, 1
        %v1557 = vrot.slane %v1108, 1
        %v1558 = vrot.slane %v1109, 1
        %v1559 = vrot.slane %v1110, 1
        %v1560 = vrot.slane %v1111, 1
        %v1561 = vrot.slane %v1112, 1
        %v1562 = vrot.slane %v1113, 1
        %v1563 = vrot.slane %v1114, 1
        %v1564 = vrot.slane %v1115, 1
        %v1565 = vrot.slane %v1116, 1
        %v1566 = vrot.slane %v1117, 1
        %v1567 = vrot.slane %v1118, 1
        %vm1568 = vcmp.lt.s32.totalorder %v1087, 7
        %v1569 = vsel %vm1568, %v1566, %v1567
        %v1570 = vsel %vm1568, %v1565, %v1566
        %v1571 = vsel %vm1568, %v1564, %v1565
        %v1572 = vsel %vm1568, %v1563, %v1564
        %v1573 = vsel %vm1568, %v1562, %v1563
        %v1574 = vsel %vm1568, %v1561, %v1562
        %v1575 = vsel %vm1568, %v1560, %v1561
        %v1576 = vsel %vm1568, %v1559, %v1560
        %v1577 = vsel %vm1568, %v1558, %v1559
        %v1578 = vsel %vm1568, %v1557, %v1558
        %v1579 = vsel %vm1568, %v1556, %v1557
        %v1580 = vsel %vm1568, %v1555, %v1556
        %v1581 = vsel %vm1568, %v1554, %v1555
        %v1582 = vsel %vm1568, %v1553, %v1554
        %v1583 = vsel %vm1568, %v1552, %v1553
        %v1584 = vsel %vm1568, %v1551, %v1552
        %v1585 = vsel %vm1568, %v1550, %v1551
        %v1586 = vsel %vm1568, %v1549, %v1550
        %v1587 = vsel %vm1568, %v1548, %v1549
        %v1588 = vsel %vm1568, %v1547, %v1548
        %v1589 = vsel %vm1568, %v1546, %v1547
        %v1590 = vsel %vm1568, %v1545, %v1546
        %v1591 = vsel %vm1568, %v1544, %v1545
        %v1592 = vsel %vm1568, %v1543, %v1544
        %v1593 = vsel %vm1568, %v1542, %v1543
        %v1594 = vsel %vm1568, %v1541, %v1542
        %v1595 = vsel %vm1568, %v1540, %v1541
        %v1596 = vsel %vm1568, %v1539, %v1540
        %v1597 = vsel %vm1568, %v1538, %v1539
        %v1598 = vsel %vm1568, %v1537, %v1538
        %v1599 = vsel %vm1568, %v1536, %v1537
        %v1600 = vsel %vm1568, %v1567, %v1536
        %v1601 = vsub.s32 %v1599, %v1087
        %v1602 = vsub.s32 %v1598, %v1088
        %v1603 = vsub.s32 %v1597, %v1089
        %v1604 = vsub.s32 %v1596, %v1090
        %v1605 = vsub.s32 %v1595, %v1091
        %v1606 = vsub.s32 %v1594, %v1092
        %v1607 = vsub.s32 %v1593, %v1093
        %v1608 = vsub.s32 %v1592, %v1094
        %v1609 = vsub.s32 %v1591, %v1095
        %v1610 = vsub.s32 %v1590, %v1096
        %v1611 = vsub.s32 %v1589, %v1097
        %v1612 = vsub.s32 %v1588, %v1098
        %v1613 = vsub.s32 %v1587, %v1099
        %v1614 = vsub.s32 %v1586, %v1100
        %v1615 = vsub.s32 %v1585, %v1101
        %v1616 = vsub.s32 %v1584, %v1102
        %v1617 = vsub.s32 %v1583, %v1103
        %v1618 = vsub.s32 %v1582, %v1104
        %v1619 = vsub.s32 %v1581, %v1105
        %v1620 = vsub.s32 %v1580, %v1106
        %v1621 = vsub.s32 %v1579, %v1107
        %v1622 = vsub.s32 %v1578, %v1108
        %v1623 = vsub.s32 %v1577, %v1109
        %v1624 = vsub.s32 %v1576, %v1110
        %v1625 = vsub.s32 %v1575, %v1111
        %v1626 = vsub.s32 %v1574, %v1112
        %v1627 = vsub.s32 %v1573, %v1113
        %v1628 = vsub.s32 %v1572, %v1114
        %v1629 = vsub.s32 %v1571, %v1115
        %v1630 = vsub.s32 %v1570, %v1116
        %v1631 = vsub.s32 %v1569, %v1117
        %v1632 = vsub.s32 %v1600, %v1118
        %vm1633 = vcmp.eq.s32.totalorder %v1601, 1
        %vm1634 = vcmp.eq.s32.totalorder %v1602, 1
        %vm1635 = vcmp.eq.s32.totalorder %v1603, 1
        %vm1636 = vcmp.eq.s32.totalorder %v1604, 1
        %vm1637 = vcmp.eq.s32.totalorder %v1605, 1
        %vm1638 = vcmp.eq.s32.totalorder %v1606, 1
        %vm1639 = vcmp.eq.s32.totalorder %v1607, 1
        %vm1640 = vcmp.eq.s32.totalorder %v1608, 1
        %vm1641 = vcmp.eq.s32.totalorder %v1609, 1
        %vm1642 = vcmp.eq.s32.totalorder %v1610, 1
        %vm1643 = vcmp.eq.s32.totalorder %v1611, 1
        %vm1644 = vcmp.eq.s32.totalorder %v1612, 1
        %vm1645 = vcmp.eq.s32.totalorder %v1613, 1
        %vm1646 = vcmp.eq.s32.totalorder %v1614, 1
        %vm1647 = vcmp.eq.s32.totalorder %v1615, 1
        %vm1648 = vcmp.eq.s32.totalorder %v1616, 1
        %vm1649 = vcmp.eq.s32.totalorder %v1617, 1
        %vm1650 = vcmp.eq.s32.totalorder %v1618, 1
        %vm1651 = vcmp.eq.s32.totalorder %v1619, 1
        %vm1652 = vcmp.eq.s32.totalorder %v1620, 1
        %vm1653 = vcmp.eq.s32.totalorder %v1621, 1
        %vm1654 = vcmp.eq.s32.totalorder %v1622, 1
        %vm1655 = vcmp.eq.s32.totalorder %v1623, 1
        %vm1656 = vcmp.eq.s32.totalorder %v1624, 1
        %vm1657 = vcmp.eq.s32.totalorder %v1625, 1
        %vm1658 = vcmp.eq.s32.totalorder %v1626, 1
        %vm1659 = vcmp.eq.s32.totalorder %v1627, 1
        %vm1660 = vcmp.eq.s32.totalorder %v1628, 1
        %vm1661 = vcmp.eq.s32.totalorder %v1629, 1
        %vm1662 = vcmp.eq.s32.totalorder %v1630, 1
        %vm1663 = vcmp.eq.s32.totalorder %v1631, 1
        %vm1664 = vcmp.eq.s32.totalorder %v1632, 1
        %vm1665 = vcmp.eq.s32.totalorder %v1601, 4294967295
        %vm1666 = vcmp.eq.s32.totalorder %v1602, 4294967295
        %vm1667 = vcmp.eq.s32.totalorder %v1603, 4294967295
        %vm1668 = vcmp.eq.s32.totalorder %v1604, 4294967295
        %vm1669 = vcmp.eq.s32.totalorder %v1605, 4294967295
        %vm1670 = vcmp.eq.s32.totalorder %v1606, 4294967295
        %vm1671 = vcmp.eq.s32.totalorder %v1607, 4294967295
        %vm1672 = vcmp.eq.s32.totalorder %v1608, 4294967295
        %vm1673 = vcmp.eq.s32.totalorder %v1609, 4294967295
        %vm1674 = vcmp.eq.s32.totalorder %v1610, 4294967295
        %vm1675 = vcmp.eq.s32.totalorder %v1611, 4294967295
        %vm1676 = vcmp.eq.s32.totalorder %v1612, 4294967295
        %vm1677 = vcmp.eq.s32.totalorder %v1613, 4294967295
        %vm1678 = vcmp.eq.s32.totalorder %v1614, 4294967295
        %vm1679 = vcmp.eq.s32.totalorder %v1615, 4294967295
        %vm1680 = vcmp.eq.s32.totalorder %v1616, 4294967295
        %vm1681 = vcmp.eq.s32.totalorder %v1617, 4294967295
        %vm1682 = vcmp.eq.s32.totalorder %v1618, 4294967295
        %vm1683 = vcmp.eq.s32.totalorder %v1619, 4294967295
        %vm1684 = vcmp.eq.s32.totalorder %v1620, 4294967295
        %vm1685 = vcmp.eq.s32.totalorder %v1621, 4294967295
        %vm1686 = vcmp.eq.s32.totalorder %v1622, 4294967295
        %vm1687 = vcmp.eq.s32.totalorder %v1623, 4294967295
        %vm1688 = vcmp.eq.s32.totalorder %v1624, 4294967295
        %vm1689 = vcmp.eq.s32.totalorder %v1625, 4294967295
        %vm1690 = vcmp.eq.s32.totalorder %v1626, 4294967295
        %vm1691 = vcmp.eq.s32.totalorder %v1627, 4294967295
        %vm1692 = vcmp.eq.s32.totalorder %v1628, 4294967295
        %vm1693 = vcmp.eq.s32.totalorder %v1629, 4294967295
        %vm1694 = vcmp.eq.s32.totalorder %v1630, 4294967295
        %vm1695 = vcmp.eq.s32.totalorder %v1631, 4294967295
        %vm1696 = vcmp.eq.s32.totalorder %v1632, 4294967295
        %vm1697 = vmor %vm1633, %vm1665
        %vm1698 = vmor %vm1634, %vm1666
        %vm1699 = vmor %vm1635, %vm1667
        %vm1700 = vmor %vm1636, %vm1668
        %vm1701 = vmor %vm1637, %vm1669
        %vm1702 = vmor %vm1638, %vm1670
        %vm1703 = vmor %vm1639, %vm1671
        %vm1704 = vmor %vm1640, %vm1672
        %vm1705 = vmor %vm1641, %vm1673
        %vm1706 = vmor %vm1642, %vm1674
        %vm1707 = vmor %vm1643, %vm1675
        %vm1708 = vmor %vm1644, %vm1676
        %vm1709 = vmor %vm1645, %vm1677
        %vm1710 = vmor %vm1646, %vm1678
        %vm1711 = vmor %vm1647, %vm1679
        %vm1712 = vmor %vm1648, %vm1680
        %vm1713 = vmor %vm1649, %vm1681
        %vm1714 = vmor %vm1650, %vm1682
        %vm1715 = vmor %vm1651, %vm1683
        %vm1716 = vmor %vm1652, %vm1684
        %vm1717 = vmor %vm1653, %vm1685
        %vm1718 = vmor %vm1654, %vm1686
        %vm1719 = vmor %vm1655, %vm1687
        %vm1720 = vmor %vm1656, %vm1688
        %vm1721 = vmor %vm1657, %vm1689
        %vm1722 = vmor %vm1658, %vm1690
        %vm1723 = vmor %vm1659, %vm1691
        %vm1724 = vmor %vm1660, %vm1692
        %vm1725 = vmor %vm1661, %vm1693
        %vm1726 = vmor %vm1662, %vm1694
        %vm1727 = vmor %vm1663, %vm1695
        %vm1728 = vmor %vm1664, %vm1696
        %v1729 = vrot.slane %v1119, 1
        %v1730 = vrot.slane %v1120, 1
        %v1731 = vrot.slane %v1121, 1
        %v1732 = vrot.slane %v1122, 1
        %v1733 = vrot.slane %v1123, 1
        %v1734 = vrot.slane %v1124, 1
        %v1735 = vrot.slane %v1125, 1
        %v1736 = vrot.slane %v1126, 1
        %v1737 = vrot.slane %v1127, 1
        %v1738 = vrot.slane %v1128, 1
        %v1739 = vrot.slane %v1129, 1
        %v1740 = vrot.slane %v1130, 1
        %v1741 = vrot.slane %v1131, 1
        %v1742 = vrot.slane %v1132, 1
        %v1743 = vrot.slane %v1133, 1
        %v1744 = vrot.slane %v1134, 1
        %v1745 = vrot.slane %v1135, 1
        %v1746 = vrot.slane %v1136, 1
        %v1747 = vrot.slane %v1137, 1
        %v1748 = vrot.slane %v1138, 1
        %v1749 = vrot.slane %v1139, 1
        %v1750 = vrot.slane %v1140, 1
        %v1751 = vrot.slane %v1141, 1
        %v1752 = vrot.slane %v1142, 1
        %v1753 = vrot.slane %v1143, 1
        %v1754 = vrot.slane %v1144, 1
        %v1755 = vrot.slane %v1145, 1
        %v1756 = vrot.slane %v1146, 1
        %v1757 = vrot.slane %v1147, 1
        %v1758 = vrot.slane %v1148, 1
        %v1759 = vrot.slane %v1149, 1
        %v1760 = vrot.slane %v1150, 1
        %v1761 = vsel %vm1568, %v1759, %v1760
        %v1762 = vsel %vm1568, %v1758, %v1759
        %v1763 = vsel %vm1568, %v1757, %v1758
        %v1764 = vsel %vm1568, %v1756, %v1757
        %v1765 = vsel %vm1568, %v1755, %v1756
        %v1766 = vsel %vm1568, %v1754, %v1755
        %v1767 = vsel %vm1568, %v1753, %v1754
        %v1768 = vsel %vm1568, %v1752, %v1753
        %v1769 = vsel %vm1568, %v1751, %v1752
        %v1770 = vsel %vm1568, %v1750, %v1751
        %v1771 = vsel %vm1568, %v1749, %v1750
        %v1772 = vsel %vm1568, %v1748, %v1749
        %v1773 = vsel %vm1568, %v1747, %v1748
        %v1774 = vsel %vm1568, %v1746, %v1747
        %v1775 = vsel %vm1568, %v1745, %v1746
        %v1776 = vsel %vm1568, %v1744, %v1745
        %v1777 = vsel %vm1568, %v1743, %v1744
        %v1778 = vsel %vm1568, %v1742, %v1743
        %v1779 = vsel %vm1568, %v1741, %v1742
        %v1780 = vsel %vm1568, %v1740, %v1741
        %v1781 = vsel %vm1568, %v1739, %v1740
        %v1782 = vsel %vm1568, %v1738, %v1739
        %v1783 = vsel %vm1568, %v1737, %v1738
        %v1784 = vsel %vm1568, %v1736, %v1737
        %v1785 = vsel %vm1568, %v1735, %v1736
        %v1786 = vsel %vm1568, %v1734, %v1735
        %v1787 = vsel %vm1568, %v1733, %v1734
        %v1788 = vsel %vm1568, %v1732, %v1733
        %v1789 = vsel %vm1568, %v1731, %v1732
        %v1790 = vsel %vm1568, %v1730, %v1731
        %v1791 = vsel %vm1568, %v1729, %v1730
        %v1792 = vsel %vm1568, %v1760, %v1729
        %v1793 = vsub.s32 %v1791, %v1119
        %v1794 = vsub.s32 %v1790, %v1120
        %v1795 = vsub.s32 %v1789, %v1121
        %v1796 = vsub.s32 %v1788, %v1122
        %v1797 = vsub.s32 %v1787, %v1123
        %v1798 = vsub.s32 %v1786, %v1124
        %v1799 = vsub.s32 %v1785, %v1125
        %v1800 = vsub.s32 %v1784, %v1126
        %v1801 = vsub.s32 %v1783, %v1127
        %v1802 = vsub.s32 %v1782, %v1128
        %v1803 = vsub.s32 %v1781, %v1129
        %v1804 = vsub.s32 %v1780, %v1130
        %v1805 = vsub.s32 %v1779, %v1131
        %v1806 = vsub.s32 %v1778, %v1132
        %v1807 = vsub.s32 %v1777, %v1133
        %v1808 = vsub.s32 %v1776, %v1134
        %v1809 = vsub.s32 %v1775, %v1135
        %v1810 = vsub.s32 %v1774, %v1136
        %v1811 = vsub.s32 %v1773, %v1137
        %v1812 = vsub.s32 %v1772, %v1138
        %v1813 = vsub.s32 %v1771, %v1139
        %v1814 = vsub.s32 %v1770, %v1140
        %v1815 = vsub.s32 %v1769, %v1141
        %v1816 = vsub.s32 %v1768, %v1142
        %v1817 = vsub.s32 %v1767, %v1143
        %v1818 = vsub.s32 %v1766, %v1144
        %v1819 = vsub.s32 %v1765, %v1145
        %v1820 = vsub.s32 %v1764, %v1146
        %v1821 = vsub.s32 %v1763, %v1147
        %v1822 = vsub.s32 %v1762, %v1148
        %v1823 = vsub.s32 %v1761, %v1149
        %v1824 = vsub.s32 %v1792, %v1150
        %vm1825 = vcmp.eq.s32.totalorder %v1793, %v1601
        %vm1826 = vcmp.eq.s32.totalorder %v1794, %v1602
        %vm1827 = vcmp.eq.s32.totalorder %v1795, %v1603
        %vm1828 = vcmp.eq.s32.totalorder %v1796, %v1604
        %vm1829 = vcmp.eq.s32.totalorder %v1797, %v1605
        %vm1830 = vcmp.eq.s32.totalorder %v1798, %v1606
        %vm1831 = vcmp.eq.s32.totalorder %v1799, %v1607
        %vm1832 = vcmp.eq.s32.totalorder %v1800, %v1608
        %vm1833 = vcmp.eq.s32.totalorder %v1801, %v1609
        %vm1834 = vcmp.eq.s32.totalorder %v1802, %v1610
        %vm1835 = vcmp.eq.s32.totalorder %v1803, %v1611
        %vm1836 = vcmp.eq.s32.totalorder %v1804, %v1612
        %vm1837 = vcmp.eq.s32.totalorder %v1805, %v1613
        %vm1838 = vcmp.eq.s32.totalorder %v1806, %v1614
        %vm1839 = vcmp.eq.s32.totalorder %v1807, %v1615
        %vm1840 = vcmp.eq.s32.totalorder %v1808, %v1616
        %vm1841 = vcmp.eq.s32.totalorder %v1809, %v1617
        %vm1842 = vcmp.eq.s32.totalorder %v1810, %v1618
        %vm1843 = vcmp.eq.s32.totalorder %v1811, %v1619
        %vm1844 = vcmp.eq.s32.totalorder %v1812, %v1620
        %vm1845 = vcmp.eq.s32.totalorder %v1813, %v1621
        %vm1846 = vcmp.eq.s32.totalorder %v1814, %v1622
        %vm1847 = vcmp.eq.s32.totalorder %v1815, %v1623
        %vm1848 = vcmp.eq.s32.totalorder %v1816, %v1624
        %vm1849 = vcmp.eq.s32.totalorder %v1817, %v1625
        %vm1850 = vcmp.eq.s32.totalorder %v1818, %v1626
        %vm1851 = vcmp.eq.s32.totalorder %v1819, %v1627
        %vm1852 = vcmp.eq.s32.totalorder %v1820, %v1628
        %vm1853 = vcmp.eq.s32.totalorder %v1821, %v1629
        %vm1854 = vcmp.eq.s32.totalorder %v1822, %v1630
        %vm1855 = vcmp.eq.s32.totalorder %v1823, %v1631
        %vm1856 = vcmp.eq.s32.totalorder %v1824, %v1632
        %vm1857 = vmand %vm1697, %vm1825
        %vm1858 = vmand %vm1698, %vm1826
        %vm1859 = vmand %vm1699, %vm1827
        %vm1860 = vmand %vm1700, %vm1828
        %vm1861 = vmand %vm1701, %vm1829
        %vm1862 = vmand %vm1702, %vm1830
        %vm1863 = vmand %vm1703, %vm1831
        %vm1864 = vmand %vm1704, %vm1832
        %vm1865 = vmand %vm1705, %vm1833
        %vm1866 = vmand %vm1706, %vm1834
        %vm1867 = vmand %vm1707, %vm1835
        %vm1868 = vmand %vm1708, %vm1836
        %vm1869 = vmand %vm1709, %vm1837
        %vm1870 = vmand %vm1710, %vm1838
        %vm1871 = vmand %vm1711, %vm1839
        %vm1872 = vmand %vm1712, %vm1840
        %vm1873 = vmand %vm1713, %vm1841
        %vm1874 = vmand %vm1714, %vm1842
        %vm1875 = vmand %vm1715, %vm1843
        %vm1876 = vmand %vm1716, %vm1844
        %vm1877 = vmand %vm1717, %vm1845
        %vm1878 = vmand %vm1718, %vm1846
        %vm1879 = vmand %vm1719, %vm1847
        %vm1880 = vmand %vm1720, %vm1848
        %vm1881 = vmand %vm1721, %vm1849
        %vm1882 = vmand %vm1722, %vm1850
        %vm1883 = vmand %vm1723, %vm1851
        %vm1884 = vmand %vm1724, %vm1852
        %vm1885 = vmand %vm1725, %vm1853
        %vm1886 = vmand %vm1726, %vm1854
        %vm1887 = vmand %vm1727, %vm1855
        %vm1888 = vmand %vm1728, %vm1856
        %v1889 = vsel %vm1857, 0.0, -inf
        %v1890 = vsel %vm1858, 0.0, -inf
        %v1891 = vsel %vm1859, 0.0, -inf
        %v1892 = vsel %vm1860, 0.0, -inf
        %v1893 = vsel %vm1861, 0.0, -inf
        %v1894 = vsel %vm1862, 0.0, -inf
        %v1895 = vsel %vm1863, 0.0, -inf
        %v1896 = vsel %vm1864, 0.0, -inf
        %v1897 = vsel %vm1865, 0.0, -inf
        %v1898 = vsel %vm1866, 0.0, -inf
        %v1899 = vsel %vm1867, 0.0, -inf
        %v1900 = vsel %vm1868, 0.0, -inf
        %v1901 = vsel %vm1869, 0.0, -inf
        %v1902 = vsel %vm1870, 0.0, -inf
        %v1903 = vsel %vm1871, 0.0, -inf
        %v1904 = vsel %vm1872, 0.0, -inf
        %v1905 = vsel %vm1873, 0.0, -inf
        %v1906 = vsel %vm1874, 0.0, -inf
        %v1907 = vsel %vm1875, 0.0, -inf
        %v1908 = vsel %vm1876, 0.0, -inf
        %v1909 = vsel %vm1877, 0.0, -inf
        %v1910 = vsel %vm1878, 0.0, -inf
        %v1911 = vsel %vm1879, 0.0, -inf
        %v1912 = vsel %vm1880, 0.0, -inf
        %v1913 = vsel %vm1881, 0.0, -inf
        %v1914 = vsel %vm1882, 0.0, -inf
        %v1915 = vsel %vm1883, 0.0, -inf
        %v1916 = vsel %vm1884, 0.0, -inf
        %v1917 = vsel %vm1885, 0.0, -inf
        %v1918 = vsel %vm1886, 0.0, -inf
        %v1919 = vsel %vm1887, 0.0, -inf
        %v1920 = vsel %vm1888, 0.0, -inf
        %v1921 = vrot.slane %v1087, 6
        %v1922 = vrot.slane %v1088, 6
        %v1923 = vrot.slane %v1089, 6
        %v1924 = vrot.slane %v1090, 6
        %v1925 = vrot.slane %v1091, 6
        %v1926 = vrot.slane %v1092, 6
        %v1927 = vrot.slane %v1093, 6
        %v1928 = vrot.slane %v1094, 6
        %v1929 = vrot.slane %v1095, 6
        %v1930 = vrot.slane %v1096, 6
        %v1931 = vrot.slane %v1097, 6
        %v1932 = vrot.slane %v1098, 6
        %v1933 = vrot.slane %v1099, 6
        %v1934 = vrot.slane %v1100, 6
        %v1935 = vrot.slane %v1101, 6
        %v1936 = vrot.slane %v1102, 6
        %v1937 = vrot.slane %v1103, 6
        %v1938 = vrot.slane %v1104, 6
        %v1939 = vrot.slane %v1105, 6
        %v1940 = vrot.slane %v1106, 6
        %v1941 = vrot.slane %v1107, 6
        %v1942 = vrot.slane %v1108, 6
        %v1943 = vrot.slane %v1109, 6
        %v1944 = vrot.slane %v1110, 6
        %v1945 = vrot.slane %v1111, 6
        %v1946 = vrot.slane %v1112, 6
        %v1947 = vrot.slane %v1113, 6
        %v1948 = vrot.slane %v1114, 6
        %v1949 = vrot.slane %v1115, 6
        %v1950 = vrot.slane %v1116, 6
        %v1951 = vrot.slane %v1117, 6
        %v1952 = vrot.slane %v1118, 6
        %vm1953 = vcmp.lt.s32.totalorder %v1087, 2
        %v1954 = vsel %vm1953, %v1951, %v1952
        %v1955 = vsel %vm1953, %v1950, %v1951
        %v1956 = vsel %vm1953, %v1949, %v1950
        %v1957 = vsel %vm1953, %v1948, %v1949
        %v1958 = vsel %vm1953, %v1947, %v1948
        %v1959 = vsel %vm1953, %v1946, %v1947
        %v1960 = vsel %vm1953, %v1945, %v1946
        %v1961 = vsel %vm1953, %v1944, %v1945
        %v1962 = vsel %vm1953, %v1943, %v1944
        %v1963 = vsel %vm1953, %v1942, %v1943
        %v1964 = vsel %vm1953, %v1941, %v1942
        %v1965 = vsel %vm1953, %v1940, %v1941
        %v1966 = vsel %vm1953, %v1939, %v1940
        %v1967 = vsel %vm1953, %v1938, %v1939
        %v1968 = vsel %vm1953, %v1937, %v1938
        %v1969 = vsel %vm1953, %v1936, %v1937
        %v1970 = vsel %vm1953, %v1935, %v1936
        %v1971 = vsel %vm1953, %v1934, %v1935
        %v1972 = vsel %vm1953, %v1933, %v1934
        %v1973 = vsel %vm1953, %v1932, %v1933
        %v1974 = vsel %vm1953, %v1931, %v1932
        %v1975 = vsel %vm1953, %v1930, %v1931
        %v1976 = vsel %vm1953, %v1929, %v1930
        %v1977 = vsel %vm1953, %v1928, %v1929
        %v1978 = vsel %vm1953, %v1927, %v1928
        %v1979 = vsel %vm1953, %v1926, %v1927
        %v1980 = vsel %vm1953, %v1925, %v1926
        %v1981 = vsel %vm1953, %v1924, %v1925
        %v1982 = vsel %vm1953, %v1923, %v1924
        %v1983 = vsel %vm1953, %v1922, %v1923
        %v1984 = vsel %vm1953, %v1921, %v1922
        %v1985 = vsel %vm1953, %v1952, %v1921
        %v1986 = vsub.s32 %v1985, %v1087
        %v1987 = vsub.s32 %v1984, %v1088
        %v1988 = vsub.s32 %v1983, %v1089
        %v1989 = vsub.s32 %v1982, %v1090
        %v1990 = vsub.s32 %v1981, %v1091
        %v1991 = vsub.s32 %v1980, %v1092
        %v1992 = vsub.s32 %v1979, %v1093
        %v1993 = vsub.s32 %v1978, %v1094
        %v1994 = vsub.s32 %v1977, %v1095
        %v1995 = vsub.s32 %v1976, %v1096
        %v1996 = vsub.s32 %v1975, %v1097
        %v1997 = vsub.s32 %v1974, %v1098
        %v1998 = vsub.s32 %v1973, %v1099
        %v1999 = vsub.s32 %v1972, %v1100
        %v2000 = vsub.s32 %v1971, %v1101
        %v2001 = vsub.s32 %v1970, %v1102
        %v2002 = vsub.s32 %v1969, %v1103
        %v2003 = vsub.s32 %v1968, %v1104
        %v2004 = vsub.s32 %v1967, %v1105
        %v2005 = vsub.s32 %v1966, %v1106
        %v2006 = vsub.s32 %v1965, %v1107
        %v2007 = vsub.s32 %v1964, %v1108
        %v2008 = vsub.s32 %v1963, %v1109
        %v2009 = vsub.s32 %v1962, %v1110
        %v2010 = vsub.s32 %v1961, %v1111
        %v2011 = vsub.s32 %v1960, %v1112
        %v2012 = vsub.s32 %v1959, %v1113
        %v2013 = vsub.s32 %v1958, %v1114
        %v2014 = vsub.s32 %v1957, %v1115
        %v2015 = vsub.s32 %v1956, %v1116
        %v2016 = vsub.s32 %v1955, %v1117
        %v2017 = vsub.s32 %v1954, %v1118
        %vm2018 = vcmp.eq.s32.totalorder %v1986, 2
        %vm2019 = vcmp.eq.s32.totalorder %v1987, 2
        %vm2020 = vcmp.eq.s32.totalorder %v1988, 2
        %vm2021 = vcmp.eq.s32.totalorder %v1989, 2
        %vm2022 = vcmp.eq.s32.totalorder %v1990, 2
        %vm2023 = vcmp.eq.s32.totalorder %v1991, 2
        %vm2024 = vcmp.eq.s32.totalorder %v1992, 2
        %vm2025 = vcmp.eq.s32.totalorder %v1993, 2
        %vm2026 = vcmp.eq.s32.totalorder %v1994, 2
        %vm2027 = vcmp.eq.s32.totalorder %v1995, 2
        %vm2028 = vcmp.eq.s32.totalorder %v1996, 2
        %vm2029 = vcmp.eq.s32.totalorder %v1997, 2
        %vm2030 = vcmp.eq.s32.totalorder %v1998, 2
        %vm2031 = vcmp.eq.s32.totalorder %v1999, 2
        %vm2032 = vcmp.eq.s32.totalorder %v2000, 2
        %vm2033 = vcmp.eq.s32.totalorder %v2001, 2
        %vm2034 = vcmp.eq.s32.totalorder %v2002, 2
        %vm2035 = vcmp.eq.s32.totalorder %v2003, 2
        %vm2036 = vcmp.eq.s32.totalorder %v2004, 2
        %vm2037 = vcmp.eq.s32.totalorder %v2005, 2
        %vm2038 = vcmp.eq.s32.totalorder %v2006, 2
        %vm2039 = vcmp.eq.s32.totalorder %v2007, 2
        %vm2040 = vcmp.eq.s32.totalorder %v2008, 2
        %vm2041 = vcmp.eq.s32.totalorder %v2009, 2
        %vm2042 = vcmp.eq.s32.totalorder %v2010, 2
        %vm2043 = vcmp.eq.s32.totalorder %v2011, 2
        %vm2044 = vcmp.eq.s32.totalorder %v2012, 2
        %vm2045 = vcmp.eq.s32.totalorder %v2013, 2
        %vm2046 = vcmp.eq.s32.totalorder %v2014, 2
        %vm2047 = vcmp.eq.s32.totalorder %v2015, 2
        %vm2048 = vcmp.eq.s32.totalorder %v2016, 2
        %vm2049 = vcmp.eq.s32.totalorder %v2017, 2
        %vm2050 = vcmp.eq.s32.totalorder %v1986, 4294967294
        %vm2051 = vcmp.eq.s32.totalorder %v1987, 4294967294
        %vm2052 = vcmp.eq.s32.totalorder %v1988, 4294967294
        %vm2053 = vcmp.eq.s32.totalorder %v1989, 4294967294
        %vm2054 = vcmp.eq.s32.totalorder %v1990, 4294967294
        %vm2055 = vcmp.eq.s32.totalorder %v1991, 4294967294
        %vm2056 = vcmp.eq.s32.totalorder %v1992, 4294967294
        %vm2057 = vcmp.eq.s32.totalorder %v1993, 4294967294
        %vm2058 = vcmp.eq.s32.totalorder %v1994, 4294967294
        %vm2059 = vcmp.eq.s32.totalorder %v1995, 4294967294
        %vm2060 = vcmp.eq.s32.totalorder %v1996, 4294967294
        %vm2061 = vcmp.eq.s32.totalorder %v1997, 4294967294
        %vm2062 = vcmp.eq.s32.totalorder %v1998, 4294967294
        %vm2063 = vcmp.eq.s32.totalorder %v1999, 4294967294
        %vm2064 = vcmp.eq.s32.totalorder %v2000, 4294967294
        %vm2065 = vcmp.eq.s32.totalorder %v2001, 4294967294
        %vm2066 = vcmp.eq.s32.totalorder %v2002, 4294967294
        %vm2067 = vcmp.eq.s32.totalorder %v2003, 4294967294
        %vm2068 = vcmp.eq.s32.totalorder %v2004, 4294967294
        %vm2069 = vcmp.eq.s32.totalorder %v2005, 4294967294
        %vm2070 = vcmp.eq.s32.totalorder %v2006, 4294967294
        %vm2071 = vcmp.eq.s32.totalorder %v2007, 4294967294
        %vm2072 = vcmp.eq.s32.totalorder %v2008, 4294967294
        %vm2073 = vcmp.eq.s32.totalorder %v2009, 4294967294
        %vm2074 = vcmp.eq.s32.totalorder %v2010, 4294967294
        %vm2075 = vcmp.eq.s32.totalorder %v2011, 4294967294
        %vm2076 = vcmp.eq.s32.totalorder %v2012, 4294967294
        %vm2077 = vcmp.eq.s32.totalorder %v2013, 4294967294
        %vm2078 = vcmp.eq.s32.totalorder %v2014, 4294967294
        %vm2079 = vcmp.eq.s32.totalorder %v2015, 4294967294
        %vm2080 = vcmp.eq.s32.totalorder %v2016, 4294967294
        %vm2081 = vcmp.eq.s32.totalorder %v2017, 4294967294
        %vm2082 = vmor %vm2018, %vm2050
        %vm2083 = vmor %vm2019, %vm2051
        %vm2084 = vmor %vm2020, %vm2052
        %vm2085 = vmor %vm2021, %vm2053
        %vm2086 = vmor %vm2022, %vm2054
        %vm2087 = vmor %vm2023, %vm2055
        %vm2088 = vmor %vm2024, %vm2056
        %vm2089 = vmor %vm2025, %vm2057
        %vm2090 = vmor %vm2026, %vm2058
        %vm2091 = vmor %vm2027, %vm2059
        %vm2092 = vmor %vm2028, %vm2060
        %vm2093 = vmor %vm2029, %vm2061
        %vm2094 = vmor %vm2030, %vm2062
        %vm2095 = vmor %vm2031, %vm2063
        %vm2096 = vmor %vm2032, %vm2064
        %vm2097 = vmor %vm2033, %vm2065
        %vm2098 = vmor %vm2034, %vm2066
        %vm2099 = vmor %vm2035, %vm2067
        %vm2100 = vmor %vm2036, %vm2068
        %vm2101 = vmor %vm2037, %vm2069
        %vm2102 = vmor %vm2038, %vm2070
        %vm2103 = vmor %vm2039, %vm2071
        %vm2104 = vmor %vm2040, %vm2072
        %vm2105 = vmor %vm2041, %vm2073
        %vm2106 = vmor %vm2042, %vm2074
        %vm2107 = vmor %vm2043, %vm2075
        %vm2108 = vmor %vm2044, %vm2076
        %vm2109 = vmor %vm2045, %vm2077
        %vm2110 = vmor %vm2046, %vm2078
        %vm2111 = vmor %vm2047, %vm2079
        %vm2112 = vmor %vm2048, %vm2080
        %vm2113 = vmor %vm2049, %vm2081
        %v2114 = vrot.slane %v1119, 6
        %v2115 = vrot.slane %v1120, 6
        %v2116 = vrot.slane %v1121, 6
        %v2117 = vrot.slane %v1122, 6
        %v2118 = vrot.slane %v1123, 6
        %v2119 = vrot.slane %v1124, 6
        %v2120 = vrot.slane %v1125, 6
        %v2121 = vrot.slane %v1126, 6
        %v2122 = vrot.slane %v1127, 6
        %v2123 = vrot.slane %v1128, 6
        %v2124 = vrot.slane %v1129, 6
        %v2125 = vrot.slane %v1130, 6
        %v2126 = vrot.slane %v1131, 6
        %v2127 = vrot.slane %v1132, 6
        %v2128 = vrot.slane %v1133, 6
        %v2129 = vrot.slane %v1134, 6
        %v2130 = vrot.slane %v1135, 6
        %v2131 = vrot.slane %v1136, 6
        %v2132 = vrot.slane %v1137, 6
        %v2133 = vrot.slane %v1138, 6
        %v2134 = vrot.slane %v1139, 6
        %v2135 = vrot.slane %v1140, 6
        %v2136 = vrot.slane %v1141, 6
        %v2137 = vrot.slane %v1142, 6
        %v2138 = vrot.slane %v1143, 6
        %v2139 = vrot.slane %v1144, 6
        %v2140 = vrot.slane %v1145, 6
        %v2141 = vrot.slane %v1146, 6
        %v2142 = vrot.slane %v1147, 6
        %v2143 = vrot.slane %v1148, 6
        %v2144 = vrot.slane %v1149, 6
        %v2145 = vrot.slane %v1150, 6
        %v2146 = vsel %vm1953, %v2144, %v2145
        %v2147 = vsel %vm1953, %v2143, %v2144
        %v2148 = vsel %vm1953, %v2142, %v2143
        %v2149 = vsel %vm1953, %v2141, %v2142
        %v2150 = vsel %vm1953, %v2140, %v2141
        %v2151 = vsel %vm1953, %v2139, %v2140
        %v2152 = vsel %vm1953, %v2138, %v2139
        %v2153 = vsel %vm1953, %v2137, %v2138
        %v2154 = vsel %vm1953, %v2136, %v2137
        %v2155 = vsel %vm1953, %v2135, %v2136
        %v2156 = vsel %vm1953, %v2134, %v2135
        %v2157 = vsel %vm1953, %v2133, %v2134
        %v2158 = vsel %vm1953, %v2132, %v2133
        %v2159 = vsel %vm1953, %v2131, %v2132
        %v2160 = vsel %vm1953, %v2130, %v2131
        %v2161 = vsel %vm1953, %v2129, %v2130
        %v2162 = vsel %vm1953, %v2128, %v2129
        %v2163 = vsel %vm1953, %v2127, %v2128
        %v2164 = vsel %vm1953, %v2126, %v2127
        %v2165 = vsel %vm1953, %v2125, %v2126
        %v2166 = vsel %vm1953, %v2124, %v2125
        %v2167 = vsel %vm1953, %v2123, %v2124
        %v2168 = vsel %vm1953, %v2122, %v2123
        %v2169 = vsel %vm1953, %v2121, %v2122
        %v2170 = vsel %vm1953, %v2120, %v2121
        %v2171 = vsel %vm1953, %v2119, %v2120
        %v2172 = vsel %vm1953, %v2118, %v2119
        %v2173 = vsel %vm1953, %v2117, %v2118
        %v2174 = vsel %vm1953, %v2116, %v2117
        %v2175 = vsel %vm1953, %v2115, %v2116
        %v2176 = vsel %vm1953, %v2114, %v2115
        %v2177 = vsel %vm1953, %v2145, %v2114
        %v2178 = vsub.s32 %v2177, %v1119
        %v2179 = vsub.s32 %v2176, %v1120
        %v2180 = vsub.s32 %v2175, %v1121
        %v2181 = vsub.s32 %v2174, %v1122
        %v2182 = vsub.s32 %v2173, %v1123
        %v2183 = vsub.s32 %v2172, %v1124
        %v2184 = vsub.s32 %v2171, %v1125
        %v2185 = vsub.s32 %v2170, %v1126
        %v2186 = vsub.s32 %v2169, %v1127
        %v2187 = vsub.s32 %v2168, %v1128
        %v2188 = vsub.s32 %v2167, %v1129
        %v2189 = vsub.s32 %v2166, %v1130
        %v2190 = vsub.s32 %v2165, %v1131
        %v2191 = vsub.s32 %v2164, %v1132
        %v2192 = vsub.s32 %v2163, %v1133
        %v2193 = vsub.s32 %v2162, %v1134
        %v2194 = vsub.s32 %v2161, %v1135
        %v2195 = vsub.s32 %v2160, %v1136
        %v2196 = vsub.s32 %v2159, %v1137
        %v2197 = vsub.s32 %v2158, %v1138
        %v2198 = vsub.s32 %v2157, %v1139
        %v2199 = vsub.s32 %v2156, %v1140
        %v2200 = vsub.s32 %v2155, %v1141
        %v2201 = vsub.s32 %v2154, %v1142
        %v2202 = vsub.s32 %v2153, %v1143
        %v2203 = vsub.s32 %v2152, %v1144
        %v2204 = vsub.s32 %v2151, %v1145
        %v2205 = vsub.s32 %v2150, %v1146
        %v2206 = vsub.s32 %v2149, %v1147
        %v2207 = vsub.s32 %v2148, %v1148
        %v2208 = vsub.s32 %v2147, %v1149
        %v2209 = vsub.s32 %v2146, %v1150
        %vm2210 = vcmp.eq.s32.totalorder %v2178, %v1986
        %vm2211 = vcmp.eq.s32.totalorder %v2179, %v1987
        %vm2212 = vcmp.eq.s32.totalorder %v2180, %v1988
        %vm2213 = vcmp.eq.s32.totalorder %v2181, %v1989
        %vm2214 = vcmp.eq.s32.totalorder %v2182, %v1990
        %vm2215 = vcmp.eq.s32.totalorder %v2183, %v1991
        %vm2216 = vcmp.eq.s32.totalorder %v2184, %v1992
        %vm2217 = vcmp.eq.s32.totalorder %v2185, %v1993
        %vm2218 = vcmp.eq.s32.totalorder %v2186, %v1994
        %vm2219 = vcmp.eq.s32.totalorder %v2187, %v1995
        %vm2220 = vcmp.eq.s32.totalorder %v2188, %v1996
        %vm2221 = vcmp.eq.s32.totalorder %v2189, %v1997
        %vm2222 = vcmp.eq.s32.totalorder %v2190, %v1998
        %vm2223 = vcmp.eq.s32.totalorder %v2191, %v1999
        %vm2224 = vcmp.eq.s32.totalorder %v2192, %v2000
        %vm2225 = vcmp.eq.s32.totalorder %v2193, %v2001
        %vm2226 = vcmp.eq.s32.totalorder %v2194, %v2002
        %vm2227 = vcmp.eq.s32.totalorder %v2195, %v2003
        %vm2228 = vcmp.eq.s32.totalorder %v2196, %v2004
        %vm2229 = vcmp.eq.s32.totalorder %v2197, %v2005
        %vm2230 = vcmp.eq.s32.totalorder %v2198, %v2006
        %vm2231 = vcmp.eq.s32.totalorder %v2199, %v2007
        %vm2232 = vcmp.eq.s32.totalorder %v2200, %v2008
        %vm2233 = vcmp.eq.s32.totalorder %v2201, %v2009
        %vm2234 = vcmp.eq.s32.totalorder %v2202, %v2010
        %vm2235 = vcmp.eq.s32.totalorder %v2203, %v2011
        %vm2236 = vcmp.eq.s32.totalorder %v2204, %v2012
        %vm2237 = vcmp.eq.s32.totalorder %v2205, %v2013
        %vm2238 = vcmp.eq.s32.totalorder %v2206, %v2014
        %vm2239 = vcmp.eq.s32.totalorder %v2207, %v2015
        %vm2240 = vcmp.eq.s32.totalorder %v2208, %v2016
        %vm2241 = vcmp.eq.s32.totalorder %v2209, %v2017
        %vm2242 = vmand %vm2082, %vm2210
        %vm2243 = vmand %vm2083, %vm2211
        %vm2244 = vmand %vm2084, %vm2212
        %vm2245 = vmand %vm2085, %vm2213
        %vm2246 = vmand %vm2086, %vm2214
        %vm2247 = vmand %vm2087, %vm2215
        %vm2248 = vmand %vm2088, %vm2216
        %vm2249 = vmand %vm2089, %vm2217
        %vm2250 = vmand %vm2090, %vm2218
        %vm2251 = vmand %vm2091, %vm2219
        %vm2252 = vmand %vm2092, %vm2220
        %vm2253 = vmand %vm2093, %vm2221
        %vm2254 = vmand %vm2094, %vm2222
        %vm2255 = vmand %vm2095, %vm2223
        %vm2256 = vmand %vm2096, %vm2224
        %vm2257 = vmand %vm2097, %vm2225
        %vm2258 = vmand %vm2098, %vm2226
        %vm2259 = vmand %vm2099, %vm2227
        %vm2260 = vmand %vm2100, %vm2228
        %vm2261 = vmand %vm2101, %vm2229
        %vm2262 = vmand %vm2102, %vm2230
        %vm2263 = vmand %vm2103, %vm2231
        %vm2264 = vmand %vm2104, %vm2232
        %vm2265 = vmand %vm2105, %vm2233
        %vm2266 = vmand %vm2106, %vm2234
        %vm2267 = vmand %vm2107, %vm2235
        %vm2268 = vmand %vm2108, %vm2236
        %vm2269 = vmand %vm2109, %vm2237
        %vm2270 = vmand %vm2110, %vm2238
        %vm2271 = vmand %vm2111, %vm2239
        %vm2272 = vmand %vm2112, %vm2240
        %vm2273 = vmand %vm2113, %vm2241
        %v2274 = vsel %vm2242, 0.0, -inf
        %v2275 = vsel %vm2243, 0.0, -inf
        %v2276 = vsel %vm2244, 0.0, -inf
        %v2277 = vsel %vm2245, 0.0, -inf
        %v2278 = vsel %vm2246, 0.0, -inf
        %v2279 = vsel %vm2247, 0.0, -inf
        %v2280 = vsel %vm2248, 0.0, -inf
        %v2281 = vsel %vm2249, 0.0, -inf
        %v2282 = vsel %vm2250, 0.0, -inf
        %v2283 = vsel %vm2251, 0.0, -inf
        %v2284 = vsel %vm2252, 0.0, -inf
        %v2285 = vsel %vm2253, 0.0, -inf
        %v2286 = vsel %vm2254, 0.0, -inf
        %v2287 = vsel %vm2255, 0.0, -inf
        %v2288 = vsel %vm2256, 0.0, -inf
        %v2289 = vsel %vm2257, 0.0, -inf
        %v2290 = vsel %vm2258, 0.0, -inf
        %v2291 = vsel %vm2259, 0.0, -inf
        %v2292 = vsel %vm2260, 0.0, -inf
        %v2293 = vsel %vm2261, 0.0, -inf
        %v2294 = vsel %vm2262, 0.0, -inf
        %v2295 = vsel %vm2263, 0.0, -inf
        %v2296 = vsel %vm2264, 0.0, -inf
        %v2297 = vsel %vm2265, 0.0, -inf
        %v2298 = vsel %vm2266, 0.0, -inf
        %v2299 = vsel %vm2267, 0.0, -inf
        %v2300 = vsel %vm2268, 0.0, -inf
        %v2301 = vsel %vm2269, 0.0, -inf
        %v2302 = vsel %vm2270, 0.0, -inf
        %v2303 = vsel %vm2271, 0.0, -inf
        %v2304 = vsel %vm2272, 0.0, -inf
        %v2305 = vsel %vm2273, 0.0, -inf
        %v2306 = vrot.slane %v1087, 2
        %v2307 = vrot.slane %v1088, 2
        %v2308 = vrot.slane %v1089, 2
        %v2309 = vrot.slane %v1090, 2
        %v2310 = vrot.slane %v1091, 2
        %v2311 = vrot.slane %v1092, 2
        %v2312 = vrot.slane %v1093, 2
        %v2313 = vrot.slane %v1094, 2
        %v2314 = vrot.slane %v1095, 2
        %v2315 = vrot.slane %v1096, 2
        %v2316 = vrot.slane %v1097, 2
        %v2317 = vrot.slane %v1098, 2
        %v2318 = vrot.slane %v1099, 2
        %v2319 = vrot.slane %v1100, 2
        %v2320 = vrot.slane %v1101, 2
        %v2321 = vrot.slane %v1102, 2
        %v2322 = vrot.slane %v1103, 2
        %v2323 = vrot.slane %v1104, 2
        %v2324 = vrot.slane %v1105, 2
        %v2325 = vrot.slane %v1106, 2
        %v2326 = vrot.slane %v1107, 2
        %v2327 = vrot.slane %v1108, 2
        %v2328 = vrot.slane %v1109, 2
        %v2329 = vrot.slane %v1110, 2
        %v2330 = vrot.slane %v1111, 2
        %v2331 = vrot.slane %v1112, 2
        %v2332 = vrot.slane %v1113, 2
        %v2333 = vrot.slane %v1114, 2
        %v2334 = vrot.slane %v1115, 2
        %v2335 = vrot.slane %v1116, 2
        %v2336 = vrot.slane %v1117, 2
        %v2337 = vrot.slane %v1118, 2
        %vm2338 = vcmp.lt.s32.totalorder %v1087, 6
        %v2339 = vsel %vm2338, %v2336, %v2337
        %v2340 = vsel %vm2338, %v2335, %v2336
        %v2341 = vsel %vm2338, %v2334, %v2335
        %v2342 = vsel %vm2338, %v2333, %v2334
        %v2343 = vsel %vm2338, %v2332, %v2333
        %v2344 = vsel %vm2338, %v2331, %v2332
        %v2345 = vsel %vm2338, %v2330, %v2331
        %v2346 = vsel %vm2338, %v2329, %v2330
        %v2347 = vsel %vm2338, %v2328, %v2329
        %v2348 = vsel %vm2338, %v2327, %v2328
        %v2349 = vsel %vm2338, %v2326, %v2327
        %v2350 = vsel %vm2338, %v2325, %v2326
        %v2351 = vsel %vm2338, %v2324, %v2325
        %v2352 = vsel %vm2338, %v2323, %v2324
        %v2353 = vsel %vm2338, %v2322, %v2323
        %v2354 = vsel %vm2338, %v2321, %v2322
        %v2355 = vsel %vm2338, %v2320, %v2321
        %v2356 = vsel %vm2338, %v2319, %v2320
        %v2357 = vsel %vm2338, %v2318, %v2319
        %v2358 = vsel %vm2338, %v2317, %v2318
        %v2359 = vsel %vm2338, %v2316, %v2317
        %v2360 = vsel %vm2338, %v2315, %v2316
        %v2361 = vsel %vm2338, %v2314, %v2315
        %v2362 = vsel %vm2338, %v2313, %v2314
        %v2363 = vsel %vm2338, %v2312, %v2313
        %v2364 = vsel %vm2338, %v2311, %v2312
        %v2365 = vsel %vm2338, %v2310, %v2311
        %v2366 = vsel %vm2338, %v2309, %v2310
        %v2367 = vsel %vm2338, %v2308, %v2309
        %v2368 = vsel %vm2338, %v2307, %v2308
        %v2369 = vsel %vm2338, %v2306, %v2307
        %v2370 = vsel %vm2338, %v2337, %v2306
        %v2371 = vsub.s32 %v2369, %v1087
        %v2372 = vsub.s32 %v2368, %v1088
        %v2373 = vsub.s32 %v2367, %v1089
        %v2374 = vsub.s32 %v2366, %v1090
        %v2375 = vsub.s32 %v2365, %v1091
        %v2376 = vsub.s32 %v2364, %v1092
        %v2377 = vsub.s32 %v2363, %v1093
        %v2378 = vsub.s32 %v2362, %v1094
        %v2379 = vsub.s32 %v2361, %v1095
        %v2380 = vsub.s32 %v2360, %v1096
        %v2381 = vsub.s32 %v2359, %v1097
        %v2382 = vsub.s32 %v2358, %v1098
        %v2383 = vsub.s32 %v2357, %v1099
        %v2384 = vsub.s32 %v2356, %v1100
        %v2385 = vsub.s32 %v2355, %v1101
        %v2386 = vsub.s32 %v2354, %v1102
        %v2387 = vsub.s32 %v2353, %v1103
        %v2388 = vsub.s32 %v2352, %v1104
        %v2389 = vsub.s32 %v2351, %v1105
        %v2390 = vsub.s32 %v2350, %v1106
        %v2391 = vsub.s32 %v2349, %v1107
        %v2392 = vsub.s32 %v2348, %v1108
        %v2393 = vsub.s32 %v2347, %v1109
        %v2394 = vsub.s32 %v2346, %v1110
        %v2395 = vsub.s32 %v2345, %v1111
        %v2396 = vsub.s32 %v2344, %v1112
        %v2397 = vsub.s32 %v2343, %v1113
        %v2398 = vsub.s32 %v2342, %v1114
        %v2399 = vsub.s32 %v2341, %v1115
        %v2400 = vsub.s32 %v2340, %v1116
        %v2401 = vsub.s32 %v2339, %v1117
        %v2402 = vsub.s32 %v2370, %v1118
        %vm2403 = vcmp.eq.s32.totalorder %v2371, 2
        %vm2404 = vcmp.eq.s32.totalorder %v2372, 2
        %vm2405 = vcmp.eq.s32.totalorder %v2373, 2
        %vm2406 = vcmp.eq.s32.totalorder %v2374, 2
        %vm2407 = vcmp.eq.s32.totalorder %v2375, 2
        %vm2408 = vcmp.eq.s32.totalorder %v2376, 2
        %vm2409 = vcmp.eq.s32.totalorder %v2377, 2
        %vm2410 = vcmp.eq.s32.totalorder %v2378, 2
        %vm2411 = vcmp.eq.s32.totalorder %v2379, 2
        %vm2412 = vcmp.eq.s32.totalorder %v2380, 2
        %vm2413 = vcmp.eq.s32.totalorder %v2381, 2
        %vm2414 = vcmp.eq.s32.totalorder %v2382, 2
        %vm2415 = vcmp.eq.s32.totalorder %v2383, 2
        %vm2416 = vcmp.eq.s32.totalorder %v2384, 2
        %vm2417 = vcmp.eq.s32.totalorder %v2385, 2
        %vm2418 = vcmp.eq.s32.totalorder %v2386, 2
        %vm2419 = vcmp.eq.s32.totalorder %v2387, 2
        %vm2420 = vcmp.eq.s32.totalorder %v2388, 2
        %vm2421 = vcmp.eq.s32.totalorder %v2389, 2
        %vm2422 = vcmp.eq.s32.totalorder %v2390, 2
        %vm2423 = vcmp.eq.s32.totalorder %v2391, 2
        %vm2424 = vcmp.eq.s32.totalorder %v2392, 2
        %vm2425 = vcmp.eq.s32.totalorder %v2393, 2
        %vm2426 = vcmp.eq.s32.totalorder %v2394, 2
        %vm2427 = vcmp.eq.s32.totalorder %v2395, 2
        %vm2428 = vcmp.eq.s32.totalorder %v2396, 2
        %vm2429 = vcmp.eq.s32.totalorder %v2397, 2
        %vm2430 = vcmp.eq.s32.totalorder %v2398, 2
        %vm2431 = vcmp.eq.s32.totalorder %v2399, 2
        %vm2432 = vcmp.eq.s32.totalorder %v2400, 2
        %vm2433 = vcmp.eq.s32.totalorder %v2401, 2
        %vm2434 = vcmp.eq.s32.totalorder %v2402, 2
        %vm2435 = vcmp.eq.s32.totalorder %v2371, 4294967294
        %vm2436 = vcmp.eq.s32.totalorder %v2372, 4294967294
        %vm2437 = vcmp.eq.s32.totalorder %v2373, 4294967294
        %vm2438 = vcmp.eq.s32.totalorder %v2374, 4294967294
        %vm2439 = vcmp.eq.s32.totalorder %v2375, 4294967294
        %vm2440 = vcmp.eq.s32.totalorder %v2376, 4294967294
        %vm2441 = vcmp.eq.s32.totalorder %v2377, 4294967294
        %vm2442 = vcmp.eq.s32.totalorder %v2378, 4294967294
        %vm2443 = vcmp.eq.s32.totalorder %v2379, 4294967294
        %vm2444 = vcmp.eq.s32.totalorder %v2380, 4294967294
        %vm2445 = vcmp.eq.s32.totalorder %v2381, 4294967294
        %vm2446 = vcmp.eq.s32.totalorder %v2382, 4294967294
        %vm2447 = vcmp.eq.s32.totalorder %v2383, 4294967294
        %vm2448 = vcmp.eq.s32.totalorder %v2384, 4294967294
        %vm2449 = vcmp.eq.s32.totalorder %v2385, 4294967294
        %vm2450 = vcmp.eq.s32.totalorder %v2386, 4294967294
        %vm2451 = vcmp.eq.s32.totalorder %v2387, 4294967294
        %vm2452 = vcmp.eq.s32.totalorder %v2388, 4294967294
        %vm2453 = vcmp.eq.s32.totalorder %v2389, 4294967294
        %vm2454 = vcmp.eq.s32.totalorder %v2390, 4294967294
        %vm2455 = vcmp.eq.s32.totalorder %v2391, 4294967294
        %vm2456 = vcmp.eq.s32.totalorder %v2392, 4294967294
        %vm2457 = vcmp.eq.s32.totalorder %v2393, 4294967294
        %vm2458 = vcmp.eq.s32.totalorder %v2394, 4294967294
        %vm2459 = vcmp.eq.s32.totalorder %v2395, 4294967294
        %vm2460 = vcmp.eq.s32.totalorder %v2396, 4294967294
        %vm2461 = vcmp.eq.s32.totalorder %v2397, 4294967294
        %vm2462 = vcmp.eq.s32.totalorder %v2398, 4294967294
        %vm2463 = vcmp.eq.s32.totalorder %v2399, 4294967294
        %vm2464 = vcmp.eq.s32.totalorder %v2400, 4294967294
        %vm2465 = vcmp.eq.s32.totalorder %v2401, 4294967294
        %vm2466 = vcmp.eq.s32.totalorder %v2402, 4294967294
        %vm2467 = vmor %vm2403, %vm2435
        %vm2468 = vmor %vm2404, %vm2436
        %vm2469 = vmor %vm2405, %vm2437
        %vm2470 = vmor %vm2406, %vm2438
        %vm2471 = vmor %vm2407, %vm2439
        %vm2472 = vmor %vm2408, %vm2440
        %vm2473 = vmor %vm2409, %vm2441
        %vm2474 = vmor %vm2410, %vm2442
        %vm2475 = vmor %vm2411, %vm2443
        %vm2476 = vmor %vm2412, %vm2444
        %vm2477 = vmor %vm2413, %vm2445
        %vm2478 = vmor %vm2414, %vm2446
        %vm2479 = vmor %vm2415, %vm2447
        %vm2480 = vmor %vm2416, %vm2448
        %vm2481 = vmor %vm2417, %vm2449
        %vm2482 = vmor %vm2418, %vm2450
        %vm2483 = vmor %vm2419, %vm2451
        %vm2484 = vmor %vm2420, %vm2452
        %vm2485 = vmor %vm2421, %vm2453
        %vm2486 = vmor %vm2422, %vm2454
        %vm2487 = vmor %vm2423, %vm2455
        %vm2488 = vmor %vm2424, %vm2456
        %vm2489 = vmor %vm2425, %vm2457
        %vm2490 = vmor %vm2426, %vm2458
        %vm2491 = vmor %vm2427, %vm2459
        %vm2492 = vmor %vm2428, %vm2460
        %vm2493 = vmor %vm2429, %vm2461
        %vm2494 = vmor %vm2430, %vm2462
        %vm2495 = vmor %vm2431, %vm2463
        %vm2496 = vmor %vm2432, %vm2464
        %vm2497 = vmor %vm2433, %vm2465
        %vm2498 = vmor %vm2434, %vm2466
        %v2499 = vrot.slane %v1119, 2
        %v2500 = vrot.slane %v1120, 2
        %v2501 = vrot.slane %v1121, 2
        %v2502 = vrot.slane %v1122, 2
        %v2503 = vrot.slane %v1123, 2
        %v2504 = vrot.slane %v1124, 2
        %v2505 = vrot.slane %v1125, 2
        %v2506 = vrot.slane %v1126, 2
        %v2507 = vrot.slane %v1127, 2
        %v2508 = vrot.slane %v1128, 2
        %v2509 = vrot.slane %v1129, 2
        %v2510 = vrot.slane %v1130, 2
        %v2511 = vrot.slane %v1131, 2
        %v2512 = vrot.slane %v1132, 2
        %v2513 = vrot.slane %v1133, 2
        %v2514 = vrot.slane %v1134, 2
        %v2515 = vrot.slane %v1135, 2
        %v2516 = vrot.slane %v1136, 2
        %v2517 = vrot.slane %v1137, 2
        %v2518 = vrot.slane %v1138, 2
        %v2519 = vrot.slane %v1139, 2
        %v2520 = vrot.slane %v1140, 2
        %v2521 = vrot.slane %v1141, 2
        %v2522 = vrot.slane %v1142, 2
        %v2523 = vrot.slane %v1143, 2
        %v2524 = vrot.slane %v1144, 2
        %v2525 = vrot.slane %v1145, 2
        %v2526 = vrot.slane %v1146, 2
        %v2527 = vrot.slane %v1147, 2
        %v2528 = vrot.slane %v1148, 2
        %v2529 = vrot.slane %v1149, 2
        %v2530 = vrot.slane %v1150, 2
        %v2531 = vsel %vm2338, %v2529, %v2530
        %v2532 = vsel %vm2338, %v2528, %v2529
        %v2533 = vsel %vm2338, %v2527, %v2528
        %v2534 = vsel %vm2338, %v2526, %v2527
        %v2535 = vsel %vm2338, %v2525, %v2526
        %v2536 = vsel %vm2338, %v2524, %v2525
        %v2537 = vsel %vm2338, %v2523, %v2524
        %v2538 = vsel %vm2338, %v2522, %v2523
        %v2539 = vsel %vm2338, %v2521, %v2522
        %v2540 = vsel %vm2338, %v2520, %v2521
        %v2541 = vsel %vm2338, %v2519, %v2520
        %v2542 = vsel %vm2338, %v2518, %v2519
        %v2543 = vsel %vm2338, %v2517, %v2518
        %v2544 = vsel %vm2338, %v2516, %v2517
        %v2545 = vsel %vm2338, %v2515, %v2516
        %v2546 = vsel %vm2338, %v2514, %v2515
        %v2547 = vsel %vm2338, %v2513, %v2514
        %v2548 = vsel %vm2338, %v2512, %v2513
        %v2549 = vsel %vm2338, %v2511, %v2512
        %v2550 = vsel %vm2338, %v2510, %v2511
        %v2551 = vsel %vm2338, %v2509, %v2510
        %v2552 = vsel %vm2338, %v2508, %v2509
        %v2553 = vsel %vm2338, %v2507, %v2508
        %v2554 = vsel %vm2338, %v2506, %v2507
        %v2555 = vsel %vm2338, %v2505, %v2506
        %v2556 = vsel %vm2338, %v2504, %v2505
        %v2557 = vsel %vm2338, %v2503, %v2504
        %v2558 = vsel %vm2338, %v2502, %v2503
        %v2559 = vsel %vm2338, %v2501, %v2502
        %v2560 = vsel %vm2338, %v2500, %v2501
        %v2561 = vsel %vm2338, %v2499, %v2500
        %v2562 = vsel %vm2338, %v2530, %v2499
        %v2563 = vsub.s32 %v2561, %v1119
        %v2564 = vsub.s32 %v2560, %v1120
        %v2565 = vsub.s32 %v2559, %v1121
        %v2566 = vsub.s32 %v2558, %v1122
        %v2567 = vsub.s32 %v2557, %v1123
        %v2568 = vsub.s32 %v2556, %v1124
        %v2569 = vsub.s32 %v2555, %v1125
        %v2570 = vsub.s32 %v2554, %v1126
        %v2571 = vsub.s32 %v2553, %v1127
        %v2572 = vsub.s32 %v2552, %v1128
        %v2573 = vsub.s32 %v2551, %v1129
        %v2574 = vsub.s32 %v2550, %v1130
        %v2575 = vsub.s32 %v2549, %v1131
        %v2576 = vsub.s32 %v2548, %v1132
        %v2577 = vsub.s32 %v2547, %v1133
        %v2578 = vsub.s32 %v2546, %v1134
        %v2579 = vsub.s32 %v2545, %v1135
        %v2580 = vsub.s32 %v2544, %v1136
        %v2581 = vsub.s32 %v2543, %v1137
        %v2582 = vsub.s32 %v2542, %v1138
        %v2583 = vsub.s32 %v2541, %v1139
        %v2584 = vsub.s32 %v2540, %v1140
        %v2585 = vsub.s32 %v2539, %v1141
        %v2586 = vsub.s32 %v2538, %v1142
        %v2587 = vsub.s32 %v2537, %v1143
        %v2588 = vsub.s32 %v2536, %v1144
        %v2589 = vsub.s32 %v2535, %v1145
        %v2590 = vsub.s32 %v2534, %v1146
        %v2591 = vsub.s32 %v2533, %v1147
        %v2592 = vsub.s32 %v2532, %v1148
        %v2593 = vsub.s32 %v2531, %v1149
        %v2594 = vsub.s32 %v2562, %v1150
        %vm2595 = vcmp.eq.s32.totalorder %v2563, %v2371
        %vm2596 = vcmp.eq.s32.totalorder %v2564, %v2372
        %vm2597 = vcmp.eq.s32.totalorder %v2565, %v2373
        %vm2598 = vcmp.eq.s32.totalorder %v2566, %v2374
        %vm2599 = vcmp.eq.s32.totalorder %v2567, %v2375
        %vm2600 = vcmp.eq.s32.totalorder %v2568, %v2376
        %vm2601 = vcmp.eq.s32.totalorder %v2569, %v2377
        %vm2602 = vcmp.eq.s32.totalorder %v2570, %v2378
        %vm2603 = vcmp.eq.s32.totalorder %v2571, %v2379
        %vm2604 = vcmp.eq.s32.totalorder %v2572, %v2380
        %vm2605 = vcmp.eq.s32.totalorder %v2573, %v2381
        %vm2606 = vcmp.eq.s32.totalorder %v2574, %v2382
        %vm2607 = vcmp.eq.s32.totalorder %v2575, %v2383
        %vm2608 = vcmp.eq.s32.totalorder %v2576, %v2384
        %vm2609 = vcmp.eq.s32.totalorder %v2577, %v2385
        %vm2610 = vcmp.eq.s32.totalorder %v2578, %v2386
        %vm2611 = vcmp.eq.s32.totalorder %v2579, %v2387
        %vm2612 = vcmp.eq.s32.totalorder %v2580, %v2388
        %vm2613 = vcmp.eq.s32.totalorder %v2581, %v2389
        %vm2614 = vcmp.eq.s32.totalorder %v2582, %v2390
        %vm2615 = vcmp.eq.s32.totalorder %v2583, %v2391
        %vm2616 = vcmp.eq.s32.totalorder %v2584, %v2392
        %vm2617 = vcmp.eq.s32.totalorder %v2585, %v2393
        %vm2618 = vcmp.eq.s32.totalorder %v2586, %v2394
        %vm2619 = vcmp.eq.s32.totalorder %v2587, %v2395
        %vm2620 = vcmp.eq.s32.totalorder %v2588, %v2396
        %vm2621 = vcmp.eq.s32.totalorder %v2589, %v2397
        %vm2622 = vcmp.eq.s32.totalorder %v2590, %v2398
        %vm2623 = vcmp.eq.s32.totalorder %v2591, %v2399
        %vm2624 = vcmp.eq.s32.totalorder %v2592, %v2400
        %vm2625 = vcmp.eq.s32.totalorder %v2593, %v2401
        %vm2626 = vcmp.eq.s32.totalorder %v2594, %v2402
        %vm2627 = vmand %vm2467, %vm2595
        %vm2628 = vmand %vm2468, %vm2596
        %vm2629 = vmand %vm2469, %vm2597
        %vm2630 = vmand %vm2470, %vm2598
        %vm2631 = vmand %vm2471, %vm2599
        %vm2632 = vmand %vm2472, %vm2600
        %vm2633 = vmand %vm2473, %vm2601
        %vm2634 = vmand %vm2474, %vm2602
        %vm2635 = vmand %vm2475, %vm2603
        %vm2636 = vmand %vm2476, %vm2604
        %vm2637 = vmand %vm2477, %vm2605
        %vm2638 = vmand %vm2478, %vm2606
        %vm2639 = vmand %vm2479, %vm2607
        %vm2640 = vmand %vm2480, %vm2608
        %vm2641 = vmand %vm2481, %vm2609
        %vm2642 = vmand %vm2482, %vm2610
        %vm2643 = vmand %vm2483, %vm2611
        %vm2644 = vmand %vm2484, %vm2612
        %vm2645 = vmand %vm2485, %vm2613
        %vm2646 = vmand %vm2486, %vm2614
        %vm2647 = vmand %vm2487, %vm2615
        %vm2648 = vmand %vm2488, %vm2616
        %vm2649 = vmand %vm2489, %vm2617
        %vm2650 = vmand %vm2490, %vm2618
        %vm2651 = vmand %vm2491, %vm2619
        %vm2652 = vmand %vm2492, %vm2620
        %vm2653 = vmand %vm2493, %vm2621
        %vm2654 = vmand %vm2494, %vm2622
        %vm2655 = vmand %vm2495, %vm2623
        %vm2656 = vmand %vm2496, %vm2624
        %vm2657 = vmand %vm2497, %vm2625
        %vm2658 = vmand %vm2498, %vm2626
        %v2659 = vsel %vm2627, 0.0, -inf
        %v2660 = vsel %vm2628, 0.0, -inf
        %v2661 = vsel %vm2629, 0.0, -inf
        %v2662 = vsel %vm2630, 0.0, -inf
        %v2663 = vsel %vm2631, 0.0, -inf
        %v2664 = vsel %vm2632, 0.0, -inf
        %v2665 = vsel %vm2633, 0.0, -inf
        %v2666 = vsel %vm2634, 0.0, -inf
        %v2667 = vsel %vm2635, 0.0, -inf
        %v2668 = vsel %vm2636, 0.0, -inf
        %v2669 = vsel %vm2637, 0.0, -inf
        %v2670 = vsel %vm2638, 0.0, -inf
        %v2671 = vsel %vm2639, 0.0, -inf
        %v2672 = vsel %vm2640, 0.0, -inf
        %v2673 = vsel %vm2641, 0.0, -inf
        %v2674 = vsel %vm2642, 0.0, -inf
        %v2675 = vsel %vm2643, 0.0, -inf
        %v2676 = vsel %vm2644, 0.0, -inf
        %v2677 = vsel %vm2645, 0.0, -inf
        %v2678 = vsel %vm2646, 0.0, -inf
        %v2679 = vsel %vm2647, 0.0, -inf
        %v2680 = vsel %vm2648, 0.0, -inf
        %v2681 = vsel %vm2649, 0.0, -inf
        %v2682 = vsel %vm2650, 0.0, -inf
        %v2683 = vsel %vm2651, 0.0, -inf
        %v2684 = vsel %vm2652, 0.0, -inf
        %v2685 = vsel %vm2653, 0.0, -inf
        %v2686 = vsel %vm2654, 0.0, -inf
        %v2687 = vsel %vm2655, 0.0, -inf
        %v2688 = vsel %vm2656, 0.0, -inf
        %v2689 = vsel %vm2657, 0.0, -inf
        %v2690 = vsel %vm2658, 0.0, -inf
        %v2691 = vsub.s32 %v1118, %v1088
        %v2692 = vsub.s32 %v1087, %v1089
        %v2693 = vsub.s32 %v1088, %v1090
        %v2694 = vsub.s32 %v1089, %v1091
        %v2695 = vsub.s32 %v1090, %v1092
        %v2696 = vsub.s32 %v1091, %v1093
        %v2697 = vsub.s32 %v1092, %v1094
        %v2698 = vsub.s32 %v1093, %v1095
        %v2699 = vsub.s32 %v1094, %v1096
        %v2700 = vsub.s32 %v1095, %v1097
        %v2701 = vsub.s32 %v1096, %v1098
        %v2702 = vsub.s32 %v1097, %v1099
        %v2703 = vsub.s32 %v1098, %v1100
        %v2704 = vsub.s32 %v1099, %v1101
        %v2705 = vsub.s32 %v1100, %v1102
        %v2706 = vsub.s32 %v1101, %v1103
        %v2707 = vsub.s32 %v1102, %v1104
        %v2708 = vsub.s32 %v1103, %v1105
        %v2709 = vsub.s32 %v1104, %v1106
        %v2710 = vsub.s32 %v1105, %v1107
        %v2711 = vsub.s32 %v1106, %v1108
        %v2712 = vsub.s32 %v1107, %v1109
        %v2713 = vsub.s32 %v1108, %v1110
        %v2714 = vsub.s32 %v1109, %v1111
        %v2715 = vsub.s32 %v1110, %v1112
        %v2716 = vsub.s32 %v1111, %v1113
        %v2717 = vsub.s32 %v1112, %v1114
        %v2718 = vsub.s32 %v1113, %v1115
        %v2719 = vsub.s32 %v1114, %v1116
        %v2720 = vsub.s32 %v1115, %v1117
        %v2721 = vsub.s32 %v1116, %v1118
        %vm2722 = vcmp.eq.s32.totalorder %v2691, 16
        %vm2723 = vcmp.eq.s32.totalorder %v2692, 16
        %vm2724 = vcmp.eq.s32.totalorder %v2693, 16
        %vm2725 = vcmp.eq.s32.totalorder %v2694, 16
        %vm2726 = vcmp.eq.s32.totalorder %v2695, 16
        %vm2727 = vcmp.eq.s32.totalorder %v2696, 16
        %vm2728 = vcmp.eq.s32.totalorder %v2697, 16
        %vm2729 = vcmp.eq.s32.totalorder %v2698, 16
        %vm2730 = vcmp.eq.s32.totalorder %v2699, 16
        %vm2731 = vcmp.eq.s32.totalorder %v2700, 16
        %vm2732 = vcmp.eq.s32.totalorder %v2701, 16
        %vm2733 = vcmp.eq.s32.totalorder %v2702, 16
        %vm2734 = vcmp.eq.s32.totalorder %v2703, 16
        %vm2735 = vcmp.eq.s32.totalorder %v2704, 16
        %vm2736 = vcmp.eq.s32.totalorder %v2705, 16
        %vm2737 = vcmp.eq.s32.totalorder %v2706, 16
        %vm2738 = vcmp.eq.s32.totalorder %v2707, 16
        %vm2739 = vcmp.eq.s32.totalorder %v2708, 16
        %vm2740 = vcmp.eq.s32.totalorder %v2709, 16
        %vm2741 = vcmp.eq.s32.totalorder %v2710, 16
        %vm2742 = vcmp.eq.s32.totalorder %v2711, 16
        %vm2743 = vcmp.eq.s32.totalorder %v2712, 16
        %vm2744 = vcmp.eq.s32.totalorder %v2713, 16
        %vm2745 = vcmp.eq.s32.totalorder %v2714, 16
        %vm2746 = vcmp.eq.s32.totalorder %v2715, 16
        %vm2747 = vcmp.eq.s32.totalorder %v2716, 16
        %vm2748 = vcmp.eq.s32.totalorder %v2717, 16
        %vm2749 = vcmp.eq.s32.totalorder %v2718, 16
        %vm2750 = vcmp.eq.s32.totalorder %v2719, 16
        %vm2751 = vcmp.eq.s32.totalorder %v2720, 16
        %vm2752 = vcmp.eq.s32.totalorder %v2721, 16
        %vm2753 = vcmp.eq.s32.totalorder %v2691, 4294967280
        %vm2754 = vcmp.eq.s32.totalorder %v2692, 4294967280
        %vm2755 = vcmp.eq.s32.totalorder %v2693, 4294967280
        %vm2756 = vcmp.eq.s32.totalorder %v2694, 4294967280
        %vm2757 = vcmp.eq.s32.totalorder %v2695, 4294967280
        %vm2758 = vcmp.eq.s32.totalorder %v2696, 4294967280
        %vm2759 = vcmp.eq.s32.totalorder %v2697, 4294967280
        %vm2760 = vcmp.eq.s32.totalorder %v2698, 4294967280
        %vm2761 = vcmp.eq.s32.totalorder %v2699, 4294967280
        %vm2762 = vcmp.eq.s32.totalorder %v2700, 4294967280
        %vm2763 = vcmp.eq.s32.totalorder %v2701, 4294967280
        %vm2764 = vcmp.eq.s32.totalorder %v2702, 4294967280
        %vm2765 = vcmp.eq.s32.totalorder %v2703, 4294967280
        %vm2766 = vcmp.eq.s32.totalorder %v2704, 4294967280
        %vm2767 = vcmp.eq.s32.totalorder %v2705, 4294967280
        %vm2768 = vcmp.eq.s32.totalorder %v2706, 4294967280
        %vm2769 = vcmp.eq.s32.totalorder %v2707, 4294967280
        %vm2770 = vcmp.eq.s32.totalorder %v2708, 4294967280
        %vm2771 = vcmp.eq.s32.totalorder %v2709, 4294967280
        %vm2772 = vcmp.eq.s32.totalorder %v2710, 4294967280
        %vm2773 = vcmp.eq.s32.totalorder %v2711, 4294967280
        %vm2774 = vcmp.eq.s32.totalorder %v2712, 4294967280
        %vm2775 = vcmp.eq.s32.totalorder %v2713, 4294967280
        %vm2776 = vcmp.eq.s32.totalorder %v2714, 4294967280
        %vm2777 = vcmp.eq.s32.totalorder %v2715, 4294967280
        %vm2778 = vcmp.eq.s32.totalorder %v2716, 4294967280
        %vm2779 = vcmp.eq.s32.totalorder %v2717, 4294967280
        %vm2780 = vcmp.eq.s32.totalorder %v2718, 4294967280
        %vm2781 = vcmp.eq.s32.totalorder %v2719, 4294967280
        %vm2782 = vcmp.eq.s32.totalorder %v2720, 4294967280
        %vm2783 = vcmp.eq.s32.totalorder %v2721, 4294967280
        %vm2784 = vmor %vm2722, %vm2753
        %vm2785 = vmor %vm2723, %vm2754
        %vm2786 = vmor %vm2724, %vm2755
        %vm2787 = vmor %vm2725, %vm2756
        %vm2788 = vmor %vm2726, %vm2757
        %vm2789 = vmor %vm2727, %vm2758
        %vm2790 = vmor %vm2728, %vm2759
        %vm2791 = vmor %vm2729, %vm2760
        %vm2792 = vmor %vm2730, %vm2761
        %vm2793 = vmor %vm2731, %vm2762
        %vm2794 = vmor %vm2732, %vm2763
        %vm2795 = vmor %vm2733, %vm2764
        %vm2796 = vmor %vm2734, %vm2765
        %vm2797 = vmor %vm2735, %vm2766
        %vm2798 = vmor %vm2736, %vm2767
        %vm2799 = vmor %vm2737, %vm2768
        %vm2800 = vmor %vm2738, %vm2769
        %vm2801 = vmor %vm2739, %vm2770
        %vm2802 = vmor %vm2740, %vm2771
        %vm2803 = vmor %vm2741, %vm2772
        %vm2804 = vmor %vm2742, %vm2773
        %vm2805 = vmor %vm2743, %vm2774
        %vm2806 = vmor %vm2744, %vm2775
        %vm2807 = vmor %vm2745, %vm2776
        %vm2808 = vmor %vm2746, %vm2777
        %vm2809 = vmor %vm2747, %vm2778
        %vm2810 = vmor %vm2748, %vm2779
        %vm2811 = vmor %vm2749, %vm2780
        %vm2812 = vmor %vm2750, %vm2781
        %vm2813 = vmor %vm2751, %vm2782
        %vm2814 = vmor %vm2752, %vm2783
        %v2815 = vsel %vm2784, 0.0, -inf
        %v2816 = vsel %vm2785, 0.0, -inf
        %v2817 = vsel %vm2786, 0.0, -inf
        %v2818 = vsel %vm2787, 0.0, -inf
        %v2819 = vsel %vm2788, 0.0, -inf
        %v2820 = vsel %vm2789, 0.0, -inf
        %v2821 = vsel %vm2790, 0.0, -inf
        %v2822 = vsel %vm2791, 0.0, -inf
        %v2823 = vsel %vm2792, 0.0, -inf
        %v2824 = vsel %vm2793, 0.0, -inf
        %v2825 = vsel %vm2794, 0.0, -inf
        %v2826 = vsel %vm2795, 0.0, -inf
        %v2827 = vsel %vm2796, 0.0, -inf
        %v2828 = vsel %vm2797, 0.0, -inf
        %v2829 = vsel %vm2798, 0.0, -inf
        %v2830 = vsel %vm2799, 0.0, -inf
        %v2831 = vsel %vm2800, 0.0, -inf
        %v2832 = vsel %vm2801, 0.0, -inf
        %v2833 = vsel %vm2802, 0.0, -inf
        %v2834 = vsel %vm2803, 0.0, -inf
        %v2835 = vsel %vm2804, 0.0, -inf
        %v2836 = vsel %vm2805, 0.0, -inf
        %v2837 = vsel %vm2806, 0.0, -inf
        %v2838 = vsel %vm2807, 0.0, -inf
        %v2839 = vsel %vm2808, 0.0, -inf
        %v2840 = vsel %vm2809, 0.0, -inf
        %v2841 = vsel %vm2810, 0.0, -inf
        %v2842 = vsel %vm2811, 0.0, -inf
        %v2843 = vsel %vm2812, 0.0, -inf
        %v2844 = vsel %vm2813, 0.0, -inf
        %v2845 = vsel %vm2814, 0.0, -inf
        %v2846 = vsub.s32 %v1090, %v1088
        %v2847 = vsub.s32 %v1091, %v1089
        %v2848 = vsub.s32 %v1092, %v1090
        %v2849 = vsub.s32 %v1093, %v1091
        %v2850 = vsub.s32 %v1094, %v1092
        %v2851 = vsub.s32 %v1095, %v1093
        %v2852 = vsub.s32 %v1096, %v1094
        %v2853 = vsub.s32 %v1097, %v1095
        %v2854 = vsub.s32 %v1098, %v1096
        %v2855 = vsub.s32 %v1099, %v1097
        %v2856 = vsub.s32 %v1100, %v1098
        %v2857 = vsub.s32 %v1101, %v1099
        %v2858 = vsub.s32 %v1102, %v1100
        %v2859 = vsub.s32 %v1103, %v1101
        %v2860 = vsub.s32 %v1104, %v1102
        %v2861 = vsub.s32 %v1105, %v1103
        %v2862 = vsub.s32 %v1106, %v1104
        %v2863 = vsub.s32 %v1107, %v1105
        %v2864 = vsub.s32 %v1108, %v1106
        %v2865 = vsub.s32 %v1109, %v1107
        %v2866 = vsub.s32 %v1110, %v1108
        %v2867 = vsub.s32 %v1111, %v1109
        %v2868 = vsub.s32 %v1112, %v1110
        %v2869 = vsub.s32 %v1113, %v1111
        %v2870 = vsub.s32 %v1114, %v1112
        %v2871 = vsub.s32 %v1115, %v1113
        %v2872 = vsub.s32 %v1116, %v1114
        %v2873 = vsub.s32 %v1117, %v1115
        %v2874 = vsub.s32 %v1118, %v1116
        %v2875 = vsub.s32 %v1087, %v1117
        %v2876 = vsub.s32 %v1088, %v1118
        %vm2877 = vcmp.eq.s32.totalorder %v2846, 16
        %vm2878 = vcmp.eq.s32.totalorder %v2847, 16
        %vm2879 = vcmp.eq.s32.totalorder %v2848, 16
        %vm2880 = vcmp.eq.s32.totalorder %v2849, 16
        %vm2881 = vcmp.eq.s32.totalorder %v2850, 16
        %vm2882 = vcmp.eq.s32.totalorder %v2851, 16
        %vm2883 = vcmp.eq.s32.totalorder %v2852, 16
        %vm2884 = vcmp.eq.s32.totalorder %v2853, 16
        %vm2885 = vcmp.eq.s32.totalorder %v2854, 16
        %vm2886 = vcmp.eq.s32.totalorder %v2855, 16
        %vm2887 = vcmp.eq.s32.totalorder %v2856, 16
        %vm2888 = vcmp.eq.s32.totalorder %v2857, 16
        %vm2889 = vcmp.eq.s32.totalorder %v2858, 16
        %vm2890 = vcmp.eq.s32.totalorder %v2859, 16
        %vm2891 = vcmp.eq.s32.totalorder %v2860, 16
        %vm2892 = vcmp.eq.s32.totalorder %v2861, 16
        %vm2893 = vcmp.eq.s32.totalorder %v2862, 16
        %vm2894 = vcmp.eq.s32.totalorder %v2863, 16
        %vm2895 = vcmp.eq.s32.totalorder %v2864, 16
        %vm2896 = vcmp.eq.s32.totalorder %v2865, 16
        %vm2897 = vcmp.eq.s32.totalorder %v2866, 16
        %vm2898 = vcmp.eq.s32.totalorder %v2867, 16
        %vm2899 = vcmp.eq.s32.totalorder %v2868, 16
        %vm2900 = vcmp.eq.s32.totalorder %v2869, 16
        %vm2901 = vcmp.eq.s32.totalorder %v2870, 16
        %vm2902 = vcmp.eq.s32.totalorder %v2871, 16
        %vm2903 = vcmp.eq.s32.totalorder %v2872, 16
        %vm2904 = vcmp.eq.s32.totalorder %v2873, 16
        %vm2905 = vcmp.eq.s32.totalorder %v2874, 16
        %vm2906 = vcmp.eq.s32.totalorder %v2875, 16
        %vm2907 = vcmp.eq.s32.totalorder %v2876, 16
        %vm2908 = vcmp.eq.s32.totalorder %v2846, 4294967280
        %vm2909 = vcmp.eq.s32.totalorder %v2847, 4294967280
        %vm2910 = vcmp.eq.s32.totalorder %v2848, 4294967280
        %vm2911 = vcmp.eq.s32.totalorder %v2849, 4294967280
        %vm2912 = vcmp.eq.s32.totalorder %v2850, 4294967280
        %vm2913 = vcmp.eq.s32.totalorder %v2851, 4294967280
        %vm2914 = vcmp.eq.s32.totalorder %v2852, 4294967280
        %vm2915 = vcmp.eq.s32.totalorder %v2853, 4294967280
        %vm2916 = vcmp.eq.s32.totalorder %v2854, 4294967280
        %vm2917 = vcmp.eq.s32.totalorder %v2855, 4294967280
        %vm2918 = vcmp.eq.s32.totalorder %v2856, 4294967280
        %vm2919 = vcmp.eq.s32.totalorder %v2857, 4294967280
        %vm2920 = vcmp.eq.s32.totalorder %v2858, 4294967280
        %vm2921 = vcmp.eq.s32.totalorder %v2859, 4294967280
        %vm2922 = vcmp.eq.s32.totalorder %v2860, 4294967280
        %vm2923 = vcmp.eq.s32.totalorder %v2861, 4294967280
        %vm2924 = vcmp.eq.s32.totalorder %v2862, 4294967280
        %vm2925 = vcmp.eq.s32.totalorder %v2863, 4294967280
        %vm2926 = vcmp.eq.s32.totalorder %v2864, 4294967280
        %vm2927 = vcmp.eq.s32.totalorder %v2865, 4294967280
        %vm2928 = vcmp.eq.s32.totalorder %v2866, 4294967280
        %vm2929 = vcmp.eq.s32.totalorder %v2867, 4294967280
        %vm2930 = vcmp.eq.s32.totalorder %v2868, 4294967280
        %vm2931 = vcmp.eq.s32.totalorder %v2869, 4294967280
        %vm2932 = vcmp.eq.s32.totalorder %v2870, 4294967280
        %vm2933 = vcmp.eq.s32.totalorder %v2871, 4294967280
        %vm2934 = vcmp.eq.s32.totalorder %v2872, 4294967280
        %vm2935 = vcmp.eq.s32.totalorder %v2873, 4294967280
        %vm2936 = vcmp.eq.s32.totalorder %v2874, 4294967280
        %vm2937 = vcmp.eq.s32.totalorder %v2875, 4294967280
        %vm2938 = vcmp.eq.s32.totalorder %v2876, 4294967280
        %vm2939 = vmor %vm2877, %vm2908
        %vm2940 = vmor %vm2878, %vm2909
        %vm2941 = vmor %vm2879, %vm2910
        %vm2942 = vmor %vm2880, %vm2911
        %vm2943 = vmor %vm2881, %vm2912
        %vm2944 = vmor %vm2882, %vm2913
        %vm2945 = vmor %vm2883, %vm2914
        %vm2946 = vmor %vm2884, %vm2915
        %vm2947 = vmor %vm2885, %vm2916
        %vm2948 = vmor %vm2886, %vm2917
        %vm2949 = vmor %vm2887, %vm2918
        %vm2950 = vmor %vm2888, %vm2919
        %vm2951 = vmor %vm2889, %vm2920
        %vm2952 = vmor %vm2890, %vm2921
        %vm2953 = vmor %vm2891, %vm2922
        %vm2954 = vmor %vm2892, %vm2923
        %vm2955 = vmor %vm2893, %vm2924
        %vm2956 = vmor %vm2894, %vm2925
        %vm2957 = vmor %vm2895, %vm2926
        %vm2958 = vmor %vm2896, %vm2927
        %vm2959 = vmor %vm2897, %vm2928
        %vm2960 = vmor %vm2898, %vm2929
        %vm2961 = vmor %vm2899, %vm2930
        %vm2962 = vmor %vm2900, %vm2931
        %vm2963 = vmor %vm2901, %vm2932
        %vm2964 = vmor %vm2902, %vm2933
        %vm2965 = vmor %vm2903, %vm2934
        %vm2966 = vmor %vm2904, %vm2935
        %vm2967 = vmor %vm2905, %vm2936
        %vm2968 = vmor %vm2906, %vm2937
        %vm2969 = vmor %vm2907, %vm2938
        %v2970 = vsel %vm2939, 0.0, -inf
        %v2971 = vsel %vm2940, 0.0, -inf
        %v2972 = vsel %vm2941, 0.0, -inf
        %v2973 = vsel %vm2942, 0.0, -inf
        %v2974 = vsel %vm2943, 0.0, -inf
        %v2975 = vsel %vm2944, 0.0, -inf
        %v2976 = vsel %vm2945, 0.0, -inf
        %v2977 = vsel %vm2946, 0.0, -inf
        %v2978 = vsel %vm2947, 0.0, -inf
        %v2979 = vsel %vm2948, 0.0, -inf
        %v2980 = vsel %vm2949, 0.0, -inf
        %v2981 = vsel %vm2950, 0.0, -inf
        %v2982 = vsel %vm2951, 0.0, -inf
        %v2983 = vsel %vm2952, 0.0, -inf
        %v2984 = vsel %vm2953, 0.0, -inf
        %v2985 = vsel %vm2954, 0.0, -inf
        %v2986 = vsel %vm2955, 0.0, -inf
        %v2987 = vsel %vm2956, 0.0, -inf
        %v2988 = vsel %vm2957, 0.0, -inf
        %v2989 = vsel %vm2958, 0.0, -inf
        %v2990 = vsel %vm2959, 0.0, -inf
        %v2991 = vsel %vm2960, 0.0, -inf
        %v2992 = vsel %vm2961, 0.0, -inf
        %v2993 = vsel %vm2962, 0.0, -inf
        %v2994 = vsel %vm2963, 0.0, -inf
        %v2995 = vsel %vm2964, 0.0, -inf
        %v2996 = vsel %vm2965, 0.0, -inf
        %v2997 = vsel %vm2966, 0.0, -inf
        %v2998 = vsel %vm2967, 0.0, -inf
        %v2999 = vsel %vm2968, 0.0, -inf
        %v3000 = vsel %vm2969, 0.0, -inf
        %v3001 = vsub.s32 %v1116, %v1088
        %v3002 = vsub.s32 %v1117, %v1089
        %v3003 = vsub.s32 %v1118, %v1090
        %v3004 = vsub.s32 %v1087, %v1091
        %v3005 = vsub.s32 %v1088, %v1092
        %v3006 = vsub.s32 %v1089, %v1093
        %v3007 = vsub.s32 %v1090, %v1094
        %v3008 = vsub.s32 %v1091, %v1095
        %v3009 = vsub.s32 %v1092, %v1096
        %v3010 = vsub.s32 %v1093, %v1097
        %v3011 = vsub.s32 %v1094, %v1098
        %v3012 = vsub.s32 %v1095, %v1099
        %v3013 = vsub.s32 %v1096, %v1100
        %v3014 = vsub.s32 %v1097, %v1101
        %v3015 = vsub.s32 %v1098, %v1102
        %v3016 = vsub.s32 %v1099, %v1103
        %v3017 = vsub.s32 %v1100, %v1104
        %v3018 = vsub.s32 %v1101, %v1105
        %v3019 = vsub.s32 %v1102, %v1106
        %v3020 = vsub.s32 %v1103, %v1107
        %v3021 = vsub.s32 %v1104, %v1108
        %v3022 = vsub.s32 %v1105, %v1109
        %v3023 = vsub.s32 %v1106, %v1110
        %v3024 = vsub.s32 %v1107, %v1111
        %v3025 = vsub.s32 %v1108, %v1112
        %v3026 = vsub.s32 %v1109, %v1113
        %v3027 = vsub.s32 %v1110, %v1114
        %v3028 = vsub.s32 %v1111, %v1115
        %v3029 = vsub.s32 %v1112, %v1116
        %v3030 = vsub.s32 %v1113, %v1117
        %v3031 = vsub.s32 %v1114, %v1118
        %vm3032 = vcmp.eq.s32.totalorder %v3001, 32
        %vm3033 = vcmp.eq.s32.totalorder %v3002, 32
        %vm3034 = vcmp.eq.s32.totalorder %v3003, 32
        %vm3035 = vcmp.eq.s32.totalorder %v3004, 32
        %vm3036 = vcmp.eq.s32.totalorder %v3005, 32
        %vm3037 = vcmp.eq.s32.totalorder %v3006, 32
        %vm3038 = vcmp.eq.s32.totalorder %v3007, 32
        %vm3039 = vcmp.eq.s32.totalorder %v3008, 32
        %vm3040 = vcmp.eq.s32.totalorder %v3009, 32
        %vm3041 = vcmp.eq.s32.totalorder %v3010, 32
        %vm3042 = vcmp.eq.s32.totalorder %v3011, 32
        %vm3043 = vcmp.eq.s32.totalorder %v3012, 32
        %vm3044 = vcmp.eq.s32.totalorder %v3013, 32
        %vm3045 = vcmp.eq.s32.totalorder %v3014, 32
        %vm3046 = vcmp.eq.s32.totalorder %v3015, 32
        %vm3047 = vcmp.eq.s32.totalorder %v3016, 32
        %vm3048 = vcmp.eq.s32.totalorder %v3017, 32
        %vm3049 = vcmp.eq.s32.totalorder %v3018, 32
        %vm3050 = vcmp.eq.s32.totalorder %v3019, 32
        %vm3051 = vcmp.eq.s32.totalorder %v3020, 32
        %vm3052 = vcmp.eq.s32.totalorder %v3021, 32
        %vm3053 = vcmp.eq.s32.totalorder %v3022, 32
        %vm3054 = vcmp.eq.s32.totalorder %v3023, 32
        %vm3055 = vcmp.eq.s32.totalorder %v3024, 32
        %vm3056 = vcmp.eq.s32.totalorder %v3025, 32
        %vm3057 = vcmp.eq.s32.totalorder %v3026, 32
        %vm3058 = vcmp.eq.s32.totalorder %v3027, 32
        %vm3059 = vcmp.eq.s32.totalorder %v3028, 32
        %vm3060 = vcmp.eq.s32.totalorder %v3029, 32
        %vm3061 = vcmp.eq.s32.totalorder %v3030, 32
        %vm3062 = vcmp.eq.s32.totalorder %v3031, 32
        %vm3063 = vcmp.eq.s32.totalorder %v3001, 4294967264
        %vm3064 = vcmp.eq.s32.totalorder %v3002, 4294967264
        %vm3065 = vcmp.eq.s32.totalorder %v3003, 4294967264
        %vm3066 = vcmp.eq.s32.totalorder %v3004, 4294967264
        %vm3067 = vcmp.eq.s32.totalorder %v3005, 4294967264
        %vm3068 = vcmp.eq.s32.totalorder %v3006, 4294967264
        %vm3069 = vcmp.eq.s32.totalorder %v3007, 4294967264
        %vm3070 = vcmp.eq.s32.totalorder %v3008, 4294967264
        %vm3071 = vcmp.eq.s32.totalorder %v3009, 4294967264
        %vm3072 = vcmp.eq.s32.totalorder %v3010, 4294967264
        %vm3073 = vcmp.eq.s32.totalorder %v3011, 4294967264
        %vm3074 = vcmp.eq.s32.totalorder %v3012, 4294967264
        %vm3075 = vcmp.eq.s32.totalorder %v3013, 4294967264
        %vm3076 = vcmp.eq.s32.totalorder %v3014, 4294967264
        %vm3077 = vcmp.eq.s32.totalorder %v3015, 4294967264
        %vm3078 = vcmp.eq.s32.totalorder %v3016, 4294967264
        %vm3079 = vcmp.eq.s32.totalorder %v3017, 4294967264
        %vm3080 = vcmp.eq.s32.totalorder %v3018, 4294967264
        %vm3081 = vcmp.eq.s32.totalorder %v3019, 4294967264
        %vm3082 = vcmp.eq.s32.totalorder %v3020, 4294967264
        %vm3083 = vcmp.eq.s32.totalorder %v3021, 4294967264
        %vm3084 = vcmp.eq.s32.totalorder %v3022, 4294967264
        %vm3085 = vcmp.eq.s32.totalorder %v3023, 4294967264
        %vm3086 = vcmp.eq.s32.totalorder %v3024, 4294967264
        %vm3087 = vcmp.eq.s32.totalorder %v3025, 4294967264
        %vm3088 = vcmp.eq.s32.totalorder %v3026, 4294967264
        %vm3089 = vcmp.eq.s32.totalorder %v3027, 4294967264
        %vm3090 = vcmp.eq.s32.totalorder %v3028, 4294967264
        %vm3091 = vcmp.eq.s32.totalorder %v3029, 4294967264
        %vm3092 = vcmp.eq.s32.totalorder %v3030, 4294967264
        %vm3093 = vcmp.eq.s32.totalorder %v3031, 4294967264
        %vm3094 = vmor %vm3032, %vm3063
        %vm3095 = vmor %vm3033, %vm3064
        %vm3096 = vmor %vm3034, %vm3065
        %vm3097 = vmor %vm3035, %vm3066
        %vm3098 = vmor %vm3036, %vm3067
        %vm3099 = vmor %vm3037, %vm3068
        %vm3100 = vmor %vm3038, %vm3069
        %vm3101 = vmor %vm3039, %vm3070
        %vm3102 = vmor %vm3040, %vm3071
        %vm3103 = vmor %vm3041, %vm3072
        %vm3104 = vmor %vm3042, %vm3073
        %vm3105 = vmor %vm3043, %vm3074
        %vm3106 = vmor %vm3044, %vm3075
        %vm3107 = vmor %vm3045, %vm3076
        %vm3108 = vmor %vm3046, %vm3077
        %vm3109 = vmor %vm3047, %vm3078
        %vm3110 = vmor %vm3048, %vm3079
        %vm3111 = vmor %vm3049, %vm3080
        %vm3112 = vmor %vm3050, %vm3081
        %vm3113 = vmor %vm3051, %vm3082
        %vm3114 = vmor %vm3052, %vm3083
        %vm3115 = vmor %vm3053, %vm3084
        %vm3116 = vmor %vm3054, %vm3085
        %vm3117 = vmor %vm3055, %vm3086
        %vm3118 = vmor %vm3056, %vm3087
        %vm3119 = vmor %vm3057, %vm3088
        %vm3120 = vmor %vm3058, %vm3089
        %vm3121 = vmor %vm3059, %vm3090
        %vm3122 = vmor %vm3060, %vm3091
        %vm3123 = vmor %vm3061, %vm3092
        %vm3124 = vmor %vm3062, %vm3093
        %v3125 = vsel %vm3094, 0.0, -inf
        %v3126 = vsel %vm3095, 0.0, -inf
        %v3127 = vsel %vm3096, 0.0, -inf
        %v3128 = vsel %vm3097, 0.0, -inf
        %v3129 = vsel %vm3098, 0.0, -inf
        %v3130 = vsel %vm3099, 0.0, -inf
        %v3131 = vsel %vm3100, 0.0, -inf
        %v3132 = vsel %vm3101, 0.0, -inf
        %v3133 = vsel %vm3102, 0.0, -inf
        %v3134 = vsel %vm3103, 0.0, -inf
        %v3135 = vsel %vm3104, 0.0, -inf
        %v3136 = vsel %vm3105, 0.0, -inf
        %v3137 = vsel %vm3106, 0.0, -inf
        %v3138 = vsel %vm3107, 0.0, -inf
        %v3139 = vsel %vm3108, 0.0, -inf
        %v3140 = vsel %vm3109, 0.0, -inf
        %v3141 = vsel %vm3110, 0.0, -inf
        %v3142 = vsel %vm3111, 0.0, -inf
        %v3143 = vsel %vm3112, 0.0, -inf
        %v3144 = vsel %vm3113, 0.0, -inf
        %v3145 = vsel %vm3114, 0.0, -inf
        %v3146 = vsel %vm3115, 0.0, -inf
        %v3147 = vsel %vm3116, 0.0, -inf
        %v3148 = vsel %vm3117, 0.0, -inf
        %v3149 = vsel %vm3118, 0.0, -inf
        %v3150 = vsel %vm3119, 0.0, -inf
        %v3151 = vsel %vm3120, 0.0, -inf
        %v3152 = vsel %vm3121, 0.0, -inf
        %v3153 = vsel %vm3122, 0.0, -inf
        %v3154 = vsel %vm3123, 0.0, -inf
        %v3155 = vsel %vm3124, 0.0, -inf
        %v3156 = vsub.s32 %v1092, %v1088
        %v3157 = vsub.s32 %v1093, %v1089
        %v3158 = vsub.s32 %v1094, %v1090
        %v3159 = vsub.s32 %v1095, %v1091
        %v3160 = vsub.s32 %v1096, %v1092
        %v3161 = vsub.s32 %v1097, %v1093
        %v3162 = vsub.s32 %v1098, %v1094
        %v3163 = vsub.s32 %v1099, %v1095
        %v3164 = vsub.s32 %v1100, %v1096
        %v3165 = vsub.s32 %v1101, %v1097
        %v3166 = vsub.s32 %v1102, %v1098
        %v3167 = vsub.s32 %v1103, %v1099
        %v3168 = vsub.s32 %v1104, %v1100
        %v3169 = vsub.s32 %v1105, %v1101
        %v3170 = vsub.s32 %v1106, %v1102
        %v3171 = vsub.s32 %v1107, %v1103
        %v3172 = vsub.s32 %v1108, %v1104
        %v3173 = vsub.s32 %v1109, %v1105
        %v3174 = vsub.s32 %v1110, %v1106
        %v3175 = vsub.s32 %v1111, %v1107
        %v3176 = vsub.s32 %v1112, %v1108
        %v3177 = vsub.s32 %v1113, %v1109
        %v3178 = vsub.s32 %v1114, %v1110
        %v3179 = vsub.s32 %v1115, %v1111
        %v3180 = vsub.s32 %v1116, %v1112
        %v3181 = vsub.s32 %v1117, %v1113
        %v3182 = vsub.s32 %v1118, %v1114
        %v3183 = vsub.s32 %v1087, %v1115
        %v3184 = vsub.s32 %v1088, %v1116
        %v3185 = vsub.s32 %v1089, %v1117
        %v3186 = vsub.s32 %v1090, %v1118
        %vm3187 = vcmp.eq.s32.totalorder %v3156, 32
        %vm3188 = vcmp.eq.s32.totalorder %v3157, 32
        %vm3189 = vcmp.eq.s32.totalorder %v3158, 32
        %vm3190 = vcmp.eq.s32.totalorder %v3159, 32
        %vm3191 = vcmp.eq.s32.totalorder %v3160, 32
        %vm3192 = vcmp.eq.s32.totalorder %v3161, 32
        %vm3193 = vcmp.eq.s32.totalorder %v3162, 32
        %vm3194 = vcmp.eq.s32.totalorder %v3163, 32
        %vm3195 = vcmp.eq.s32.totalorder %v3164, 32
        %vm3196 = vcmp.eq.s32.totalorder %v3165, 32
        %vm3197 = vcmp.eq.s32.totalorder %v3166, 32
        %vm3198 = vcmp.eq.s32.totalorder %v3167, 32
        %vm3199 = vcmp.eq.s32.totalorder %v3168, 32
        %vm3200 = vcmp.eq.s32.totalorder %v3169, 32
        %vm3201 = vcmp.eq.s32.totalorder %v3170, 32
        %vm3202 = vcmp.eq.s32.totalorder %v3171, 32
        %vm3203 = vcmp.eq.s32.totalorder %v3172, 32
        %vm3204 = vcmp.eq.s32.totalorder %v3173, 32
        %vm3205 = vcmp.eq.s32.totalorder %v3174, 32
        %vm3206 = vcmp.eq.s32.totalorder %v3175, 32
        %vm3207 = vcmp.eq.s32.totalorder %v3176, 32
        %vm3208 = vcmp.eq.s32.totalorder %v3177, 32
        %vm3209 = vcmp.eq.s32.totalorder %v3178, 32
        %vm3210 = vcmp.eq.s32.totalorder %v3179, 32
        %vm3211 = vcmp.eq.s32.totalorder %v3180, 32
        %vm3212 = vcmp.eq.s32.totalorder %v3181, 32
        %vm3213 = vcmp.eq.s32.totalorder %v3182, 32
        %vm3214 = vcmp.eq.s32.totalorder %v3183, 32
        %vm3215 = vcmp.eq.s32.totalorder %v3184, 32
        %vm3216 = vcmp.eq.s32.totalorder %v3185, 32
        %vm3217 = vcmp.eq.s32.totalorder %v3186, 32
        %vm3218 = vcmp.eq.s32.totalorder %v3156, 4294967264
        %vm3219 = vcmp.eq.s32.totalorder %v3157, 4294967264
        %vm3220 = vcmp.eq.s32.totalorder %v3158, 4294967264
        %vm3221 = vcmp.eq.s32.totalorder %v3159, 4294967264
        %vm3222 = vcmp.eq.s32.totalorder %v3160, 4294967264
        %vm3223 = vcmp.eq.s32.totalorder %v3161, 4294967264
        %vm3224 = vcmp.eq.s32.totalorder %v3162, 4294967264
        %vm3225 = vcmp.eq.s32.totalorder %v3163, 4294967264
        %vm3226 = vcmp.eq.s32.totalorder %v3164, 4294967264
        %vm3227 = vcmp.eq.s32.totalorder %v3165, 4294967264
        %vm3228 = vcmp.eq.s32.totalorder %v3166, 4294967264
        %vm3229 = vcmp.eq.s32.totalorder %v3167, 4294967264
        %vm3230 = vcmp.eq.s32.totalorder %v3168, 4294967264
        %vm3231 = vcmp.eq.s32.totalorder %v3169, 4294967264
        %vm3232 = vcmp.eq.s32.totalorder %v3170, 4294967264
        %vm3233 = vcmp.eq.s32.totalorder %v3171, 4294967264
        %vm3234 = vcmp.eq.s32.totalorder %v3172, 4294967264
        %vm3235 = vcmp.eq.s32.totalorder %v3173, 4294967264
        %vm3236 = vcmp.eq.s32.totalorder %v3174, 4294967264
        %vm3237 = vcmp.eq.s32.totalorder %v3175, 4294967264
        %vm3238 = vcmp.eq.s32.totalorder %v3176, 4294967264
        %vm3239 = vcmp.eq.s32.totalorder %v3177, 4294967264
        %vm3240 = vcmp.eq.s32.totalorder %v3178, 4294967264
        %vm3241 = vcmp.eq.s32.totalorder %v3179, 4294967264
        %vm3242 = vcmp.eq.s32.totalorder %v3180, 4294967264
        %vm3243 = vcmp.eq.s32.totalorder %v3181, 4294967264
        %vm3244 = vcmp.eq.s32.totalorder %v3182, 4294967264
        %vm3245 = vcmp.eq.s32.totalorder %v3183, 4294967264
        %vm3246 = vcmp.eq.s32.totalorder %v3184, 4294967264
        %vm3247 = vcmp.eq.s32.totalorder %v3185, 4294967264
        %vm3248 = vcmp.eq.s32.totalorder %v3186, 4294967264
        %vm3249 = vmor %vm3187, %vm3218
        %vm3250 = vmor %vm3188, %vm3219
        %vm3251 = vmor %vm3189, %vm3220
        %vm3252 = vmor %vm3190, %vm3221
        %vm3253 = vmor %vm3191, %vm3222
        %vm3254 = vmor %vm3192, %vm3223
        %vm3255 = vmor %vm3193, %vm3224
        %vm3256 = vmor %vm3194, %vm3225
        %vm3257 = vmor %vm3195, %vm3226
        %vm3258 = vmor %vm3196, %vm3227
        %vm3259 = vmor %vm3197, %vm3228
        %vm3260 = vmor %vm3198, %vm3229
        %vm3261 = vmor %vm3199, %vm3230
        %vm3262 = vmor %vm3200, %vm3231
        %vm3263 = vmor %vm3201, %vm3232
        %vm3264 = vmor %vm3202, %vm3233
        %vm3265 = vmor %vm3203, %vm3234
        %vm3266 = vmor %vm3204, %vm3235
        %vm3267 = vmor %vm3205, %vm3236
        %vm3268 = vmor %vm3206, %vm3237
        %vm3269 = vmor %vm3207, %vm3238
        %vm3270 = vmor %vm3208, %vm3239
        %vm3271 = vmor %vm3209, %vm3240
        %vm3272 = vmor %vm3210, %vm3241
        %vm3273 = vmor %vm3211, %vm3242
        %vm3274 = vmor %vm3212, %vm3243
        %vm3275 = vmor %vm3213, %vm3244
        %vm3276 = vmor %vm3214, %vm3245
        %vm3277 = vmor %vm3215, %vm3246
        %vm3278 = vmor %vm3216, %vm3247
        %vm3279 = vmor %vm3217, %vm3248
        %v3280 = vsel %vm3249, 0.0, -inf
        %v3281 = vsel %vm3250, 0.0, -inf
        %v3282 = vsel %vm3251, 0.0, -inf
        %v3283 = vsel %vm3252, 0.0, -inf
        %v3284 = vsel %vm3253, 0.0, -inf
        %v3285 = vsel %vm3254, 0.0, -inf
        %v3286 = vsel %vm3255, 0.0, -inf
        %v3287 = vsel %vm3256, 0.0, -inf
        %v3288 = vsel %vm3257, 0.0, -inf
        %v3289 = vsel %vm3258, 0.0, -inf
        %v3290 = vsel %vm3259, 0.0, -inf
        %v3291 = vsel %vm3260, 0.0, -inf
        %v3292 = vsel %vm3261, 0.0, -inf
        %v3293 = vsel %vm3262, 0.0, -inf
        %v3294 = vsel %vm3263, 0.0, -inf
        %v3295 = vsel %vm3264, 0.0, -inf
        %v3296 = vsel %vm3265, 0.0, -inf
        %v3297 = vsel %vm3266, 0.0, -inf
        %v3298 = vsel %vm3267, 0.0, -inf
        %v3299 = vsel %vm3268, 0.0, -inf
        %v3300 = vsel %vm3269, 0.0, -inf
        %v3301 = vsel %vm3270, 0.0, -inf
        %v3302 = vsel %vm3271, 0.0, -inf
        %v3303 = vsel %vm3272, 0.0, -inf
        %v3304 = vsel %vm3273, 0.0, -inf
        %v3305 = vsel %vm3274, 0.0, -inf
        %v3306 = vsel %vm3275, 0.0, -inf
        %v3307 = vsel %vm3276, 0.0, -inf
        %v3308 = vsel %vm3277, 0.0, -inf
        %v3309 = vsel %vm3278, 0.0, -inf
        %v3310 = vsel %vm3279, 0.0, -inf
        %v3311 = vpack.c.bf16 %v1055, %v1054
        %v3312 = vpack.c.bf16 %v1057, %v1056
        %v3313 = vpack.c.bf16 %v1059, %v1058
        %v3314 = vpack.c.bf16 %v1061, %v1060
        %v3315 = vpack.c.bf16 %v1063, %v1062
        %v3316 = vpack.c.bf16 %v1065, %v1064
        %v3317 = vpack.c.bf16 %v1067, %v1066
        %v3318 = vpack.c.bf16 %v1069, %v1068
        %v3319 = vpack.c.bf16 %v1071, %v1070
        %v3320 = vpack.c.bf16 %v1073, %v1072
        %v3321 = vpack.c.bf16 %v1075, %v1074
        %v3322 = vpack.c.bf16 %v1077, %v1076
        %v3323 = vpack.c.bf16 %v1079, %v1078
        %v3324 = vpack.c.bf16 %v1081, %v1080
        %v3325 = vpack.c.bf16 %v1083, %v1082
        %v3326 = vpack.c.bf16 %v1085, %v1084
        %v3327 = vld [vmem:[%s3] sm:$0xf]
        %v3328 = vrot.slane %v1054, 7
        %v3329 = vrot.slane %v1055, 7
        %v3330 = vrot.slane %v1056, 7
        %v3331 = vrot.slane %v1057, 7
        %v3332 = vrot.slane %v1058, 7
        %v3333 = vrot.slane %v1059, 7
        %v3334 = vrot.slane %v1060, 7
        %v3335 = vrot.slane %v1061, 7
        %v3336 = vrot.slane %v1062, 7
        %v3337 = vrot.slane %v1063, 7
        %v3338 = vrot.slane %v1064, 7
        %v3339 = vrot.slane %v1065, 7
        %v3340 = vrot.slane %v1066, 7
        %v3341 = vrot.slane %v1067, 7
        %v3342 = vrot.slane %v1068, 7
        %v3343 = vrot.slane %v1069, 7
        %v3344 = vrot.slane %v1070, 7
        %v3345 = vrot.slane %v1071, 7
        %v3346 = vrot.slane %v1072, 7
        %v3347 = vrot.slane %v1073, 7
        %v3348 = vrot.slane %v1074, 7
        %v3349 = vrot.slane %v1075, 7
        %v3350 = vrot.slane %v1076, 7
        %v3351 = vrot.slane %v1077, 7
        %v3352 = vrot.slane %v1078, 7
        %v3353 = vrot.slane %v1079, 7
        %v3354 = vrot.slane %v1080, 7
        %v3355 = vrot.slane %v1081, 7
        %v3356 = vrot.slane %v1082, 7
        %v3357 = vrot.slane %v1083, 7
        %v3358 = vrot.slane %v1084, 7
        %v3359 = vrot.slane %v1085, 7
        %v3360 = vsel %vm1183, %v3358, %v3359
        %v3361 = vsel %vm1183, %v3357, %v3358
        %v3362 = vsel %vm1183, %v3356, %v3357
        %v3363 = vsel %vm1183, %v3355, %v3356
        %v3364 = vsel %vm1183, %v3354, %v3355
        %v3365 = vsel %vm1183, %v3353, %v3354
        %v3366 = vsel %vm1183, %v3352, %v3353
        %v3367 = vsel %vm1183, %v3351, %v3352
        %v3368 = vsel %vm1183, %v3350, %v3351
        %v3369 = vsel %vm1183, %v3349, %v3350
        %v3370 = vsel %vm1183, %v3348, %v3349
        %v3371 = vsel %vm1183, %v3347, %v3348
        %v3372 = vsel %vm1183, %v3346, %v3347
        %v3373 = vsel %vm1183, %v3345, %v3346
        %v3374 = vsel %vm1183, %v3344, %v3345
        %v3375 = vsel %vm1183, %v3343, %v3344
        %v3376 = vsel %vm1183, %v3342, %v3343
        %v3377 = vsel %vm1183, %v3341, %v3342
        %v3378 = vsel %vm1183, %v3340, %v3341
        %v3379 = vsel %vm1183, %v3339, %v3340
        %v3380 = vsel %vm1183, %v3338, %v3339
        %v3381 = vsel %vm1183, %v3337, %v3338
        %v3382 = vsel %vm1183, %v3336, %v3337
        %v3383 = vsel %vm1183, %v3335, %v3336
        %v3384 = vsel %vm1183, %v3334, %v3335
        %v3385 = vsel %vm1183, %v3333, %v3334
        %v3386 = vsel %vm1183, %v3332, %v3333
        %v3387 = vsel %vm1183, %v3331, %v3332
        %v3388 = vsel %vm1183, %v3330, %v3331
        %v3389 = vsel %vm1183, %v3329, %v3330
        %v3390 = vsel %vm1183, %v3328, %v3329
        %v3391 = vsel %vm1183, %v3359, %v3328
        %3393 = vset.pattern.permute.xlu0 0
        %3394 = vperm.xlu0 %3393, %v1504
        %v3395 = vpop.permute.xlu0 %3394
        %3398 = vset.pattern.permute.xlu0 0
        %3399 = vperm.xlu0 %3398, %v1505
        %v3400 = vpop.permute.xlu0 %3399
        %3403 = vset.pattern.permute.xlu0 0
        %3404 = vperm.xlu0 %3403, %v1506
        %v3405 = vpop.permute.xlu0 %3404
        %3408 = vset.pattern.permute.xlu0 0
        %3409 = vperm.xlu0 %3408, %v1507
        %v3410 = vpop.permute.xlu0 %3409
        %3413 = vset.pattern.permute.xlu0 0
        %3414 = vperm.xlu0 %3413, %v1508
        %v3415 = vpop.permute.xlu0 %3414
        %3418 = vset.pattern.permute.xlu0 0
        %3419 = vperm.xlu0 %3418, %v1509
        %v3420 = vpop.permute.xlu0 %3419
        %3423 = vset.pattern.permute.xlu0 0
        %3424 = vperm.xlu0 %3423, %v1510
        %v3425 = vpop.permute.xlu0 %3424
        %3428 = vset.pattern.permute.xlu0 0
        %3429 = vperm.xlu0 %3428, %v1511
        %v3430 = vpop.permute.xlu0 %3429
        %3433 = vset.pattern.permute.xlu0 0
        %3434 = vperm.xlu0 %3433, %v1512
        %v3435 = vpop.permute.xlu0 %3434
        %3438 = vset.pattern.permute.xlu0 0
        %3439 = vperm.xlu0 %3438, %v1513
        %v3440 = vpop.permute.xlu0 %3439
        %3443 = vset.pattern.permute.xlu0 0
        %3444 = vperm.xlu0 %3443, %v1514
        %v3445 = vpop.permute.xlu0 %3444
        %3448 = vset.pattern.permute.xlu0 0
        %3449 = vperm.xlu0 %3448, %v1515
        %v3450 = vpop.permute.xlu0 %3449
        %3453 = vset.pattern.permute.xlu0 0
        %3454 = vperm.xlu0 %3453, %v1516
        %v3455 = vpop.permute.xlu0 %3454
        %3458 = vset.pattern.permute.xlu0 0
        %3459 = vperm.xlu0 %3458, %v1517
        %v3460 = vpop.permute.xlu0 %3459
        %3463 = vset.pattern.permute.xlu0 0
        %3464 = vperm.xlu0 %3463, %v1518
        %v3465 = vpop.permute.xlu0 %3464
        %3468 = vset.pattern.permute.xlu0 0
        %3469 = vperm.xlu0 %3468, %v1519
        %v3470 = vpop.permute.xlu0 %3469
        %3473 = vset.pattern.permute.xlu0 0
        %3474 = vperm.xlu0 %3473, %v1520
        %v3475 = vpop.permute.xlu0 %3474
        %3478 = vset.pattern.permute.xlu0 0
        %3479 = vperm.xlu0 %3478, %v1521
        %v3480 = vpop.permute.xlu0 %3479
        %3483 = vset.pattern.permute.xlu0 0
        %3484 = vperm.xlu0 %3483, %v1522
        %v3485 = vpop.permute.xlu0 %3484
        %3488 = vset.pattern.permute.xlu0 0
        %3489 = vperm.xlu0 %3488, %v1523
        %v3490 = vpop.permute.xlu0 %3489
        %3493 = vset.pattern.permute.xlu0 0
        %3494 = vperm.xlu0 %3493, %v1524
        %v3495 = vpop.permute.xlu0 %3494
        %3498 = vset.pattern.permute.xlu0 0
        %3499 = vperm.xlu0 %3498, %v1525
        %v3500 = vpop.permute.xlu0 %3499
        %3503 = vset.pattern.permute.xlu0 0
        %3504 = vperm.xlu0 %3503, %v1526
        %v3505 = vpop.permute.xlu0 %3504
        %3508 = vset.pattern.permute.xlu0 0
        %3509 = vperm.xlu0 %3508, %v1527
        %v3510 = vpop.permute.xlu0 %3509
        %3513 = vset.pattern.permute.xlu0 0
        %3514 = vperm.xlu0 %3513, %v1528
        %v3515 = vpop.permute.xlu0 %3514
        %3518 = vset.pattern.permute.xlu0 0
        %3519 = vperm.xlu0 %3518, %v1529
        %v3520 = vpop.permute.xlu0 %3519
        %3523 = vset.pattern.permute.xlu0 0
        %3524 = vperm.xlu0 %3523, %v1530
        %v3525 = vpop.permute.xlu0 %3524
        %3528 = vset.pattern.permute.xlu0 0
        %3529 = vperm.xlu0 %3528, %v1531
        %v3530 = vpop.permute.xlu0 %3529
        %3533 = vset.pattern.permute.xlu0 0
        %3534 = vperm.xlu0 %3533, %v1532
        %v3535 = vpop.permute.xlu0 %3534
        %3538 = vset.pattern.permute.xlu0 0
        %3539 = vperm.xlu0 %3538, %v1533
        %v3540 = vpop.permute.xlu0 %3539
        %3543 = vset.pattern.permute.xlu0 0
        %3544 = vperm.xlu0 %3543, %v1534
        %v3545 = vpop.permute.xlu0 %3544
        %3548 = vset.pattern.permute.xlu0 0
        %3549 = vperm.xlu0 %3548, %v1535
        %v3550 = vpop.permute.xlu0 %3549
        %v3552 = vadd.f32 %v3391, %v3395
        %v3553 = vadd.f32 %v3390, %v3400
        %v3554 = vadd.f32 %v3389, %v3405
        %v3555 = vadd.f32 %v3388, %v3410
        %v3556 = vadd.f32 %v3387, %v3415
        %v3557 = vadd.f32 %v3386, %v3420
        %v3558 = vadd.f32 %v3385, %v3425
        %v3559 = vadd.f32 %v3384, %v3430
        %v3560 = vadd.f32 %v3383, %v3435
        %v3561 = vadd.f32 %v3382, %v3440
        %v3562 = vadd.f32 %v3381, %v3445
        %v3563 = vadd.f32 %v3380, %v3450
        %v3564 = vadd.f32 %v3379, %v3455
        %v3565 = vadd.f32 %v3378, %v3460
        %v3566 = vadd.f32 %v3377, %v3465
        %v3567 = vadd.f32 %v3376, %v3470
        %v3568 = vadd.f32 %v3375, %v3475
        %v3569 = vadd.f32 %v3374, %v3480
        %v3570 = vadd.f32 %v3373, %v3485
        %v3571 = vadd.f32 %v3372, %v3490
        %v3572 = vadd.f32 %v3371, %v3495
        %v3573 = vadd.f32 %v3370, %v3500
        %v3574 = vadd.f32 %v3369, %v3505
        %v3575 = vadd.f32 %v3368, %v3510
        %v3576 = vadd.f32 %v3367, %v3515
        %v3577 = vadd.f32 %v3366, %v3520
        %v3578 = vadd.f32 %v3365, %v3525
        %v3579 = vadd.f32 %v3364, %v3530
        %v3580 = vadd.f32 %v3363, %v3535
        %v3581 = vadd.f32 %v3362, %v3540
        %v3582 = vadd.f32 %v3361, %v3545
        %v3583 = vadd.f32 %v3360, %v3550
        %v3584 = vmax.f32 %v1054, %v3552
        %v3585 = vmax.f32 %v1055, %v3553
        %v3586 = vmax.f32 %v1056, %v3554
        %v3587 = vmax.f32 %v1057, %v3555
        %v3588 = vmax.f32 %v1058, %v3556
        %v3589 = vmax.f32 %v1059, %v3557
        %v3590 = vmax.f32 %v1060, %v3558
        %v3591 = vmax.f32 %v1061, %v3559
        %v3592 = vmax.f32 %v1062, %v3560
        %v3593 = vmax.f32 %v1063, %v3561
        %v3594 = vmax.f32 %v1064, %v3562
        %v3595 = vmax.f32 %v1065, %v3563
        %v3596 = vmax.f32 %v1066, %v3564
        %v3597 = vmax.f32 %v1067, %v3565
        %v3598 = vmax.f32 %v1068, %v3566
        %v3599 = vmax.f32 %v1069, %v3567
        %v3600 = vmax.f32 %v1070, %v3568
        %v3601 = vmax.f32 %v1071, %v3569
        %v3602 = vmax.f32 %v1072, %v3570
        %v3603 = vmax.f32 %v1073, %v3571
        %v3604 = vmax.f32 %v1074, %v3572
        %v3605 = vmax.f32 %v1075, %v3573
        %v3606 = vmax.f32 %v1076, %v3574
        %v3607 = vmax.f32 %v1077, %v3575
        %v3608 = vmax.f32 %v1078, %v3576
        %v3609 = vmax.f32 %v1079, %v3577
        %v3610 = vmax.f32 %v1080, %v3578
        %v3611 = vmax.f32 %v1081, %v3579
        %v3612 = vmax.f32 %v1082, %v3580
        %v3613 = vmax.f32 %v1083, %v3581
        %v3614 = vmax.f32 %v1084, %v3582
        %v3615 = vmax.f32 %v1085, %v3583
        %v3616 = vrot.slane %v1054, 1
        %v3617 = vrot.slane %v1055, 1
        %v3618 = vrot.slane %v1056, 1
        %v3619 = vrot.slane %v1057, 1
        %v3620 = vrot.slane %v1058, 1
        %v3621 = vrot.slane %v1059, 1
        %v3622 = vrot.slane %v1060, 1
        %v3623 = vrot.slane %v1061, 1
        %v3624 = vrot.slane %v1062, 1
        %v3625 = vrot.slane %v1063, 1
        %v3626 = vrot.slane %v1064, 1
        %v3627 = vrot.slane %v1065, 1
        %v3628 = vrot.slane %v1066, 1
        %v3629 = vrot.slane %v1067, 1
        %v3630 = vrot.slane %v1068, 1
        %v3631 = vrot.slane %v1069, 1
        %v3632 = vrot.slane %v1070, 1
        %v3633 = vrot.slane %v1071, 1
        %v3634 = vrot.slane %v1072, 1
        %v3635 = vrot.slane %v1073, 1
        %v3636 = vrot.slane %v1074, 1
        %v3637 = vrot.slane %v1075, 1
        %v3638 = vrot.slane %v1076, 1
        %v3639 = vrot.slane %v1077, 1
        %v3640 = vrot.slane %v1078, 1
        %v3641 = vrot.slane %v1079, 1
        %v3642 = vrot.slane %v1080, 1
        %v3643 = vrot.slane %v1081, 1
        %v3644 = vrot.slane %v1082, 1
        %v3645 = vrot.slane %v1083, 1
        %v3646 = vrot.slane %v1084, 1
        %v3647 = vrot.slane %v1085, 1
        %v3648 = vsel %vm1568, %v3646, %v3647
        %v3649 = vsel %vm1568, %v3645, %v3646
        %v3650 = vsel %vm1568, %v3644, %v3645
        %v3651 = vsel %vm1568, %v3643, %v3644
        %v3652 = vsel %vm1568, %v3642, %v3643
        %v3653 = vsel %vm1568, %v3641, %v3642
        %v3654 = vsel %vm1568, %v3640, %v3641
        %v3655 = vsel %vm1568, %v3639, %v3640
        %v3656 = vsel %vm1568, %v3638, %v3639
        %v3657 = vsel %vm1568, %v3637, %v3638
        %v3658 = vsel %vm1568, %v3636, %v3637
        %v3659 = vsel %vm1568, %v3635, %v3636
        %v3660 = vsel %vm1568, %v3634, %v3635
        %v3661 = vsel %vm1568, %v3633, %v3634
        %v3662 = vsel %vm1568, %v3632, %v3633
        %v3663 = vsel %vm1568, %v3631, %v3632
        %v3664 = vsel %vm1568, %v3630, %v3631
        %v3665 = vsel %vm1568, %v3629, %v3630
        %v3666 = vsel %vm1568, %v3628, %v3629
        %v3667 = vsel %vm1568, %v3627, %v3628
        %v3668 = vsel %vm1568, %v3626, %v3627
        %v3669 = vsel %vm1568, %v3625, %v3626
        %v3670 = vsel %vm1568, %v3624, %v3625
        %v3671 = vsel %vm1568, %v3623, %v3624
        %v3672 = vsel %vm1568, %v3622, %v3623
        %v3673 = vsel %vm1568, %v3621, %v3622
        %v3674 = vsel %vm1568, %v3620, %v3621
        %v3675 = vsel %vm1568, %v3619, %v3620
        %v3676 = vsel %vm1568, %v3618, %v3619
        %v3677 = vsel %vm1568, %v3617, %v3618
        %v3678 = vsel %vm1568, %v3616, %v3617
        %v3679 = vsel %vm1568, %v3647, %v3616
        %3681 = vset.pattern.permute.xlu0 0
        %3682 = vperm.xlu0 %3681, %v1889
        %v3683 = vpop.permute.xlu0 %3682
        %3686 = vset.pattern.permute.xlu0 0
        %3687 = vperm.xlu0 %3686, %v1890
        %v3688 = vpop.permute.xlu0 %3687
        %3691 = vset.pattern.permute.xlu0 0
        %3692 = vperm.xlu0 %3691, %v1891
        %v3693 = vpop.permute.xlu0 %3692
        %3696 = vset.pattern.permute.xlu0 0
        %3697 = vperm.xlu0 %3696, %v1892
        %v3698 = vpop.permute.xlu0 %3697
        %3701 = vset.pattern.permute.xlu0 0
        %3702 = vperm.xlu0 %3701, %v1893
        %v3703 = vpop.permute.xlu0 %3702
        %3706 = vset.pattern.permute.xlu0 0
        %3707 = vperm.xlu0 %3706, %v1894
        %v3708 = vpop.permute.xlu0 %3707
        %3711 = vset.pattern.permute.xlu0 0
        %3712 = vperm.xlu0 %3711, %v1895
        %v3713 = vpop.permute.xlu0 %3712
        %3716 = vset.pattern.permute.xlu0 0
        %3717 = vperm.xlu0 %3716, %v1896
        %v3718 = vpop.permute.xlu0 %3717
        %3721 = vset.pattern.permute.xlu0 0
        %3722 = vperm.xlu0 %3721, %v1897
        %v3723 = vpop.permute.xlu0 %3722
        %3726 = vset.pattern.permute.xlu0 0
        %3727 = vperm.xlu0 %3726, %v1898
        %v3728 = vpop.permute.xlu0 %3727
        %3731 = vset.pattern.permute.xlu0 0
        %3732 = vperm.xlu0 %3731, %v1899
        %v3733 = vpop.permute.xlu0 %3732
        %3736 = vset.pattern.permute.xlu0 0
        %3737 = vperm.xlu0 %3736, %v1900
        %v3738 = vpop.permute.xlu0 %3737
        %3741 = vset.pattern.permute.xlu0 0
        %3742 = vperm.xlu0 %3741, %v1901
        %v3743 = vpop.permute.xlu0 %3742
        %3746 = vset.pattern.permute.xlu0 0
        %3747 = vperm.xlu0 %3746, %v1902
        %v3748 = vpop.permute.xlu0 %3747
        %3751 = vset.pattern.permute.xlu0 0
        %3752 = vperm.xlu0 %3751, %v1903
        %v3753 = vpop.permute.xlu0 %3752
        %3756 = vset.pattern.permute.xlu0 0
        %3757 = vperm.xlu0 %3756, %v1904
        %v3758 = vpop.permute.xlu0 %3757
        %3761 = vset.pattern.permute.xlu0 0
        %3762 = vperm.xlu0 %3761, %v1905
        %v3763 = vpop.permute.xlu0 %3762
        %3766 = vset.pattern.permute.xlu0 0
        %3767 = vperm.xlu0 %3766, %v1906
        %v3768 = vpop.permute.xlu0 %3767
        %3771 = vset.pattern.permute.xlu0 0
        %3772 = vperm.xlu0 %3771, %v1907
        %v3773 = vpop.permute.xlu0 %3772
        %3776 = vset.pattern.permute.xlu0 0
        %3777 = vperm.xlu0 %3776, %v1908
        %v3778 = vpop.permute.xlu0 %3777
        %3781 = vset.pattern.permute.xlu0 0
        %3782 = vperm.xlu0 %3781, %v1909
        %v3783 = vpop.permute.xlu0 %3782
        %3786 = vset.pattern.permute.xlu0 0
        %3787 = vperm.xlu0 %3786, %v1910
        %v3788 = vpop.permute.xlu0 %3787
        %3791 = vset.pattern.permute.xlu0 0
        %3792 = vperm.xlu0 %3791, %v1911
        %v3793 = vpop.permute.xlu0 %3792
        %3796 = vset.pattern.permute.xlu0 0
        %3797 = vperm.xlu0 %3796, %v1912
        %v3798 = vpop.permute.xlu0 %3797
        %3801 = vset.pattern.permute.xlu0 0
        %3802 = vperm.xlu0 %3801, %v1913
        %v3803 = vpop.permute.xlu0 %3802
        %3806 = vset.pattern.permute.xlu0 0
        %3807 = vperm.xlu0 %3806, %v1914
        %v3808 = vpop.permute.xlu0 %3807
        %3811 = vset.pattern.permute.xlu0 0
        %3812 = vperm.xlu0 %3811, %v1915
        %v3813 = vpop.permute.xlu0 %3812
        %3816 = vset.pattern.permute.xlu0 0
        %3817 = vperm.xlu0 %3816, %v1916
        %v3818 = vpop.permute.xlu0 %3817
        %3821 = vset.pattern.permute.xlu0 0
        %3822 = vperm.xlu0 %3821, %v1917
        %v3823 = vpop.permute.xlu0 %3822
        %3826 = vset.pattern.permute.xlu0 0
        %3827 = vperm.xlu0 %3826, %v1918
        %v3828 = vpop.permute.xlu0 %3827
        %3831 = vset.pattern.permute.xlu0 0
        %3832 = vperm.xlu0 %3831, %v1919
        %v3833 = vpop.permute.xlu0 %3832
        %3836 = vset.pattern.permute.xlu0 0
        %3837 = vperm.xlu0 %3836, %v1920
        %v3838 = vpop.permute.xlu0 %3837
        %v3840 = vadd.f32 %v3678, %v3683
        %v3841 = vadd.f32 %v3677, %v3688
        %v3842 = vadd.f32 %v3676, %v3693
        %v3843 = vadd.f32 %v3675, %v3698
        %v3844 = vadd.f32 %v3674, %v3703
        %v3845 = vadd.f32 %v3673, %v3708
        %v3846 = vadd.f32 %v3672, %v3713
        %v3847 = vadd.f32 %v3671, %v3718
        %v3848 = vadd.f32 %v3670, %v3723
        %v3849 = vadd.f32 %v3669, %v3728
        %v3850 = vadd.f32 %v3668, %v3733
        %v3851 = vadd.f32 %v3667, %v3738
        %v3852 = vadd.f32 %v3666, %v3743
        %v3853 = vadd.f32 %v3665, %v3748
        %v3854 = vadd.f32 %v3664, %v3753
        %v3855 = vadd.f32 %v3663, %v3758
        %v3856 = vadd.f32 %v3662, %v3763
        %v3857 = vadd.f32 %v3661, %v3768
        %v3858 = vadd.f32 %v3660, %v3773
        %v3859 = vadd.f32 %v3659, %v3778
        %v3860 = vadd.f32 %v3658, %v3783
        %v3861 = vadd.f32 %v3657, %v3788
        %v3862 = vadd.f32 %v3656, %v3793
        %v3863 = vadd.f32 %v3655, %v3798
        %v3864 = vadd.f32 %v3654, %v3803
        %v3865 = vadd.f32 %v3653, %v3808
        %v3866 = vadd.f32 %v3652, %v3813
        %v3867 = vadd.f32 %v3651, %v3818
        %v3868 = vadd.f32 %v3650, %v3823
        %v3869 = vadd.f32 %v3649, %v3828
        %v3870 = vadd.f32 %v3648, %v3833
        %v3871 = vadd.f32 %v3679, %v3838
        %v3872 = vmax.f32 %v3584, %v3840
        %v3873 = vmax.f32 %v3585, %v3841
        %v3874 = vmax.f32 %v3586, %v3842
        %v3875 = vmax.f32 %v3587, %v3843
        %v3876 = vmax.f32 %v3588, %v3844
        %v3877 = vmax.f32 %v3589, %v3845
        %v3878 = vmax.f32 %v3590, %v3846
        %v3879 = vmax.f32 %v3591, %v3847
        %v3880 = vmax.f32 %v3592, %v3848
        %v3881 = vmax.f32 %v3593, %v3849
        %v3882 = vmax.f32 %v3594, %v3850
        %v3883 = vmax.f32 %v3595, %v3851
        %v3884 = vmax.f32 %v3596, %v3852
        %v3885 = vmax.f32 %v3597, %v3853
        %v3886 = vmax.f32 %v3598, %v3854
        %v3887 = vmax.f32 %v3599, %v3855
        %v3888 = vmax.f32 %v3600, %v3856
        %v3889 = vmax.f32 %v3601, %v3857
        %v3890 = vmax.f32 %v3602, %v3858
        %v3891 = vmax.f32 %v3603, %v3859
        %v3892 = vmax.f32 %v3604, %v3860
        %v3893 = vmax.f32 %v3605, %v3861
        %v3894 = vmax.f32 %v3606, %v3862
        %v3895 = vmax.f32 %v3607, %v3863
        %v3896 = vmax.f32 %v3608, %v3864
        %v3897 = vmax.f32 %v3609, %v3865
        %v3898 = vmax.f32 %v3610, %v3866
        %v3899 = vmax.f32 %v3611, %v3867
        %v3900 = vmax.f32 %v3612, %v3868
        %v3901 = vmax.f32 %v3613, %v3869
        %v3902 = vmax.f32 %v3614, %v3870
        %v3903 = vmax.f32 %v3615, %v3871
        %v3904 = vrot.slane %v1054, 6
        %v3905 = vrot.slane %v1055, 6
        %v3906 = vrot.slane %v1056, 6
        %v3907 = vrot.slane %v1057, 6
        %v3908 = vrot.slane %v1058, 6
        %v3909 = vrot.slane %v1059, 6
        %v3910 = vrot.slane %v1060, 6
        %v3911 = vrot.slane %v1061, 6
        %v3912 = vrot.slane %v1062, 6
        %v3913 = vrot.slane %v1063, 6
        %v3914 = vrot.slane %v1064, 6
        %v3915 = vrot.slane %v1065, 6
        %v3916 = vrot.slane %v1066, 6
        %v3917 = vrot.slane %v1067, 6
        %v3918 = vrot.slane %v1068, 6
        %v3919 = vrot.slane %v1069, 6
        %v3920 = vrot.slane %v1070, 6
        %v3921 = vrot.slane %v1071, 6
        %v3922 = vrot.slane %v1072, 6
        %v3923 = vrot.slane %v1073, 6
        %v3924 = vrot.slane %v1074, 6
        %v3925 = vrot.slane %v1075, 6
        %v3926 = vrot.slane %v1076, 6
        %v3927 = vrot.slane %v1077, 6
        %v3928 = vrot.slane %v1078, 6
        %v3929 = vrot.slane %v1079, 6
        %v3930 = vrot.slane %v1080, 6
        %v3931 = vrot.slane %v1081, 6
        %v3932 = vrot.slane %v1082, 6
        %v3933 = vrot.slane %v1083, 6
        %v3934 = vrot.slane %v1084, 6
        %v3935 = vrot.slane %v1085, 6
        %v3936 = vsel %vm1953, %v3934, %v3935
        %v3937 = vsel %vm1953, %v3933, %v3934
        %v3938 = vsel %vm1953, %v3932, %v3933
        %v3939 = vsel %vm1953, %v3931, %v3932
        %v3940 = vsel %vm1953, %v3930, %v3931
        %v3941 = vsel %vm1953, %v3929, %v3930
        %v3942 = vsel %vm1953, %v3928, %v3929
        %v3943 = vsel %vm1953, %v3927, %v3928
        %v3944 = vsel %vm1953, %v3926, %v3927
        %v3945 = vsel %vm1953, %v3925, %v3926
        %v3946 = vsel %vm1953, %v3924, %v3925
        %v3947 = vsel %vm1953, %v3923, %v3924
        %v3948 = vsel %vm1953, %v3922, %v3923
        %v3949 = vsel %vm1953, %v3921, %v3922
        %v3950 = vsel %vm1953, %v3920, %v3921
        %v3951 = vsel %vm1953, %v3919, %v3920
        %v3952 = vsel %vm1953, %v3918, %v3919
        %v3953 = vsel %vm1953, %v3917, %v3918
        %v3954 = vsel %vm1953, %v3916, %v3917
        %v3955 = vsel %vm1953, %v3915, %v3916
        %v3956 = vsel %vm1953, %v3914, %v3915
        %v3957 = vsel %vm1953, %v3913, %v3914
        %v3958 = vsel %vm1953, %v3912, %v3913
        %v3959 = vsel %vm1953, %v3911, %v3912
        %v3960 = vsel %vm1953, %v3910, %v3911
        %v3961 = vsel %vm1953, %v3909, %v3910
        %v3962 = vsel %vm1953, %v3908, %v3909
        %v3963 = vsel %vm1953, %v3907, %v3908
        %v3964 = vsel %vm1953, %v3906, %v3907
        %v3965 = vsel %vm1953, %v3905, %v3906
        %v3966 = vsel %vm1953, %v3904, %v3905
        %v3967 = vsel %vm1953, %v3935, %v3904
        %3969 = vset.pattern.permute.xlu0 0
        %3970 = vperm.xlu0 %3969, %v2274
        %v3971 = vpop.permute.xlu0 %3970
        %3974 = vset.pattern.permute.xlu0 0
        %3975 = vperm.xlu0 %3974, %v2275
        %v3976 = vpop.permute.xlu0 %3975
        %3979 = vset.pattern.permute.xlu0 0
        %3980 = vperm.xlu0 %3979, %v2276
        %v3981 = vpop.permute.xlu0 %3980
        %3984 = vset.pattern.permute.xlu0 0
        %3985 = vperm.xlu0 %3984, %v2277
        %v3986 = vpop.permute.xlu0 %3985
        %3989 = vset.pattern.permute.xlu0 0
        %3990 = vperm.xlu0 %3989, %v2278
        %v3991 = vpop.permute.xlu0 %3990
        %3994 = vset.pattern.permute.xlu0 0
        %3995 = vperm.xlu0 %3994, %v2279
        %v3996 = vpop.permute.xlu0 %3995
        %3999 = vset.pattern.permute.xlu0 0
        %4000 = vperm.xlu0 %3999, %v2280
        %v4001 = vpop.permute.xlu0 %4000
        %4004 = vset.pattern.permute.xlu0 0
        %4005 = vperm.xlu0 %4004, %v2281
        %v4006 = vpop.permute.xlu0 %4005
        %4009 = vset.pattern.permute.xlu0 0
        %4010 = vperm.xlu0 %4009, %v2282
        %v4011 = vpop.permute.xlu0 %4010
        %4014 = vset.pattern.permute.xlu0 0
        %4015 = vperm.xlu0 %4014, %v2283
        %v4016 = vpop.permute.xlu0 %4015
        %4019 = vset.pattern.permute.xlu0 0
        %4020 = vperm.xlu0 %4019, %v2284
        %v4021 = vpop.permute.xlu0 %4020
        %4024 = vset.pattern.permute.xlu0 0
        %4025 = vperm.xlu0 %4024, %v2285
        %v4026 = vpop.permute.xlu0 %4025
        %4029 = vset.pattern.permute.xlu0 0
        %4030 = vperm.xlu0 %4029, %v2286
        %v4031 = vpop.permute.xlu0 %4030
        %4034 = vset.pattern.permute.xlu0 0
        %4035 = vperm.xlu0 %4034, %v2287
        %v4036 = vpop.permute.xlu0 %4035
        %4039 = vset.pattern.permute.xlu0 0
        %4040 = vperm.xlu0 %4039, %v2288
        %v4041 = vpop.permute.xlu0 %4040
        %4044 = vset.pattern.permute.xlu0 0
        %4045 = vperm.xlu0 %4044, %v2289
        %v4046 = vpop.permute.xlu0 %4045
        %4049 = vset.pattern.permute.xlu0 0
        %4050 = vperm.xlu0 %4049, %v2290
        %v4051 = vpop.permute.xlu0 %4050
        %4054 = vset.pattern.permute.xlu0 0
        %4055 = vperm.xlu0 %4054, %v2291
        %v4056 = vpop.permute.xlu0 %4055
        %4059 = vset.pattern.permute.xlu0 0
        %4060 = vperm.xlu0 %4059, %v2292
        %v4061 = vpop.permute.xlu0 %4060
        %4064 = vset.pattern.permute.xlu0 0
        %4065 = vperm.xlu0 %4064, %v2293
        %v4066 = vpop.permute.xlu0 %4065
        %4069 = vset.pattern.permute.xlu0 0
        %4070 = vperm.xlu0 %4069, %v2294
        %v4071 = vpop.permute.xlu0 %4070
        %4074 = vset.pattern.permute.xlu0 0
        %4075 = vperm.xlu0 %4074, %v2295
        %v4076 = vpop.permute.xlu0 %4075
        %4079 = vset.pattern.permute.xlu0 0
        %4080 = vperm.xlu0 %4079, %v2296
        %v4081 = vpop.permute.xlu0 %4080
        %4084 = vset.pattern.permute.xlu0 0
        %4085 = vperm.xlu0 %4084, %v2297
        %v4086 = vpop.permute.xlu0 %4085
        %4089 = vset.pattern.permute.xlu0 0
        %4090 = vperm.xlu0 %4089, %v2298
        %v4091 = vpop.permute.xlu0 %4090
        %4094 = vset.pattern.permute.xlu0 0
        %4095 = vperm.xlu0 %4094, %v2299
        %v4096 = vpop.permute.xlu0 %4095
        %4099 = vset.pattern.permute.xlu0 0
        %4100 = vperm.xlu0 %4099, %v2300
        %v4101 = vpop.permute.xlu0 %4100
        %4104 = vset.pattern.permute.xlu0 0
        %4105 = vperm.xlu0 %4104, %v2301
        %v4106 = vpop.permute.xlu0 %4105
        %4109 = vset.pattern.permute.xlu0 0
        %4110 = vperm.xlu0 %4109, %v2302
        %v4111 = vpop.permute.xlu0 %4110
        %4114 = vset.pattern.permute.xlu0 0
        %4115 = vperm.xlu0 %4114, %v2303
        %v4116 = vpop.permute.xlu0 %4115
        %4119 = vset.pattern.permute.xlu0 0
        %4120 = vperm.xlu0 %4119, %v2304
        %v4121 = vpop.permute.xlu0 %4120
        %4124 = vset.pattern.permute.xlu0 0
        %4125 = vperm.xlu0 %4124, %v2305
        %v4126 = vpop.permute.xlu0 %4125
        %v4128 = vadd.f32 %v3967, %v3971
        %v4129 = vadd.f32 %v3966, %v3976
        %v4130 = vadd.f32 %v3965, %v3981
        %v4131 = vadd.f32 %v3964, %v3986
        %v4132 = vadd.f32 %v3963, %v3991
        %v4133 = vadd.f32 %v3962, %v3996
        %v4134 = vadd.f32 %v3961, %v4001
        %v4135 = vadd.f32 %v3960, %v4006
        %v4136 = vadd.f32 %v3959, %v4011
        %v4137 = vadd.f32 %v3958, %v4016
        %v4138 = vadd.f32 %v3957, %v4021
        %v4139 = vadd.f32 %v3956, %v4026
        %v4140 = vadd.f32 %v3955, %v4031
        %v4141 = vadd.f32 %v3954, %v4036
        %v4142 = vadd.f32 %v3953, %v4041
        %v4143 = vadd.f32 %v3952, %v4046
        %v4144 = vadd.f32 %v3951, %v4051
        %v4145 = vadd.f32 %v3950, %v4056
        %v4146 = vadd.f32 %v3949, %v4061
        %v4147 = vadd.f32 %v3948, %v4066
        %v4148 = vadd.f32 %v3947, %v4071
        %v4149 = vadd.f32 %v3946, %v4076
        %v4150 = vadd.f32 %v3945, %v4081
        %v4151 = vadd.f32 %v3944, %v4086
        %v4152 = vadd.f32 %v3943, %v4091
        %v4153 = vadd.f32 %v3942, %v4096
        %v4154 = vadd.f32 %v3941, %v4101
        %v4155 = vadd.f32 %v3940, %v4106
        %v4156 = vadd.f32 %v3939, %v4111
        %v4157 = vadd.f32 %v3938, %v4116
        %v4158 = vadd.f32 %v3937, %v4121
        %v4159 = vadd.f32 %v3936, %v4126
        %v4160 = vmax.f32 %v3872, %v4128
        %v4161 = vmax.f32 %v3873, %v4129
        %v4162 = vmax.f32 %v3874, %v4130
        %v4163 = vmax.f32 %v3875, %v4131
        %v4164 = vmax.f32 %v3876, %v4132
        %v4165 = vmax.f32 %v3877, %v4133
        %v4166 = vmax.f32 %v3878, %v4134
        %v4167 = vmax.f32 %v3879, %v4135
        %v4168 = vmax.f32 %v3880, %v4136
        %v4169 = vmax.f32 %v3881, %v4137
        %v4170 = vmax.f32 %v3882, %v4138
        %v4171 = vmax.f32 %v3883, %v4139
        %v4172 = vmax.f32 %v3884, %v4140
        %v4173 = vmax.f32 %v3885, %v4141
        %v4174 = vmax.f32 %v3886, %v4142
        %v4175 = vmax.f32 %v3887, %v4143
        %v4176 = vmax.f32 %v3888, %v4144
        %v4177 = vmax.f32 %v3889, %v4145
        %v4178 = vmax.f32 %v3890, %v4146
        %v4179 = vmax.f32 %v3891, %v4147
        %v4180 = vmax.f32 %v3892, %v4148
        %v4181 = vmax.f32 %v3893, %v4149
        %v4182 = vmax.f32 %v3894, %v4150
        %v4183 = vmax.f32 %v3895, %v4151
        %v4184 = vmax.f32 %v3896, %v4152
        %v4185 = vmax.f32 %v3897, %v4153
        %v4186 = vmax.f32 %v3898, %v4154
        %v4187 = vmax.f32 %v3899, %v4155
        %v4188 = vmax.f32 %v3900, %v4156
        %v4189 = vmax.f32 %v3901, %v4157
        %v4190 = vmax.f32 %v3902, %v4158
        %v4191 = vmax.f32 %v3903, %v4159
        %v4192 = vrot.slane %v1054, 2
        %v4193 = vrot.slane %v1055, 2
        %v4194 = vrot.slane %v1056, 2
        %v4195 = vrot.slane %v1057, 2
        %v4196 = vrot.slane %v1058, 2
        %v4197 = vrot.slane %v1059, 2
        %v4198 = vrot.slane %v1060, 2
        %v4199 = vrot.slane %v1061, 2
        %v4200 = vrot.slane %v1062, 2
        %v4201 = vrot.slane %v1063, 2
        %v4202 = vrot.slane %v1064, 2
        %v4203 = vrot.slane %v1065, 2
        %v4204 = vrot.slane %v1066, 2
        %v4205 = vrot.slane %v1067, 2
        %v4206 = vrot.slane %v1068, 2
        %v4207 = vrot.slane %v1069, 2
        %v4208 = vrot.slane %v1070, 2
        %v4209 = vrot.slane %v1071, 2
        %v4210 = vrot.slane %v1072, 2
        %v4211 = vrot.slane %v1073, 2
        %v4212 = vrot.slane %v1074, 2
        %v4213 = vrot.slane %v1075, 2
        %v4214 = vrot.slane %v1076, 2
        %v4215 = vrot.slane %v1077, 2
        %v4216 = vrot.slane %v1078, 2
        %v4217 = vrot.slane %v1079, 2
        %v4218 = vrot.slane %v1080, 2
        %v4219 = vrot.slane %v1081, 2
        %v4220 = vrot.slane %v1082, 2
        %v4221 = vrot.slane %v1083, 2
        %v4222 = vrot.slane %v1084, 2
        %v4223 = vrot.slane %v1085, 2
        %v4224 = vsel %vm2338, %v4222, %v4223
        %v4225 = vsel %vm2338, %v4221, %v4222
        %v4226 = vsel %vm2338, %v4220, %v4221
        %v4227 = vsel %vm2338, %v4219, %v4220
        %v4228 = vsel %vm2338, %v4218, %v4219
        %v4229 = vsel %vm2338, %v4217, %v4218
        %v4230 = vsel %vm2338, %v4216, %v4217
        %v4231 = vsel %vm2338, %v4215, %v4216
        %v4232 = vsel %vm2338, %v4214, %v4215
        %v4233 = vsel %vm2338, %v4213, %v4214
        %v4234 = vsel %vm2338, %v4212, %v4213
        %v4235 = vsel %vm2338, %v4211, %v4212
        %v4236 = vsel %vm2338, %v4210, %v4211
        %v4237 = vsel %vm2338, %v4209, %v4210
        %v4238 = vsel %vm2338, %v4208, %v4209
        %v4239 = vsel %vm2338, %v4207, %v4208
        %v4240 = vsel %vm2338, %v4206, %v4207
        %v4241 = vsel %vm2338, %v4205, %v4206
        %v4242 = vsel %vm2338, %v4204, %v4205
        %v4243 = vsel %vm2338, %v4203, %v4204
        %v4244 = vsel %vm2338, %v4202, %v4203
        %v4245 = vsel %vm2338, %v4201, %v4202
        %v4246 = vsel %vm2338, %v4200, %v4201
        %v4247 = vsel %vm2338, %v4199, %v4200
        %v4248 = vsel %vm2338, %v4198, %v4199
        %v4249 = vsel %vm2338, %v4197, %v4198
        %v4250 = vsel %vm2338, %v4196, %v4197
        %v4251 = vsel %vm2338, %v4195, %v4196
        %v4252 = vsel %vm2338, %v4194, %v4195
        %v4253 = vsel %vm2338, %v4193, %v4194
        %v4254 = vsel %vm2338, %v4192, %v4193
        %v4255 = vsel %vm2338, %v4223, %v4192
        %4257 = vset.pattern.permute.xlu0 0
        %4258 = vperm.xlu0 %4257, %v2659
        %v4259 = vpop.permute.xlu0 %4258
        %4262 = vset.pattern.permute.xlu0 0
        %4263 = vperm.xlu0 %4262, %v2660
        %v4264 = vpop.permute.xlu0 %4263
        %4267 = vset.pattern.permute.xlu0 0
        %4268 = vperm.xlu0 %4267, %v2661
        %v4269 = vpop.permute.xlu0 %4268
        %4272 = vset.pattern.permute.xlu0 0
        %4273 = vperm.xlu0 %4272, %v2662
        %v4274 = vpop.permute.xlu0 %4273
        %4277 = vset.pattern.permute.xlu0 0
        %4278 = vperm.xlu0 %4277, %v2663
        %v4279 = vpop.permute.xlu0 %4278
        %4282 = vset.pattern.permute.xlu0 0
        %4283 = vperm.xlu0 %4282, %v2664
        %v4284 = vpop.permute.xlu0 %4283
        %4287 = vset.pattern.permute.xlu0 0
        %4288 = vperm.xlu0 %4287, %v2665
        %v4289 = vpop.permute.xlu0 %4288
        %4292 = vset.pattern.permute.xlu0 0
        %4293 = vperm.xlu0 %4292, %v2666
        %v4294 = vpop.permute.xlu0 %4293
        %4297 = vset.pattern.permute.xlu0 0
        %4298 = vperm.xlu0 %4297, %v2667
        %v4299 = vpop.permute.xlu0 %4298
        %4302 = vset.pattern.permute.xlu0 0
        %4303 = vperm.xlu0 %4302, %v2668
        %v4304 = vpop.permute.xlu0 %4303
        %4307 = vset.pattern.permute.xlu0 0
        %4308 = vperm.xlu0 %4307, %v2669
        %v4309 = vpop.permute.xlu0 %4308
        %4312 = vset.pattern.permute.xlu0 0
        %4313 = vperm.xlu0 %4312, %v2670
        %v4314 = vpop.permute.xlu0 %4313
        %4317 = vset.pattern.permute.xlu0 0
        %4318 = vperm.xlu0 %4317, %v2671
        %v4319 = vpop.permute.xlu0 %4318
        %4322 = vset.pattern.permute.xlu0 0
        %4323 = vperm.xlu0 %4322, %v2672
        %v4324 = vpop.permute.xlu0 %4323
        %4327 = vset.pattern.permute.xlu0 0
        %4328 = vperm.xlu0 %4327, %v2673
        %v4329 = vpop.permute.xlu0 %4328
        %4332 = vset.pattern.permute.xlu0 0
        %4333 = vperm.xlu0 %4332, %v2674
        %v4334 = vpop.permute.xlu0 %4333
        %4337 = vset.pattern.permute.xlu0 0
        %4338 = vperm.xlu0 %4337, %v2675
        %v4339 = vpop.permute.xlu0 %4338
        %4342 = vset.pattern.permute.xlu0 0
        %4343 = vperm.xlu0 %4342, %v2676
        %v4344 = vpop.permute.xlu0 %4343
        %4347 = vset.pattern.permute.xlu0 0
        %4348 = vperm.xlu0 %4347, %v2677
        %v4349 = vpop.permute.xlu0 %4348
        %4352 = vset.pattern.permute.xlu0 0
        %4353 = vperm.xlu0 %4352, %v2678
        %v4354 = vpop.permute.xlu0 %4353
        %4357 = vset.pattern.permute.xlu0 0
        %4358 = vperm.xlu0 %4357, %v2679
        %v4359 = vpop.permute.xlu0 %4358
        %4362 = vset.pattern.permute.xlu0 0
        %4363 = vperm.xlu0 %4362, %v2680
        %v4364 = vpop.permute.xlu0 %4363
        %4367 = vset.pattern.permute.xlu0 0
        %4368 = vperm.xlu0 %4367, %v2681
        %v4369 = vpop.permute.xlu0 %4368
        %4372 = vset.pattern.permute.xlu0 0
        %4373 = vperm.xlu0 %4372, %v2682
        %v4374 = vpop.permute.xlu0 %4373
        %4377 = vset.pattern.permute.xlu0 0
        %4378 = vperm.xlu0 %4377, %v2683
        %v4379 = vpop.permute.xlu0 %4378
        %4382 = vset.pattern.permute.xlu0 0
        %4383 = vperm.xlu0 %4382, %v2684
        %v4384 = vpop.permute.xlu0 %4383
        %4387 = vset.pattern.permute.xlu0 0
        %4388 = vperm.xlu0 %4387, %v2685
        %v4389 = vpop.permute.xlu0 %4388
        %4392 = vset.pattern.permute.xlu0 0
        %4393 = vperm.xlu0 %4392, %v2686
        %v4394 = vpop.permute.xlu0 %4393
        %4397 = vset.pattern.permute.xlu0 0
        %4398 = vperm.xlu0 %4397, %v2687
        %v4399 = vpop.permute.xlu0 %4398
        %4402 = vset.pattern.permute.xlu0 0
        %4403 = vperm.xlu0 %4402, %v2688
        %v4404 = vpop.permute.xlu0 %4403
        %4407 = vset.pattern.permute.xlu0 0
        %4408 = vperm.xlu0 %4407, %v2689
        %v4409 = vpop.permute.xlu0 %4408
        %4412 = vset.pattern.permute.xlu0 0
        %4413 = vperm.xlu0 %4412, %v2690
        %v4414 = vpop.permute.xlu0 %4413
        %v4416 = vadd.f32 %v4254, %v4259
        %v4417 = vadd.f32 %v4253, %v4264
        %v4418 = vadd.f32 %v4252, %v4269
        %v4419 = vadd.f32 %v4251, %v4274
        %v4420 = vadd.f32 %v4250, %v4279
        %v4421 = vadd.f32 %v4249, %v4284
        %v4422 = vadd.f32 %v4248, %v4289
        %v4423 = vadd.f32 %v4247, %v4294
        %v4424 = vadd.f32 %v4246, %v4299
        %v4425 = vadd.f32 %v4245, %v4304
        %v4426 = vadd.f32 %v4244, %v4309
        %v4427 = vadd.f32 %v4243, %v4314
        %v4428 = vadd.f32 %v4242, %v4319
        %v4429 = vadd.f32 %v4241, %v4324
        %v4430 = vadd.f32 %v4240, %v4329
        %v4431 = vadd.f32 %v4239, %v4334
        %v4432 = vadd.f32 %v4238, %v4339
        %v4433 = vadd.f32 %v4237, %v4344
        %v4434 = vadd.f32 %v4236, %v4349
        %v4435 = vadd.f32 %v4235, %v4354
        %v4436 = vadd.f32 %v4234, %v4359
        %v4437 = vadd.f32 %v4233, %v4364
        %v4438 = vadd.f32 %v4232, %v4369
        %v4439 = vadd.f32 %v4231, %v4374
        %v4440 = vadd.f32 %v4230, %v4379
        %v4441 = vadd.f32 %v4229, %v4384
        %v4442 = vadd.f32 %v4228, %v4389
        %v4443 = vadd.f32 %v4227, %v4394
        %v4444 = vadd.f32 %v4226, %v4399
        %v4445 = vadd.f32 %v4225, %v4404
        %v4446 = vadd.f32 %v4224, %v4409
        %v4447 = vadd.f32 %v4255, %v4414
        %v4448 = vmax.f32 %v4160, %v4416
        %v4449 = vmax.f32 %v4161, %v4417
        %v4450 = vmax.f32 %v4162, %v4418
        %v4451 = vmax.f32 %v4163, %v4419
        %v4452 = vmax.f32 %v4164, %v4420
        %v4453 = vmax.f32 %v4165, %v4421
        %v4454 = vmax.f32 %v4166, %v4422
        %v4455 = vmax.f32 %v4167, %v4423
        %v4456 = vmax.f32 %v4168, %v4424
        %v4457 = vmax.f32 %v4169, %v4425
        %v4458 = vmax.f32 %v4170, %v4426
        %v4459 = vmax.f32 %v4171, %v4427
        %v4460 = vmax.f32 %v4172, %v4428
        %v4461 = vmax.f32 %v4173, %v4429
        %v4462 = vmax.f32 %v4174, %v4430
        %v4463 = vmax.f32 %v4175, %v4431
        %v4464 = vmax.f32 %v4176, %v4432
        %v4465 = vmax.f32 %v4177, %v4433
        %v4466 = vmax.f32 %v4178, %v4434
        %v4467 = vmax.f32 %v4179, %v4435
        %v4468 = vmax.f32 %v4180, %v4436
        %v4469 = vmax.f32 %v4181, %v4437
        %v4470 = vmax.f32 %v4182, %v4438
        %v4471 = vmax.f32 %v4183, %v4439
        %v4472 = vmax.f32 %v4184, %v4440
        %v4473 = vmax.f32 %v4185, %v4441
        %v4474 = vmax.f32 %v4186, %v4442
        %v4475 = vmax.f32 %v4187, %v4443
        %v4476 = vmax.f32 %v4188, %v4444
        %v4477 = vmax.f32 %v4189, %v4445
        %v4478 = vmax.f32 %v4190, %v4446
        %v4479 = vmax.f32 %v4191, %v4447
        %4481 = vset.pattern.permute.xlu0 0
        %4482 = vperm.xlu0 %4481, -inf
        %v4483 = vpop.permute.xlu0 %4482
        %4486 = vset.pattern.permute.xlu0 0
        %4487 = vperm.xlu0 %4486, %v2815
        %v4488 = vpop.permute.xlu0 %4487
        %4491 = vset.pattern.permute.xlu0 0
        %4492 = vperm.xlu0 %4491, %v2816
        %v4493 = vpop.permute.xlu0 %4492
        %4496 = vset.pattern.permute.xlu0 0
        %4497 = vperm.xlu0 %4496, %v2817
        %v4498 = vpop.permute.xlu0 %4497
        %4501 = vset.pattern.permute.xlu0 0
        %4502 = vperm.xlu0 %4501, %v2818
        %v4503 = vpop.permute.xlu0 %4502
        %4506 = vset.pattern.permute.xlu0 0
        %4507 = vperm.xlu0 %4506, %v2819
        %v4508 = vpop.permute.xlu0 %4507
        %4511 = vset.pattern.permute.xlu0 0
        %4512 = vperm.xlu0 %4511, %v2820
        %v4513 = vpop.permute.xlu0 %4512
        %4516 = vset.pattern.permute.xlu0 0
        %4517 = vperm.xlu0 %4516, %v2821
        %v4518 = vpop.permute.xlu0 %4517
        %4521 = vset.pattern.permute.xlu0 0
        %4522 = vperm.xlu0 %4521, %v2822
        %v4523 = vpop.permute.xlu0 %4522
        %4526 = vset.pattern.permute.xlu0 0
        %4527 = vperm.xlu0 %4526, %v2823
        %v4528 = vpop.permute.xlu0 %4527
        %4531 = vset.pattern.permute.xlu0 0
        %4532 = vperm.xlu0 %4531, %v2824
        %v4533 = vpop.permute.xlu0 %4532
        %4536 = vset.pattern.permute.xlu0 0
        %4537 = vperm.xlu0 %4536, %v2825
        %v4538 = vpop.permute.xlu0 %4537
        %4541 = vset.pattern.permute.xlu0 0
        %4542 = vperm.xlu0 %4541, %v2826
        %v4543 = vpop.permute.xlu0 %4542
        %4546 = vset.pattern.permute.xlu0 0
        %4547 = vperm.xlu0 %4546, %v2827
        %v4548 = vpop.permute.xlu0 %4547
        %4551 = vset.pattern.permute.xlu0 0
        %4552 = vperm.xlu0 %4551, %v2828
        %v4553 = vpop.permute.xlu0 %4552
        %4556 = vset.pattern.permute.xlu0 0
        %4557 = vperm.xlu0 %4556, %v2829
        %v4558 = vpop.permute.xlu0 %4557
        %4561 = vset.pattern.permute.xlu0 0
        %4562 = vperm.xlu0 %4561, %v2830
        %v4563 = vpop.permute.xlu0 %4562
        %4566 = vset.pattern.permute.xlu0 0
        %4567 = vperm.xlu0 %4566, %v2831
        %v4568 = vpop.permute.xlu0 %4567
        %4571 = vset.pattern.permute.xlu0 0
        %4572 = vperm.xlu0 %4571, %v2832
        %v4573 = vpop.permute.xlu0 %4572
        %4576 = vset.pattern.permute.xlu0 0
        %4577 = vperm.xlu0 %4576, %v2833
        %v4578 = vpop.permute.xlu0 %4577
        %4581 = vset.pattern.permute.xlu0 0
        %4582 = vperm.xlu0 %4581, %v2834
        %v4583 = vpop.permute.xlu0 %4582
        %4586 = vset.pattern.permute.xlu0 0
        %4587 = vperm.xlu0 %4586, %v2835
        %v4588 = vpop.permute.xlu0 %4587
        %4591 = vset.pattern.permute.xlu0 0
        %4592 = vperm.xlu0 %4591, %v2836
        %v4593 = vpop.permute.xlu0 %4592
        %4596 = vset.pattern.permute.xlu0 0
        %4597 = vperm.xlu0 %4596, %v2837
        %v4598 = vpop.permute.xlu0 %4597
        %4601 = vset.pattern.permute.xlu0 0
        %4602 = vperm.xlu0 %4601, %v2838
        %v4603 = vpop.permute.xlu0 %4602
        %4606 = vset.pattern.permute.xlu0 0
        %4607 = vperm.xlu0 %4606, %v2839
        %v4608 = vpop.permute.xlu0 %4607
        %4611 = vset.pattern.permute.xlu0 0
        %4612 = vperm.xlu0 %4611, %v2840
        %v4613 = vpop.permute.xlu0 %4612
        %4616 = vset.pattern.permute.xlu0 0
        %4617 = vperm.xlu0 %4616, %v2841
        %v4618 = vpop.permute.xlu0 %4617
        %4621 = vset.pattern.permute.xlu0 0
        %4622 = vperm.xlu0 %4621, %v2842
        %v4623 = vpop.permute.xlu0 %4622
        %4626 = vset.pattern.permute.xlu0 0
        %4627 = vperm.xlu0 %4626, %v2843
        %v4628 = vpop.permute.xlu0 %4627
        %4631 = vset.pattern.permute.xlu0 0
        %4632 = vperm.xlu0 %4631, %v2844
        %v4633 = vpop.permute.xlu0 %4632
        %4636 = vset.pattern.permute.xlu0 0
        %4637 = vperm.xlu0 %4636, %v2845
        %v4638 = vpop.permute.xlu0 %4637
        %v4640 = vadd.f32 %v4478, %v4483
        %v4641 = vadd.f32 %v4479, %v4488
        %v4642 = vadd.f32 %v4448, %v4493
        %v4643 = vadd.f32 %v4449, %v4498
        %v4644 = vadd.f32 %v4450, %v4503
        %v4645 = vadd.f32 %v4451, %v4508
        %v4646 = vadd.f32 %v4452, %v4513
        %v4647 = vadd.f32 %v4453, %v4518
        %v4648 = vadd.f32 %v4454, %v4523
        %v4649 = vadd.f32 %v4455, %v4528
        %v4650 = vadd.f32 %v4456, %v4533
        %v4651 = vadd.f32 %v4457, %v4538
        %v4652 = vadd.f32 %v4458, %v4543
        %v4653 = vadd.f32 %v4459, %v4548
        %v4654 = vadd.f32 %v4460, %v4553
        %v4655 = vadd.f32 %v4461, %v4558
        %v4656 = vadd.f32 %v4462, %v4563
        %v4657 = vadd.f32 %v4463, %v4568
        %v4658 = vadd.f32 %v4464, %v4573
        %v4659 = vadd.f32 %v4465, %v4578
        %v4660 = vadd.f32 %v4466, %v4583
        %v4661 = vadd.f32 %v4467, %v4588
        %v4662 = vadd.f32 %v4468, %v4593
        %v4663 = vadd.f32 %v4469, %v4598
        %v4664 = vadd.f32 %v4470, %v4603
        %v4665 = vadd.f32 %v4471, %v4608
        %v4666 = vadd.f32 %v4472, %v4613
        %v4667 = vadd.f32 %v4473, %v4618
        %v4668 = vadd.f32 %v4474, %v4623
        %v4669 = vadd.f32 %v4475, %v4628
        %v4670 = vadd.f32 %v4476, %v4633
        %v4671 = vadd.f32 %v4477, %v4638
        %v4672 = vmax.f32 %v4448, %v4640
        %v4673 = vmax.f32 %v4449, %v4641
        %v4674 = vmax.f32 %v4450, %v4642
        %v4675 = vmax.f32 %v4451, %v4643
        %v4676 = vmax.f32 %v4452, %v4644
        %v4677 = vmax.f32 %v4453, %v4645
        %v4678 = vmax.f32 %v4454, %v4646
        %v4679 = vmax.f32 %v4455, %v4647
        %v4680 = vmax.f32 %v4456, %v4648
        %v4681 = vmax.f32 %v4457, %v4649
        %v4682 = vmax.f32 %v4458, %v4650
        %v4683 = vmax.f32 %v4459, %v4651
        %v4684 = vmax.f32 %v4460, %v4652
        %v4685 = vmax.f32 %v4461, %v4653
        %v4686 = vmax.f32 %v4462, %v4654
        %v4687 = vmax.f32 %v4463, %v4655
        %v4688 = vmax.f32 %v4464, %v4656
        %v4689 = vmax.f32 %v4465, %v4657
        %v4690 = vmax.f32 %v4466, %v4658
        %v4691 = vmax.f32 %v4467, %v4659
        %v4692 = vmax.f32 %v4468, %v4660
        %v4693 = vmax.f32 %v4469, %v4661
        %v4694 = vmax.f32 %v4470, %v4662
        %v4695 = vmax.f32 %v4471, %v4663
        %v4696 = vmax.f32 %v4472, %v4664
        %v4697 = vmax.f32 %v4473, %v4665
        %v4698 = vmax.f32 %v4474, %v4666
        %v4699 = vmax.f32 %v4475, %v4667
        %v4700 = vmax.f32 %v4476, %v4668
        %v4701 = vmax.f32 %v4477, %v4669
        %v4702 = vmax.f32 %v4478, %v4670
        %v4703 = vmax.f32 %v4479, %v4671
        %4705 = vset.pattern.permute.xlu0 0
        %4706 = vperm.xlu0 %4705, 0.0
        %v4707 = vpop.permute.xlu0 %4706
        %4710 = vset.pattern.permute.xlu0 0
        %4711 = vperm.xlu0 %4710, %v2970
        %v4712 = vpop.permute.xlu0 %4711
        %4715 = vset.pattern.permute.xlu0 0
        %4716 = vperm.xlu0 %4715, %v2971
        %v4717 = vpop.permute.xlu0 %4716
        %4720 = vset.pattern.permute.xlu0 0
        %4721 = vperm.xlu0 %4720, %v2972
        %v4722 = vpop.permute.xlu0 %4721
        %4725 = vset.pattern.permute.xlu0 0
        %4726 = vperm.xlu0 %4725, %v2973
        %v4727 = vpop.permute.xlu0 %4726
        %4730 = vset.pattern.permute.xlu0 0
        %4731 = vperm.xlu0 %4730, %v2974
        %v4732 = vpop.permute.xlu0 %4731
        %4735 = vset.pattern.permute.xlu0 0
        %4736 = vperm.xlu0 %4735, %v2975
        %v4737 = vpop.permute.xlu0 %4736
        %4740 = vset.pattern.permute.xlu0 0
        %4741 = vperm.xlu0 %4740, %v2976
        %v4742 = vpop.permute.xlu0 %4741
        %4745 = vset.pattern.permute.xlu0 0
        %4746 = vperm.xlu0 %4745, %v2977
        %v4747 = vpop.permute.xlu0 %4746
        %4750 = vset.pattern.permute.xlu0 0
        %4751 = vperm.xlu0 %4750, %v2978
        %v4752 = vpop.permute.xlu0 %4751
        %4755 = vset.pattern.permute.xlu0 0
        %4756 = vperm.xlu0 %4755, %v2979
        %v4757 = vpop.permute.xlu0 %4756
        %4760 = vset.pattern.permute.xlu0 0
        %4761 = vperm.xlu0 %4760, %v2980
        %v4762 = vpop.permute.xlu0 %4761
        %4765 = vset.pattern.permute.xlu0 0
        %4766 = vperm.xlu0 %4765, %v2981
        %v4767 = vpop.permute.xlu0 %4766
        %4770 = vset.pattern.permute.xlu0 0
        %4771 = vperm.xlu0 %4770, %v2982
        %v4772 = vpop.permute.xlu0 %4771
        %4775 = vset.pattern.permute.xlu0 0
        %4776 = vperm.xlu0 %4775, %v2983
        %v4777 = vpop.permute.xlu0 %4776
        %4780 = vset.pattern.permute.xlu0 0
        %4781 = vperm.xlu0 %4780, %v2984
        %v4782 = vpop.permute.xlu0 %4781
        %4785 = vset.pattern.permute.xlu0 0
        %4786 = vperm.xlu0 %4785, %v2985
        %v4787 = vpop.permute.xlu0 %4786
        %4790 = vset.pattern.permute.xlu0 0
        %4791 = vperm.xlu0 %4790, %v2986
        %v4792 = vpop.permute.xlu0 %4791
        %4795 = vset.pattern.permute.xlu0 0
        %4796 = vperm.xlu0 %4795, %v2987
        %v4797 = vpop.permute.xlu0 %4796
        %4800 = vset.pattern.permute.xlu0 0
        %4801 = vperm.xlu0 %4800, %v2988
        %v4802 = vpop.permute.xlu0 %4801
        %4805 = vset.pattern.permute.xlu0 0
        %4806 = vperm.xlu0 %4805, %v2989
        %v4807 = vpop.permute.xlu0 %4806
        %4810 = vset.pattern.permute.xlu0 0
        %4811 = vperm.xlu0 %4810, %v2990
        %v4812 = vpop.permute.xlu0 %4811
        %4815 = vset.pattern.permute.xlu0 0
        %4816 = vperm.xlu0 %4815, %v2991
        %v4817 = vpop.permute.xlu0 %4816
        %4820 = vset.pattern.permute.xlu0 0
        %4821 = vperm.xlu0 %4820, %v2992
        %v4822 = vpop.permute.xlu0 %4821
        %4825 = vset.pattern.permute.xlu0 0
        %4826 = vperm.xlu0 %4825, %v2993
        %v4827 = vpop.permute.xlu0 %4826
        %4830 = vset.pattern.permute.xlu0 0
        %4831 = vperm.xlu0 %4830, %v2994
        %v4832 = vpop.permute.xlu0 %4831
        %4835 = vset.pattern.permute.xlu0 0
        %4836 = vperm.xlu0 %4835, %v2995
        %v4837 = vpop.permute.xlu0 %4836
        %4840 = vset.pattern.permute.xlu0 0
        %4841 = vperm.xlu0 %4840, %v2996
        %v4842 = vpop.permute.xlu0 %4841
        %4845 = vset.pattern.permute.xlu0 0
        %4846 = vperm.xlu0 %4845, %v2997
        %v4847 = vpop.permute.xlu0 %4846
        %4850 = vset.pattern.permute.xlu0 0
        %4851 = vperm.xlu0 %4850, %v2998
        %v4852 = vpop.permute.xlu0 %4851
        %4855 = vset.pattern.permute.xlu0 0
        %4856 = vperm.xlu0 %4855, %v2999
        %v4857 = vpop.permute.xlu0 %4856
        %4860 = vset.pattern.permute.xlu0 0
        %4861 = vperm.xlu0 %4860, %v3000
        %v4862 = vpop.permute.xlu0 %4861
        %v4864 = vadd.f32 %v4450, %v4707
        %v4865 = vadd.f32 %v4451, %v4712
        %v4866 = vadd.f32 %v4452, %v4717
        %v4867 = vadd.f32 %v4453, %v4722
        %v4868 = vadd.f32 %v4454, %v4727
        %v4869 = vadd.f32 %v4455, %v4732
        %v4870 = vadd.f32 %v4456, %v4737
        %v4871 = vadd.f32 %v4457, %v4742
        %v4872 = vadd.f32 %v4458, %v4747
        %v4873 = vadd.f32 %v4459, %v4752
        %v4874 = vadd.f32 %v4460, %v4757
        %v4875 = vadd.f32 %v4461, %v4762
        %v4876 = vadd.f32 %v4462, %v4767
        %v4877 = vadd.f32 %v4463, %v4772
        %v4878 = vadd.f32 %v4464, %v4777
        %v4879 = vadd.f32 %v4465, %v4782
        %v4880 = vadd.f32 %v4466, %v4787
        %v4881 = vadd.f32 %v4467, %v4792
        %v4882 = vadd.f32 %v4468, %v4797
        %v4883 = vadd.f32 %v4469, %v4802
        %v4884 = vadd.f32 %v4470, %v4807
        %v4885 = vadd.f32 %v4471, %v4812
        %v4886 = vadd.f32 %v4472, %v4817
        %v4887 = vadd.f32 %v4473, %v4822
        %v4888 = vadd.f32 %v4474, %v4827
        %v4889 = vadd.f32 %v4475, %v4832
        %v4890 = vadd.f32 %v4476, %v4837
        %v4891 = vadd.f32 %v4477, %v4842
        %v4892 = vadd.f32 %v4478, %v4847
        %v4893 = vadd.f32 %v4479, %v4852
        %v4894 = vadd.f32 %v4448, %v4857
        %v4895 = vadd.f32 %v4449, %v4862
        %v4896 = vmax.f32 %v4672, %v4864
        %v4897 = vmax.f32 %v4673, %v4865
        %v4898 = vmax.f32 %v4674, %v4866
        %v4899 = vmax.f32 %v4675, %v4867
        %v4900 = vmax.f32 %v4676, %v4868
        %v4901 = vmax.f32 %v4677, %v4869
        %v4902 = vmax.f32 %v4678, %v4870
        %v4903 = vmax.f32 %v4679, %v4871
        %v4904 = vmax.f32 %v4680, %v4872
        %v4905 = vmax.f32 %v4681, %v4873
        %v4906 = vmax.f32 %v4682, %v4874
        %v4907 = vmax.f32 %v4683, %v4875
        %v4908 = vmax.f32 %v4684, %v4876
        %v4909 = vmax.f32 %v4685, %v4877
        %v4910 = vmax.f32 %v4686, %v4878
        %v4911 = vmax.f32 %v4687, %v4879
        %v4912 = vmax.f32 %v4688, %v4880
        %v4913 = vmax.f32 %v4689, %v4881
        %v4914 = vmax.f32 %v4690, %v4882
        %v4915 = vmax.f32 %v4691, %v4883
        %v4916 = vmax.f32 %v4692, %v4884
        %v4917 = vmax.f32 %v4693, %v4885
        %v4918 = vmax.f32 %v4694, %v4886
        %v4919 = vmax.f32 %v4695, %v4887
        %v4920 = vmax.f32 %v4696, %v4888
        %v4921 = vmax.f32 %v4697, %v4889
        %v4922 = vmax.f32 %v4698, %v4890
        %v4923 = vmax.f32 %v4699, %v4891
        %v4924 = vmax.f32 %v4700, %v4892
        %v4925 = vmax.f32 %v4701, %v4893
        %v4926 = vmax.f32 %v4702, %v4894
        %v4927 = vmax.f32 %v4703, %v4895
        %4929 = vset.pattern.permute.xlu0 0
        %4930 = vperm.xlu0 %4929, %v3125
        %v4931 = vpop.permute.xlu0 %4930
        %4934 = vset.pattern.permute.xlu0 0
        %4935 = vperm.xlu0 %4934, %v3126
        %v4936 = vpop.permute.xlu0 %4935
        %4939 = vset.pattern.permute.xlu0 0
        %4940 = vperm.xlu0 %4939, %v3127
        %v4941 = vpop.permute.xlu0 %4940
        %4944 = vset.pattern.permute.xlu0 0
        %4945 = vperm.xlu0 %4944, %v3128
        %v4946 = vpop.permute.xlu0 %4945
        %4949 = vset.pattern.permute.xlu0 0
        %4950 = vperm.xlu0 %4949, %v3129
        %v4951 = vpop.permute.xlu0 %4950
        %4954 = vset.pattern.permute.xlu0 0
        %4955 = vperm.xlu0 %4954, %v3130
        %v4956 = vpop.permute.xlu0 %4955
        %4959 = vset.pattern.permute.xlu0 0
        %4960 = vperm.xlu0 %4959, %v3131
        %v4961 = vpop.permute.xlu0 %4960
        %4964 = vset.pattern.permute.xlu0 0
        %4965 = vperm.xlu0 %4964, %v3132
        %v4966 = vpop.permute.xlu0 %4965
        %4969 = vset.pattern.permute.xlu0 0
        %4970 = vperm.xlu0 %4969, %v3133
        %v4971 = vpop.permute.xlu0 %4970
        %4974 = vset.pattern.permute.xlu0 0
        %4975 = vperm.xlu0 %4974, %v3134
        %v4976 = vpop.permute.xlu0 %4975
        %4979 = vset.pattern.permute.xlu0 0
        %4980 = vperm.xlu0 %4979, %v3135
        %v4981 = vpop.permute.xlu0 %4980
        %4984 = vset.pattern.permute.xlu0 0
        %4985 = vperm.xlu0 %4984, %v3136
        %v4986 = vpop.permute.xlu0 %4985
        %4989 = vset.pattern.permute.xlu0 0
        %4990 = vperm.xlu0 %4989, %v3137
        %v4991 = vpop.permute.xlu0 %4990
        %4994 = vset.pattern.permute.xlu0 0
        %4995 = vperm.xlu0 %4994, %v3138
        %v4996 = vpop.permute.xlu0 %4995
        %4999 = vset.pattern.permute.xlu0 0
        %5000 = vperm.xlu0 %4999, %v3139
        %v5001 = vpop.permute.xlu0 %5000
        %5004 = vset.pattern.permute.xlu0 0
        %5005 = vperm.xlu0 %5004, %v3140
        %v5006 = vpop.permute.xlu0 %5005
        %5009 = vset.pattern.permute.xlu0 0
        %5010 = vperm.xlu0 %5009, %v3141
        %v5011 = vpop.permute.xlu0 %5010
        %5014 = vset.pattern.permute.xlu0 0
        %5015 = vperm.xlu0 %5014, %v3142
        %v5016 = vpop.permute.xlu0 %5015
        %5019 = vset.pattern.permute.xlu0 0
        %5020 = vperm.xlu0 %5019, %v3143
        %v5021 = vpop.permute.xlu0 %5020
        %5024 = vset.pattern.permute.xlu0 0
        %5025 = vperm.xlu0 %5024, %v3144
        %v5026 = vpop.permute.xlu0 %5025
        %5029 = vset.pattern.permute.xlu0 0
        %5030 = vperm.xlu0 %5029, %v3145
        %v5031 = vpop.permute.xlu0 %5030
        %5034 = vset.pattern.permute.xlu0 0
        %5035 = vperm.xlu0 %5034, %v3146
        %v5036 = vpop.permute.xlu0 %5035
        %5039 = vset.pattern.permute.xlu0 0
        %5040 = vperm.xlu0 %5039, %v3147
        %v5041 = vpop.permute.xlu0 %5040
        %5044 = vset.pattern.permute.xlu0 0
        %5045 = vperm.xlu0 %5044, %v3148
        %v5046 = vpop.permute.xlu0 %5045
        %5049 = vset.pattern.permute.xlu0 0
        %5050 = vperm.xlu0 %5049, %v3149
        %v5051 = vpop.permute.xlu0 %5050
        %5054 = vset.pattern.permute.xlu0 0
        %5055 = vperm.xlu0 %5054, %v3150
        %v5056 = vpop.permute.xlu0 %5055
        %5059 = vset.pattern.permute.xlu0 0
        %5060 = vperm.xlu0 %5059, %v3151
        %v5061 = vpop.permute.xlu0 %5060
        %5064 = vset.pattern.permute.xlu0 0
        %5065 = vperm.xlu0 %5064, %v3152
        %v5066 = vpop.permute.xlu0 %5065
        %5069 = vset.pattern.permute.xlu0 0
        %5070 = vperm.xlu0 %5069, %v3153
        %v5071 = vpop.permute.xlu0 %5070
        %5074 = vset.pattern.permute.xlu0 0
        %5075 = vperm.xlu0 %5074, %v3154
        %v5076 = vpop.permute.xlu0 %5075
        %5079 = vset.pattern.permute.xlu0 0
        %5080 = vperm.xlu0 %5079, %v3155
        %v5081 = vpop.permute.xlu0 %5080
        %v5083 = vadd.f32 %v4476, %v4483
        %v5084 = vadd.f32 %v4477, %v4931
        %v5085 = vadd.f32 %v4478, %v4936
        %v5086 = vadd.f32 %v4479, %v4941
        %v5087 = vadd.f32 %v4448, %v4946
        %v5088 = vadd.f32 %v4449, %v4951
        %v5089 = vadd.f32 %v4450, %v4956
        %v5090 = vadd.f32 %v4451, %v4961
        %v5091 = vadd.f32 %v4452, %v4966
        %v5092 = vadd.f32 %v4453, %v4971
        %v5093 = vadd.f32 %v4454, %v4976
        %v5094 = vadd.f32 %v4455, %v4981
        %v5095 = vadd.f32 %v4456, %v4986
        %v5096 = vadd.f32 %v4457, %v4991
        %v5097 = vadd.f32 %v4458, %v4996
        %v5098 = vadd.f32 %v4459, %v5001
        %v5099 = vadd.f32 %v4460, %v5006
        %v5100 = vadd.f32 %v4461, %v5011
        %v5101 = vadd.f32 %v4462, %v5016
        %v5102 = vadd.f32 %v4463, %v5021
        %v5103 = vadd.f32 %v4464, %v5026
        %v5104 = vadd.f32 %v4465, %v5031
        %v5105 = vadd.f32 %v4466, %v5036
        %v5106 = vadd.f32 %v4467, %v5041
        %v5107 = vadd.f32 %v4468, %v5046
        %v5108 = vadd.f32 %v4469, %v5051
        %v5109 = vadd.f32 %v4470, %v5056
        %v5110 = vadd.f32 %v4471, %v5061
        %v5111 = vadd.f32 %v4472, %v5066
        %v5112 = vadd.f32 %v4473, %v5071
        %v5113 = vadd.f32 %v4474, %v5076
        %v5114 = vadd.f32 %v4475, %v5081
        %v5115 = vmax.f32 %v4896, %v5083
        %v5116 = vmax.f32 %v4897, %v5084
        %v5117 = vmax.f32 %v4898, %v5085
        %v5118 = vmax.f32 %v4899, %v5086
        %v5119 = vmax.f32 %v4900, %v5087
        %v5120 = vmax.f32 %v4901, %v5088
        %v5121 = vmax.f32 %v4902, %v5089
        %v5122 = vmax.f32 %v4903, %v5090
        %v5123 = vmax.f32 %v4904, %v5091
        %v5124 = vmax.f32 %v4905, %v5092
        %v5125 = vmax.f32 %v4906, %v5093
        %v5126 = vmax.f32 %v4907, %v5094
        %v5127 = vmax.f32 %v4908, %v5095
        %v5128 = vmax.f32 %v4909, %v5096
        %v5129 = vmax.f32 %v4910, %v5097
        %v5130 = vmax.f32 %v4911, %v5098
        %v5131 = vmax.f32 %v4912, %v5099
        %v5132 = vmax.f32 %v4913, %v5100
        %v5133 = vmax.f32 %v4914, %v5101
        %v5134 = vmax.f32 %v4915, %v5102
        %v5135 = vmax.f32 %v4916, %v5103
        %v5136 = vmax.f32 %v4917, %v5104
        %v5137 = vmax.f32 %v4918, %v5105
        %v5138 = vmax.f32 %v4919, %v5106
        %v5139 = vmax.f32 %v4920, %v5107
        %v5140 = vmax.f32 %v4921, %v5108
        %v5141 = vmax.f32 %v4922, %v5109
        %v5142 = vmax.f32 %v4923, %v5110
        %v5143 = vmax.f32 %v4924, %v5111
        %v5144 = vmax.f32 %v4925, %v5112
        %v5145 = vmax.f32 %v4926, %v5113
        %v5146 = vmax.f32 %v4927, %v5114
        %5148 = vset.pattern.permute.xlu0 0
        %5149 = vperm.xlu0 %5148, %v3280
        %v5150 = vpop.permute.xlu0 %5149
        %5153 = vset.pattern.permute.xlu0 0
        %5154 = vperm.xlu0 %5153, %v3281
        %v5155 = vpop.permute.xlu0 %5154
        %5158 = vset.pattern.permute.xlu0 0
        %5159 = vperm.xlu0 %5158, %v3282
        %v5160 = vpop.permute.xlu0 %5159
        %5163 = vset.pattern.permute.xlu0 0
        %5164 = vperm.xlu0 %5163, %v3283
        %v5165 = vpop.permute.xlu0 %5164
        %5168 = vset.pattern.permute.xlu0 0
        %5169 = vperm.xlu0 %5168, %v3284
        %v5170 = vpop.permute.xlu0 %5169
        %5173 = vset.pattern.permute.xlu0 0
        %5174 = vperm.xlu0 %5173, %v3285
        %v5175 = vpop.permute.xlu0 %5174
        %5178 = vset.pattern.permute.xlu0 0
        %5179 = vperm.xlu0 %5178, %v3286
        %v5180 = vpop.permute.xlu0 %5179
        %5183 = vset.pattern.permute.xlu0 0
        %5184 = vperm.xlu0 %5183, %v3287
        %v5185 = vpop.permute.xlu0 %5184
        %5188 = vset.pattern.permute.xlu0 0
        %5189 = vperm.xlu0 %5188, %v3288
        %v5190 = vpop.permute.xlu0 %5189
        %5193 = vset.pattern.permute.xlu0 0
        %5194 = vperm.xlu0 %5193, %v3289
        %v5195 = vpop.permute.xlu0 %5194
        %5198 = vset.pattern.permute.xlu0 0
        %5199 = vperm.xlu0 %5198, %v3290
        %v5200 = vpop.permute.xlu0 %5199
        %5203 = vset.pattern.permute.xlu0 0
        %5204 = vperm.xlu0 %5203, %v3291
        %v5205 = vpop.permute.xlu0 %5204
        %5208 = vset.pattern.permute.xlu0 0
        %5209 = vperm.xlu0 %5208, %v3292
        %v5210 = vpop.permute.xlu0 %5209
        %5213 = vset.pattern.permute.xlu0 0
        %5214 = vperm.xlu0 %5213, %v3293
        %v5215 = vpop.permute.xlu0 %5214
        %5218 = vset.pattern.permute.xlu0 0
        %5219 = vperm.xlu0 %5218, %v3294
        %v5220 = vpop.permute.xlu0 %5219
        %5223 = vset.pattern.permute.xlu0 0
        %5224 = vperm.xlu0 %5223, %v3295
        %v5225 = vpop.permute.xlu0 %5224
        %5228 = vset.pattern.permute.xlu0 0
        %5229 = vperm.xlu0 %5228, %v3296
        %v5230 = vpop.permute.xlu0 %5229
        %5233 = vset.pattern.permute.xlu0 0
        %5234 = vperm.xlu0 %5233, %v3297
        %v5235 = vpop.permute.xlu0 %5234
        %5238 = vset.pattern.permute.xlu0 0
        %5239 = vperm.xlu0 %5238, %v3298
        %v5240 = vpop.permute.xlu0 %5239
        %5243 = vset.pattern.permute.xlu0 0
        %5244 = vperm.xlu0 %5243, %v3299
        %v5245 = vpop.permute.xlu0 %5244
        %5248 = vset.pattern.permute.xlu0 0
        %5249 = vperm.xlu0 %5248, %v3300
        %v5250 = vpop.permute.xlu0 %5249
        %5253 = vset.pattern.permute.xlu0 0
        %5254 = vperm.xlu0 %5253, %v3301
        %v5255 = vpop.permute.xlu0 %5254
        %5258 = vset.pattern.permute.xlu0 0
        %5259 = vperm.xlu0 %5258, %v3302
        %v5260 = vpop.permute.xlu0 %5259
        %5263 = vset.pattern.permute.xlu0 0
        %5264 = vperm.xlu0 %5263, %v3303
        %v5265 = vpop.permute.xlu0 %5264
        %5268 = vset.pattern.permute.xlu0 0
        %5269 = vperm.xlu0 %5268, %v3304
        %v5270 = vpop.permute.xlu0 %5269
        %5273 = vset.pattern.permute.xlu0 0
        %5274 = vperm.xlu0 %5273, %v3305
        %v5275 = vpop.permute.xlu0 %5274
        %5278 = vset.pattern.permute.xlu0 0
        %5279 = vperm.xlu0 %5278, %v3306
        %v5280 = vpop.permute.xlu0 %5279
        %5283 = vset.pattern.permute.xlu0 0
        %5284 = vperm.xlu0 %5283, %v3307
        %v5285 = vpop.permute.xlu0 %5284
        %5288 = vset.pattern.permute.xlu0 0
        %5289 = vperm.xlu0 %5288, %v3308
        %v5290 = vpop.permute.xlu0 %5289
        %5293 = vset.pattern.permute.xlu0 0
        %5294 = vperm.xlu0 %5293, %v3309
        %v5295 = vpop.permute.xlu0 %5294
        %5298 = vset.pattern.permute.xlu0 0
        %5299 = vperm.xlu0 %5298, %v3310
        %v5300 = vpop.permute.xlu0 %5299
        %v5302 = vadd.f32 %v4452, %v4707
        %v5303 = vadd.f32 %v4453, %v5150
        %v5304 = vadd.f32 %v4454, %v5155
        %v5305 = vadd.f32 %v4455, %v5160
        %v5306 = vadd.f32 %v4456, %v5165
        %v5307 = vadd.f32 %v4457, %v5170
        %v5308 = vadd.f32 %v4458, %v5175
        %v5309 = vadd.f32 %v4459, %v5180
        %v5310 = vadd.f32 %v4460, %v5185
        %v5311 = vadd.f32 %v4461, %v5190
        %v5312 = vadd.f32 %v4462, %v5195
        %v5313 = vadd.f32 %v4463, %v5200
        %v5314 = vadd.f32 %v4464, %v5205
        %v5315 = vadd.f32 %v4465, %v5210
        %v5316 = vadd.f32 %v4466, %v5215
        %v5317 = vadd.f32 %v4467, %v5220
        %v5318 = vadd.f32 %v4468, %v5225
        %v5319 = vadd.f32 %v4469, %v5230
        %v5320 = vadd.f32 %v4470, %v5235
        %v5321 = vadd.f32 %v4471, %v5240
        %v5322 = vadd.f32 %v4472, %v5245
        %v5323 = vadd.f32 %v4473, %v5250
        %v5324 = vadd.f32 %v4474, %v5255
        %v5325 = vadd.f32 %v4475, %v5260
        %v5326 = vadd.f32 %v4476, %v5265
        %v5327 = vadd.f32 %v4477, %v5270
        %v5328 = vadd.f32 %v4478, %v5275
        %v5329 = vadd.f32 %v4479, %v5280
        %v5330 = vadd.f32 %v4448, %v5285
        %v5331 = vadd.f32 %v4449, %v5290
        %v5332 = vadd.f32 %v4450, %v5295
        %v5333 = vadd.f32 %v4451, %v5300
        %v5334 = vmax.f32 %v5115, %v5302
        %v5335 = vmax.f32 %v5116, %v5303
        %v5336 = vmax.f32 %v5117, %v5304
        %v5337 = vmax.f32 %v5118, %v5305
        %v5338 = vmax.f32 %v5119, %v5306
        %v5339 = vmax.f32 %v5120, %v5307
        %v5340 = vmax.f32 %v5121, %v5308
        %v5341 = vmax.f32 %v5122, %v5309
        %v5342 = vmax.f32 %v5123, %v5310
        %v5343 = vmax.f32 %v5124, %v5311
        %v5344 = vmax.f32 %v5125, %v5312
        %v5345 = vmax.f32 %v5126, %v5313
        %v5346 = vmax.f32 %v5127, %v5314
        %v5347 = vmax.f32 %v5128, %v5315
        %v5348 = vmax.f32 %v5129, %v5316
        %v5349 = vmax.f32 %v5130, %v5317
        %v5350 = vmax.f32 %v5131, %v5318
        %v5351 = vmax.f32 %v5132, %v5319
        %v5352 = vmax.f32 %v5133, %v5320
        %v5353 = vmax.f32 %v5134, %v5321
        %v5354 = vmax.f32 %v5135, %v5322
        %v5355 = vmax.f32 %v5136, %v5323
        %v5356 = vmax.f32 %v5137, %v5324
        %v5357 = vmax.f32 %v5138, %v5325
        %v5358 = vmax.f32 %v5139, %v5326
        %v5359 = vmax.f32 %v5140, %v5327
        %v5360 = vmax.f32 %v5141, %v5328
        %v5361 = vmax.f32 %v5142, %v5329
        %v5362 = vmax.f32 %v5143, %v5330
        %v5363 = vmax.f32 %v5144, %v5331
        %v5364 = vmax.f32 %v5145, %v5332
        %v5365 = vmax.f32 %v5146, %v5333
        %v5366 = vpack.c.bf16 %v5335, %v5334
        %v5367 = vpack.c.bf16 %v5337, %v5336
        %v5368 = vpack.c.bf16 %v5339, %v5338
        %v5369 = vpack.c.bf16 %v5341, %v5340
        %v5370 = vpack.c.bf16 %v5343, %v5342
        %v5371 = vpack.c.bf16 %v5345, %v5344
        %v5372 = vpack.c.bf16 %v5347, %v5346
        %v5373 = vpack.c.bf16 %v5349, %v5348
        %v5374 = vpack.c.bf16 %v5351, %v5350
        %v5375 = vpack.c.bf16 %v5353, %v5352
        %v5376 = vpack.c.bf16 %v5355, %v5354
        %v5377 = vpack.c.bf16 %v5357, %v5356
        %v5378 = vpack.c.bf16 %v5359, %v5358
        %v5379 = vpack.c.bf16 %v5361, %v5360
        %v5380 = vpack.c.bf16 %v5363, %v5362
        %v5381 = vpack.c.bf16 %v5365, %v5364
        %s5382 = scalar_lea.vmem %s3, 4
        %v5383 = vld [vmem:[%s5382] sm:$0xf]
        %vm5384 = vcmask 64512
        %v5386 = vsel %vm5384, %v5366, 0
        %v5389 = vsel %vm5384, %v5367, 0
        %v5392 = vsel %vm5384, %v5368, 0
        %v5395 = vsel %vm5384, %v5369, 0
        %v5398 = vsel %vm5384, %v5370, 0
        %v5401 = vsel %vm5384, %v5371, 0
        %v5404 = vsel %vm5384, %v5372, 0
        %v5407 = vsel %vm5384, %v5373, 0
        %v5410 = vsel %vm5384, %v5374, 0
        %v5413 = vsel %vm5384, %v5375, 0
        %v5416 = vsel %vm5384, %v5376, 0
        %v5419 = vsel %vm5384, %v5377, 0
        %v5422 = vsel %vm5384, %v5378, 0
        %v5425 = vsel %vm5384, %v5379, 0
        %v5428 = vsel %vm5384, %v5380, 0
        %v5431 = vsel %vm5384, %v5381, 0
        %vm5433 = vcmask 1043456
        %v5435 = vsel %vm5433, %v5383, 0
        %5437 = vmatpush.bf16.msra.mxu0 0
        %5438 = vmatpush.bf16.msra.mxu0 0
        %5439 = vmatpush.bf16.msra.mxu0 0
        %5440 = vmatpush.bf16.msra.mxu0 0
        %5441 = vmatpush.bf16.msra.mxu0 0
        %5442 = vmatpush.bf16.msra.mxu0 0
        %5443 = vmatpush.bf16.msra.mxu0 0
        %5444 = vmatpush.bf16.msra.mxu0 %v5435
        %5445 = vmatmul.bf16.gmra.mxu0 %v5386
        %v5446 = vpop.f32.mrf.mxu0
        %v5447 = vadd.f32 0.0, %v5446
        %v5448 = vpop.f32.mrf.mxu0
        %v5449 = vadd.f32 0.0, %v5448
        %5450 = vmatmul.bf16.gmra.mxu0 %v5389
        %v5451 = vpop.f32.mrf.mxu0
        %v5452 = vadd.f32 0.0, %v5451
        %v5453 = vpop.f32.mrf.mxu0
        %v5454 = vadd.f32 0.0, %v5453
        %5455 = vmatmul.bf16.gmra.mxu0 %v5392
        %v5456 = vpop.f32.mrf.mxu0
        %v5457 = vadd.f32 0.0, %v5456
        %v5458 = vpop.f32.mrf.mxu0
        %v5459 = vadd.f32 0.0, %v5458
        %5460 = vmatmul.bf16.gmra.mxu0 %v5395
        %v5461 = vpop.f32.mrf.mxu0
        %v5462 = vadd.f32 0.0, %v5461
        %v5463 = vpop.f32.mrf.mxu0
        %v5464 = vadd.f32 0.0, %v5463
        %5465 = vmatmul.bf16.gmra.mxu0 %v5398
        %v5466 = vpop.f32.mrf.mxu0
        %v5467 = vadd.f32 0.0, %v5466
        %v5468 = vpop.f32.mrf.mxu0
        %v5469 = vadd.f32 0.0, %v5468
        %5470 = vmatmul.bf16.gmra.mxu0 %v5401
        %v5471 = vpop.f32.mrf.mxu0
        %v5472 = vadd.f32 0.0, %v5471
        %v5473 = vpop.f32.mrf.mxu0
        %v5474 = vadd.f32 0.0, %v5473
        %5475 = vmatmul.bf16.gmra.mxu0 %v5404
        %v5476 = vpop.f32.mrf.mxu0
        %v5477 = vadd.f32 0.0, %v5476
        %v5478 = vpop.f32.mrf.mxu0
        %v5479 = vadd.f32 0.0, %v5478
        %5480 = vmatmul.bf16.gmra.mxu0 %v5407
        %v5481 = vpop.f32.mrf.mxu0
        %v5482 = vadd.f32 0.0, %v5481
        %v5483 = vpop.f32.mrf.mxu0
        %v5484 = vadd.f32 0.0, %v5483
        %5485 = vmatmul.bf16.gmra.mxu0 %v5410
        %v5486 = vpop.f32.mrf.mxu0
        %v5487 = vadd.f32 0.0, %v5486
        %v5488 = vpop.f32.mrf.mxu0
        %v5489 = vadd.f32 0.0, %v5488
        %5490 = vmatmul.bf16.gmra.mxu0 %v5413
        %v5491 = vpop.f32.mrf.mxu0
        %v5492 = vadd.f32 0.0, %v5491
        %v5493 = vpop.f32.mrf.mxu0
        %v5494 = vadd.f32 0.0, %v5493
        %5495 = vmatmul.bf16.gmra.mxu0 %v5416
        %v5496 = vpop.f32.mrf.mxu0
        %v5497 = vadd.f32 0.0, %v5496
        %v5498 = vpop.f32.mrf.mxu0
        %v5499 = vadd.f32 0.0, %v5498
        %5500 = vmatmul.bf16.gmra.mxu0 %v5419
        %v5501 = vpop.f32.mrf.mxu0
        %v5502 = vadd.f32 0.0, %v5501
        %v5503 = vpop.f32.mrf.mxu0
        %v5504 = vadd.f32 0.0, %v5503
        %5505 = vmatmul.bf16.gmra.mxu0 %v5422
        %v5506 = vpop.f32.mrf.mxu0
        %v5507 = vadd.f32 0.0, %v5506
        %v5508 = vpop.f32.mrf.mxu0
        %v5509 = vadd.f32 0.0, %v5508
        %5510 = vmatmul.bf16.gmra.mxu0 %v5425
        %v5511 = vpop.f32.mrf.mxu0
        %v5512 = vadd.f32 0.0, %v5511
        %v5513 = vpop.f32.mrf.mxu0
        %v5514 = vadd.f32 0.0, %v5513
        %5515 = vmatmul.bf16.gmra.mxu0 %v5428
        %v5516 = vpop.f32.mrf.mxu0
        %v5517 = vadd.f32 0.0, %v5516
        %v5518 = vpop.f32.mrf.mxu0
        %v5519 = vadd.f32 0.0, %v5518
        %5520 = vmatmul.bf16.gmra.mxu0 %v5431
        %v5521 = vpop.f32.mrf.mxu0
        %v5522 = vadd.f32 0.0, %v5521
        %v5523 = vpop.f32.mrf.mxu0
        %v5524 = vadd.f32 0.0, %v5523
        %5525 = vdwg.mxu0
        %v5527 = vsel %vm5384, %v3311, 0
        %v5530 = vsel %vm5384, %v3312, 0
        %v5533 = vsel %vm5384, %v3313, 0
        %v5536 = vsel %vm5384, %v3314, 0
        %v5539 = vsel %vm5384, %v3315, 0
        %v5542 = vsel %vm5384, %v3316, 0
        %v5545 = vsel %vm5384, %v3317, 0
        %v5548 = vsel %vm5384, %v3318, 0
        %v5551 = vsel %vm5384, %v3319, 0
        %v5554 = vsel %vm5384, %v3320, 0
        %v5557 = vsel %vm5384, %v3321, 0
        %v5560 = vsel %vm5384, %v3322, 0
        %v5563 = vsel %vm5384, %v3323, 0
        %v5566 = vsel %vm5384, %v3324, 0
        %v5569 = vsel %vm5384, %v3325, 0
        %v5572 = vsel %vm5384, %v3326, 0
        %v5575 = vsel %vm5433, %v3327, 0
        %5577 = vmatpush.bf16.msra.mxu0 0
        %5578 = vmatpush.bf16.msra.mxu0 0
        %5579 = vmatpush.bf16.msra.mxu0 0
        %5580 = vmatpush.bf16.msra.mxu0 0
        %5581 = vmatpush.bf16.msra.mxu0 0
        %5582 = vmatpush.bf16.msra.mxu0 0
        %5583 = vmatpush.bf16.msra.mxu0 0
        %5584 = vmatpush.bf16.msra.mxu0 %v5575
        %5585 = vmatmul.bf16.gmra.mxu0 %v5527
        %v5586 = vpop.f32.mrf.mxu0
        %v5587 = vadd.f32 %v5447, %v5586
        %v5588 = vpop.f32.mrf.mxu0
        %v5589 = vadd.f32 %v5449, %v5588
        %5590 = vmatmul.bf16.gmra.mxu0 %v5530
        %v5591 = vpop.f32.mrf.mxu0
        %v5592 = vadd.f32 %v5452, %v5591
        %v5593 = vpop.f32.mrf.mxu0
        %v5594 = vadd.f32 %v5454, %v5593
        %5595 = vmatmul.bf16.gmra.mxu0 %v5533
        %v5596 = vpop.f32.mrf.mxu0
        %v5597 = vadd.f32 %v5457, %v5596
        %v5598 = vpop.f32.mrf.mxu0
        %v5599 = vadd.f32 %v5459, %v5598
        %5600 = vmatmul.bf16.gmra.mxu0 %v5536
        %v5601 = vpop.f32.mrf.mxu0
        %v5602 = vadd.f32 %v5462, %v5601
        %v5603 = vpop.f32.mrf.mxu0
        %v5604 = vadd.f32 %v5464, %v5603
        %5605 = vmatmul.bf16.gmra.mxu0 %v5539
        %v5606 = vpop.f32.mrf.mxu0
        %v5607 = vadd.f32 %v5467, %v5606
        %v5608 = vpop.f32.mrf.mxu0
        %v5609 = vadd.f32 %v5469, %v5608
        %5610 = vmatmul.bf16.gmra.mxu0 %v5542
        %v5611 = vpop.f32.mrf.mxu0
        %v5612 = vadd.f32 %v5472, %v5611
        %v5613 = vpop.f32.mrf.mxu0
        %v5614 = vadd.f32 %v5474, %v5613
        %5615 = vmatmul.bf16.gmra.mxu0 %v5545
        %v5616 = vpop.f32.mrf.mxu0
        %v5617 = vadd.f32 %v5477, %v5616
        %v5618 = vpop.f32.mrf.mxu0
        %v5619 = vadd.f32 %v5479, %v5618
        %5620 = vmatmul.bf16.gmra.mxu0 %v5548
        %v5621 = vpop.f32.mrf.mxu0
        %v5622 = vadd.f32 %v5482, %v5621
        %v5623 = vpop.f32.mrf.mxu0
        %v5624 = vadd.f32 %v5484, %v5623
        %5625 = vmatmul.bf16.gmra.mxu0 %v5551
        %v5626 = vpop.f32.mrf.mxu0
        %v5627 = vadd.f32 %v5487, %v5626
        %v5628 = vpop.f32.mrf.mxu0
        %v5629 = vadd.f32 %v5489, %v5628
        %5630 = vmatmul.bf16.gmra.mxu0 %v5554
        %v5631 = vpop.f32.mrf.mxu0
        %v5632 = vadd.f32 %v5492, %v5631
        %v5633 = vpop.f32.mrf.mxu0
        %v5634 = vadd.f32 %v5494, %v5633
        %5635 = vmatmul.bf16.gmra.mxu0 %v5557
        %v5636 = vpop.f32.mrf.mxu0
        %v5637 = vadd.f32 %v5497, %v5636
        %v5638 = vpop.f32.mrf.mxu0
        %v5639 = vadd.f32 %v5499, %v5638
        %5640 = vmatmul.bf16.gmra.mxu0 %v5560
        %v5641 = vpop.f32.mrf.mxu0
        %v5642 = vadd.f32 %v5502, %v5641
        %v5643 = vpop.f32.mrf.mxu0
        %v5644 = vadd.f32 %v5504, %v5643
        %5645 = vmatmul.bf16.gmra.mxu0 %v5563
        %v5646 = vpop.f32.mrf.mxu0
        %v5647 = vadd.f32 %v5507, %v5646
        %v5648 = vpop.f32.mrf.mxu0
        %v5649 = vadd.f32 %v5509, %v5648
        %5650 = vmatmul.bf16.gmra.mxu0 %v5566
        %v5651 = vpop.f32.mrf.mxu0
        %v5652 = vadd.f32 %v5512, %v5651
        %v5653 = vpop.f32.mrf.mxu0
        %v5654 = vadd.f32 %v5514, %v5653
        %5655 = vmatmul.bf16.gmra.mxu0 %v5569
        %v5656 = vpop.f32.mrf.mxu0
        %v5657 = vadd.f32 %v5517, %v5656
        %v5658 = vpop.f32.mrf.mxu0
        %v5659 = vadd.f32 %v5519, %v5658
        %5660 = vmatmul.bf16.gmra.mxu0 %v5572
        %v5661 = vpop.f32.mrf.mxu0
        %v5662 = vadd.f32 %v5522, %v5661
        %v5663 = vpop.f32.mrf.mxu0
        %v5664 = vadd.f32 %v5524, %v5663
        %5665 = vdwg.mxu0
        %v5666 = vrot.slane %v5334, 7
        %v5667 = vrot.slane %v5335, 7
        %v5668 = vrot.slane %v5336, 7
        %v5669 = vrot.slane %v5337, 7
        %v5670 = vrot.slane %v5338, 7
        %v5671 = vrot.slane %v5339, 7
        %v5672 = vrot.slane %v5340, 7
        %v5673 = vrot.slane %v5341, 7
        %v5674 = vrot.slane %v5342, 7
        %v5675 = vrot.slane %v5343, 7
        %v5676 = vrot.slane %v5344, 7
        %v5677 = vrot.slane %v5345, 7
        %v5678 = vrot.slane %v5346, 7
        %v5679 = vrot.slane %v5347, 7
        %v5680 = vrot.slane %v5348, 7
        %v5681 = vrot.slane %v5349, 7
        %v5682 = vrot.slane %v5350, 7
        %v5683 = vrot.slane %v5351, 7
        %v5684 = vrot.slane %v5352, 7
        %v5685 = vrot.slane %v5353, 7
        %v5686 = vrot.slane %v5354, 7
        %v5687 = vrot.slane %v5355, 7
        %v5688 = vrot.slane %v5356, 7
        %v5689 = vrot.slane %v5357, 7
        %v5690 = vrot.slane %v5358, 7
        %v5691 = vrot.slane %v5359, 7
        %v5692 = vrot.slane %v5360, 7
        %v5693 = vrot.slane %v5361, 7
        %v5694 = vrot.slane %v5362, 7
        %v5695 = vrot.slane %v5363, 7
        %v5696 = vrot.slane %v5364, 7
        %v5697 = vrot.slane %v5365, 7
        %v5698 = vsel %vm1183, %v5696, %v5697
        %v5699 = vsel %vm1183, %v5695, %v5696
        %v5700 = vsel %vm1183, %v5694, %v5695
        %v5701 = vsel %vm1183, %v5693, %v5694
        %v5702 = vsel %vm1183, %v5692, %v5693
        %v5703 = vsel %vm1183, %v5691, %v5692
        %v5704 = vsel %vm1183, %v5690, %v5691
        %v5705 = vsel %vm1183, %v5689, %v5690
        %v5706 = vsel %vm1183, %v5688, %v5689
        %v5707 = vsel %vm1183, %v5687, %v5688
        %v5708 = vsel %vm1183, %v5686, %v5687
        %v5709 = vsel %vm1183, %v5685, %v5686
        %v5710 = vsel %vm1183, %v5684, %v5685
        %v5711 = vsel %vm1183, %v5683, %v5684
        %v5712 = vsel %vm1183, %v5682, %v5683
        %v5713 = vsel %vm1183, %v5681, %v5682
        %v5714 = vsel %vm1183, %v5680, %v5681
        %v5715 = vsel %vm1183, %v5679, %v5680
        %v5716 = vsel %vm1183, %v5678, %v5679
        %v5717 = vsel %vm1183, %v5677, %v5678
        %v5718 = vsel %vm1183, %v5676, %v5677
        %v5719 = vsel %vm1183, %v5675, %v5676
        %v5720 = vsel %vm1183, %v5674, %v5675
        %v5721 = vsel %vm1183, %v5673, %v5674
        %v5722 = vsel %vm1183, %v5672, %v5673
        %v5723 = vsel %vm1183, %v5671, %v5672
        %v5724 = vsel %vm1183, %v5670, %v5671
        %v5725 = vsel %vm1183, %v5669, %v5670
        %v5726 = vsel %vm1183, %v5668, %v5669
        %v5727 = vsel %vm1183, %v5667, %v5668
        %v5728 = vsel %vm1183, %v5666, %v5667
        %v5729 = vsel %vm1183, %v5697, %v5666
        %v5730 = vadd.f32 %v5729, %v3395
        %v5731 = vadd.f32 %v5728, %v3400
        %v5732 = vadd.f32 %v5727, %v3405
        %v5733 = vadd.f32 %v5726, %v3410
        %v5734 = vadd.f32 %v5725, %v3415
        %v5735 = vadd.f32 %v5724, %v3420
        %v5736 = vadd.f32 %v5723, %v3425
        %v5737 = vadd.f32 %v5722, %v3430
        %v5738 = vadd.f32 %v5721, %v3435
        %v5739 = vadd.f32 %v5720, %v3440
        %v5740 = vadd.f32 %v5719, %v3445
        %v5741 = vadd.f32 %v5718, %v3450
        %v5742 = vadd.f32 %v5717, %v3455
        %v5743 = vadd.f32 %v5716, %v3460
        %v5744 = vadd.f32 %v5715, %v3465
        %v5745 = vadd.f32 %v5714, %v3470
        %v5746 = vadd.f32 %v5713, %v3475
        %v5747 = vadd.f32 %v5712, %v3480
        %v5748 = vadd.f32 %v5711, %v3485
        %v5749 = vadd.f32 %v5710, %v3490
        %v5750 = vadd.f32 %v5709, %v3495
        %v5751 = vadd.f32 %v5708, %v3500
        %v5752 = vadd.f32 %v5707, %v3505
        %v5753 = vadd.f32 %v5706, %v3510
        %v5754 = vadd.f32 %v5705, %v3515
        %v5755 = vadd.f32 %v5704, %v3520
        %v5756 = vadd.f32 %v5703, %v3525
        %v5757 = vadd.f32 %v5702, %v3530
        %v5758 = vadd.f32 %v5701, %v3535
        %v5759 = vadd.f32 %v5700, %v3540
        %v5760 = vadd.f32 %v5699, %v3545
        %v5761 = vadd.f32 %v5698, %v3550
        %v5762 = vmax.f32 %v5334, %v5730
        %v5763 = vmax.f32 %v5335, %v5731
        %v5764 = vmax.f32 %v5336, %v5732
        %v5765 = vmax.f32 %v5337, %v5733
        %v5766 = vmax.f32 %v5338, %v5734
        %v5767 = vmax.f32 %v5339, %v5735
        %v5768 = vmax.f32 %v5340, %v5736
        %v5769 = vmax.f32 %v5341, %v5737
        %v5770 = vmax.f32 %v5342, %v5738
        %v5771 = vmax.f32 %v5343, %v5739
        %v5772 = vmax.f32 %v5344, %v5740
        %v5773 = vmax.f32 %v5345, %v5741
        %v5774 = vmax.f32 %v5346, %v5742
        %v5775 = vmax.f32 %v5347, %v5743
        %v5776 = vmax.f32 %v5348, %v5744
        %v5777 = vmax.f32 %v5349, %v5745
        %v5778 = vmax.f32 %v5350, %v5746
        %v5779 = vmax.f32 %v5351, %v5747
        %v5780 = vmax.f32 %v5352, %v5748
        %v5781 = vmax.f32 %v5353, %v5749
        %v5782 = vmax.f32 %v5354, %v5750
        %v5783 = vmax.f32 %v5355, %v5751
        %v5784 = vmax.f32 %v5356, %v5752
        %v5785 = vmax.f32 %v5357, %v5753
        %v5786 = vmax.f32 %v5358, %v5754
        %v5787 = vmax.f32 %v5359, %v5755
        %v5788 = vmax.f32 %v5360, %v5756
        %v5789 = vmax.f32 %v5361, %v5757
        %v5790 = vmax.f32 %v5362, %v5758
        %v5791 = vmax.f32 %v5363, %v5759
        %v5792 = vmax.f32 %v5364, %v5760
        %v5793 = vmax.f32 %v5365, %v5761
        %v5794 = vrot.slane %v5334, 1
        %v5795 = vrot.slane %v5335, 1
        %v5796 = vrot.slane %v5336, 1
        %v5797 = vrot.slane %v5337, 1
        %v5798 = vrot.slane %v5338, 1
        %v5799 = vrot.slane %v5339, 1
        %v5800 = vrot.slane %v5340, 1
        %v5801 = vrot.slane %v5341, 1
        %v5802 = vrot.slane %v5342, 1
        %v5803 = vrot.slane %v5343, 1
        %v5804 = vrot.slane %v5344, 1
        %v5805 = vrot.slane %v5345, 1
        %v5806 = vrot.slane %v5346, 1
        %v5807 = vrot.slane %v5347, 1
        %v5808 = vrot.slane %v5348, 1
        %v5809 = vrot.slane %v5349, 1
        %v5810 = vrot.slane %v5350, 1
        %v5811 = vrot.slane %v5351, 1
        %v5812 = vrot.slane %v5352, 1
        %v5813 = vrot.slane %v5353, 1
        %v5814 = vrot.slane %v5354, 1
        %v5815 = vrot.slane %v5355, 1
        %v5816 = vrot.slane %v5356, 1
        %v5817 = vrot.slane %v5357, 1
        %v5818 = vrot.slane %v5358, 1
        %v5819 = vrot.slane %v5359, 1
        %v5820 = vrot.slane %v5360, 1
        %v5821 = vrot.slane %v5361, 1
        %v5822 = vrot.slane %v5362, 1
        %v5823 = vrot.slane %v5363, 1
        %v5824 = vrot.slane %v5364, 1
        %v5825 = vrot.slane %v5365, 1
        %v5826 = vsel %vm1568, %v5824, %v5825
        %v5827 = vsel %vm1568, %v5823, %v5824
        %v5828 = vsel %vm1568, %v5822, %v5823
        %v5829 = vsel %vm1568, %v5821, %v5822
        %v5830 = vsel %vm1568, %v5820, %v5821
        %v5831 = vsel %vm1568, %v5819, %v5820
        %v5832 = vsel %vm1568, %v5818, %v5819
        %v5833 = vsel %vm1568, %v5817, %v5818
        %v5834 = vsel %vm1568, %v5816, %v5817
        %v5835 = vsel %vm1568, %v5815, %v5816
        %v5836 = vsel %vm1568, %v5814, %v5815
        %v5837 = vsel %vm1568, %v5813, %v5814
        %v5838 = vsel %vm1568, %v5812, %v5813
        %v5839 = vsel %vm1568, %v5811, %v5812
        %v5840 = vsel %vm1568, %v5810, %v5811
        %v5841 = vsel %vm1568, %v5809, %v5810
        %v5842 = vsel %vm1568, %v5808, %v5809
        %v5843 = vsel %vm1568, %v5807, %v5808
        %v5844 = vsel %vm1568, %v5806, %v5807
        %v5845 = vsel %vm1568, %v5805, %v5806
        %v5846 = vsel %vm1568, %v5804, %v5805
        %v5847 = vsel %vm1568, %v5803, %v5804
        %v5848 = vsel %vm1568, %v5802, %v5803
        %v5849 = vsel %vm1568, %v5801, %v5802
        %v5850 = vsel %vm1568, %v5800, %v5801
        %v5851 = vsel %vm1568, %v5799, %v5800
        %v5852 = vsel %vm1568, %v5798, %v5799
        %v5853 = vsel %vm1568, %v5797, %v5798
        %v5854 = vsel %vm1568, %v5796, %v5797
        %v5855 = vsel %vm1568, %v5795, %v5796
        %v5856 = vsel %vm1568, %v5794, %v5795
        %v5857 = vsel %vm1568, %v5825, %v5794
        %v5858 = vadd.f32 %v5856, %v3683
        %v5859 = vadd.f32 %v5855, %v3688
        %v5860 = vadd.f32 %v5854, %v3693
        %v5861 = vadd.f32 %v5853, %v3698
        %v5862 = vadd.f32 %v5852, %v3703
        %v5863 = vadd.f32 %v5851, %v3708
        %v5864 = vadd.f32 %v5850, %v3713
        %v5865 = vadd.f32 %v5849, %v3718
        %v5866 = vadd.f32 %v5848, %v3723
        %v5867 = vadd.f32 %v5847, %v3728
        %v5868 = vadd.f32 %v5846, %v3733
        %v5869 = vadd.f32 %v5845, %v3738
        %v5870 = vadd.f32 %v5844, %v3743
        %v5871 = vadd.f32 %v5843, %v3748
        %v5872 = vadd.f32 %v5842, %v3753
        %v5873 = vadd.f32 %v5841, %v3758
        %v5874 = vadd.f32 %v5840, %v3763
        %v5875 = vadd.f32 %v5839, %v3768
        %v5876 = vadd.f32 %v5838, %v3773
        %v5877 = vadd.f32 %v5837, %v3778
        %v5878 = vadd.f32 %v5836, %v3783
        %v5879 = vadd.f32 %v5835, %v3788
        %v5880 = vadd.f32 %v5834, %v3793
        %v5881 = vadd.f32 %v5833, %v3798
        %v5882 = vadd.f32 %v5832, %v3803
        %v5883 = vadd.f32 %v5831, %v3808
        %v5884 = vadd.f32 %v5830, %v3813
        %v5885 = vadd.f32 %v5829, %v3818
        %v5886 = vadd.f32 %v5828, %v3823
        %v5887 = vadd.f32 %v5827, %v3828
        %v5888 = vadd.f32 %v5826, %v3833
        %v5889 = vadd.f32 %v5857, %v3838
        %v5890 = vmax.f32 %v5762, %v5858
        %v5891 = vmax.f32 %v5763, %v5859
        %v5892 = vmax.f32 %v5764, %v5860
        %v5893 = vmax.f32 %v5765, %v5861
        %v5894 = vmax.f32 %v5766, %v5862
        %v5895 = vmax.f32 %v5767, %v5863
        %v5896 = vmax.f32 %v5768, %v5864
        %v5897 = vmax.f32 %v5769, %v5865
        %v5898 = vmax.f32 %v5770, %v5866
        %v5899 = vmax.f32 %v5771, %v5867
        %v5900 = vmax.f32 %v5772, %v5868
        %v5901 = vmax.f32 %v5773, %v5869
        %v5902 = vmax.f32 %v5774, %v5870
        %v5903 = vmax.f32 %v5775, %v5871
        %v5904 = vmax.f32 %v5776, %v5872
        %v5905 = vmax.f32 %v5777, %v5873
        %v5906 = vmax.f32 %v5778, %v5874
        %v5907 = vmax.f32 %v5779, %v5875
        %v5908 = vmax.f32 %v5780, %v5876
        %v5909 = vmax.f32 %v5781, %v5877
        %v5910 = vmax.f32 %v5782, %v5878
        %v5911 = vmax.f32 %v5783, %v5879
        %v5912 = vmax.f32 %v5784, %v5880
        %v5913 = vmax.f32 %v5785, %v5881
        %v5914 = vmax.f32 %v5786, %v5882
        %v5915 = vmax.f32 %v5787, %v5883
        %v5916 = vmax.f32 %v5788, %v5884
        %v5917 = vmax.f32 %v5789, %v5885
        %v5918 = vmax.f32 %v5790, %v5886
        %v5919 = vmax.f32 %v5791, %v5887
        %v5920 = vmax.f32 %v5792, %v5888
        %v5921 = vmax.f32 %v5793, %v5889
        %v5922 = vrot.slane %v5334, 6
        %v5923 = vrot.slane %v5335, 6
        %v5924 = vrot.slane %v5336, 6
        %v5925 = vrot.slane %v5337, 6
        %v5926 = vrot.slane %v5338, 6
        %v5927 = vrot.slane %v5339, 6
        %v5928 = vrot.slane %v5340, 6
        %v5929 = vrot.slane %v5341, 6
        %v5930 = vrot.slane %v5342, 6
        %v5931 = vrot.slane %v5343, 6
        %v5932 = vrot.slane %v5344, 6
        %v5933 = vrot.slane %v5345, 6
        %v5934 = vrot.slane %v5346, 6
        %v5935 = vrot.slane %v5347, 6
        %v5936 = vrot.slane %v5348, 6
        %v5937 = vrot.slane %v5349, 6
        %v5938 = vrot.slane %v5350, 6
        %v5939 = vrot.slane %v5351, 6
        %v5940 = vrot.slane %v5352, 6
        %v5941 = vrot.slane %v5353, 6
        %v5942 = vrot.slane %v5354, 6
        %v5943 = vrot.slane %v5355, 6
        %v5944 = vrot.slane %v5356, 6
        %v5945 = vrot.slane %v5357, 6
        %v5946 = vrot.slane %v5358, 6
        %v5947 = vrot.slane %v5359, 6
        %v5948 = vrot.slane %v5360, 6
        %v5949 = vrot.slane %v5361, 6
        %v5950 = vrot.slane %v5362, 6
        %v5951 = vrot.slane %v5363, 6
        %v5952 = vrot.slane %v5364, 6
        %v5953 = vrot.slane %v5365, 6
        %v5954 = vsel %vm1953, %v5952, %v5953
        %v5955 = vsel %vm1953, %v5951, %v5952
        %v5956 = vsel %vm1953, %v5950, %v5951
        %v5957 = vsel %vm1953, %v5949, %v5950
        %v5958 = vsel %vm1953, %v5948, %v5949
        %v5959 = vsel %vm1953, %v5947, %v5948
        %v5960 = vsel %vm1953, %v5946, %v5947
        %v5961 = vsel %vm1953, %v5945, %v5946
        %v5962 = vsel %vm1953, %v5944, %v5945
        %v5963 = vsel %vm1953, %v5943, %v5944
        %v5964 = vsel %vm1953, %v5942, %v5943
        %v5965 = vsel %vm1953, %v5941, %v5942
        %v5966 = vsel %vm1953, %v5940, %v5941
        %v5967 = vsel %vm1953, %v5939, %v5940
        %v5968 = vsel %vm1953, %v5938, %v5939
        %v5969 = vsel %vm1953, %v5937, %v5938
        %v5970 = vsel %vm1953, %v5936, %v5937
        %v5971 = vsel %vm1953, %v5935, %v5936
        %v5972 = vsel %vm1953, %v5934, %v5935
        %v5973 = vsel %vm1953, %v5933, %v5934
        %v5974 = vsel %vm1953, %v5932, %v5933
        %v5975 = vsel %vm1953, %v5931, %v5932
        %v5976 = vsel %vm1953, %v5930, %v5931
        %v5977 = vsel %vm1953, %v5929, %v5930
        %v5978 = vsel %vm1953, %v5928, %v5929
        %v5979 = vsel %vm1953, %v5927, %v5928
        %v5980 = vsel %vm1953, %v5926, %v5927
        %v5981 = vsel %vm1953, %v5925, %v5926
        %v5982 = vsel %vm1953, %v5924, %v5925
        %v5983 = vsel %vm1953, %v5923, %v5924
        %v5984 = vsel %vm1953, %v5922, %v5923
        %v5985 = vsel %vm1953, %v5953, %v5922
        %v5986 = vadd.f32 %v5985, %v3971
        %v5987 = vadd.f32 %v5984, %v3976
        %v5988 = vadd.f32 %v5983, %v3981
        %v5989 = vadd.f32 %v5982, %v3986
        %v5990 = vadd.f32 %v5981, %v3991
        %v5991 = vadd.f32 %v5980, %v3996
        %v5992 = vadd.f32 %v5979, %v4001
        %v5993 = vadd.f32 %v5978, %v4006
        %v5994 = vadd.f32 %v5977, %v4011
        %v5995 = vadd.f32 %v5976, %v4016
        %v5996 = vadd.f32 %v5975, %v4021
        %v5997 = vadd.f32 %v5974, %v4026
        %v5998 = vadd.f32 %v5973, %v4031
        %v5999 = vadd.f32 %v5972, %v4036
        %v6000 = vadd.f32 %v5971, %v4041
        %v6001 = vadd.f32 %v5970, %v4046
        %v6002 = vadd.f32 %v5969, %v4051
        %v6003 = vadd.f32 %v5968, %v4056
        %v6004 = vadd.f32 %v5967, %v4061
        %v6005 = vadd.f32 %v5966, %v4066
        %v6006 = vadd.f32 %v5965, %v4071
        %v6007 = vadd.f32 %v5964, %v4076
        %v6008 = vadd.f32 %v5963, %v4081
        %v6009 = vadd.f32 %v5962, %v4086
        %v6010 = vadd.f32 %v5961, %v4091
        %v6011 = vadd.f32 %v5960, %v4096
        %v6012 = vadd.f32 %v5959, %v4101
        %v6013 = vadd.f32 %v5958, %v4106
        %v6014 = vadd.f32 %v5957, %v4111
        %v6015 = vadd.f32 %v5956, %v4116
        %v6016 = vadd.f32 %v5955, %v4121
        %v6017 = vadd.f32 %v5954, %v4126
        %v6018 = vmax.f32 %v5890, %v5986
        %v6019 = vmax.f32 %v5891, %v5987
        %v6020 = vmax.f32 %v5892, %v5988
        %v6021 = vmax.f32 %v5893, %v5989
        %v6022 = vmax.f32 %v5894, %v5990
        %v6023 = vmax.f32 %v5895, %v5991
        %v6024 = vmax.f32 %v5896, %v5992
        %v6025 = vmax.f32 %v5897, %v5993
        %v6026 = vmax.f32 %v5898, %v5994
        %v6027 = vmax.f32 %v5899, %v5995
        %v6028 = vmax.f32 %v5900, %v5996
        %v6029 = vmax.f32 %v5901, %v5997
        %v6030 = vmax.f32 %v5902, %v5998
        %v6031 = vmax.f32 %v5903, %v5999
        %v6032 = vmax.f32 %v5904, %v6000
        %v6033 = vmax.f32 %v5905, %v6001
        %v6034 = vmax.f32 %v5906, %v6002
        %v6035 = vmax.f32 %v5907, %v6003
        %v6036 = vmax.f32 %v5908, %v6004
        %v6037 = vmax.f32 %v5909, %v6005
        %v6038 = vmax.f32 %v5910, %v6006
        %v6039 = vmax.f32 %v5911, %v6007
        %v6040 = vmax.f32 %v5912, %v6008
        %v6041 = vmax.f32 %v5913, %v6009
        %v6042 = vmax.f32 %v5914, %v6010
        %v6043 = vmax.f32 %v5915, %v6011
        %v6044 = vmax.f32 %v5916, %v6012
        %v6045 = vmax.f32 %v5917, %v6013
        %v6046 = vmax.f32 %v5918, %v6014
        %v6047 = vmax.f32 %v5919, %v6015
        %v6048 = vmax.f32 %v5920, %v6016
        %v6049 = vmax.f32 %v5921, %v6017
        %v6050 = vrot.slane %v5334, 2
        %v6051 = vrot.slane %v5335, 2
        %v6052 = vrot.slane %v5336, 2
        %v6053 = vrot.slane %v5337, 2
        %v6054 = vrot.slane %v5338, 2
        %v6055 = vrot.slane %v5339, 2
        %v6056 = vrot.slane %v5340, 2
        %v6057 = vrot.slane %v5341, 2
        %v6058 = vrot.slane %v5342, 2
        %v6059 = vrot.slane %v5343, 2
        %v6060 = vrot.slane %v5344, 2
        %v6061 = vrot.slane %v5345, 2
        %v6062 = vrot.slane %v5346, 2
        %v6063 = vrot.slane %v5347, 2
        %v6064 = vrot.slane %v5348, 2
        %v6065 = vrot.slane %v5349, 2
        %v6066 = vrot.slane %v5350, 2
        %v6067 = vrot.slane %v5351, 2
        %v6068 = vrot.slane %v5352, 2
        %v6069 = vrot.slane %v5353, 2
        %v6070 = vrot.slane %v5354, 2
        %v6071 = vrot.slane %v5355, 2
        %v6072 = vrot.slane %v5356, 2
        %v6073 = vrot.slane %v5357, 2
        %v6074 = vrot.slane %v5358, 2
        %v6075 = vrot.slane %v5359, 2
        %v6076 = vrot.slane %v5360, 2
        %v6077 = vrot.slane %v5361, 2
        %v6078 = vrot.slane %v5362, 2
        %v6079 = vrot.slane %v5363, 2
        %v6080 = vrot.slane %v5364, 2
        %v6081 = vrot.slane %v5365, 2
        %v6082 = vsel %vm2338, %v6080, %v6081
        %v6083 = vsel %vm2338, %v6079, %v6080
        %v6084 = vsel %vm2338, %v6078, %v6079
        %v6085 = vsel %vm2338, %v6077, %v6078
        %v6086 = vsel %vm2338, %v6076, %v6077
        %v6087 = vsel %vm2338, %v6075, %v6076
        %v6088 = vsel %vm2338, %v6074, %v6075
        %v6089 = vsel %vm2338, %v6073, %v6074
        %v6090 = vsel %vm2338, %v6072, %v6073
        %v6091 = vsel %vm2338, %v6071, %v6072
        %v6092 = vsel %vm2338, %v6070, %v6071
        %v6093 = vsel %vm2338, %v6069, %v6070
        %v6094 = vsel %vm2338, %v6068, %v6069
        %v6095 = vsel %vm2338, %v6067, %v6068
        %v6096 = vsel %vm2338, %v6066, %v6067
        %v6097 = vsel %vm2338, %v6065, %v6066
        %v6098 = vsel %vm2338, %v6064, %v6065
        %v6099 = vsel %vm2338, %v6063, %v6064
        %v6100 = vsel %vm2338, %v6062, %v6063
        %v6101 = vsel %vm2338, %v6061, %v6062
        %v6102 = vsel %vm2338, %v6060, %v6061
        %v6103 = vsel %vm2338, %v6059, %v6060
        %v6104 = vsel %vm2338, %v6058, %v6059
        %v6105 = vsel %vm2338, %v6057, %v6058
        %v6106 = vsel %vm2338, %v6056, %v6057
        %v6107 = vsel %vm2338, %v6055, %v6056
        %v6108 = vsel %vm2338, %v6054, %v6055
        %v6109 = vsel %vm2338, %v6053, %v6054
        %v6110 = vsel %vm2338, %v6052, %v6053
        %v6111 = vsel %vm2338, %v6051, %v6052
        %v6112 = vsel %vm2338, %v6050, %v6051
        %v6113 = vsel %vm2338, %v6081, %v6050
        %v6114 = vadd.f32 %v6112, %v4259
        %v6115 = vadd.f32 %v6111, %v4264
        %v6116 = vadd.f32 %v6110, %v4269
        %v6117 = vadd.f32 %v6109, %v4274
        %v6118 = vadd.f32 %v6108, %v4279
        %v6119 = vadd.f32 %v6107, %v4284
        %v6120 = vadd.f32 %v6106, %v4289
        %v6121 = vadd.f32 %v6105, %v4294
        %v6122 = vadd.f32 %v6104, %v4299
        %v6123 = vadd.f32 %v6103, %v4304
        %v6124 = vadd.f32 %v6102, %v4309
        %v6125 = vadd.f32 %v6101, %v4314
        %v6126 = vadd.f32 %v6100, %v4319
        %v6127 = vadd.f32 %v6099, %v4324
        %v6128 = vadd.f32 %v6098, %v4329
        %v6129 = vadd.f32 %v6097, %v4334
        %v6130 = vadd.f32 %v6096, %v4339
        %v6131 = vadd.f32 %v6095, %v4344
        %v6132 = vadd.f32 %v6094, %v4349
        %v6133 = vadd.f32 %v6093, %v4354
        %v6134 = vadd.f32 %v6092, %v4359
        %v6135 = vadd.f32 %v6091, %v4364
        %v6136 = vadd.f32 %v6090, %v4369
        %v6137 = vadd.f32 %v6089, %v4374
        %v6138 = vadd.f32 %v6088, %v4379
        %v6139 = vadd.f32 %v6087, %v4384
        %v6140 = vadd.f32 %v6086, %v4389
        %v6141 = vadd.f32 %v6085, %v4394
        %v6142 = vadd.f32 %v6084, %v4399
        %v6143 = vadd.f32 %v6083, %v4404
        %v6144 = vadd.f32 %v6082, %v4409
        %v6145 = vadd.f32 %v6113, %v4414
        %v6146 = vmax.f32 %v6018, %v6114
        %v6147 = vmax.f32 %v6019, %v6115
        %v6148 = vmax.f32 %v6020, %v6116
        %v6149 = vmax.f32 %v6021, %v6117
        %v6150 = vmax.f32 %v6022, %v6118
        %v6151 = vmax.f32 %v6023, %v6119
        %v6152 = vmax.f32 %v6024, %v6120
        %v6153 = vmax.f32 %v6025, %v6121
        %v6154 = vmax.f32 %v6026, %v6122
        %v6155 = vmax.f32 %v6027, %v6123
        %v6156 = vmax.f32 %v6028, %v6124
        %v6157 = vmax.f32 %v6029, %v6125
        %v6158 = vmax.f32 %v6030, %v6126
        %v6159 = vmax.f32 %v6031, %v6127
        %v6160 = vmax.f32 %v6032, %v6128
        %v6161 = vmax.f32 %v6033, %v6129
        %v6162 = vmax.f32 %v6034, %v6130
        %v6163 = vmax.f32 %v6035, %v6131
        %v6164 = vmax.f32 %v6036, %v6132
        %v6165 = vmax.f32 %v6037, %v6133
        %v6166 = vmax.f32 %v6038, %v6134
        %v6167 = vmax.f32 %v6039, %v6135
        %v6168 = vmax.f32 %v6040, %v6136
        %v6169 = vmax.f32 %v6041, %v6137
        %v6170 = vmax.f32 %v6042, %v6138
        %v6171 = vmax.f32 %v6043, %v6139
        %v6172 = vmax.f32 %v6044, %v6140
        %v6173 = vmax.f32 %v6045, %v6141
        %v6174 = vmax.f32 %v6046, %v6142
        %v6175 = vmax.f32 %v6047, %v6143
        %v6176 = vmax.f32 %v6048, %v6144
        %v6177 = vmax.f32 %v6049, %v6145
        %v6178 = vadd.f32 %v6176, %v4483
        %v6179 = vadd.f32 %v6177, %v4488
        %v6180 = vadd.f32 %v6146, %v4493
        %v6181 = vadd.f32 %v6147, %v4498
        %v6182 = vadd.f32 %v6148, %v4503
        %v6183 = vadd.f32 %v6149, %v4508
        %v6184 = vadd.f32 %v6150, %v4513
        %v6185 = vadd.f32 %v6151, %v4518
        %v6186 = vadd.f32 %v6152, %v4523
        %v6187 = vadd.f32 %v6153, %v4528
        %v6188 = vadd.f32 %v6154, %v4533
        %v6189 = vadd.f32 %v6155, %v4538
        %v6190 = vadd.f32 %v6156, %v4543
        %v6191 = vadd.f32 %v6157, %v4548
        %v6192 = vadd.f32 %v6158, %v4553
        %v6193 = vadd.f32 %v6159, %v4558
        %v6194 = vadd.f32 %v6160, %v4563
        %v6195 = vadd.f32 %v6161, %v4568
        %v6196 = vadd.f32 %v6162, %v4573
        %v6197 = vadd.f32 %v6163, %v4578
        %v6198 = vadd.f32 %v6164, %v4583
        %v6199 = vadd.f32 %v6165, %v4588
        %v6200 = vadd.f32 %v6166, %v4593
        %v6201 = vadd.f32 %v6167, %v4598
        %v6202 = vadd.f32 %v6168, %v4603
        %v6203 = vadd.f32 %v6169, %v4608
        %v6204 = vadd.f32 %v6170, %v4613
        %v6205 = vadd.f32 %v6171, %v4618
        %v6206 = vadd.f32 %v6172, %v4623
        %v6207 = vadd.f32 %v6173, %v4628
        %v6208 = vadd.f32 %v6174, %v4633
        %v6209 = vadd.f32 %v6175, %v4638
        %v6210 = vmax.f32 %v6146, %v6178
        %v6211 = vmax.f32 %v6147, %v6179
        %v6212 = vmax.f32 %v6148, %v6180
        %v6213 = vmax.f32 %v6149, %v6181
        %v6214 = vmax.f32 %v6150, %v6182
        %v6215 = vmax.f32 %v6151, %v6183
        %v6216 = vmax.f32 %v6152, %v6184
        %v6217 = vmax.f32 %v6153, %v6185
        %v6218 = vmax.f32 %v6154, %v6186
        %v6219 = vmax.f32 %v6155, %v6187
        %v6220 = vmax.f32 %v6156, %v6188
        %v6221 = vmax.f32 %v6157, %v6189
        %v6222 = vmax.f32 %v6158, %v6190
        %v6223 = vmax.f32 %v6159, %v6191
        %v6224 = vmax.f32 %v6160, %v6192
        %v6225 = vmax.f32 %v6161, %v6193
        %v6226 = vmax.f32 %v6162, %v6194
        %v6227 = vmax.f32 %v6163, %v6195
        %v6228 = vmax.f32 %v6164, %v6196
        %v6229 = vmax.f32 %v6165, %v6197
        %v6230 = vmax.f32 %v6166, %v6198
        %v6231 = vmax.f32 %v6167, %v6199
        %v6232 = vmax.f32 %v6168, %v6200
        %v6233 = vmax.f32 %v6169, %v6201
        %v6234 = vmax.f32 %v6170, %v6202
        %v6235 = vmax.f32 %v6171, %v6203
        %v6236 = vmax.f32 %v6172, %v6204
        %v6237 = vmax.f32 %v6173, %v6205
        %v6238 = vmax.f32 %v6174, %v6206
        %v6239 = vmax.f32 %v6175, %v6207
        %v6240 = vmax.f32 %v6176, %v6208
        %v6241 = vmax.f32 %v6177, %v6209
        %v6242 = vadd.f32 %v6148, %v4707
        %v6243 = vadd.f32 %v6149, %v4712
        %v6244 = vadd.f32 %v6150, %v4717
        %v6245 = vadd.f32 %v6151, %v4722
        %v6246 = vadd.f32 %v6152, %v4727
        %v6247 = vadd.f32 %v6153, %v4732
        %v6248 = vadd.f32 %v6154, %v4737
        %v6249 = vadd.f32 %v6155, %v4742
        %v6250 = vadd.f32 %v6156, %v4747
        %v6251 = vadd.f32 %v6157, %v4752
        %v6252 = vadd.f32 %v6158, %v4757
        %v6253 = vadd.f32 %v6159, %v4762
        %v6254 = vadd.f32 %v6160, %v4767
        %v6255 = vadd.f32 %v6161, %v4772
        %v6256 = vadd.f32 %v6162, %v4777
        %v6257 = vadd.f32 %v6163, %v4782
        %v6258 = vadd.f32 %v6164, %v4787
        %v6259 = vadd.f32 %v6165, %v4792
        %v6260 = vadd.f32 %v6166, %v4797
        %v6261 = vadd.f32 %v6167, %v4802
        %v6262 = vadd.f32 %v6168, %v4807
        %v6263 = vadd.f32 %v6169, %v4812
        %v6264 = vadd.f32 %v6170, %v4817
        %v6265 = vadd.f32 %v6171, %v4822
        %v6266 = vadd.f32 %v6172, %v4827
        %v6267 = vadd.f32 %v6173, %v4832
        %v6268 = vadd.f32 %v6174, %v4837
        %v6269 = vadd.f32 %v6175, %v4842
        %v6270 = vadd.f32 %v6176, %v4847
        %v6271 = vadd.f32 %v6177, %v4852
        %v6272 = vadd.f32 %v6146, %v4857
        %v6273 = vadd.f32 %v6147, %v4862
        %v6274 = vmax.f32 %v6210, %v6242
        %v6275 = vmax.f32 %v6211, %v6243
        %v6276 = vmax.f32 %v6212, %v6244
        %v6277 = vmax.f32 %v6213, %v6245
        %v6278 = vmax.f32 %v6214, %v6246
        %v6279 = vmax.f32 %v6215, %v6247
        %v6280 = vmax.f32 %v6216, %v6248
        %v6281 = vmax.f32 %v6217, %v6249
        %v6282 = vmax.f32 %v6218, %v6250
        %v6283 = vmax.f32 %v6219, %v6251
        %v6284 = vmax.f32 %v6220, %v6252
        %v6285 = vmax.f32 %v6221, %v6253
        %v6286 = vmax.f32 %v6222, %v6254
        %v6287 = vmax.f32 %v6223, %v6255
        %v6288 = vmax.f32 %v6224, %v6256
        %v6289 = vmax.f32 %v6225, %v6257
        %v6290 = vmax.f32 %v6226, %v6258
        %v6291 = vmax.f32 %v6227, %v6259
        %v6292 = vmax.f32 %v6228, %v6260
        %v6293 = vmax.f32 %v6229, %v6261
        %v6294 = vmax.f32 %v6230, %v6262
        %v6295 = vmax.f32 %v6231, %v6263
        %v6296 = vmax.f32 %v6232, %v6264
        %v6297 = vmax.f32 %v6233, %v6265
        %v6298 = vmax.f32 %v6234, %v6266
        %v6299 = vmax.f32 %v6235, %v6267
        %v6300 = vmax.f32 %v6236, %v6268
        %v6301 = vmax.f32 %v6237, %v6269
        %v6302 = vmax.f32 %v6238, %v6270
        %v6303 = vmax.f32 %v6239, %v6271
        %v6304 = vmax.f32 %v6240, %v6272
        %v6305 = vmax.f32 %v6241, %v6273
        %v6306 = vadd.f32 %v6174, %v4483
        %v6307 = vadd.f32 %v6175, %v4931
        %v6308 = vadd.f32 %v6176, %v4936
        %v6309 = vadd.f32 %v6177, %v4941
        %v6310 = vadd.f32 %v6146, %v4946
        %v6311 = vadd.f32 %v6147, %v4951
        %v6312 = vadd.f32 %v6148, %v4956
        %v6313 = vadd.f32 %v6149, %v4961
        %v6314 = vadd.f32 %v6150, %v4966
        %v6315 = vadd.f32 %v6151, %v4971
        %v6316 = vadd.f32 %v6152, %v4976
        %v6317 = vadd.f32 %v6153, %v4981
        %v6318 = vadd.f32 %v6154, %v4986
        %v6319 = vadd.f32 %v6155, %v4991
        %v6320 = vadd.f32 %v6156, %v4996
        %v6321 = vadd.f32 %v6157, %v5001
        %v6322 = vadd.f32 %v6158, %v5006
        %v6323 = vadd.f32 %v6159, %v5011
        %v6324 = vadd.f32 %v6160, %v5016
        %v6325 = vadd.f32 %v6161, %v5021
        %v6326 = vadd.f32 %v6162, %v5026
        %v6327 = vadd.f32 %v6163, %v5031
        %v6328 = vadd.f32 %v6164, %v5036
        %v6329 = vadd.f32 %v6165, %v5041
        %v6330 = vadd.f32 %v6166, %v5046
        %v6331 = vadd.f32 %v6167, %v5051
        %v6332 = vadd.f32 %v6168, %v5056
        %v6333 = vadd.f32 %v6169, %v5061
        %v6334 = vadd.f32 %v6170, %v5066
        %v6335 = vadd.f32 %v6171, %v5071
        %v6336 = vadd.f32 %v6172, %v5076
        %v6337 = vadd.f32 %v6173, %v5081
        %v6338 = vmax.f32 %v6274, %v6306
        %v6339 = vmax.f32 %v6275, %v6307
        %v6340 = vmax.f32 %v6276, %v6308
        %v6341 = vmax.f32 %v6277, %v6309
        %v6342 = vmax.f32 %v6278, %v6310
        %v6343 = vmax.f32 %v6279, %v6311
        %v6344 = vmax.f32 %v6280, %v6312
        %v6345 = vmax.f32 %v6281, %v6313
        %v6346 = vmax.f32 %v6282, %v6314
        %v6347 = vmax.f32 %v6283, %v6315
        %v6348 = vmax.f32 %v6284, %v6316
        %v6349 = vmax.f32 %v6285, %v6317
        %v6350 = vmax.f32 %v6286, %v6318
        %v6351 = vmax.f32 %v6287, %v6319
        %v6352 = vmax.f32 %v6288, %v6320
        %v6353 = vmax.f32 %v6289, %v6321
        %v6354 = vmax.f32 %v6290, %v6322
        %v6355 = vmax.f32 %v6291, %v6323
        %v6356 = vmax.f32 %v6292, %v6324
        %v6357 = vmax.f32 %v6293, %v6325
        %v6358 = vmax.f32 %v6294, %v6326
        %v6359 = vmax.f32 %v6295, %v6327
        %v6360 = vmax.f32 %v6296, %v6328
        %v6361 = vmax.f32 %v6297, %v6329
        %v6362 = vmax.f32 %v6298, %v6330
        %v6363 = vmax.f32 %v6299, %v6331
        %v6364 = vmax.f32 %v6300, %v6332
        %v6365 = vmax.f32 %v6301, %v6333
        %v6366 = vmax.f32 %v6302, %v6334
        %v6367 = vmax.f32 %v6303, %v6335
        %v6368 = vmax.f32 %v6304, %v6336
        %v6369 = vmax.f32 %v6305, %v6337
        %v6370 = vadd.f32 %v6150, %v4707
        %v6371 = vadd.f32 %v6151, %v5150
        %v6372 = vadd.f32 %v6152, %v5155
        %v6373 = vadd.f32 %v6153, %v5160
        %v6374 = vadd.f32 %v6154, %v5165
        %v6375 = vadd.f32 %v6155, %v5170
        %v6376 = vadd.f32 %v6156, %v5175
        %v6377 = vadd.f32 %v6157, %v5180
        %v6378 = vadd.f32 %v6158, %v5185
        %v6379 = vadd.f32 %v6159, %v5190
        %v6380 = vadd.f32 %v6160, %v5195
        %v6381 = vadd.f32 %v6161, %v5200
        %v6382 = vadd.f32 %v6162, %v5205
        %v6383 = vadd.f32 %v6163, %v5210
        %v6384 = vadd.f32 %v6164, %v5215
        %v6385 = vadd.f32 %v6165, %v5220
        %v6386 = vadd.f32 %v6166, %v5225
        %v6387 = vadd.f32 %v6167, %v5230
        %v6388 = vadd.f32 %v6168, %v5235
        %v6389 = vadd.f32 %v6169, %v5240
        %v6390 = vadd.f32 %v6170, %v5245
        %v6391 = vadd.f32 %v6171, %v5250
        %v6392 = vadd.f32 %v6172, %v5255
        %v6393 = vadd.f32 %v6173, %v5260
        %v6394 = vadd.f32 %v6174, %v5265
        %v6395 = vadd.f32 %v6175, %v5270
        %v6396 = vadd.f32 %v6176, %v5275
        %v6397 = vadd.f32 %v6177, %v5280
        %v6398 = vadd.f32 %v6146, %v5285
        %v6399 = vadd.f32 %v6147, %v5290
        %v6400 = vadd.f32 %v6148, %v5295
        %v6401 = vadd.f32 %v6149, %v5300
        %v6402 = vmax.f32 %v6338, %v6370
        %v6403 = vmax.f32 %v6339, %v6371
        %v6404 = vmax.f32 %v6340, %v6372
        %v6405 = vmax.f32 %v6341, %v6373
        %v6406 = vmax.f32 %v6342, %v6374
        %v6407 = vmax.f32 %v6343, %v6375
        %v6408 = vmax.f32 %v6344, %v6376
        %v6409 = vmax.f32 %v6345, %v6377
        %v6410 = vmax.f32 %v6346, %v6378
        %v6411 = vmax.f32 %v6347, %v6379
        %v6412 = vmax.f32 %v6348, %v6380
        %v6413 = vmax.f32 %v6349, %v6381
        %v6414 = vmax.f32 %v6350, %v6382
        %v6415 = vmax.f32 %v6351, %v6383
        %v6416 = vmax.f32 %v6352, %v6384
        %v6417 = vmax.f32 %v6353, %v6385
        %v6418 = vmax.f32 %v6354, %v6386
        %v6419 = vmax.f32 %v6355, %v6387
        %v6420 = vmax.f32 %v6356, %v6388
        %v6421 = vmax.f32 %v6357, %v6389
        %v6422 = vmax.f32 %v6358, %v6390
        %v6423 = vmax.f32 %v6359, %v6391
        %v6424 = vmax.f32 %v6360, %v6392
        %v6425 = vmax.f32 %v6361, %v6393
        %v6426 = vmax.f32 %v6362, %v6394
        %v6427 = vmax.f32 %v6363, %v6395
        %v6428 = vmax.f32 %v6364, %v6396
        %v6429 = vmax.f32 %v6365, %v6397
        %v6430 = vmax.f32 %v6366, %v6398
        %v6431 = vmax.f32 %v6367, %v6399
        %v6432 = vmax.f32 %v6368, %v6400
        %v6433 = vmax.f32 %v6369, %v6401
        %v6434 = vpack.c.bf16 %v6403, %v6402
        %v6435 = vpack.c.bf16 %v6405, %v6404
        %v6436 = vpack.c.bf16 %v6407, %v6406
        %v6437 = vpack.c.bf16 %v6409, %v6408
        %v6438 = vpack.c.bf16 %v6411, %v6410
        %v6439 = vpack.c.bf16 %v6413, %v6412
        %v6440 = vpack.c.bf16 %v6415, %v6414
        %v6441 = vpack.c.bf16 %v6417, %v6416
        %v6442 = vpack.c.bf16 %v6419, %v6418
        %v6443 = vpack.c.bf16 %v6421, %v6420
        %v6444 = vpack.c.bf16 %v6423, %v6422
        %v6445 = vpack.c.bf16 %v6425, %v6424
        %v6446 = vpack.c.bf16 %v6427, %v6426
        %v6447 = vpack.c.bf16 %v6429, %v6428
        %v6448 = vpack.c.bf16 %v6431, %v6430
        %v6449 = vpack.c.bf16 %v6433, %v6432
        %s6450 = scalar_lea.vmem %s3, 8
        %v6451 = vld [vmem:[%s6450] sm:$0xf]
        %v6453 = vsel %vm5384, %v6434, 0
        %v6456 = vsel %vm5384, %v6435, 0
        %v6459 = vsel %vm5384, %v6436, 0
        %v6462 = vsel %vm5384, %v6437, 0
        %v6465 = vsel %vm5384, %v6438, 0
        %v6468 = vsel %vm5384, %v6439, 0
        %v6471 = vsel %vm5384, %v6440, 0
        %v6474 = vsel %vm5384, %v6441, 0
        %v6477 = vsel %vm5384, %v6442, 0
        %v6480 = vsel %vm5384, %v6443, 0
        %v6483 = vsel %vm5384, %v6444, 0
        %v6486 = vsel %vm5384, %v6445, 0
        %v6489 = vsel %vm5384, %v6446, 0
        %v6492 = vsel %vm5384, %v6447, 0
        %v6495 = vsel %vm5384, %v6448, 0
        %v6498 = vsel %vm5384, %v6449, 0
        %v6501 = vsel %vm5433, %v6451, 0
        %6503 = vmatpush.bf16.msra.mxu0 0
        %6504 = vmatpush.bf16.msra.mxu0 0
        %6505 = vmatpush.bf16.msra.mxu0 0
        %6506 = vmatpush.bf16.msra.mxu0 0
        %6507 = vmatpush.bf16.msra.mxu0 0
        %6508 = vmatpush.bf16.msra.mxu0 0
        %6509 = vmatpush.bf16.msra.mxu0 0
        %6510 = vmatpush.bf16.msra.mxu0 %v6501
        %6511 = vmatmul.bf16.gmra.mxu0 %v6453
        %v6512 = vpop.f32.mrf.mxu0
        %v6513 = vadd.f32 0.0, %v6512
        %v6514 = vpop.f32.mrf.mxu0
        %v6515 = vadd.f32 0.0, %v6514
        %6516 = vmatmul.bf16.gmra.mxu0 %v6456
        %v6517 = vpop.f32.mrf.mxu0
        %v6518 = vadd.f32 0.0, %v6517
        %v6519 = vpop.f32.mrf.mxu0
        %v6520 = vadd.f32 0.0, %v6519
        %6521 = vmatmul.bf16.gmra.mxu0 %v6459
        %v6522 = vpop.f32.mrf.mxu0
        %v6523 = vadd.f32 0.0, %v6522
        %v6524 = vpop.f32.mrf.mxu0
        %v6525 = vadd.f32 0.0, %v6524
        %6526 = vmatmul.bf16.gmra.mxu0 %v6462
        %v6527 = vpop.f32.mrf.mxu0
        %v6528 = vadd.f32 0.0, %v6527
        %v6529 = vpop.f32.mrf.mxu0
        %v6530 = vadd.f32 0.0, %v6529
        %6531 = vmatmul.bf16.gmra.mxu0 %v6465
        %v6532 = vpop.f32.mrf.mxu0
        %v6533 = vadd.f32 0.0, %v6532
        %v6534 = vpop.f32.mrf.mxu0
        %v6535 = vadd.f32 0.0, %v6534
        %6536 = vmatmul.bf16.gmra.mxu0 %v6468
        %v6537 = vpop.f32.mrf.mxu0
        %v6538 = vadd.f32 0.0, %v6537
        %v6539 = vpop.f32.mrf.mxu0
        %v6540 = vadd.f32 0.0, %v6539
        %6541 = vmatmul.bf16.gmra.mxu0 %v6471
        %v6542 = vpop.f32.mrf.mxu0
        %v6543 = vadd.f32 0.0, %v6542
        %v6544 = vpop.f32.mrf.mxu0
        %v6545 = vadd.f32 0.0, %v6544
        %6546 = vmatmul.bf16.gmra.mxu0 %v6474
        %v6547 = vpop.f32.mrf.mxu0
        %v6548 = vadd.f32 0.0, %v6547
        %v6549 = vpop.f32.mrf.mxu0
        %v6550 = vadd.f32 0.0, %v6549
        %6551 = vmatmul.bf16.gmra.mxu0 %v6477
        %v6552 = vpop.f32.mrf.mxu0
        %v6553 = vadd.f32 0.0, %v6552
        %v6554 = vpop.f32.mrf.mxu0
        %v6555 = vadd.f32 0.0, %v6554
        %6556 = vmatmul.bf16.gmra.mxu0 %v6480
        %v6557 = vpop.f32.mrf.mxu0
        %v6558 = vadd.f32 0.0, %v6557
        %v6559 = vpop.f32.mrf.mxu0
        %v6560 = vadd.f32 0.0, %v6559
        %6561 = vmatmul.bf16.gmra.mxu0 %v6483
        %v6562 = vpop.f32.mrf.mxu0
        %v6563 = vadd.f32 0.0, %v6562
        %v6564 = vpop.f32.mrf.mxu0
        %v6565 = vadd.f32 0.0, %v6564
        %6566 = vmatmul.bf16.gmra.mxu0 %v6486
        %v6567 = vpop.f32.mrf.mxu0
        %v6568 = vadd.f32 0.0, %v6567
        %v6569 = vpop.f32.mrf.mxu0
        %v6570 = vadd.f32 0.0, %v6569
        %6571 = vmatmul.bf16.gmra.mxu0 %v6489
        %v6572 = vpop.f32.mrf.mxu0
        %v6573 = vadd.f32 0.0, %v6572
        %v6574 = vpop.f32.mrf.mxu0
        %v6575 = vadd.f32 0.0, %v6574
        %6576 = vmatmul.bf16.gmra.mxu0 %v6492
        %v6577 = vpop.f32.mrf.mxu0
        %v6578 = vadd.f32 0.0, %v6577
        %v6579 = vpop.f32.mrf.mxu0
        %v6580 = vadd.f32 0.0, %v6579
        %6581 = vmatmul.bf16.gmra.mxu0 %v6495
        %v6582 = vpop.f32.mrf.mxu0
        %v6583 = vadd.f32 0.0, %v6582
        %v6584 = vpop.f32.mrf.mxu0
        %v6585 = vadd.f32 0.0, %v6584
        %6586 = vmatmul.bf16.gmra.mxu0 %v6498
        %v6587 = vpop.f32.mrf.mxu0
        %v6588 = vadd.f32 0.0, %v6587
        %v6589 = vpop.f32.mrf.mxu0
        %v6590 = vadd.f32 0.0, %v6589
        %6591 = vdwg.mxu0
        %v6592 = vadd.f32 %v5587, %v6513
        %v6593 = vadd.f32 %v5589, %v6515
        %v6594 = vadd.f32 %v5592, %v6518
        %v6595 = vadd.f32 %v5594, %v6520
        %v6596 = vadd.f32 %v5597, %v6523
        %v6597 = vadd.f32 %v5599, %v6525
        %v6598 = vadd.f32 %v5602, %v6528
        %v6599 = vadd.f32 %v5604, %v6530
        %v6600 = vadd.f32 %v5607, %v6533
        %v6601 = vadd.f32 %v5609, %v6535
        %v6602 = vadd.f32 %v5612, %v6538
        %v6603 = vadd.f32 %v5614, %v6540
        %v6604 = vadd.f32 %v5617, %v6543
        %v6605 = vadd.f32 %v5619, %v6545
        %v6606 = vadd.f32 %v5622, %v6548
        %v6607 = vadd.f32 %v5624, %v6550
        %v6608 = vadd.f32 %v5627, %v6553
        %v6609 = vadd.f32 %v5629, %v6555
        %v6610 = vadd.f32 %v5632, %v6558
        %v6611 = vadd.f32 %v5634, %v6560
        %v6612 = vadd.f32 %v5637, %v6563
        %v6613 = vadd.f32 %v5639, %v6565
        %v6614 = vadd.f32 %v5642, %v6568
        %v6615 = vadd.f32 %v5644, %v6570
        %v6616 = vadd.f32 %v5647, %v6573
        %v6617 = vadd.f32 %v5649, %v6575
        %v6618 = vadd.f32 %v5652, %v6578
        %v6619 = vadd.f32 %v5654, %v6580
        %v6620 = vadd.f32 %v5657, %v6583
        %v6621 = vadd.f32 %v5659, %v6585
        %v6622 = vadd.f32 %v5662, %v6588
        %v6623 = vadd.f32 %v5664, %v6590
        %v6624 = vrot.slane %v6402, 7
        %v6625 = vrot.slane %v6403, 7
        %v6626 = vrot.slane %v6404, 7
        %v6627 = vrot.slane %v6405, 7
        %v6628 = vrot.slane %v6406, 7
        %v6629 = vrot.slane %v6407, 7
        %v6630 = vrot.slane %v6408, 7
        %v6631 = vrot.slane %v6409, 7
        %v6632 = vrot.slane %v6410, 7
        %v6633 = vrot.slane %v6411, 7
        %v6634 = vrot.slane %v6412, 7
        %v6635 = vrot.slane %v6413, 7
        %v6636 = vrot.slane %v6414, 7
        %v6637 = vrot.slane %v6415, 7
        %v6638 = vrot.slane %v6416, 7
        %v6639 = vrot.slane %v6417, 7
        %v6640 = vrot.slane %v6418, 7
        %v6641 = vrot.slane %v6419, 7
        %v6642 = vrot.slane %v6420, 7
        %v6643 = vrot.slane %v6421, 7
        %v6644 = vrot.slane %v6422, 7
        %v6645 = vrot.slane %v6423, 7
        %v6646 = vrot.slane %v6424, 7
        %v6647 = vrot.slane %v6425, 7
        %v6648 = vrot.slane %v6426, 7
        %v6649 = vrot.slane %v6427, 7
        %v6650 = vrot.slane %v6428, 7
        %v6651 = vrot.slane %v6429, 7
        %v6652 = vrot.slane %v6430, 7
        %v6653 = vrot.slane %v6431, 7
        %v6654 = vrot.slane %v6432, 7
        %v6655 = vrot.slane %v6433, 7
        %v6656 = vsel %vm1183, %v6654, %v6655
        %v6657 = vsel %vm1183, %v6653, %v6654
        %v6658 = vsel %vm1183, %v6652, %v6653
        %v6659 = vsel %vm1183, %v6651, %v6652
        %v6660 = vsel %vm1183, %v6650, %v6651
        %v6661 = vsel %vm1183, %v6649, %v6650
        %v6662 = vsel %vm1183, %v6648, %v6649
        %v6663 = vsel %vm1183, %v6647, %v6648
        %v6664 = vsel %vm1183, %v6646, %v6647
        %v6665 = vsel %vm1183, %v6645, %v6646
        %v6666 = vsel %vm1183, %v6644, %v6645
        %v6667 = vsel %vm1183, %v6643, %v6644
        %v6668 = vsel %vm1183, %v6642, %v6643
        %v6669 = vsel %vm1183, %v6641, %v6642
        %v6670 = vsel %vm1183, %v6640, %v6641
        %v6671 = vsel %vm1183, %v6639, %v6640
        %v6672 = vsel %vm1183, %v6638, %v6639
        %v6673 = vsel %vm1183, %v6637, %v6638
        %v6674 = vsel %vm1183, %v6636, %v6637
        %v6675 = vsel %vm1183, %v6635, %v6636
        %v6676 = vsel %vm1183, %v6634, %v6635
        %v6677 = vsel %vm1183, %v6633, %v6634
        %v6678 = vsel %vm1183, %v6632, %v6633
        %v6679 = vsel %vm1183, %v6631, %v6632
        %v6680 = vsel %vm1183, %v6630, %v6631
        %v6681 = vsel %vm1183, %v6629, %v6630
        %v6682 = vsel %vm1183, %v6628, %v6629
        %v6683 = vsel %vm1183, %v6627, %v6628
        %v6684 = vsel %vm1183, %v6626, %v6627
        %v6685 = vsel %vm1183, %v6625, %v6626
        %v6686 = vsel %vm1183, %v6624, %v6625
        %v6687 = vsel %vm1183, %v6655, %v6624
        %v6688 = vadd.f32 %v6687, %v3395
        %v6689 = vadd.f32 %v6686, %v3400
        %v6690 = vadd.f32 %v6685, %v3405
        %v6691 = vadd.f32 %v6684, %v3410
        %v6692 = vadd.f32 %v6683, %v3415
        %v6693 = vadd.f32 %v6682, %v3420
        %v6694 = vadd.f32 %v6681, %v3425
        %v6695 = vadd.f32 %v6680, %v3430
        %v6696 = vadd.f32 %v6679, %v3435
        %v6697 = vadd.f32 %v6678, %v3440
        %v6698 = vadd.f32 %v6677, %v3445
        %v6699 = vadd.f32 %v6676, %v3450
        %v6700 = vadd.f32 %v6675, %v3455
        %v6701 = vadd.f32 %v6674, %v3460
        %v6702 = vadd.f32 %v6673, %v3465
        %v6703 = vadd.f32 %v6672, %v3470
        %v6704 = vadd.f32 %v6671, %v3475
        %v6705 = vadd.f32 %v6670, %v3480
        %v6706 = vadd.f32 %v6669, %v3485
        %v6707 = vadd.f32 %v6668, %v3490
        %v6708 = vadd.f32 %v6667, %v3495
        %v6709 = vadd.f32 %v6666, %v3500
        %v6710 = vadd.f32 %v6665, %v3505
        %v6711 = vadd.f32 %v6664, %v3510
        %v6712 = vadd.f32 %v6663, %v3515
        %v6713 = vadd.f32 %v6662, %v3520
        %v6714 = vadd.f32 %v6661, %v3525
        %v6715 = vadd.f32 %v6660, %v3530
        %v6716 = vadd.f32 %v6659, %v3535
        %v6717 = vadd.f32 %v6658, %v3540
        %v6718 = vadd.f32 %v6657, %v3545
        %v6719 = vadd.f32 %v6656, %v3550
        %v6720 = vmax.f32 %v6402, %v6688
        %v6721 = vmax.f32 %v6403, %v6689
        %v6722 = vmax.f32 %v6404, %v6690
        %v6723 = vmax.f32 %v6405, %v6691
        %v6724 = vmax.f32 %v6406, %v6692
        %v6725 = vmax.f32 %v6407, %v6693
        %v6726 = vmax.f32 %v6408, %v6694
        %v6727 = vmax.f32 %v6409, %v6695
        %v6728 = vmax.f32 %v6410, %v6696
        %v6729 = vmax.f32 %v6411, %v6697
        %v6730 = vmax.f32 %v6412, %v6698
        %v6731 = vmax.f32 %v6413, %v6699
        %v6732 = vmax.f32 %v6414, %v6700
        %v6733 = vmax.f32 %v6415, %v6701
        %v6734 = vmax.f32 %v6416, %v6702
        %v6735 = vmax.f32 %v6417, %v6703
        %v6736 = vmax.f32 %v6418, %v6704
        %v6737 = vmax.f32 %v6419, %v6705
        %v6738 = vmax.f32 %v6420, %v6706
        %v6739 = vmax.f32 %v6421, %v6707
        %v6740 = vmax.f32 %v6422, %v6708
        %v6741 = vmax.f32 %v6423, %v6709
        %v6742 = vmax.f32 %v6424, %v6710
        %v6743 = vmax.f32 %v6425, %v6711
        %v6744 = vmax.f32 %v6426, %v6712
        %v6745 = vmax.f32 %v6427, %v6713
        %v6746 = vmax.f32 %v6428, %v6714
        %v6747 = vmax.f32 %v6429, %v6715
        %v6748 = vmax.f32 %v6430, %v6716
        %v6749 = vmax.f32 %v6431, %v6717
        %v6750 = vmax.f32 %v6432, %v6718
        %v6751 = vmax.f32 %v6433, %v6719
        %v6752 = vrot.slane %v6402, 1
        %v6753 = vrot.slane %v6403, 1
        %v6754 = vrot.slane %v6404, 1
        %v6755 = vrot.slane %v6405, 1
        %v6756 = vrot.slane %v6406, 1
        %v6757 = vrot.slane %v6407, 1
        %v6758 = vrot.slane %v6408, 1
        %v6759 = vrot.slane %v6409, 1
        %v6760 = vrot.slane %v6410, 1
        %v6761 = vrot.slane %v6411, 1
        %v6762 = vrot.slane %v6412, 1
        %v6763 = vrot.slane %v6413, 1
        %v6764 = vrot.slane %v6414, 1
        %v6765 = vrot.slane %v6415, 1
        %v6766 = vrot.slane %v6416, 1
        %v6767 = vrot.slane %v6417, 1
        %v6768 = vrot.slane %v6418, 1
        %v6769 = vrot.slane %v6419, 1
        %v6770 = vrot.slane %v6420, 1
        %v6771 = vrot.slane %v6421, 1
        %v6772 = vrot.slane %v6422, 1
        %v6773 = vrot.slane %v6423, 1
        %v6774 = vrot.slane %v6424, 1
        %v6775 = vrot.slane %v6425, 1
        %v6776 = vrot.slane %v6426, 1
        %v6777 = vrot.slane %v6427, 1
        %v6778 = vrot.slane %v6428, 1
        %v6779 = vrot.slane %v6429, 1
        %v6780 = vrot.slane %v6430, 1
        %v6781 = vrot.slane %v6431, 1
        %v6782 = vrot.slane %v6432, 1
        %v6783 = vrot.slane %v6433, 1
        %v6784 = vsel %vm1568, %v6782, %v6783
        %v6785 = vsel %vm1568, %v6781, %v6782
        %v6786 = vsel %vm1568, %v6780, %v6781
        %v6787 = vsel %vm1568, %v6779, %v6780
        %v6788 = vsel %vm1568, %v6778, %v6779
        %v6789 = vsel %vm1568, %v6777, %v6778
        %v6790 = vsel %vm1568, %v6776, %v6777
        %v6791 = vsel %vm1568, %v6775, %v6776
        %v6792 = vsel %vm1568, %v6774, %v6775
        %v6793 = vsel %vm1568, %v6773, %v6774
        %v6794 = vsel %vm1568, %v6772, %v6773
        %v6795 = vsel %vm1568, %v6771, %v6772
        %v6796 = vsel %vm1568, %v6770, %v6771
        %v6797 = vsel %vm1568, %v6769, %v6770
        %v6798 = vsel %vm1568, %v6768, %v6769
        %v6799 = vsel %vm1568, %v6767, %v6768
        %v6800 = vsel %vm1568, %v6766, %v6767
        %v6801 = vsel %vm1568, %v6765, %v6766
        %v6802 = vsel %vm1568, %v6764, %v6765
        %v6803 = vsel %vm1568, %v6763, %v6764
        %v6804 = vsel %vm1568, %v6762, %v6763
        %v6805 = vsel %vm1568, %v6761, %v6762
        %v6806 = vsel %vm1568, %v6760, %v6761
        %v6807 = vsel %vm1568, %v6759, %v6760
        %v6808 = vsel %vm1568, %v6758, %v6759
        %v6809 = vsel %vm1568, %v6757, %v6758
        %v6810 = vsel %vm1568, %v6756, %v6757
        %v6811 = vsel %vm1568, %v6755, %v6756
        %v6812 = vsel %vm1568, %v6754, %v6755
        %v6813 = vsel %vm1568, %v6753, %v6754
        %v6814 = vsel %vm1568, %v6752, %v6753
        %v6815 = vsel %vm1568, %v6783, %v6752
        %v6816 = vadd.f32 %v6814, %v3683
        %v6817 = vadd.f32 %v6813, %v3688
        %v6818 = vadd.f32 %v6812, %v3693
        %v6819 = vadd.f32 %v6811, %v3698
        %v6820 = vadd.f32 %v6810, %v3703
        %v6821 = vadd.f32 %v6809, %v3708
        %v6822 = vadd.f32 %v6808, %v3713
        %v6823 = vadd.f32 %v6807, %v3718
        %v6824 = vadd.f32 %v6806, %v3723
        %v6825 = vadd.f32 %v6805, %v3728
        %v6826 = vadd.f32 %v6804, %v3733
        %v6827 = vadd.f32 %v6803, %v3738
        %v6828 = vadd.f32 %v6802, %v3743
        %v6829 = vadd.f32 %v6801, %v3748
        %v6830 = vadd.f32 %v6800, %v3753
        %v6831 = vadd.f32 %v6799, %v3758
        %v6832 = vadd.f32 %v6798, %v3763
        %v6833 = vadd.f32 %v6797, %v3768
        %v6834 = vadd.f32 %v6796, %v3773
        %v6835 = vadd.f32 %v6795, %v3778
        %v6836 = vadd.f32 %v6794, %v3783
        %v6837 = vadd.f32 %v6793, %v3788
        %v6838 = vadd.f32 %v6792, %v3793
        %v6839 = vadd.f32 %v6791, %v3798
        %v6840 = vadd.f32 %v6790, %v3803
        %v6841 = vadd.f32 %v6789, %v3808
        %v6842 = vadd.f32 %v6788, %v3813
        %v6843 = vadd.f32 %v6787, %v3818
        %v6844 = vadd.f32 %v6786, %v3823
        %v6845 = vadd.f32 %v6785, %v3828
        %v6846 = vadd.f32 %v6784, %v3833
        %v6847 = vadd.f32 %v6815, %v3838
        %v6848 = vmax.f32 %v6720, %v6816
        %v6849 = vmax.f32 %v6721, %v6817
        %v6850 = vmax.f32 %v6722, %v6818
        %v6851 = vmax.f32 %v6723, %v6819
        %v6852 = vmax.f32 %v6724, %v6820
        %v6853 = vmax.f32 %v6725, %v6821
        %v6854 = vmax.f32 %v6726, %v6822
        %v6855 = vmax.f32 %v6727, %v6823
        %v6856 = vmax.f32 %v6728, %v6824
        %v6857 = vmax.f32 %v6729, %v6825
        %v6858 = vmax.f32 %v6730, %v6826
        %v6859 = vmax.f32 %v6731, %v6827
        %v6860 = vmax.f32 %v6732, %v6828
        %v6861 = vmax.f32 %v6733, %v6829
        %v6862 = vmax.f32 %v6734, %v6830
        %v6863 = vmax.f32 %v6735, %v6831
        %v6864 = vmax.f32 %v6736, %v6832
        %v6865 = vmax.f32 %v6737, %v6833
        %v6866 = vmax.f32 %v6738, %v6834
        %v6867 = vmax.f32 %v6739, %v6835
        %v6868 = vmax.f32 %v6740, %v6836
        %v6869 = vmax.f32 %v6741, %v6837
        %v6870 = vmax.f32 %v6742, %v6838
        %v6871 = vmax.f32 %v6743, %v6839
        %v6872 = vmax.f32 %v6744, %v6840
        %v6873 = vmax.f32 %v6745, %v6841
        %v6874 = vmax.f32 %v6746, %v6842
        %v6875 = vmax.f32 %v6747, %v6843
        %v6876 = vmax.f32 %v6748, %v6844
        %v6877 = vmax.f32 %v6749, %v6845
        %v6878 = vmax.f32 %v6750, %v6846
        %v6879 = vmax.f32 %v6751, %v6847
        %v6880 = vrot.slane %v6402, 6
        %v6881 = vrot.slane %v6403, 6
        %v6882 = vrot.slane %v6404, 6
        %v6883 = vrot.slane %v6405, 6
        %v6884 = vrot.slane %v6406, 6
        %v6885 = vrot.slane %v6407, 6
        %v6886 = vrot.slane %v6408, 6
        %v6887 = vrot.slane %v6409, 6
        %v6888 = vrot.slane %v6410, 6
        %v6889 = vrot.slane %v6411, 6
        %v6890 = vrot.slane %v6412, 6
        %v6891 = vrot.slane %v6413, 6
        %v6892 = vrot.slane %v6414, 6
        %v6893 = vrot.slane %v6415, 6
        %v6894 = vrot.slane %v6416, 6
        %v6895 = vrot.slane %v6417, 6
        %v6896 = vrot.slane %v6418, 6
        %v6897 = vrot.slane %v6419, 6
        %v6898 = vrot.slane %v6420, 6
        %v6899 = vrot.slane %v6421, 6
        %v6900 = vrot.slane %v6422, 6
        %v6901 = vrot.slane %v6423, 6
        %v6902 = vrot.slane %v6424, 6
        %v6903 = vrot.slane %v6425, 6
        %v6904 = vrot.slane %v6426, 6
        %v6905 = vrot.slane %v6427, 6
        %v6906 = vrot.slane %v6428, 6
        %v6907 = vrot.slane %v6429, 6
        %v6908 = vrot.slane %v6430, 6
        %v6909 = vrot.slane %v6431, 6
        %v6910 = vrot.slane %v6432, 6
        %v6911 = vrot.slane %v6433, 6
        %v6912 = vsel %vm1953, %v6910, %v6911
        %v6913 = vsel %vm1953, %v6909, %v6910
        %v6914 = vsel %vm1953, %v6908, %v6909
        %v6915 = vsel %vm1953, %v6907, %v6908
        %v6916 = vsel %vm1953, %v6906, %v6907
        %v6917 = vsel %vm1953, %v6905, %v6906
        %v6918 = vsel %vm1953, %v6904, %v6905
        %v6919 = vsel %vm1953, %v6903, %v6904
        %v6920 = vsel %vm1953, %v6902, %v6903
        %v6921 = vsel %vm1953, %v6901, %v6902
        %v6922 = vsel %vm1953, %v6900, %v6901
        %v6923 = vsel %vm1953, %v6899, %v6900
        %v6924 = vsel %vm1953, %v6898, %v6899
        %v6925 = vsel %vm1953, %v6897, %v6898
        %v6926 = vsel %vm1953, %v6896, %v6897
        %v6927 = vsel %vm1953, %v6895, %v6896
        %v6928 = vsel %vm1953, %v6894, %v6895
        %v6929 = vsel %vm1953, %v6893, %v6894
        %v6930 = vsel %vm1953, %v6892, %v6893
        %v6931 = vsel %vm1953, %v6891, %v6892
        %v6932 = vsel %vm1953, %v6890, %v6891
        %v6933 = vsel %vm1953, %v6889, %v6890
        %v6934 = vsel %vm1953, %v6888, %v6889
        %v6935 = vsel %vm1953, %v6887, %v6888
        %v6936 = vsel %vm1953, %v6886, %v6887
        %v6937 = vsel %vm1953, %v6885, %v6886
        %v6938 = vsel %vm1953, %v6884, %v6885
        %v6939 = vsel %vm1953, %v6883, %v6884
        %v6940 = vsel %vm1953, %v6882, %v6883
        %v6941 = vsel %vm1953, %v6881, %v6882
        %v6942 = vsel %vm1953, %v6880, %v6881
        %v6943 = vsel %vm1953, %v6911, %v6880
        %v6944 = vadd.f32 %v6943, %v3971
        %v6945 = vadd.f32 %v6942, %v3976
        %v6946 = vadd.f32 %v6941, %v3981
        %v6947 = vadd.f32 %v6940, %v3986
        %v6948 = vadd.f32 %v6939, %v3991
        %v6949 = vadd.f32 %v6938, %v3996
        %v6950 = vadd.f32 %v6937, %v4001
        %v6951 = vadd.f32 %v6936, %v4006
        %v6952 = vadd.f32 %v6935, %v4011
        %v6953 = vadd.f32 %v6934, %v4016
        %v6954 = vadd.f32 %v6933, %v4021
        %v6955 = vadd.f32 %v6932, %v4026
        %v6956 = vadd.f32 %v6931, %v4031
        %v6957 = vadd.f32 %v6930, %v4036
        %v6958 = vadd.f32 %v6929, %v4041
        %v6959 = vadd.f32 %v6928, %v4046
        %v6960 = vadd.f32 %v6927, %v4051
        %v6961 = vadd.f32 %v6926, %v4056
        %v6962 = vadd.f32 %v6925, %v4061
        %v6963 = vadd.f32 %v6924, %v4066
        %v6964 = vadd.f32 %v6923, %v4071
        %v6965 = vadd.f32 %v6922, %v4076
        %v6966 = vadd.f32 %v6921, %v4081
        %v6967 = vadd.f32 %v6920, %v4086
        %v6968 = vadd.f32 %v6919, %v4091
        %v6969 = vadd.f32 %v6918, %v4096
        %v6970 = vadd.f32 %v6917, %v4101
        %v6971 = vadd.f32 %v6916, %v4106
        %v6972 = vadd.f32 %v6915, %v4111
        %v6973 = vadd.f32 %v6914, %v4116
        %v6974 = vadd.f32 %v6913, %v4121
        %v6975 = vadd.f32 %v6912, %v4126
        %v6976 = vmax.f32 %v6848, %v6944
        %v6977 = vmax.f32 %v6849, %v6945
        %v6978 = vmax.f32 %v6850, %v6946
        %v6979 = vmax.f32 %v6851, %v6947
        %v6980 = vmax.f32 %v6852, %v6948
        %v6981 = vmax.f32 %v6853, %v6949
        %v6982 = vmax.f32 %v6854, %v6950
        %v6983 = vmax.f32 %v6855, %v6951
        %v6984 = vmax.f32 %v6856, %v6952
        %v6985 = vmax.f32 %v6857, %v6953
        %v6986 = vmax.f32 %v6858, %v6954
        %v6987 = vmax.f32 %v6859, %v6955
        %v6988 = vmax.f32 %v6860, %v6956
        %v6989 = vmax.f32 %v6861, %v6957
        %v6990 = vmax.f32 %v6862, %v6958
        %v6991 = vmax.f32 %v6863, %v6959
        %v6992 = vmax.f32 %v6864, %v6960
        %v6993 = vmax.f32 %v6865, %v6961
        %v6994 = vmax.f32 %v6866, %v6962
        %v6995 = vmax.f32 %v6867, %v6963
        %v6996 = vmax.f32 %v6868, %v6964
        %v6997 = vmax.f32 %v6869, %v6965
        %v6998 = vmax.f32 %v6870, %v6966
        %v6999 = vmax.f32 %v6871, %v6967
        %v7000 = vmax.f32 %v6872, %v6968
        %v7001 = vmax.f32 %v6873, %v6969
        %v7002 = vmax.f32 %v6874, %v6970
        %v7003 = vmax.f32 %v6875, %v6971
        %v7004 = vmax.f32 %v6876, %v6972
        %v7005 = vmax.f32 %v6877, %v6973
        %v7006 = vmax.f32 %v6878, %v6974
        %v7007 = vmax.f32 %v6879, %v6975
        %v7008 = vrot.slane %v6402, 2
        %v7009 = vrot.slane %v6403, 2
        %v7010 = vrot.slane %v6404, 2
        %v7011 = vrot.slane %v6405, 2
        %v7012 = vrot.slane %v6406, 2
        %v7013 = vrot.slane %v6407, 2
        %v7014 = vrot.slane %v6408, 2
        %v7015 = vrot.slane %v6409, 2
        %v7016 = vrot.slane %v6410, 2
        %v7017 = vrot.slane %v6411, 2
        %v7018 = vrot.slane %v6412, 2
        %v7019 = vrot.slane %v6413, 2
        %v7020 = vrot.slane %v6414, 2
        %v7021 = vrot.slane %v6415, 2
        %v7022 = vrot.slane %v6416, 2
        %v7023 = vrot.slane %v6417, 2
        %v7024 = vrot.slane %v6418, 2
        %v7025 = vrot.slane %v6419, 2
        %v7026 = vrot.slane %v6420, 2
        %v7027 = vrot.slane %v6421, 2
        %v7028 = vrot.slane %v6422, 2
        %v7029 = vrot.slane %v6423, 2
        %v7030 = vrot.slane %v6424, 2
        %v7031 = vrot.slane %v6425, 2
        %v7032 = vrot.slane %v6426, 2
        %v7033 = vrot.slane %v6427, 2
        %v7034 = vrot.slane %v6428, 2
        %v7035 = vrot.slane %v6429, 2
        %v7036 = vrot.slane %v6430, 2
        %v7037 = vrot.slane %v6431, 2
        %v7038 = vrot.slane %v6432, 2
        %v7039 = vrot.slane %v6433, 2
        %v7040 = vsel %vm2338, %v7038, %v7039
        %v7041 = vsel %vm2338, %v7037, %v7038
        %v7042 = vsel %vm2338, %v7036, %v7037
        %v7043 = vsel %vm2338, %v7035, %v7036
        %v7044 = vsel %vm2338, %v7034, %v7035
        %v7045 = vsel %vm2338, %v7033, %v7034
        %v7046 = vsel %vm2338, %v7032, %v7033
        %v7047 = vsel %vm2338, %v7031, %v7032
        %v7048 = vsel %vm2338, %v7030, %v7031
        %v7049 = vsel %vm2338, %v7029, %v7030
        %v7050 = vsel %vm2338, %v7028, %v7029
        %v7051 = vsel %vm2338, %v7027, %v7028
        %v7052 = vsel %vm2338, %v7026, %v7027
        %v7053 = vsel %vm2338, %v7025, %v7026
        %v7054 = vsel %vm2338, %v7024, %v7025
        %v7055 = vsel %vm2338, %v7023, %v7024
        %v7056 = vsel %vm2338, %v7022, %v7023
        %v7057 = vsel %vm2338, %v7021, %v7022
        %v7058 = vsel %vm2338, %v7020, %v7021
        %v7059 = vsel %vm2338, %v7019, %v7020
        %v7060 = vsel %vm2338, %v7018, %v7019
        %v7061 = vsel %vm2338, %v7017, %v7018
        %v7062 = vsel %vm2338, %v7016, %v7017
        %v7063 = vsel %vm2338, %v7015, %v7016
        %v7064 = vsel %vm2338, %v7014, %v7015
        %v7065 = vsel %vm2338, %v7013, %v7014
        %v7066 = vsel %vm2338, %v7012, %v7013
        %v7067 = vsel %vm2338, %v7011, %v7012
        %v7068 = vsel %vm2338, %v7010, %v7011
        %v7069 = vsel %vm2338, %v7009, %v7010
        %v7070 = vsel %vm2338, %v7008, %v7009
        %v7071 = vsel %vm2338, %v7039, %v7008
        %v7072 = vadd.f32 %v7070, %v4259
        %v7073 = vadd.f32 %v7069, %v4264
        %v7074 = vadd.f32 %v7068, %v4269
        %v7075 = vadd.f32 %v7067, %v4274
        %v7076 = vadd.f32 %v7066, %v4279
        %v7077 = vadd.f32 %v7065, %v4284
        %v7078 = vadd.f32 %v7064, %v4289
        %v7079 = vadd.f32 %v7063, %v4294
        %v7080 = vadd.f32 %v7062, %v4299
        %v7081 = vadd.f32 %v7061, %v4304
        %v7082 = vadd.f32 %v7060, %v4309
        %v7083 = vadd.f32 %v7059, %v4314
        %v7084 = vadd.f32 %v7058, %v4319
        %v7085 = vadd.f32 %v7057, %v4324
        %v7086 = vadd.f32 %v7056, %v4329
        %v7087 = vadd.f32 %v7055, %v4334
        %v7088 = vadd.f32 %v7054, %v4339
        %v7089 = vadd.f32 %v7053, %v4344
        %v7090 = vadd.f32 %v7052, %v4349
        %v7091 = vadd.f32 %v7051, %v4354
        %v7092 = vadd.f32 %v7050, %v4359
        %v7093 = vadd.f32 %v7049, %v4364
        %v7094 = vadd.f32 %v7048, %v4369
        %v7095 = vadd.f32 %v7047, %v4374
        %v7096 = vadd.f32 %v7046, %v4379
        %v7097 = vadd.f32 %v7045, %v4384
        %v7098 = vadd.f32 %v7044, %v4389
        %v7099 = vadd.f32 %v7043, %v4394
        %v7100 = vadd.f32 %v7042, %v4399
        %v7101 = vadd.f32 %v7041, %v4404
        %v7102 = vadd.f32 %v7040, %v4409
        %v7103 = vadd.f32 %v7071, %v4414
        %v7104 = vmax.f32 %v6976, %v7072
        %v7105 = vmax.f32 %v6977, %v7073
        %v7106 = vmax.f32 %v6978, %v7074
        %v7107 = vmax.f32 %v6979, %v7075
        %v7108 = vmax.f32 %v6980, %v7076
        %v7109 = vmax.f32 %v6981, %v7077
        %v7110 = vmax.f32 %v6982, %v7078
        %v7111 = vmax.f32 %v6983, %v7079
        %v7112 = vmax.f32 %v6984, %v7080
        %v7113 = vmax.f32 %v6985, %v7081
        %v7114 = vmax.f32 %v6986, %v7082
        %v7115 = vmax.f32 %v6987, %v7083
        %v7116 = vmax.f32 %v6988, %v7084
        %v7117 = vmax.f32 %v6989, %v7085
        %v7118 = vmax.f32 %v6990, %v7086
        %v7119 = vmax.f32 %v6991, %v7087
        %v7120 = vmax.f32 %v6992, %v7088
        %v7121 = vmax.f32 %v6993, %v7089
        %v7122 = vmax.f32 %v6994, %v7090
        %v7123 = vmax.f32 %v6995, %v7091
        %v7124 = vmax.f32 %v6996, %v7092
        %v7125 = vmax.f32 %v6997, %v7093
        %v7126 = vmax.f32 %v6998, %v7094
        %v7127 = vmax.f32 %v6999, %v7095
        %v7128 = vmax.f32 %v7000, %v7096
        %v7129 = vmax.f32 %v7001, %v7097
        %v7130 = vmax.f32 %v7002, %v7098
        %v7131 = vmax.f32 %v7003, %v7099
        %v7132 = vmax.f32 %v7004, %v7100
        %v7133 = vmax.f32 %v7005, %v7101
        %v7134 = vmax.f32 %v7006, %v7102
        %v7135 = vmax.f32 %v7007, %v7103
        %v7136 = vadd.f32 %v7134, %v4483
        %v7137 = vadd.f32 %v7135, %v4488
        %v7138 = vadd.f32 %v7104, %v4493
        %v7139 = vadd.f32 %v7105, %v4498
        %v7140 = vadd.f32 %v7106, %v4503
        %v7141 = vadd.f32 %v7107, %v4508
        %v7142 = vadd.f32 %v7108, %v4513
        %v7143 = vadd.f32 %v7109, %v4518
        %v7144 = vadd.f32 %v7110, %v4523
        %v7145 = vadd.f32 %v7111, %v4528
        %v7146 = vadd.f32 %v7112, %v4533
        %v7147 = vadd.f32 %v7113, %v4538
        %v7148 = vadd.f32 %v7114, %v4543
        %v7149 = vadd.f32 %v7115, %v4548
        %v7150 = vadd.f32 %v7116, %v4553
        %v7151 = vadd.f32 %v7117, %v4558
        %v7152 = vadd.f32 %v7118, %v4563
        %v7153 = vadd.f32 %v7119, %v4568
        %v7154 = vadd.f32 %v7120, %v4573
        %v7155 = vadd.f32 %v7121, %v4578
        %v7156 = vadd.f32 %v7122, %v4583
        %v7157 = vadd.f32 %v7123, %v4588
        %v7158 = vadd.f32 %v7124, %v4593
        %v7159 = vadd.f32 %v7125, %v4598
        %v7160 = vadd.f32 %v7126, %v4603
        %v7161 = vadd.f32 %v7127, %v4608
        %v7162 = vadd.f32 %v7128, %v4613
        %v7163 = vadd.f32 %v7129, %v4618
        %v7164 = vadd.f32 %v7130, %v4623
        %v7165 = vadd.f32 %v7131, %v4628
        %v7166 = vadd.f32 %v7132, %v4633
        %v7167 = vadd.f32 %v7133, %v4638
        %v7168 = vmax.f32 %v7104, %v7136
        %v7169 = vmax.f32 %v7105, %v7137
        %v7170 = vmax.f32 %v7106, %v7138
        %v7171 = vmax.f32 %v7107, %v7139
        %v7172 = vmax.f32 %v7108, %v7140
        %v7173 = vmax.f32 %v7109, %v7141
        %v7174 = vmax.f32 %v7110, %v7142
        %v7175 = vmax.f32 %v7111, %v7143
        %v7176 = vmax.f32 %v7112, %v7144
        %v7177 = vmax.f32 %v7113, %v7145
        %v7178 = vmax.f32 %v7114, %v7146
        %v7179 = vmax.f32 %v7115, %v7147
        %v7180 = vmax.f32 %v7116, %v7148
        %v7181 = vmax.f32 %v7117, %v7149
        %v7182 = vmax.f32 %v7118, %v7150
        %v7183 = vmax.f32 %v7119, %v7151
        %v7184 = vmax.f32 %v7120, %v7152
        %v7185 = vmax.f32 %v7121, %v7153
        %v7186 = vmax.f32 %v7122, %v7154
        %v7187 = vmax.f32 %v7123, %v7155
        %v7188 = vmax.f32 %v7124, %v7156
        %v7189 = vmax.f32 %v7125, %v7157
        %v7190 = vmax.f32 %v7126, %v7158
        %v7191 = vmax.f32 %v7127, %v7159
        %v7192 = vmax.f32 %v7128, %v7160
        %v7193 = vmax.f32 %v7129, %v7161
        %v7194 = vmax.f32 %v7130, %v7162
        %v7195 = vmax.f32 %v7131, %v7163
        %v7196 = vmax.f32 %v7132, %v7164
        %v7197 = vmax.f32 %v7133, %v7165
        %v7198 = vmax.f32 %v7134, %v7166
        %v7199 = vmax.f32 %v7135, %v7167
        %v7200 = vadd.f32 %v7106, %v4707
        %v7201 = vadd.f32 %v7107, %v4712
        %v7202 = vadd.f32 %v7108, %v4717
        %v7203 = vadd.f32 %v7109, %v4722
        %v7204 = vadd.f32 %v7110, %v4727
        %v7205 = vadd.f32 %v7111, %v4732
        %v7206 = vadd.f32 %v7112, %v4737
        %v7207 = vadd.f32 %v7113, %v4742
        %v7208 = vadd.f32 %v7114, %v4747
        %v7209 = vadd.f32 %v7115, %v4752
        %v7210 = vadd.f32 %v7116, %v4757
        %v7211 = vadd.f32 %v7117, %v4762
        %v7212 = vadd.f32 %v7118, %v4767
        %v7213 = vadd.f32 %v7119, %v4772
        %v7214 = vadd.f32 %v7120, %v4777
        %v7215 = vadd.f32 %v7121, %v4782
        %v7216 = vadd.f32 %v7122, %v4787
        %v7217 = vadd.f32 %v7123, %v4792
        %v7218 = vadd.f32 %v7124, %v4797
        %v7219 = vadd.f32 %v7125, %v4802
        %v7220 = vadd.f32 %v7126, %v4807
        %v7221 = vadd.f32 %v7127, %v4812
        %v7222 = vadd.f32 %v7128, %v4817
        %v7223 = vadd.f32 %v7129, %v4822
        %v7224 = vadd.f32 %v7130, %v4827
        %v7225 = vadd.f32 %v7131, %v4832
        %v7226 = vadd.f32 %v7132, %v4837
        %v7227 = vadd.f32 %v7133, %v4842
        %v7228 = vadd.f32 %v7134, %v4847
        %v7229 = vadd.f32 %v7135, %v4852
        %v7230 = vadd.f32 %v7104, %v4857
        %v7231 = vadd.f32 %v7105, %v4862
        %v7232 = vmax.f32 %v7168, %v7200
        %v7233 = vmax.f32 %v7169, %v7201
        %v7234 = vmax.f32 %v7170, %v7202
        %v7235 = vmax.f32 %v7171, %v7203
        %v7236 = vmax.f32 %v7172, %v7204
        %v7237 = vmax.f32 %v7173, %v7205
        %v7238 = vmax.f32 %v7174, %v7206
        %v7239 = vmax.f32 %v7175, %v7207
        %v7240 = vmax.f32 %v7176, %v7208
        %v7241 = vmax.f32 %v7177, %v7209
        %v7242 = vmax.f32 %v7178, %v7210
        %v7243 = vmax.f32 %v7179, %v7211
        %v7244 = vmax.f32 %v7180, %v7212
        %v7245 = vmax.f32 %v7181, %v7213
        %v7246 = vmax.f32 %v7182, %v7214
        %v7247 = vmax.f32 %v7183, %v7215
        %v7248 = vmax.f32 %v7184, %v7216
        %v7249 = vmax.f32 %v7185, %v7217
        %v7250 = vmax.f32 %v7186, %v7218
        %v7251 = vmax.f32 %v7187, %v7219
        %v7252 = vmax.f32 %v7188, %v7220
        %v7253 = vmax.f32 %v7189, %v7221
        %v7254 = vmax.f32 %v7190, %v7222
        %v7255 = vmax.f32 %v7191, %v7223
        %v7256 = vmax.f32 %v7192, %v7224
        %v7257 = vmax.f32 %v7193, %v7225
        %v7258 = vmax.f32 %v7194, %v7226
        %v7259 = vmax.f32 %v7195, %v7227
        %v7260 = vmax.f32 %v7196, %v7228
        %v7261 = vmax.f32 %v7197, %v7229
        %v7262 = vmax.f32 %v7198, %v7230
        %v7263 = vmax.f32 %v7199, %v7231
        %v7264 = vadd.f32 %v7132, %v4483
        %v7265 = vadd.f32 %v7133, %v4931
        %v7266 = vadd.f32 %v7134, %v4936
        %v7267 = vadd.f32 %v7135, %v4941
        %v7268 = vadd.f32 %v7104, %v4946
        %v7269 = vadd.f32 %v7105, %v4951
        %v7270 = vadd.f32 %v7106, %v4956
        %v7271 = vadd.f32 %v7107, %v4961
        %v7272 = vadd.f32 %v7108, %v4966
        %v7273 = vadd.f32 %v7109, %v4971
        %v7274 = vadd.f32 %v7110, %v4976
        %v7275 = vadd.f32 %v7111, %v4981
        %v7276 = vadd.f32 %v7112, %v4986
        %v7277 = vadd.f32 %v7113, %v4991
        %v7278 = vadd.f32 %v7114, %v4996
        %v7279 = vadd.f32 %v7115, %v5001
        %v7280 = vadd.f32 %v7116, %v5006
        %v7281 = vadd.f32 %v7117, %v5011
        %v7282 = vadd.f32 %v7118, %v5016
        %v7283 = vadd.f32 %v7119, %v5021
        %v7284 = vadd.f32 %v7120, %v5026
        %v7285 = vadd.f32 %v7121, %v5031
        %v7286 = vadd.f32 %v7122, %v5036
        %v7287 = vadd.f32 %v7123, %v5041
        %v7288 = vadd.f32 %v7124, %v5046
        %v7289 = vadd.f32 %v7125, %v5051
        %v7290 = vadd.f32 %v7126, %v5056
        %v7291 = vadd.f32 %v7127, %v5061
        %v7292 = vadd.f32 %v7128, %v5066
        %v7293 = vadd.f32 %v7129, %v5071
        %v7294 = vadd.f32 %v7130, %v5076
        %v7295 = vadd.f32 %v7131, %v5081
        %v7296 = vmax.f32 %v7232, %v7264
        %v7297 = vmax.f32 %v7233, %v7265
        %v7298 = vmax.f32 %v7234, %v7266
        %v7299 = vmax.f32 %v7235, %v7267
        %v7300 = vmax.f32 %v7236, %v7268
        %v7301 = vmax.f32 %v7237, %v7269
        %v7302 = vmax.f32 %v7238, %v7270
        %v7303 = vmax.f32 %v7239, %v7271
        %v7304 = vmax.f32 %v7240, %v7272
        %v7305 = vmax.f32 %v7241, %v7273
        %v7306 = vmax.f32 %v7242, %v7274
        %v7307 = vmax.f32 %v7243, %v7275
        %v7308 = vmax.f32 %v7244, %v7276
        %v7309 = vmax.f32 %v7245, %v7277
        %v7310 = vmax.f32 %v7246, %v7278
        %v7311 = vmax.f32 %v7247, %v7279
        %v7312 = vmax.f32 %v7248, %v7280
        %v7313 = vmax.f32 %v7249, %v7281
        %v7314 = vmax.f32 %v7250, %v7282
        %v7315 = vmax.f32 %v7251, %v7283
        %v7316 = vmax.f32 %v7252, %v7284
        %v7317 = vmax.f32 %v7253, %v7285
        %v7318 = vmax.f32 %v7254, %v7286
        %v7319 = vmax.f32 %v7255, %v7287
        %v7320 = vmax.f32 %v7256, %v7288
        %v7321 = vmax.f32 %v7257, %v7289
        %v7322 = vmax.f32 %v7258, %v7290
        %v7323 = vmax.f32 %v7259, %v7291
        %v7324 = vmax.f32 %v7260, %v7292
        %v7325 = vmax.f32 %v7261, %v7293
        %v7326 = vmax.f32 %v7262, %v7294
        %v7327 = vmax.f32 %v7263, %v7295
        %v7328 = vadd.f32 %v7108, %v4707
        %v7329 = vadd.f32 %v7109, %v5150
        %v7330 = vadd.f32 %v7110, %v5155
        %v7331 = vadd.f32 %v7111, %v5160
        %v7332 = vadd.f32 %v7112, %v5165
        %v7333 = vadd.f32 %v7113, %v5170
        %v7334 = vadd.f32 %v7114, %v5175
        %v7335 = vadd.f32 %v7115, %v5180
        %v7336 = vadd.f32 %v7116, %v5185
        %v7337 = vadd.f32 %v7117, %v5190
        %v7338 = vadd.f32 %v7118, %v5195
        %v7339 = vadd.f32 %v7119, %v5200
        %v7340 = vadd.f32 %v7120, %v5205
        %v7341 = vadd.f32 %v7121, %v5210
        %v7342 = vadd.f32 %v7122, %v5215
        %v7343 = vadd.f32 %v7123, %v5220
        %v7344 = vadd.f32 %v7124, %v5225
        %v7345 = vadd.f32 %v7125, %v5230
        %v7346 = vadd.f32 %v7126, %v5235
        %v7347 = vadd.f32 %v7127, %v5240
        %v7348 = vadd.f32 %v7128, %v5245
        %v7349 = vadd.f32 %v7129, %v5250
        %v7350 = vadd.f32 %v7130, %v5255
        %v7351 = vadd.f32 %v7131, %v5260
        %v7352 = vadd.f32 %v7132, %v5265
        %v7353 = vadd.f32 %v7133, %v5270
        %v7354 = vadd.f32 %v7134, %v5275
        %v7355 = vadd.f32 %v7135, %v5280
        %v7356 = vadd.f32 %v7104, %v5285
        %v7357 = vadd.f32 %v7105, %v5290
        %v7358 = vadd.f32 %v7106, %v5295
        %v7359 = vadd.f32 %v7107, %v5300
        %v7360 = vmax.f32 %v7296, %v7328
        %v7361 = vmax.f32 %v7297, %v7329
        %v7362 = vmax.f32 %v7298, %v7330
        %v7363 = vmax.f32 %v7299, %v7331
        %v7364 = vmax.f32 %v7300, %v7332
        %v7365 = vmax.f32 %v7301, %v7333
        %v7366 = vmax.f32 %v7302, %v7334
        %v7367 = vmax.f32 %v7303, %v7335
        %v7368 = vmax.f32 %v7304, %v7336
        %v7369 = vmax.f32 %v7305, %v7337
        %v7370 = vmax.f32 %v7306, %v7338
        %v7371 = vmax.f32 %v7307, %v7339
        %v7372 = vmax.f32 %v7308, %v7340
        %v7373 = vmax.f32 %v7309, %v7341
        %v7374 = vmax.f32 %v7310, %v7342
        %v7375 = vmax.f32 %v7311, %v7343
        %v7376 = vmax.f32 %v7312, %v7344
        %v7377 = vmax.f32 %v7313, %v7345
        %v7378 = vmax.f32 %v7314, %v7346
        %v7379 = vmax.f32 %v7315, %v7347
        %v7380 = vmax.f32 %v7316, %v7348
        %v7381 = vmax.f32 %v7317, %v7349
        %v7382 = vmax.f32 %v7318, %v7350
        %v7383 = vmax.f32 %v7319, %v7351
        %v7384 = vmax.f32 %v7320, %v7352
        %v7385 = vmax.f32 %v7321, %v7353
        %v7386 = vmax.f32 %v7322, %v7354
        %v7387 = vmax.f32 %v7323, %v7355
        %v7388 = vmax.f32 %v7324, %v7356
        %v7389 = vmax.f32 %v7325, %v7357
        %v7390 = vmax.f32 %v7326, %v7358
        %v7391 = vmax.f32 %v7327, %v7359
        %v7392 = vpack.c.bf16 %v7361, %v7360
        %v7393 = vpack.c.bf16 %v7363, %v7362
        %v7394 = vpack.c.bf16 %v7365, %v7364
        %v7395 = vpack.c.bf16 %v7367, %v7366
        %v7396 = vpack.c.bf16 %v7369, %v7368
        %v7397 = vpack.c.bf16 %v7371, %v7370
        %v7398 = vpack.c.bf16 %v7373, %v7372
        %v7399 = vpack.c.bf16 %v7375, %v7374
        %v7400 = vpack.c.bf16 %v7377, %v7376
        %v7401 = vpack.c.bf16 %v7379, %v7378
        %v7402 = vpack.c.bf16 %v7381, %v7380
        %v7403 = vpack.c.bf16 %v7383, %v7382
        %v7404 = vpack.c.bf16 %v7385, %v7384
        %v7405 = vpack.c.bf16 %v7387, %v7386
        %v7406 = vpack.c.bf16 %v7389, %v7388
        %v7407 = vpack.c.bf16 %v7391, %v7390
        %s7408 = scalar_lea.vmem %s3, 12
        %v7409 = vld [vmem:[%s7408] sm:$0xf]
        %v7411 = vsel %vm5384, %v7392, 0
        %v7414 = vsel %vm5384, %v7393, 0
        %v7417 = vsel %vm5384, %v7394, 0
        %v7420 = vsel %vm5384, %v7395, 0
        %v7423 = vsel %vm5384, %v7396, 0
        %v7426 = vsel %vm5384, %v7397, 0
        %v7429 = vsel %vm5384, %v7398, 0
        %v7432 = vsel %vm5384, %v7399, 0
        %v7435 = vsel %vm5384, %v7400, 0
        %v7438 = vsel %vm5384, %v7401, 0
        %v7441 = vsel %vm5384, %v7402, 0
        %v7444 = vsel %vm5384, %v7403, 0
        %v7447 = vsel %vm5384, %v7404, 0
        %v7450 = vsel %vm5384, %v7405, 0
        %v7453 = vsel %vm5384, %v7406, 0
        %v7456 = vsel %vm5384, %v7407, 0
        %v7459 = vsel %vm5433, %v7409, 0
        %7461 = vmatpush.bf16.msra.mxu0 0
        %7462 = vmatpush.bf16.msra.mxu0 0
        %7463 = vmatpush.bf16.msra.mxu0 0
        %7464 = vmatpush.bf16.msra.mxu0 0
        %7465 = vmatpush.bf16.msra.mxu0 0
        %7466 = vmatpush.bf16.msra.mxu0 0
        %7467 = vmatpush.bf16.msra.mxu0 0
        %7468 = vmatpush.bf16.msra.mxu0 %v7459
        %7469 = vmatmul.bf16.gmra.mxu0 %v7411
        %v7470 = vpop.f32.mrf.mxu0
        %v7471 = vadd.f32 0.0, %v7470
        %v7472 = vpop.f32.mrf.mxu0
        %v7473 = vadd.f32 0.0, %v7472
        %7474 = vmatmul.bf16.gmra.mxu0 %v7414
        %v7475 = vpop.f32.mrf.mxu0
        %v7476 = vadd.f32 0.0, %v7475
        %v7477 = vpop.f32.mrf.mxu0
        %v7478 = vadd.f32 0.0, %v7477
        %7479 = vmatmul.bf16.gmra.mxu0 %v7417
        %v7480 = vpop.f32.mrf.mxu0
        %v7481 = vadd.f32 0.0, %v7480
        %v7482 = vpop.f32.mrf.mxu0
        %v7483 = vadd.f32 0.0, %v7482
        %7484 = vmatmul.bf16.gmra.mxu0 %v7420
        %v7485 = vpop.f32.mrf.mxu0
        %v7486 = vadd.f32 0.0, %v7485
        %v7487 = vpop.f32.mrf.mxu0
        %v7488 = vadd.f32 0.0, %v7487
        %7489 = vmatmul.bf16.gmra.mxu0 %v7423
        %v7490 = vpop.f32.mrf.mxu0
        %v7491 = vadd.f32 0.0, %v7490
        %v7492 = vpop.f32.mrf.mxu0
        %v7493 = vadd.f32 0.0, %v7492
        %7494 = vmatmul.bf16.gmra.mxu0 %v7426
        %v7495 = vpop.f32.mrf.mxu0
        %v7496 = vadd.f32 0.0, %v7495
        %v7497 = vpop.f32.mrf.mxu0
        %v7498 = vadd.f32 0.0, %v7497
        %7499 = vmatmul.bf16.gmra.mxu0 %v7429
        %v7500 = vpop.f32.mrf.mxu0
        %v7501 = vadd.f32 0.0, %v7500
        %v7502 = vpop.f32.mrf.mxu0
        %v7503 = vadd.f32 0.0, %v7502
        %7504 = vmatmul.bf16.gmra.mxu0 %v7432
        %v7505 = vpop.f32.mrf.mxu0
        %v7506 = vadd.f32 0.0, %v7505
        %v7507 = vpop.f32.mrf.mxu0
        %v7508 = vadd.f32 0.0, %v7507
        %7509 = vmatmul.bf16.gmra.mxu0 %v7435
        %v7510 = vpop.f32.mrf.mxu0
        %v7511 = vadd.f32 0.0, %v7510
        %v7512 = vpop.f32.mrf.mxu0
        %v7513 = vadd.f32 0.0, %v7512
        %7514 = vmatmul.bf16.gmra.mxu0 %v7438
        %v7515 = vpop.f32.mrf.mxu0
        %v7516 = vadd.f32 0.0, %v7515
        %v7517 = vpop.f32.mrf.mxu0
        %v7518 = vadd.f32 0.0, %v7517
        %7519 = vmatmul.bf16.gmra.mxu0 %v7441
        %v7520 = vpop.f32.mrf.mxu0
        %v7521 = vadd.f32 0.0, %v7520
        %v7522 = vpop.f32.mrf.mxu0
        %v7523 = vadd.f32 0.0, %v7522
        %7524 = vmatmul.bf16.gmra.mxu0 %v7444
        %v7525 = vpop.f32.mrf.mxu0
        %v7526 = vadd.f32 0.0, %v7525
        %v7527 = vpop.f32.mrf.mxu0
        %v7528 = vadd.f32 0.0, %v7527
        %7529 = vmatmul.bf16.gmra.mxu0 %v7447
        %v7530 = vpop.f32.mrf.mxu0
        %v7531 = vadd.f32 0.0, %v7530
        %v7532 = vpop.f32.mrf.mxu0
        %v7533 = vadd.f32 0.0, %v7532
        %7534 = vmatmul.bf16.gmra.mxu0 %v7450
        %v7535 = vpop.f32.mrf.mxu0
        %v7536 = vadd.f32 0.0, %v7535
        %v7537 = vpop.f32.mrf.mxu0
        %v7538 = vadd.f32 0.0, %v7537
        %7539 = vmatmul.bf16.gmra.mxu0 %v7453
        %v7540 = vpop.f32.mrf.mxu0
        %v7541 = vadd.f32 0.0, %v7540
        %v7542 = vpop.f32.mrf.mxu0
        %v7543 = vadd.f32 0.0, %v7542
        %7544 = vmatmul.bf16.gmra.mxu0 %v7456
        %v7545 = vpop.f32.mrf.mxu0
        %v7546 = vadd.f32 0.0, %v7545
        %v7547 = vpop.f32.mrf.mxu0
        %v7548 = vadd.f32 0.0, %v7547
        %7549 = vdwg.mxu0
        %v7550 = vadd.f32 %v6592, %v7471
        %v7551 = vadd.f32 %v6593, %v7473
        %v7552 = vadd.f32 %v6594, %v7476
        %v7553 = vadd.f32 %v6595, %v7478
        %v7554 = vadd.f32 %v6596, %v7481
        %v7555 = vadd.f32 %v6597, %v7483
        %v7556 = vadd.f32 %v6598, %v7486
        %v7557 = vadd.f32 %v6599, %v7488
        %v7558 = vadd.f32 %v6600, %v7491
        %v7559 = vadd.f32 %v6601, %v7493
        %v7560 = vadd.f32 %v6602, %v7496
        %v7561 = vadd.f32 %v6603, %v7498
        %v7562 = vadd.f32 %v6604, %v7501
        %v7563 = vadd.f32 %v6605, %v7503
        %v7564 = vadd.f32 %v6606, %v7506
        %v7565 = vadd.f32 %v6607, %v7508
        %v7566 = vadd.f32 %v6608, %v7511
        %v7567 = vadd.f32 %v6609, %v7513
        %v7568 = vadd.f32 %v6610, %v7516
        %v7569 = vadd.f32 %v6611, %v7518
        %v7570 = vadd.f32 %v6612, %v7521
        %v7571 = vadd.f32 %v6613, %v7523
        %v7572 = vadd.f32 %v6614, %v7526
        %v7573 = vadd.f32 %v6615, %v7528
        %v7574 = vadd.f32 %v6616, %v7531
        %v7575 = vadd.f32 %v6617, %v7533
        %v7576 = vadd.f32 %v6618, %v7536
        %v7577 = vadd.f32 %v6619, %v7538
        %v7578 = vadd.f32 %v6620, %v7541
        %v7579 = vadd.f32 %v6621, %v7543
        %v7580 = vadd.f32 %v6622, %v7546
        %v7581 = vadd.f32 %v6623, %v7548
        %v7582 = vld [vmem:[%s4] sm:$0x1]
        %v7584 = vperm.slane %v7582, 0
        %v7586 = vadd.f32 %v7550, %v7584
        %v7587 = vadd.f32 %v7551, %v7584
        %v7588 = vadd.f32 %v7552, %v7584
        %v7589 = vadd.f32 %v7553, %v7584
        %v7590 = vadd.f32 %v7554, %v7584
        %v7591 = vadd.f32 %v7555, %v7584
        %v7592 = vadd.f32 %v7556, %v7584
        %v7593 = vadd.f32 %v7557, %v7584
        %v7594 = vadd.f32 %v7558, %v7584
        %v7595 = vadd.f32 %v7559, %v7584
        %v7596 = vadd.f32 %v7560, %v7584
        %v7597 = vadd.f32 %v7561, %v7584
        %v7598 = vadd.f32 %v7562, %v7584
        %v7599 = vadd.f32 %v7563, %v7584
        %v7600 = vadd.f32 %v7564, %v7584
        %v7601 = vadd.f32 %v7565, %v7584
        %v7602 = vadd.f32 %v7566, %v7584
        %v7603 = vadd.f32 %v7567, %v7584
        %v7604 = vadd.f32 %v7568, %v7584
        %v7605 = vadd.f32 %v7569, %v7584
        %v7606 = vadd.f32 %v7570, %v7584
        %v7607 = vadd.f32 %v7571, %v7584
        %v7608 = vadd.f32 %v7572, %v7584
        %v7609 = vadd.f32 %v7573, %v7584
        %v7610 = vadd.f32 %v7574, %v7584
        %v7611 = vadd.f32 %v7575, %v7584
        %v7612 = vadd.f32 %v7576, %v7584
        %v7613 = vadd.f32 %v7577, %v7584
        %v7614 = vadd.f32 %v7578, %v7584
        %v7615 = vadd.f32 %v7579, %v7584
        %v7616 = vadd.f32 %v7580, %v7584
        %v7617 = vadd.f32 %v7581, %v7584
        %v7618 = vxor.u32 %v7586, 2147483648
        %v7619 = vxor.u32 %v7587, 2147483648
        %v7620 = vxor.u32 %v7588, 2147483648
        %v7621 = vxor.u32 %v7589, 2147483648
        %v7622 = vxor.u32 %v7590, 2147483648
        %v7623 = vxor.u32 %v7591, 2147483648
        %v7624 = vxor.u32 %v7592, 2147483648
        %v7625 = vxor.u32 %v7593, 2147483648
        %v7626 = vxor.u32 %v7594, 2147483648
        %v7627 = vxor.u32 %v7595, 2147483648
        %v7628 = vxor.u32 %v7596, 2147483648
        %v7629 = vxor.u32 %v7597, 2147483648
        %v7630 = vxor.u32 %v7598, 2147483648
        %v7631 = vxor.u32 %v7599, 2147483648
        %v7632 = vxor.u32 %v7600, 2147483648
        %v7633 = vxor.u32 %v7601, 2147483648
        %v7634 = vxor.u32 %v7602, 2147483648
        %v7635 = vxor.u32 %v7603, 2147483648
        %v7636 = vxor.u32 %v7604, 2147483648
        %v7637 = vxor.u32 %v7605, 2147483648
        %v7638 = vxor.u32 %v7606, 2147483648
        %v7639 = vxor.u32 %v7607, 2147483648
        %v7640 = vxor.u32 %v7608, 2147483648
        %v7641 = vxor.u32 %v7609, 2147483648
        %v7642 = vxor.u32 %v7610, 2147483648
        %v7643 = vxor.u32 %v7611, 2147483648
        %v7644 = vxor.u32 %v7612, 2147483648
        %v7645 = vxor.u32 %v7613, 2147483648
        %v7646 = vxor.u32 %v7614, 2147483648
        %v7647 = vxor.u32 %v7615, 2147483648
        %v7648 = vxor.u32 %v7616, 2147483648
        %v7649 = vxor.u32 %v7617, 2147483648
        %v7650 = vmul.f32 %v7618, 1.442695
        %v7651 = vpow.pop %v7650
        %v7652 = vmul.f32 %v7619, 1.442695
        %v7653 = vpow.pop %v7652
        %v7654 = vmul.f32 %v7620, 1.442695
        %v7655 = vpow.pop %v7654
        %v7656 = vmul.f32 %v7621, 1.442695
        %v7657 = vpow.pop %v7656
        %v7658 = vmul.f32 %v7622, 1.442695
        %v7659 = vpow.pop %v7658
        %v7660 = vmul.f32 %v7623, 1.442695
        %v7661 = vpow.pop %v7660
        %v7662 = vmul.f32 %v7624, 1.442695
        %v7663 = vpow.pop %v7662
        %v7664 = vmul.f32 %v7625, 1.442695
        %v7665 = vpow.pop %v7664
        %v7666 = vmul.f32 %v7626, 1.442695
        %v7667 = vpow.pop %v7666
        %v7668 = vmul.f32 %v7627, 1.442695
        %v7669 = vpow.pop %v7668
        %v7670 = vmul.f32 %v7628, 1.442695
        %v7671 = vpow.pop %v7670
        %v7672 = vmul.f32 %v7629, 1.442695
        %v7673 = vpow.pop %v7672
        %v7674 = vmul.f32 %v7630, 1.442695
        %v7675 = vpow.pop %v7674
        %v7676 = vmul.f32 %v7631, 1.442695
        %v7677 = vpow.pop %v7676
        %v7678 = vmul.f32 %v7632, 1.442695
        %v7679 = vpow.pop %v7678
        %v7680 = vmul.f32 %v7633, 1.442695
        %v7681 = vpow.pop %v7680
        %v7682 = vmul.f32 %v7634, 1.442695
        %v7683 = vpow.pop %v7682
        %v7684 = vmul.f32 %v7635, 1.442695
        %v7685 = vpow.pop %v7684
        %v7686 = vmul.f32 %v7636, 1.442695
        %v7687 = vpow.pop %v7686
        %v7688 = vmul.f32 %v7637, 1.442695
        %v7689 = vpow.pop %v7688
        %v7690 = vmul.f32 %v7638, 1.442695
        %v7691 = vpow.pop %v7690
        %v7692 = vmul.f32 %v7639, 1.442695
        %v7693 = vpow.pop %v7692
        %v7694 = vmul.f32 %v7640, 1.442695
        %v7695 = vpow.pop %v7694
        %v7696 = vmul.f32 %v7641, 1.442695
        %v7697 = vpow.pop %v7696
        %v7698 = vmul.f32 %v7642, 1.442695
        %v7699 = vpow.pop %v7698
        %v7700 = vmul.f32 %v7643, 1.442695
        %v7701 = vpow.pop %v7700
        %v7702 = vmul.f32 %v7644, 1.442695
        %v7703 = vpow.pop %v7702
        %v7704 = vmul.f32 %v7645, 1.442695
        %v7705 = vpow.pop %v7704
        %v7706 = vmul.f32 %v7646, 1.442695
        %v7707 = vpow.pop %v7706
        %v7708 = vmul.f32 %v7647, 1.442695
        %v7709 = vpow.pop %v7708
        %v7710 = vmul.f32 %v7648, 1.442695
        %v7711 = vpow.pop %v7710
        %v7712 = vmul.f32 %v7649, 1.442695
        %v7713 = vpow.pop %v7712
        %v7714 = vadd.f32 %v7651, 1.0
        %v7715 = vadd.f32 %v7653, 1.0
        %v7716 = vadd.f32 %v7655, 1.0
        %v7717 = vadd.f32 %v7657, 1.0
        %v7718 = vadd.f32 %v7659, 1.0
        %v7719 = vadd.f32 %v7661, 1.0
        %v7720 = vadd.f32 %v7663, 1.0
        %v7721 = vadd.f32 %v7665, 1.0
        %v7722 = vadd.f32 %v7667, 1.0
        %v7723 = vadd.f32 %v7669, 1.0
        %v7724 = vadd.f32 %v7671, 1.0
        %v7725 = vadd.f32 %v7673, 1.0
        %v7726 = vadd.f32 %v7675, 1.0
        %v7727 = vadd.f32 %v7677, 1.0
        %v7728 = vadd.f32 %v7679, 1.0
        %v7729 = vadd.f32 %v7681, 1.0
        %v7730 = vadd.f32 %v7683, 1.0
        %v7731 = vadd.f32 %v7685, 1.0
        %v7732 = vadd.f32 %v7687, 1.0
        %v7733 = vadd.f32 %v7689, 1.0
        %v7734 = vadd.f32 %v7691, 1.0
        %v7735 = vadd.f32 %v7693, 1.0
        %v7736 = vadd.f32 %v7695, 1.0
        %v7737 = vadd.f32 %v7697, 1.0
        %v7738 = vadd.f32 %v7699, 1.0
        %v7739 = vadd.f32 %v7701, 1.0
        %v7740 = vadd.f32 %v7703, 1.0
        %v7741 = vadd.f32 %v7705, 1.0
        %v7742 = vadd.f32 %v7707, 1.0
        %v7743 = vadd.f32 %v7709, 1.0
        %v7744 = vadd.f32 %v7711, 1.0
        %v7745 = vadd.f32 %v7713, 1.0
        %v7746 = vrcp.pop %v7714
        %v7747 = vmul.f32 %v7714, %v7746
        %v7748 = vsub.f32 1.0, %v7747
        %v7749 = vmul.f32 %v7746, %v7748
        %v7750 = vadd.f32 %v7746, %v7749
        %vm7751 = vweird.f32 %v7714
        %vm7752 = vweird.f32 %v7746
        %vm7753 = vmor %vm7751, %vm7752
        %v7754 = vsel %vm7753, %v7746, %v7750
        %v7755 = vand.u32 2147483647, %v7714
        %vm7756 = vcmp.eq.f32.partialorder %v7755, 8.507059e+37
        %v7757 = vand.u32 %v7714, 2147483648
        %v7758 = vor.u32 1.1754944e-38, %v7757
        %v7759 = vsel %vm7756, %v7758, %v7754
        %v7760 = vmul.f32 1.0, %v7759
        %v7761 = vrcp.pop %v7715
        %v7762 = vmul.f32 %v7715, %v7761
        %v7763 = vsub.f32 1.0, %v7762
        %v7764 = vmul.f32 %v7761, %v7763
        %v7765 = vadd.f32 %v7761, %v7764
        %vm7766 = vweird.f32 %v7715
        %vm7767 = vweird.f32 %v7761
        %vm7768 = vmor %vm7766, %vm7767
        %v7769 = vsel %vm7768, %v7761, %v7765
        %v7770 = vand.u32 2147483647, %v7715
        %vm7771 = vcmp.eq.f32.partialorder %v7770, 8.507059e+37
        %v7772 = vand.u32 %v7715, 2147483648
        %v7773 = vor.u32 1.1754944e-38, %v7772
        %v7774 = vsel %vm7771, %v7773, %v7769
        %v7775 = vmul.f32 1.0, %v7774
        %v7776 = vrcp.pop %v7716
        %v7777 = vmul.f32 %v7716, %v7776
        %v7778 = vsub.f32 1.0, %v7777
        %v7779 = vmul.f32 %v7776, %v7778
        %v7780 = vadd.f32 %v7776, %v7779
        %vm7781 = vweird.f32 %v7716
        %vm7782 = vweird.f32 %v7776
        %vm7783 = vmor %vm7781, %vm7782
        %v7784 = vsel %vm7783, %v7776, %v7780
        %v7785 = vand.u32 2147483647, %v7716
        %vm7786 = vcmp.eq.f32.partialorder %v7785, 8.507059e+37
        %v7787 = vand.u32 %v7716, 2147483648
        %v7788 = vor.u32 1.1754944e-38, %v7787
        %v7789 = vsel %vm7786, %v7788, %v7784
        %v7790 = vmul.f32 1.0, %v7789
        %v7791 = vrcp.pop %v7717
        %v7792 = vmul.f32 %v7717, %v7791
        %v7793 = vsub.f32 1.0, %v7792
        %v7794 = vmul.f32 %v7791, %v7793
        %v7795 = vadd.f32 %v7791, %v7794
        %vm7796 = vweird.f32 %v7717
        %vm7797 = vweird.f32 %v7791
        %vm7798 = vmor %vm7796, %vm7797
        %v7799 = vsel %vm7798, %v7791, %v7795
        %v7800 = vand.u32 2147483647, %v7717
        %vm7801 = vcmp.eq.f32.partialorder %v7800, 8.507059e+37
        %v7802 = vand.u32 %v7717, 2147483648
        %v7803 = vor.u32 1.1754944e-38, %v7802
        %v7804 = vsel %vm7801, %v7803, %v7799
        %v7805 = vmul.f32 1.0, %v7804
        %v7806 = vrcp.pop %v7718
        %v7807 = vmul.f32 %v7718, %v7806
        %v7808 = vsub.f32 1.0, %v7807
        %v7809 = vmul.f32 %v7806, %v7808
        %v7810 = vadd.f32 %v7806, %v7809
        %vm7811 = vweird.f32 %v7718
        %vm7812 = vweird.f32 %v7806
        %vm7813 = vmor %vm7811, %vm7812
        %v7814 = vsel %vm7813, %v7806, %v7810
        %v7815 = vand.u32 2147483647, %v7718
        %vm7816 = vcmp.eq.f32.partialorder %v7815, 8.507059e+37
        %v7817 = vand.u32 %v7718, 2147483648
        %v7818 = vor.u32 1.1754944e-38, %v7817
        %v7819 = vsel %vm7816, %v7818, %v7814
        %v7820 = vmul.f32 1.0, %v7819
        %v7821 = vrcp.pop %v7719
        %v7822 = vmul.f32 %v7719, %v7821
        %v7823 = vsub.f32 1.0, %v7822
        %v7824 = vmul.f32 %v7821, %v7823
        %v7825 = vadd.f32 %v7821, %v7824
        %vm7826 = vweird.f32 %v7719
        %vm7827 = vweird.f32 %v7821
        %vm7828 = vmor %vm7826, %vm7827
        %v7829 = vsel %vm7828, %v7821, %v7825
        %v7830 = vand.u32 2147483647, %v7719
        %vm7831 = vcmp.eq.f32.partialorder %v7830, 8.507059e+37
        %v7832 = vand.u32 %v7719, 2147483648
        %v7833 = vor.u32 1.1754944e-38, %v7832
        %v7834 = vsel %vm7831, %v7833, %v7829
        %v7835 = vmul.f32 1.0, %v7834
        %v7836 = vrcp.pop %v7720
        %v7837 = vmul.f32 %v7720, %v7836
        %v7838 = vsub.f32 1.0, %v7837
        %v7839 = vmul.f32 %v7836, %v7838
        %v7840 = vadd.f32 %v7836, %v7839
        %vm7841 = vweird.f32 %v7720
        %vm7842 = vweird.f32 %v7836
        %vm7843 = vmor %vm7841, %vm7842
        %v7844 = vsel %vm7843, %v7836, %v7840
        %v7845 = vand.u32 2147483647, %v7720
        %vm7846 = vcmp.eq.f32.partialorder %v7845, 8.507059e+37
        %v7847 = vand.u32 %v7720, 2147483648
        %v7848 = vor.u32 1.1754944e-38, %v7847
        %v7849 = vsel %vm7846, %v7848, %v7844
        %v7850 = vmul.f32 1.0, %v7849
        %v7851 = vrcp.pop %v7721
        %v7852 = vmul.f32 %v7721, %v7851
        %v7853 = vsub.f32 1.0, %v7852
        %v7854 = vmul.f32 %v7851, %v7853
        %v7855 = vadd.f32 %v7851, %v7854
        %vm7856 = vweird.f32 %v7721
        %vm7857 = vweird.f32 %v7851
        %vm7858 = vmor %vm7856, %vm7857
        %v7859 = vsel %vm7858, %v7851, %v7855
        %v7860 = vand.u32 2147483647, %v7721
        %vm7861 = vcmp.eq.f32.partialorder %v7860, 8.507059e+37
        %v7862 = vand.u32 %v7721, 2147483648
        %v7863 = vor.u32 1.1754944e-38, %v7862
        %v7864 = vsel %vm7861, %v7863, %v7859
        %v7865 = vmul.f32 1.0, %v7864
        %v7866 = vrcp.pop %v7722
        %v7867 = vmul.f32 %v7722, %v7866
        %v7868 = vsub.f32 1.0, %v7867
        %v7869 = vmul.f32 %v7866, %v7868
        %v7870 = vadd.f32 %v7866, %v7869
        %vm7871 = vweird.f32 %v7722
        %vm7872 = vweird.f32 %v7866
        %vm7873 = vmor %vm7871, %vm7872
        %v7874 = vsel %vm7873, %v7866, %v7870
        %v7875 = vand.u32 2147483647, %v7722
        %vm7876 = vcmp.eq.f32.partialorder %v7875, 8.507059e+37
        %v7877 = vand.u32 %v7722, 2147483648
        %v7878 = vor.u32 1.1754944e-38, %v7877
        %v7879 = vsel %vm7876, %v7878, %v7874
        %v7880 = vmul.f32 1.0, %v7879
        %v7881 = vrcp.pop %v7723
        %v7882 = vmul.f32 %v7723, %v7881
        %v7883 = vsub.f32 1.0, %v7882
        %v7884 = vmul.f32 %v7881, %v7883
        %v7885 = vadd.f32 %v7881, %v7884
        %vm7886 = vweird.f32 %v7723
        %vm7887 = vweird.f32 %v7881
        %vm7888 = vmor %vm7886, %vm7887
        %v7889 = vsel %vm7888, %v7881, %v7885
        %v7890 = vand.u32 2147483647, %v7723
        %vm7891 = vcmp.eq.f32.partialorder %v7890, 8.507059e+37
        %v7892 = vand.u32 %v7723, 2147483648
        %v7893 = vor.u32 1.1754944e-38, %v7892
        %v7894 = vsel %vm7891, %v7893, %v7889
        %v7895 = vmul.f32 1.0, %v7894
        %v7896 = vrcp.pop %v7724
        %v7897 = vmul.f32 %v7724, %v7896
        %v7898 = vsub.f32 1.0, %v7897
        %v7899 = vmul.f32 %v7896, %v7898
        %v7900 = vadd.f32 %v7896, %v7899
        %vm7901 = vweird.f32 %v7724
        %vm7902 = vweird.f32 %v7896
        %vm7903 = vmor %vm7901, %vm7902
        %v7904 = vsel %vm7903, %v7896, %v7900
        %v7905 = vand.u32 2147483647, %v7724
        %vm7906 = vcmp.eq.f32.partialorder %v7905, 8.507059e+37
        %v7907 = vand.u32 %v7724, 2147483648
        %v7908 = vor.u32 1.1754944e-38, %v7907
        %v7909 = vsel %vm7906, %v7908, %v7904
        %v7910 = vmul.f32 1.0, %v7909
        %v7911 = vrcp.pop %v7725
        %v7912 = vmul.f32 %v7725, %v7911
        %v7913 = vsub.f32 1.0, %v7912
        %v7914 = vmul.f32 %v7911, %v7913
        %v7915 = vadd.f32 %v7911, %v7914
        %vm7916 = vweird.f32 %v7725
        %vm7917 = vweird.f32 %v7911
        %vm7918 = vmor %vm7916, %vm7917
        %v7919 = vsel %vm7918, %v7911, %v7915
        %v7920 = vand.u32 2147483647, %v7725
        %vm7921 = vcmp.eq.f32.partialorder %v7920, 8.507059e+37
        %v7922 = vand.u32 %v7725, 2147483648
        %v7923 = vor.u32 1.1754944e-38, %v7922
        %v7924 = vsel %vm7921, %v7923, %v7919
        %v7925 = vmul.f32 1.0, %v7924
        %v7926 = vrcp.pop %v7726
        %v7927 = vmul.f32 %v7726, %v7926
        %v7928 = vsub.f32 1.0, %v7927
        %v7929 = vmul.f32 %v7926, %v7928
        %v7930 = vadd.f32 %v7926, %v7929
        %vm7931 = vweird.f32 %v7726
        %vm7932 = vweird.f32 %v7926
        %vm7933 = vmor %vm7931, %vm7932
        %v7934 = vsel %vm7933, %v7926, %v7930
        %v7935 = vand.u32 2147483647, %v7726
        %vm7936 = vcmp.eq.f32.partialorder %v7935, 8.507059e+37
        %v7937 = vand.u32 %v7726, 2147483648
        %v7938 = vor.u32 1.1754944e-38, %v7937
        %v7939 = vsel %vm7936, %v7938, %v7934
        %v7940 = vmul.f32 1.0, %v7939
        %v7941 = vrcp.pop %v7727
        %v7942 = vmul.f32 %v7727, %v7941
        %v7943 = vsub.f32 1.0, %v7942
        %v7944 = vmul.f32 %v7941, %v7943
        %v7945 = vadd.f32 %v7941, %v7944
        %vm7946 = vweird.f32 %v7727
        %vm7947 = vweird.f32 %v7941
        %vm7948 = vmor %vm7946, %vm7947
        %v7949 = vsel %vm7948, %v7941, %v7945
        %v7950 = vand.u32 2147483647, %v7727
        %vm7951 = vcmp.eq.f32.partialorder %v7950, 8.507059e+37
        %v7952 = vand.u32 %v7727, 2147483648
        %v7953 = vor.u32 1.1754944e-38, %v7952
        %v7954 = vsel %vm7951, %v7953, %v7949
        %v7955 = vmul.f32 1.0, %v7954
        %v7956 = vrcp.pop %v7728
        %v7957 = vmul.f32 %v7728, %v7956
        %v7958 = vsub.f32 1.0, %v7957
        %v7959 = vmul.f32 %v7956, %v7958
        %v7960 = vadd.f32 %v7956, %v7959
        %vm7961 = vweird.f32 %v7728
        %vm7962 = vweird.f32 %v7956
        %vm7963 = vmor %vm7961, %vm7962
        %v7964 = vsel %vm7963, %v7956, %v7960
        %v7965 = vand.u32 2147483647, %v7728
        %vm7966 = vcmp.eq.f32.partialorder %v7965, 8.507059e+37
        %v7967 = vand.u32 %v7728, 2147483648
        %v7968 = vor.u32 1.1754944e-38, %v7967
        %v7969 = vsel %vm7966, %v7968, %v7964
        %v7970 = vmul.f32 1.0, %v7969
        %v7971 = vrcp.pop %v7729
        %v7972 = vmul.f32 %v7729, %v7971
        %v7973 = vsub.f32 1.0, %v7972
        %v7974 = vmul.f32 %v7971, %v7973
        %v7975 = vadd.f32 %v7971, %v7974
        %vm7976 = vweird.f32 %v7729
        %vm7977 = vweird.f32 %v7971
        %vm7978 = vmor %vm7976, %vm7977
        %v7979 = vsel %vm7978, %v7971, %v7975
        %v7980 = vand.u32 2147483647, %v7729
        %vm7981 = vcmp.eq.f32.partialorder %v7980, 8.507059e+37
        %v7982 = vand.u32 %v7729, 2147483648
        %v7983 = vor.u32 1.1754944e-38, %v7982
        %v7984 = vsel %vm7981, %v7983, %v7979
        %v7985 = vmul.f32 1.0, %v7984
        %v7986 = vrcp.pop %v7730
        %v7987 = vmul.f32 %v7730, %v7986
        %v7988 = vsub.f32 1.0, %v7987
        %v7989 = vmul.f32 %v7986, %v7988
        %v7990 = vadd.f32 %v7986, %v7989
        %vm7991 = vweird.f32 %v7730
        %vm7992 = vweird.f32 %v7986
        %vm7993 = vmor %vm7991, %vm7992
        %v7994 = vsel %vm7993, %v7986, %v7990
        %v7995 = vand.u32 2147483647, %v7730
        %vm7996 = vcmp.eq.f32.partialorder %v7995, 8.507059e+37
        %v7997 = vand.u32 %v7730, 2147483648
        %v7998 = vor.u32 1.1754944e-38, %v7997
        %v7999 = vsel %vm7996, %v7998, %v7994
        %v8000 = vmul.f32 1.0, %v7999
        %v8001 = vrcp.pop %v7731
        %v8002 = vmul.f32 %v7731, %v8001
        %v8003 = vsub.f32 1.0, %v8002
        %v8004 = vmul.f32 %v8001, %v8003
        %v8005 = vadd.f32 %v8001, %v8004
        %vm8006 = vweird.f32 %v7731
        %vm8007 = vweird.f32 %v8001
        %vm8008 = vmor %vm8006, %vm8007
        %v8009 = vsel %vm8008, %v8001, %v8005
        %v8010 = vand.u32 2147483647, %v7731
        %vm8011 = vcmp.eq.f32.partialorder %v8010, 8.507059e+37
        %v8012 = vand.u32 %v7731, 2147483648
        %v8013 = vor.u32 1.1754944e-38, %v8012
        %v8014 = vsel %vm8011, %v8013, %v8009
        %v8015 = vmul.f32 1.0, %v8014
        %v8016 = vrcp.pop %v7732
        %v8017 = vmul.f32 %v7732, %v8016
        %v8018 = vsub.f32 1.0, %v8017
        %v8019 = vmul.f32 %v8016, %v8018
        %v8020 = vadd.f32 %v8016, %v8019
        %vm8021 = vweird.f32 %v7732
        %vm8022 = vweird.f32 %v8016
        %vm8023 = vmor %vm8021, %vm8022
        %v8024 = vsel %vm8023, %v8016, %v8020
        %v8025 = vand.u32 2147483647, %v7732
        %vm8026 = vcmp.eq.f32.partialorder %v8025, 8.507059e+37
        %v8027 = vand.u32 %v7732, 2147483648
        %v8028 = vor.u32 1.1754944e-38, %v8027
        %v8029 = vsel %vm8026, %v8028, %v8024
        %v8030 = vmul.f32 1.0, %v8029
        %v8031 = vrcp.pop %v7733
        %v8032 = vmul.f32 %v7733, %v8031
        %v8033 = vsub.f32 1.0, %v8032
        %v8034 = vmul.f32 %v8031, %v8033
        %v8035 = vadd.f32 %v8031, %v8034
        %vm8036 = vweird.f32 %v7733
        %vm8037 = vweird.f32 %v8031
        %vm8038 = vmor %vm8036, %vm8037
        %v8039 = vsel %vm8038, %v8031, %v8035
        %v8040 = vand.u32 2147483647, %v7733
        %vm8041 = vcmp.eq.f32.partialorder %v8040, 8.507059e+37
        %v8042 = vand.u32 %v7733, 2147483648
        %v8043 = vor.u32 1.1754944e-38, %v8042
        %v8044 = vsel %vm8041, %v8043, %v8039
        %v8045 = vmul.f32 1.0, %v8044
        %v8046 = vrcp.pop %v7734
        %v8047 = vmul.f32 %v7734, %v8046
        %v8048 = vsub.f32 1.0, %v8047
        %v8049 = vmul.f32 %v8046, %v8048
        %v8050 = vadd.f32 %v8046, %v8049
        %vm8051 = vweird.f32 %v7734
        %vm8052 = vweird.f32 %v8046
        %vm8053 = vmor %vm8051, %vm8052
        %v8054 = vsel %vm8053, %v8046, %v8050
        %v8055 = vand.u32 2147483647, %v7734
        %vm8056 = vcmp.eq.f32.partialorder %v8055, 8.507059e+37
        %v8057 = vand.u32 %v7734, 2147483648
        %v8058 = vor.u32 1.1754944e-38, %v8057
        %v8059 = vsel %vm8056, %v8058, %v8054
        %v8060 = vmul.f32 1.0, %v8059
        %v8061 = vrcp.pop %v7735
        %v8062 = vmul.f32 %v7735, %v8061
        %v8063 = vsub.f32 1.0, %v8062
        %v8064 = vmul.f32 %v8061, %v8063
        %v8065 = vadd.f32 %v8061, %v8064
        %vm8066 = vweird.f32 %v7735
        %vm8067 = vweird.f32 %v8061
        %vm8068 = vmor %vm8066, %vm8067
        %v8069 = vsel %vm8068, %v8061, %v8065
        %v8070 = vand.u32 2147483647, %v7735
        %vm8071 = vcmp.eq.f32.partialorder %v8070, 8.507059e+37
        %v8072 = vand.u32 %v7735, 2147483648
        %v8073 = vor.u32 1.1754944e-38, %v8072
        %v8074 = vsel %vm8071, %v8073, %v8069
        %v8075 = vmul.f32 1.0, %v8074
        %v8076 = vrcp.pop %v7736
        %v8077 = vmul.f32 %v7736, %v8076
        %v8078 = vsub.f32 1.0, %v8077
        %v8079 = vmul.f32 %v8076, %v8078
        %v8080 = vadd.f32 %v8076, %v8079
        %vm8081 = vweird.f32 %v7736
        %vm8082 = vweird.f32 %v8076
        %vm8083 = vmor %vm8081, %vm8082
        %v8084 = vsel %vm8083, %v8076, %v8080
        %v8085 = vand.u32 2147483647, %v7736
        %vm8086 = vcmp.eq.f32.partialorder %v8085, 8.507059e+37
        %v8087 = vand.u32 %v7736, 2147483648
        %v8088 = vor.u32 1.1754944e-38, %v8087
        %v8089 = vsel %vm8086, %v8088, %v8084
        %v8090 = vmul.f32 1.0, %v8089
        %v8091 = vrcp.pop %v7737
        %v8092 = vmul.f32 %v7737, %v8091
        %v8093 = vsub.f32 1.0, %v8092
        %v8094 = vmul.f32 %v8091, %v8093
        %v8095 = vadd.f32 %v8091, %v8094
        %vm8096 = vweird.f32 %v7737
        %vm8097 = vweird.f32 %v8091
        %vm8098 = vmor %vm8096, %vm8097
        %v8099 = vsel %vm8098, %v8091, %v8095
        %v8100 = vand.u32 2147483647, %v7737
        %vm8101 = vcmp.eq.f32.partialorder %v8100, 8.507059e+37
        %v8102 = vand.u32 %v7737, 2147483648
        %v8103 = vor.u32 1.1754944e-38, %v8102
        %v8104 = vsel %vm8101, %v8103, %v8099
        %v8105 = vmul.f32 1.0, %v8104
        %v8106 = vrcp.pop %v7738
        %v8107 = vmul.f32 %v7738, %v8106
        %v8108 = vsub.f32 1.0, %v8107
        %v8109 = vmul.f32 %v8106, %v8108
        %v8110 = vadd.f32 %v8106, %v8109
        %vm8111 = vweird.f32 %v7738
        %vm8112 = vweird.f32 %v8106
        %vm8113 = vmor %vm8111, %vm8112
        %v8114 = vsel %vm8113, %v8106, %v8110
        %v8115 = vand.u32 2147483647, %v7738
        %vm8116 = vcmp.eq.f32.partialorder %v8115, 8.507059e+37
        %v8117 = vand.u32 %v7738, 2147483648
        %v8118 = vor.u32 1.1754944e-38, %v8117
        %v8119 = vsel %vm8116, %v8118, %v8114
        %v8120 = vmul.f32 1.0, %v8119
        %v8121 = vrcp.pop %v7739
        %v8122 = vmul.f32 %v7739, %v8121
        %v8123 = vsub.f32 1.0, %v8122
        %v8124 = vmul.f32 %v8121, %v8123
        %v8125 = vadd.f32 %v8121, %v8124
        %vm8126 = vweird.f32 %v7739
        %vm8127 = vweird.f32 %v8121
        %vm8128 = vmor %vm8126, %vm8127
        %v8129 = vsel %vm8128, %v8121, %v8125
        %v8130 = vand.u32 2147483647, %v7739
        %vm8131 = vcmp.eq.f32.partialorder %v8130, 8.507059e+37
        %v8132 = vand.u32 %v7739, 2147483648
        %v8133 = vor.u32 1.1754944e-38, %v8132
        %v8134 = vsel %vm8131, %v8133, %v8129
        %v8135 = vmul.f32 1.0, %v8134
        %v8136 = vrcp.pop %v7740
        %v8137 = vmul.f32 %v7740, %v8136
        %v8138 = vsub.f32 1.0, %v8137
        %v8139 = vmul.f32 %v8136, %v8138
        %v8140 = vadd.f32 %v8136, %v8139
        %vm8141 = vweird.f32 %v7740
        %vm8142 = vweird.f32 %v8136
        %vm8143 = vmor %vm8141, %vm8142
        %v8144 = vsel %vm8143, %v8136, %v8140
        %v8145 = vand.u32 2147483647, %v7740
        %vm8146 = vcmp.eq.f32.partialorder %v8145, 8.507059e+37
        %v8147 = vand.u32 %v7740, 2147483648
        %v8148 = vor.u32 1.1754944e-38, %v8147
        %v8149 = vsel %vm8146, %v8148, %v8144
        %v8150 = vmul.f32 1.0, %v8149
        %v8151 = vrcp.pop %v7741
        %v8152 = vmul.f32 %v7741, %v8151
        %v8153 = vsub.f32 1.0, %v8152
        %v8154 = vmul.f32 %v8151, %v8153
        %v8155 = vadd.f32 %v8151, %v8154
        %vm8156 = vweird.f32 %v7741
        %vm8157 = vweird.f32 %v8151
        %vm8158 = vmor %vm8156, %vm8157
        %v8159 = vsel %vm8158, %v8151, %v8155
        %v8160 = vand.u32 2147483647, %v7741
        %vm8161 = vcmp.eq.f32.partialorder %v8160, 8.507059e+37
        %v8162 = vand.u32 %v7741, 2147483648
        %v8163 = vor.u32 1.1754944e-38, %v8162
        %v8164 = vsel %vm8161, %v8163, %v8159
        %v8165 = vmul.f32 1.0, %v8164
        %v8166 = vrcp.pop %v7742
        %v8167 = vmul.f32 %v7742, %v8166
        %v8168 = vsub.f32 1.0, %v8167
        %v8169 = vmul.f32 %v8166, %v8168
        %v8170 = vadd.f32 %v8166, %v8169
        %vm8171 = vweird.f32 %v7742
        %vm8172 = vweird.f32 %v8166
        %vm8173 = vmor %vm8171, %vm8172
        %v8174 = vsel %vm8173, %v8166, %v8170
        %v8175 = vand.u32 2147483647, %v7742
        %vm8176 = vcmp.eq.f32.partialorder %v8175, 8.507059e+37
        %v8177 = vand.u32 %v7742, 2147483648
        %v8178 = vor.u32 1.1754944e-38, %v8177
        %v8179 = vsel %vm8176, %v8178, %v8174
        %v8180 = vmul.f32 1.0, %v8179
        %v8181 = vrcp.pop %v7743
        %v8182 = vmul.f32 %v7743, %v8181
        %v8183 = vsub.f32 1.0, %v8182
        %v8184 = vmul.f32 %v8181, %v8183
        %v8185 = vadd.f32 %v8181, %v8184
        %vm8186 = vweird.f32 %v7743
        %vm8187 = vweird.f32 %v8181
        %vm8188 = vmor %vm8186, %vm8187
        %v8189 = vsel %vm8188, %v8181, %v8185
        %v8190 = vand.u32 2147483647, %v7743
        %vm8191 = vcmp.eq.f32.partialorder %v8190, 8.507059e+37
        %v8192 = vand.u32 %v7743, 2147483648
        %v8193 = vor.u32 1.1754944e-38, %v8192
        %v8194 = vsel %vm8191, %v8193, %v8189
        %v8195 = vmul.f32 1.0, %v8194
        %v8196 = vrcp.pop %v7744
        %v8197 = vmul.f32 %v7744, %v8196
        %v8198 = vsub.f32 1.0, %v8197
        %v8199 = vmul.f32 %v8196, %v8198
        %v8200 = vadd.f32 %v8196, %v8199
        %vm8201 = vweird.f32 %v7744
        %vm8202 = vweird.f32 %v8196
        %vm8203 = vmor %vm8201, %vm8202
        %v8204 = vsel %vm8203, %v8196, %v8200
        %v8205 = vand.u32 2147483647, %v7744
        %vm8206 = vcmp.eq.f32.partialorder %v8205, 8.507059e+37
        %v8207 = vand.u32 %v7744, 2147483648
        %v8208 = vor.u32 1.1754944e-38, %v8207
        %v8209 = vsel %vm8206, %v8208, %v8204
        %v8210 = vmul.f32 1.0, %v8209
        %v8211 = vrcp.pop %v7745
        %v8212 = vmul.f32 %v7745, %v8211
        %v8213 = vsub.f32 1.0, %v8212
        %v8214 = vmul.f32 %v8211, %v8213
        %v8215 = vadd.f32 %v8211, %v8214
        %vm8216 = vweird.f32 %v7745
        %vm8217 = vweird.f32 %v8211
        %vm8218 = vmor %vm8216, %vm8217
        %v8219 = vsel %vm8218, %v8211, %v8215
        %v8220 = vand.u32 2147483647, %v7745
        %vm8221 = vcmp.eq.f32.partialorder %v8220, 8.507059e+37
        %v8222 = vand.u32 %v7745, 2147483648
        %v8223 = vor.u32 1.1754944e-38, %v8222
        %v8224 = vsel %vm8221, %v8223, %v8219
        %v8225 = vmul.f32 1.0, %v8224
        %v8226 = vmul.f32 %v7586, %v7760
        %v8227 = vmul.f32 %v7587, %v7775
        %v8228 = vmul.f32 %v7588, %v7790
        %v8229 = vmul.f32 %v7589, %v7805
        %v8230 = vmul.f32 %v7590, %v7820
        %v8231 = vmul.f32 %v7591, %v7835
        %v8232 = vmul.f32 %v7592, %v7850
        %v8233 = vmul.f32 %v7593, %v7865
        %v8234 = vmul.f32 %v7594, %v7880
        %v8235 = vmul.f32 %v7595, %v7895
        %v8236 = vmul.f32 %v7596, %v7910
        %v8237 = vmul.f32 %v7597, %v7925
        %v8238 = vmul.f32 %v7598, %v7940
        %v8239 = vmul.f32 %v7599, %v7955
        %v8240 = vmul.f32 %v7600, %v7970
        %v8241 = vmul.f32 %v7601, %v7985
        %v8242 = vmul.f32 %v7602, %v8000
        %v8243 = vmul.f32 %v7603, %v8015
        %v8244 = vmul.f32 %v7604, %v8030
        %v8245 = vmul.f32 %v7605, %v8045
        %v8246 = vmul.f32 %v7606, %v8060
        %v8247 = vmul.f32 %v7607, %v8075
        %v8248 = vmul.f32 %v7608, %v8090
        %v8249 = vmul.f32 %v7609, %v8105
        %v8250 = vmul.f32 %v7610, %v8120
        %v8251 = vmul.f32 %v7611, %v8135
        %v8252 = vmul.f32 %v7612, %v8150
        %v8253 = vmul.f32 %v7613, %v8165
        %v8254 = vmul.f32 %v7614, %v8180
        %v8255 = vmul.f32 %v7615, %v8195
        %v8256 = vmul.f32 %v7616, %v8210
        %v8257 = vmul.f32 %v7617, %v8225
        %8258 = vst [vmem:[%s244] sm:$0xff] %v8226
        %8259 = vst [vmem:[%s244 + $0x8] sm:$0xff] %v8227
        %8260 = vst [vmem:[%s244 + $0x10] sm:$0xff] %v8228
        %8261 = vst [vmem:[%s244 + $0x18] sm:$0xff] %v8229
        %8262 = vst [vmem:[%s244 + $0x20] sm:$0xff] %v8230
        %8263 = vst [vmem:[%s244 + $0x28] sm:$0xff] %v8231
        %8264 = vst [vmem:[%s244 + $0x30] sm:$0xff] %v8232
        %8265 = vst [vmem:[%s244 + $0x38] sm:$0xff] %v8233
        %8266 = vst [vmem:[%s244 + $0x40] sm:$0xff] %v8234
        %8267 = vst [vmem:[%s244 + $0x48] sm:$0xff] %v8235
        %8268 = vst [vmem:[%s244 + $0x50] sm:$0xff] %v8236
        %8269 = vst [vmem:[%s244 + $0x58] sm:$0xff] %v8237
        %8270 = vst [vmem:[%s244 + $0x60] sm:$0xff] %v8238
        %8271 = vst [vmem:[%s244 + $0x68] sm:$0xff] %v8239
        %8272 = vst [vmem:[%s244 + $0x70] sm:$0xff] %v8240
        %8273 = vst [vmem:[%s244 + $0x78] sm:$0xff] %v8241
        %8274 = vst [vmem:[%s244 + $0x80] sm:$0xff] %v8242
        %8275 = vst [vmem:[%s244 + $0x88] sm:$0xff] %v8243
        %8276 = vst [vmem:[%s244 + $0x90] sm:$0xff] %v8244
        %8277 = vst [vmem:[%s244 + $0x98] sm:$0xff] %v8245
        %8278 = vst [vmem:[%s244 + $0xa0] sm:$0xff] %v8246
        %8279 = vst [vmem:[%s244 + $0xa8] sm:$0xff] %v8247
        %8280 = vst [vmem:[%s244 + $0xb0] sm:$0xff] %v8248
        %8281 = vst [vmem:[%s244 + $0xb8] sm:$0xff] %v8249
        %8282 = vst [vmem:[%s244 + $0xc0] sm:$0xff] %v8250
        %8283 = vst [vmem:[%s244 + $0xc8] sm:$0xff] %v8251
        %8284 = vst [vmem:[%s244 + $0xd0] sm:$0xff] %v8252
        %8285 = vst [vmem:[%s244 + $0xd8] sm:$0xff] %v8253
        %8286 = vst [vmem:[%s244 + $0xe0] sm:$0xff] %v8254
        %8287 = vst [vmem:[%s244 + $0xe8] sm:$0xff] %v8255
        %8288 = vst [vmem:[%s244 + $0xf0] sm:$0xff] %v8256
        %8289 = vst [vmem:[%s244 + $0xf8] sm:$0xff] %v8257
        %s8290 = sand.u32 %s159, 1
        %s8291 = scalar_lea.sflag [#allocation3], %s8290
        %s8292 = sand.u32 %s159, 1
        %s8293 = smul.addr %s8292, 256
        %s8294 = scalar_lea.vmem [#allocation2], %s8293
        // Predicated region
        $region45: #{tpu_custom_call.1} parent=43 // pred_check
          %p8295 = pneg %p169
        $region46: #{tpu_custom_call.1} parent=43 // pred_check_branch
          %8297 = sbr.rel (%p8295) target = $region48
        $region47: #{tpu_custom_call.1} parent=43 // pred_region
          %8299 = vsyncadd %s8291, 0
          %s8300 = smul.addr %s20, 32
          %s8301 = smul.addr %s8300, 8
          %s8302 = scalar_lea.hbm %s6, %s8301
          %s8303 = sshll.u32 %s8294, 4
          %s8304 = int_to_ptr.vmem [resolvable:$true] %s8303
          %s8305 = sshll.u32 %s8302, 4
          %s8306 = int_to_ptr.hbm [resolvable:$true] %s8305
          %8311 = dma.vmem_to_hbm [thread:$0]  %s8304, 4096, %s8306, %s8291, 128, 128, 8
        $region48: #{tpu_custom_call.1} parent=43 // pred_fallthru
          _
      $region44: #{tpu_custom_call.1} parent=5 // pred_fallthru
        _
      %p8312 = scmp.le.s32.totalorder 2, %s15
      // Predicated region
      $region49: #{tpu_custom_call.1} parent=5 // pred_check
        %p8313 = pneg %p8312
      $region50: #{tpu_custom_call.1} parent=5 // pred_check_branch
        %8315 = sbr.rel (%p8313) target = $region52
      $region51: #{tpu_custom_call.1} parent=5 // pred_region
        %s8316 = ssub.s32 %s15, 2
        // Predicated region
        $region53: #{tpu_custom_call.1} parent=51 // pred_check
          %p8317 = pneg %p175
        $region54: #{tpu_custom_call.1} parent=51 // pred_check_branch
          %8319 = sbr.rel (%p8317) target = $region56
        $region55: #{tpu_custom_call.1} parent=51 // pred_region
          %s8320 = sand.u32 %s160, 1
          %s8321 = scalar_lea.sflag [#allocation3], %s8320
          %s8322 = sand.u32 %s160, 1
          %s8323 = smul.addr %s8322, 256
          %s8324 = scalar_lea.vmem [#allocation2], %s8323
          %8326 = dma.done %s8321, 4096
        $region56: #{tpu_custom_call.1} parent=51 // pred_fallthru
          _
      $region52: #{tpu_custom_call.1} parent=5 // pred_fallthru
        _
    $region6: #{tpu_custom_call.1} parent=1 // loop_footer
      %s19 = sadd.s32 1, %s15
    $region7: #{tpu_custom_call.1} parent=1 // loop_footer_branch
      %14 = sbr.rel target = $region3
    $region8: #{tpu_custom_call.1} parent=1 // loop_exit
      _
    %8327 = vsyncpa [#allocation3], 1
    %s8328 = scalar_lea.sflag [#allocation3], 1
    %8329 = vsyncpa %s8328, 1

</llo_original>
